<compile_context>
chip_gen: v6e
topology: v6e:2x2x1
jax: 0.10.0
libtpu: 0.0.40
codegen_flags: <defaults>
</compile_context>

<pallas_src>
import functools

import jax
import jax.numpy as jnp
from jax.experimental import pallas as pl
from jax.experimental.pallas import tpu as pltpu

EPS = 1e-5            # nn.BatchNorm3d default eps
LEAKY_SLOPE = 0.01    # nn.LeakyReLU default negative_slope

_SMEM_SPEC = pl.BlockSpec(memory_space=pltpu.MemorySpace.SMEM)


def _vmem_limit_bytes():
    # Generation-aware scoped-VMEM request (v5e/v6e: 128 MiB physical,
    # v7x: 64 MiB).  Fallback is safe on every generation.
    try:
        cap = int(pltpu.get_tpu_info().vmem_capacity_bytes)
    except Exception:
        cap = 64 << 20
    return int(min(cap, 128 << 20) * 3 // 4)


_VMEM_LIMIT = _vmem_limit_bytes()


def _compiler_params(dims):
    return pltpu.CompilerParams(dimension_semantics=dims,
                                vmem_limit_bytes=_VMEM_LIMIT)


def _row_tile(m, bytes_per_row, *, max_rows=1024):
    """Row tile for the 1x1x1-conv kernels: as large as the VMEM budget allows
    (HBM-bound kernels want big tiles), 8-aligned unless it covers all rows.
    Non-divisible row counts are handled with a cdiv grid + masked tail."""
    budget = _VMEM_LIMIT // 8
    t = min(m, max_rows)
    while t > 8 and t * bytes_per_row > budget:
        t //= 2
    if t >= m:
        return m                      # single full block (alignment exempt)
    return max(8, (t // 8) * 8)


def _plane_row_tile(H, W, *, max_rows=256):
    """Output H-rows per grid step of the fused grouped conv.  Bounds the f32
    accumulator to ~max_rows x C while keeping the output block 8-aligned."""
    if H * W <= max_rows:
        return H
    for tr in range(H - 1, 0, -1):
        if H % tr == 0 and tr * W <= max_rows and (tr * W) % 8 == 0:
            return tr
    return H   # no aligned divisor: fall back to one whole plane per step


def _fold_bn(bn):
    scale = bn["gamma"] / jnp.sqrt(bn["var"] + EPS)
    bias = bn["beta"] - bn["mean"] * scale
    return scale, bias


# ----------------------------- Pallas kernels -----------------------------

def _mm_bias_act_kernel(alpha_ref, x_ref, w_ref, b_ref, o_ref, *, act):
    # (tm, K)bf16 @ (K, C)bf16 on the MXU, f32 accumulate, f32 epilogue.
    y = jnp.dot(x_ref[...], w_ref[...], preferred_element_type=jnp.float32)
    y = y + b_ref[...]
    if act:
        a = alpha_ref[0]
        y = jnp.where(y >= 0, y, a * y)          # PReLU (single shared alpha)
    o_ref[...] = y.astype(o_ref.dtype)


def matmul_bias_act(x, w, bias, alpha, *, act=True):
    """(M, K) @ (K, Cout) + bias, optionally followed by PReLU.  bf16 in/out."""
    M, K = x.shape
    Cout = w.shape[1]
    tm = _row_tile(M, bytes_per_row=2 * K + 2 * Cout)
    kern = functools.partial(_mm_bias_act_kernel, act=act)
    return pl.pallas_call(
        kern,
        out_shape=jax.ShapeDtypeStruct((M, Cout), jnp.bfloat16),
        grid=(pl.cdiv(M, tm),),
        in_specs=[
            _SMEM_SPEC,                                        # alpha (scalar)
            pl.BlockSpec((tm, K), lambda i: (i, 0)),
            pl.BlockSpec((K, Cout), lambda i: (0, 0)),
            pl.BlockSpec((1, Cout), lambda i: (0, 0)),
        ],
        out_specs=pl.BlockSpec((tm, Cout), lambda i: (i, 0)),
        compiler_params=_compiler_params(("parallel",)),
    )(jnp.asarray(alpha, jnp.float32).reshape(1), x, w, bias.reshape(1, -1))


def _grouped_conv3x3_kernel(alpha_ref, xd0_ref, xd1_ref, xd2_ref, w_ref, b_ref,
                            o_ref, *, W, tq, n_rt):
    # One (n, d, r) grid step computes a (tq, C) output slab by accumulating the
    # 27 taps from three resident depth slabs.  The slabs are flattened padded
    # planes (rows, C) so every tap is a pure row-window load (no reshape /
    # relayout); the conv's W zero-padding is realised with row masks.
    C = w_ref.shape[1]
    aligned_tiles = (n_rt > 1) and (tq % 8 == 0)
    if n_rt == 1:
        q0 = 0                                      # fully static addressing
    else:
        q0 = pl.program_id(2) * tq
        if aligned_tiles:
            q0 = pl.multiple_of(q0, 8)

    # Row masks for the kw taps that fall off the (unpadded) W edge.
    w_idx = jax.lax.broadcasted_iota(jnp.int32, (tq, 1), 0) % W
    mask_w0 = w_idx != 0            # kw == 0: output col w=0 has no left input
    mask_w2 = w_idx != (W - 1)      # kw == 2: output col w=W-1 has no right input

    acc = jnp.zeros((tq, C), jnp.float32)
    for kd, x_ref in enumerate((xd0_ref, xd1_ref, xd2_ref)):
        for kh in range(3):
            for kw in range(3):
                off = (kh + 1) * W + (kw - 1)       # flat-row shift of this tap
                if n_rt == 1:
                    patch = x_ref[0, 0, off:off + tq, :]
                elif aligned_tiles:
                    # keep the dynamic part of the row offset 8-aligned; the
                    # static remainder becomes a cheap value slice.
                    a0, rem = (off // 8) * 8, off % 8
                    win = x_ref[0, 0, pl.ds(q0 + a0, tq + 8), :]
                    patch = win[rem:rem + tq, :]
                else:
                    patch = x_ref[0, 0, pl.ds(q0 + off, tq), :]
                if kw == 0:
                    patch = jnp.where(mask_w0, patch, 0)
                elif kw == 2:
                    patch = jnp.where(mask_w2, patch, 0)
                acc = acc + jnp.dot(patch, w_ref[kd * 9 + kh * 3 + kw],
                                    preferred_element_type=jnp.float32)

    y = acc + b_ref[...]
    a = alpha_ref[0]
    y = jnp.where(y >= 0, y, a * y)
    o_ref[0, 0] = y.astype(o_ref.dtype)


def grouped_conv2_fused(x1, w_bd, bias, alpha):
    """3x3x3 grouped conv (stride 1, padding 1) + bias + PReLU.

    x1:   (N, D, H, W, C) channels-last bf16 activations
    w_bd: (27, C, C) bf16 per-tap block-diagonal weights (BN scale pre-folded)
    Returns (N, D, H*W, C) bf16 -- lane-dense last dim (full C, not C/groups).
    """
    N, D, H, W, C = x1.shape
    S_plane = H * W
    tr = _plane_row_tile(H, W)
    tq, n_rt = tr * W, H // tr

    # Single bf16 pad: depth halo of one plane each side + flat-row halos that
    # realise the H zero-padding (2W rows top / 2W+8 rows bottom so every tap
    # window of every row tile stays in bounds).  W is NOT padded (masks above).
    xf = x1.reshape(N, D, S_plane, C)
    xp = jnp.pad(xf, ((0, 0), (1, 1), (2 * W, 2 * W + 8), (0, 0)))
    P_slab = S_plane + 4 * W + 8

    def _slab_spec(kd):
        def idx(n, d, r):
            return (n, d + kd, 0, 0)       # overlapping 1-deep depth slabs
        return pl.BlockSpec((1, 1, P_slab, C), idx)

    # TODO(synk): for very large C_mid the (27, C, C) block-diag weights should
    # be tiled over taps / output channels (or true per-group dots used) instead
    # of being held fully resident.
    kern = functools.partial(_grouped_conv3x3_kernel, W=W, tq=tq, n_rt=n_rt)
    return pl.pallas_call(
        kern,
        out_shape=jax.ShapeDtypeStruct((N, D, S_plane, C), jnp.bfloat16),
        grid=(N, D, n_rt),
        in_specs=[
            _SMEM_SPEC,                                                  # alpha
            _slab_spec(0), _slab_spec(1), _slab_spec(2),
            pl.BlockSpec((27, C, C), lambda n, d, r: (0, 0, 0)),
            pl.BlockSpec((1, C), lambda n, d, r: (0, 0)),
        ],
        out_specs=pl.BlockSpec((1, 1, tq, C), lambda n, d, r: (n, d, r, 0)),
        compiler_params=_compiler_params(("parallel", "parallel", "arbitrary")),
    )(jnp.asarray(alpha, jnp.float32).reshape(1), xp, xp, xp,
      w_bd, bias.reshape(1, -1))


def _mm_bias_pool_kernel(x_ref, w_ref, b_ref, y_ref, p_ref, *, valid_rows):
    # conv3 + bn3 bias, plus a fused per-batch channel-sum accumulator feeding
    # the SE global average pool (no extra pass over the activations).
    s = pl.program_id(1)
    y = jnp.dot(x_ref[0], w_ref[...], preferred_element_type=jnp.float32)
    y = y + b_ref[...]
    y_ref[0] = y.astype(y_ref.dtype)

    @pl.when(s == 0)
    def _():
        p_ref[...] = jnp.zeros_like(p_ref)

    if valid_rows is not None:          # ragged tail: keep OOB rows out of sum
        ts = y.shape[0]
        rows = s * ts + jax.lax.broadcasted_iota(jnp.int32, (ts, 1), 0)
        y = jnp.where(rows < valid_rows, y, 0.0)
    p_ref[...] += jnp.sum(y, axis=0, keepdims=True)[None]


def matmul_bias_pool(x3, w, bias):
    """x3: (N, S, K) @ (K, C) + bias; also returns per-batch channel sums."""
    N, S, K = x3.shape
    C = w.shape[1]
    ts = _row_tile(S, bytes_per_row=2 * K + 2 * C + 4 * C)
    valid = S if S % ts else None
    kern = functools.partial(_mm_bias_pool_kernel, valid_rows=valid)
    return pl.pallas_call(
        kern,
        out_shape=(jax.ShapeDtypeStruct((N, S, C), jnp.bfloat16),
                   jax.ShapeDtypeStruct((N, 1, C), jnp.float32)),
        grid=(N, pl.cdiv(S, ts)),
        in_specs=[
            pl.BlockSpec((1, ts, K), lambda n, s: (n, s, 0)),
            pl.BlockSpec((K, C), lambda n, s: (0, 0)),
            pl.BlockSpec((1, C), lambda n, s: (0, 0)),
        ],
        out_specs=(pl.BlockSpec((1, ts, C), lambda n, s: (n, s, 0)),
                   pl.BlockSpec((1, 1, C), lambda n, s: (n, 0, 0))),
        compiler_params=_compiler_params(("parallel", "arbitrary")),
    )(x3, w, bias.reshape(1, -1))


def _se_scale_residual_kernel(alpha_ref, x_ref, g_ref, xr_ref, w_ref, b_ref, o_ref):
    # residual 1x1x1 conv (+ bn bias) computed in-kernel, then
    # y = PReLU(conv3_out * se_gate + residual)
    res = jnp.dot(xr_ref[0], w_ref[...], preferred_element_type=jnp.float32)
    res = res + b_ref[...]
    y = x_ref[0].astype(jnp.float32) * g_ref[0] + res
    a = alpha_ref[0]
    o_ref[0] = jnp.where(y >= 0, y, a * y).astype(o_ref.dtype)


def se_scale_residual_act(x3, gate, xr, wr, br, alpha):
    N, S, C = x3.shape
    Cin = xr.shape[-1]
    ts = _row_tile(S, bytes_per_row=2 * C + 2 * Cin + 4 * C)
    return pl.pallas_call(
        _se_scale_residual_kernel,
        out_shape=jax.ShapeDtypeStruct((N, S, C), jnp.float32),
        grid=(N, pl.cdiv(S, ts)),
        in_specs=[
            _SMEM_SPEC,                                                  # alpha
            pl.BlockSpec((1, ts, C), lambda n, s: (n, s, 0)),
            pl.BlockSpec((1, 1, C), lambda n, s: (n, 0, 0)),
            pl.BlockSpec((1, ts, Cin), lambda n, s: (n, s, 0)),
            pl.BlockSpec((Cin, C), lambda n, s: (0, 0)),
            pl.BlockSpec((1, C), lambda n, s: (0, 0)),
        ],
        out_specs=pl.BlockSpec((1, ts, C), lambda n, s: (n, s, 0)),
        compiler_params=_compiler_params(("parallel", "parallel")),
    )(jnp.asarray(alpha, jnp.float32).reshape(1),
      x3, gate.reshape(N, 1, C).astype(jnp.float32), xr, wr, br.reshape(1, -1))


# ----------------------------- Forward pass -----------------------------

def senet_bottleneck_pallas(x_ncdhw, params, *, stride, cardinality):
    # TODO(synk): when composing with other channels-last blocks, keep NDHWC
    # end-to-end and drop these boundary transposes (full-tensor HBM traffic).
    x = jnp.transpose(x_ncdhw, (0, 2, 3, 4, 1)).astype(jnp.float32)   # NDHWC
    N, D, H, W, Cin = x.shape
    C_mid = params["w_conv1"].shape[1]
    C_out = params["w_conv3"].shape[1]
    G = cardinality
    Cg = C_mid // G
    alpha = params["alpha"]

    s1, b1 = _fold_bn(params["bn1"])
    s2, b2 = _fold_bn(params["bn2"])
    s3, b3 = _fold_bn(params["bn3"])
    sr, br = _fold_bn(params["bn_res"])

    bf = jnp.bfloat16
    xb = x.astype(bf)

    # fold BN scales into the conv weights (epilogues only add the bias)
    w1f = (params["w_conv1"] * s1[None, :]).astype(bf)
    w3f = (params["w_conv3"] * s3[None, :]).astype(bf)

    # per-tap block-diagonal weights for the grouped 3x3x3 conv -> lane-dense
    # output (last dim = C_mid instead of Cg per group)
    w2 = params["w_conv2"]                                   # (G, 3, 3, 3, Cg, Cg)
    w2r = jnp.transpose(w2, (1, 2, 3, 0, 4, 5)).reshape(27, G, Cg, Cg)
    eye = jnp.eye(G, dtype=w2.dtype)
    w2bd = jnp.einsum("tgic,gh->tgihc", w2r, eye).reshape(27, C_mid, C_mid)
    w2bd = (w2bd * s2[None, None, :]).astype(bf)

    # conv1 (1x1x1) + bn1 + PReLU -- one lane-dense bf16 matmul over all voxels
    out1 = matmul_bias_act(xb.reshape(N * D * H * W, Cin), w1f, b1, alpha, act=True)
    x1 = out1.reshape(N, D, H, W, C_mid)

    s = stride
    Do = (D - 1) // s + 1
    Ho = (H - 1) // s + 1
    Wo = (W - 1) // s + 1
    S2 = Do * Ho * Wo

    if s == 1:
        # conv2: grouped 3x3x3, 27 taps accumulated in-kernel (no HBM im2col)
        x2 = grouped_conv2_fused(x1, w2bd, b2, alpha).reshape(N, S2, C_mid)
    else:
        # TODO(synk): stride>1 still materializes im2col patches in HBM; only
        # the stride==1 path does the 27 taps fully in-kernel.
        xp5 = jnp.pad(x1, ((0, 0), (1, 1), (1, 1), (1, 1), (0, 0)))
        cols = []
        for kd in range(3):
            for kh in range(3):
                for kw in range(3):
                    cols.append(xp5[:,
                                    kd:kd + (Do - 1) * s + 1:s,
                                    kh:kh + (Ho - 1) * s + 1:s,
                                    kw:kw + (Wo - 1) * s + 1:s, :])
        patches = jnp.stack(cols, axis=-2).reshape(N * S2, 27 * C_mid)
        out2 = matmul_bias_act(patches, w2bd.reshape(27 * C_mid, C_mid),
                               b2, alpha, act=True)
        x2 = out2.reshape(N, S2, C_mid)

    # conv3 (1x1x1) + bn3, with the SE average pool fused in as channel sums
    x3, psum = matmul_bias_pool(x2, w3f, b3)                 # (N,S2,C_out), (N,1,C_out)

    # SE gate on (N, C_out) in plain JAX -- a pallas_call launch would dwarf it
    pooled = psum.reshape(N, C_out) / jnp.float32(S2)
    h1 = pooled @ params["se_w1"] + params["se_b1"]
    h1 = jnp.where(h1 >= 0, h1, LEAKY_SLOPE * h1)
    gate = jax.nn.sigmoid(h1 @ params["se_w2"] + params["se_b2"])    # (N, C_out)

    # residual branch (1x1x1 conv + bn) fused into the final
    # SE-scale + add + PReLU kernel: no full-size residual intermediate in HBM
    if s != 1:
        xr = xb[:, ::s, ::s, ::s, :].reshape(N, S2, Cin)
        wrf = (params["w_down"] * sr[None, :]).astype(bf)
    else:
        xr = xb.reshape(N, S2, Cin)
        wrf = (params["w_res_conv"] * sr[None, :]).astype(bf)
    y = se_scale_residual_act(x3, gate, xr, wrf, br, alpha)  # (N, S2, C_out) f32

    y = y.reshape(N, Do, Ho, Wo, C_out)
    return jnp.transpose(y, (0, 4, 1, 2, 3))                 # back to NCDHW


# ----------------------------- Parameters -----------------------------

def _bn_init(key, c):
    k1, k2, k3, k4 = jax.random.split(key, 4)
    return {
        "gamma": 1.0 + 0.1 * jax.random.normal(k1, (c,), jnp.float32),
        "beta": 0.1 * jax.random.normal(k2, (c,), jnp.float32),
        "mean": 0.1 * jax.random.normal(k3, (c,), jnp.float32),
        "var": jax.random.uniform(k4, (c,), jnp.float32, 0.5, 1.5),
    }


def init_params(key, inplanes, out_planes, cardinality, expansion, reduction):
    C_mid = out_planes
    C_out = out_planes * expansion
    Cg = C_mid // cardinality
    Cr = C_out // reduction
    ks = jax.random.split(key, 13)

    def w(k, shape, fan_in):
        return jax.random.normal(k, shape, jnp.float32) / jnp.sqrt(float(fan_in))

    return {
        "w_conv1": w(ks[0], (inplanes, C_mid), inplanes),
        "bn1": _bn_init(ks[1], C_mid),
        "w_conv2": w(ks[2], (cardinality, 3, 3, 3, Cg, Cg), 27 * Cg),
        "bn2": _bn_init(ks[3], C_mid),
        "w_conv3": w(ks[4], (C_mid, C_out), C_mid),
        "bn3": _bn_init(ks[5], C_out),
        "alpha": jnp.float32(0.25),          # PReLU default init
        "se_w1": w(ks[6], (C_out, Cr), C_out),
        "se_b1": 0.1 * jax.random.normal(ks[7], (Cr,), jnp.float32),
        "se_w2": w(ks[8], (Cr, C_out), Cr),
        "se_b2": 0.1 * jax.random.normal(ks[9], (C_out,), jnp.float32),
        "w_down": w(ks[10], (inplanes, C_out), inplanes),
        "w_res_conv": w(ks[11], (inplanes, C_out), inplanes),
        "bn_res": _bn_init(ks[12], C_out),
    }


# ----------------------------- Pure-JAX reference -----------------------------

def reference_forward(x_ncdhw, params, *, stride, cardinality):
    # Full-f32 reference; the Pallas path feeds the MXU bf16 inputs, so the
    # comparison tolerance below accounts for bf16-level rounding.
    x = jnp.transpose(x_ncdhw, (0, 2, 3, 4, 1)).astype(jnp.float32)

    def bn(y, p):
        sc = p["gamma"] / jnp.sqrt(p["var"] + EPS)
        return y * sc + (p["beta"] - p["mean"] * sc)

    def prelu(y):
        return jnp.where(y >= 0, y, params["alpha"] * y)

    out = jnp.einsum("ndhwc,co->ndhwo", x, params["w_conv1"])
    out = prelu(bn(out, params["bn1"]))

    G = cardinality
    w2 = params["w_conv2"]
    Cg = w2.shape[-1]
    rhs = jnp.transpose(w2, (1, 2, 3, 4, 0, 5)).reshape(3, 3, 3, Cg, G * Cg)
    out = jax.lax.conv_general_dilated(
        out, rhs, window_strides=(stride,) * 3, padding=((1, 1),) * 3,
        dimension_numbers=("NDHWC", "DHWIO", "NDHWC"),
        feature_group_count=G)
    out = prelu(bn(out, params["bn2"]))

    out = jnp.einsum("ndhwc,co->ndhwo", out, params["w_conv3"])
    out = bn(out, params["bn3"])

    y = jnp.mean(out, axis=(1, 2, 3))
    y = y @ params["se_w1"] + params["se_b1"]
    y = jnp.where(y >= 0, y, LEAKY_SLOPE * y)
    y = jax.nn.sigmoid(y @ params["se_w2"] + params["se_b2"])
    out = out * y[:, None, None, None, :]

    if stride != 1:
        res = jnp.einsum("ndhwc,co->ndhwo",
                         x[:, ::stride, ::stride, ::stride, :], params["w_down"])
    else:
        res = jnp.einsum("ndhwc,co->ndhwo", x, params["w_res_conv"])
    res = bn(res, params["bn_res"])

    out = prelu(out + res)
    return jnp.transpose(out, (0, 4, 1, 2, 3))


# ----------------------------- Main -----------------------------

if __name__ == "__main__":
    key = jax.random.PRNGKey(0)
    kx, kp = jax.random.split(key)

    N, inplanes, D, H, W = 2, 16, 8, 8, 8
    out_planes, cardinality, stride, expansion, reduction = 32, 4, 1, 2, 16

    x = jax.random.normal(kx, (N, inplanes, D, H, W), jnp.float32)
    params = init_params(kp, inplanes, out_planes, cardinality, expansion, reduction)

    fwd = jax.jit(functools.partial(senet_bottleneck_pallas,
                                    stride=stride, cardinality=cardinality))
    out = fwd(x, params)
    jax.block_until_ready(out)

    assert out.shape == (N, out_planes * expansion, D, H, W), out.shape
    ref = reference_forward(x, params, stride=stride, cardinality=cardinality)
    err = float(jnp.max(jnp.abs(out - ref)))
    tol = 5e-2 * (1.0 + float(jnp.max(jnp.abs(ref))))   # bf16 MXU inputs
    if err > tol:
        raise AssertionError(f"mismatch vs reference: max abs err = {err} (tol {tol})")

    print("KERNEL_OK")
</pallas_src>

<mosaic_0001>
module attributes {stable_mosaic.version = 11 : i64} {
  func.func @_mm_bias_act_kernel(%arg0: i32, %arg1: memref<1xf32, #tpu.memory_space<smem>>, %arg2: memref<1024x16xbf16, #tpu.memory_space<vmem>>, %arg3: memref<16x32xbf16, #tpu.memory_space<vmem>>, %arg4: memref<1x32xf32, #tpu.memory_space<vmem>>, %arg5: memref<1024x32xbf16, #tpu.memory_space<vmem>>) attributes {dimension_semantics = [#tpu.dimension_semantics<parallel>], iteration_bounds = array<i64: 1>, scalar_prefetch = 0 : i64, scratch_operands = 0 : i64, tpu.core_type = #tpu.core_type<tc>, window_params = [{transform_indices = @transform_0, window_bounds = array<i64: 1>}, {transform_indices = @transform_1, window_bounds = array<i64: 1024, 16>}, {pipeline_mode = #tpu.pipeline_mode<synchronous>, transform_indices = @transform_2, window_bounds = array<i64: 16, 32>}, {pipeline_mode = #tpu.pipeline_mode<synchronous>, transform_indices = @transform_3, window_bounds = array<i64: 1, 32>}, {transform_indices = @transform_4, window_bounds = array<i64: 1024, 32>}]} {
    %c0 = arith.constant 0 : index
    %c0_0 = arith.constant 0 : index
    %0 = vector.load %arg2[%c0, %c0_0] : memref<1024x16xbf16, #tpu.memory_space<vmem>>, vector<1024x16xbf16>
    %c0_1 = arith.constant 0 : index
    %c0_2 = arith.constant 0 : index
    %1 = vector.load %arg3[%c0_1, %c0_2] : memref<16x32xbf16, #tpu.memory_space<vmem>>, vector<16x32xbf16>
    %cst = arith.constant dense<0.000000e+00> : vector<1024x32xf32>
    %2 = tpu.matmul %0, %1, %cst {dimension_numbers = #tpu.dot_dimension_numbers<[1], [0], [0], [1], [0, 0, 1, 1], [], []>} : vector<1024x16xbf16>, vector<16x32xbf16>, vector<1024x32xf32> -> vector<1024x32xf32>
    %c0_3 = arith.constant 0 : index
    %c0_4 = arith.constant 0 : index
    %3 = vector.load %arg4[%c0_3, %c0_4] : memref<1x32xf32, #tpu.memory_space<vmem>>, vector<1x32xf32>
    %4 = vector.broadcast %3 : vector<1x32xf32> to vector<1024x32xf32>
    %5 = arith.addf %2, %4 : vector<1024x32xf32>
    %c0_5 = arith.constant 0 : index
    %6 = memref.load %arg1[%c0_5] : memref<1xf32, #tpu.memory_space<smem>>
    %cst_6 = arith.constant 0.000000e+00 : f32
    %7 = vector.broadcast %cst_6 : f32 to vector<1024x32xf32>
    %8 = arith.cmpf oge, %5, %7 : vector<1024x32xf32>
    %9 = vector.broadcast %6 : f32 to vector<1024x32xf32>
    %10 = arith.mulf %9, %5 : vector<1024x32xf32>
    %11 = arith.select %8, %5, %10 : vector<1024x32xi1>, vector<1024x32xf32>
    %12 = arith.truncf %11 : vector<1024x32xf32> to vector<1024x32xbf16>
    %c0_7 = arith.constant 0 : index
    %c0_8 = arith.constant 0 : index
    %13 = vector.load %arg5[%c0_7, %c0_8] : memref<1024x32xbf16, #tpu.memory_space<vmem>>, vector<1024x32xbf16>
    tpu.vector_store %arg5[%c0_7, %c0_8], %12 {strides = array<i32>} : memref<1024x32xbf16, #tpu.memory_space<vmem>>, vector<1024x32xbf16>,
    return
  }
  func.func @transform_0(%arg0: i32) -> i32 {
    %c0_i32 = arith.constant 0 : i32
    %c0_i32_0 = arith.constant 0 : i32
    return %c0_i32 : i32
  }
  func.func @transform_1(%arg0: i32) -> (i32, i32) {
    %c0_i32 = arith.constant 0 : i32
    %c0_i32_0 = arith.constant 0 : i32
    return %arg0, %c0_i32 : i32, i32
  }
  func.func @transform_2(%arg0: i32) -> (i32, i32) {
    %c0_i32 = arith.constant 0 : i32
    %c0_i32_0 = arith.constant 0 : i32
    %c0_i32_1 = arith.constant 0 : i32
    return %c0_i32, %c0_i32_0 : i32, i32
  }
  func.func @transform_3(%arg0: i32) -> (i32, i32) {
    %c0_i32 = arith.constant 0 : i32
    %c0_i32_0 = arith.constant 0 : i32
    %c0_i32_1 = arith.constant 0 : i32
    return %c0_i32, %c0_i32_0 : i32, i32
  }
  func.func @transform_4(%arg0: i32) -> (i32, i32) {
    %c0_i32 = arith.constant 0 : i32
    %c0_i32_0 = arith.constant 0 : i32
    return %arg0, %c0_i32 : i32, i32
  }
}

module attributes {stable_mosaic.version = 11 : i64} {
  func.func @_grouped_conv3x3_kernel(%arg0: i32, %arg1: i32, %arg2: i32, %arg3: memref<1xf32, #tpu.memory_space<smem>>, %arg4: memref<1x1x104x32xbf16, #tpu.memory_space<vmem>>, %arg5: memref<1x1x104x32xbf16, #tpu.memory_space<vmem>>, %arg6: memref<1x1x104x32xbf16, #tpu.memory_space<vmem>>, %arg7: memref<27x32x32xbf16, #tpu.memory_space<vmem>>, %arg8: memref<1x32xf32, #tpu.memory_space<vmem>>, %arg9: memref<1x1x64x32xbf16, #tpu.memory_space<vmem>>) attributes {dimension_semantics = [#tpu.dimension_semantics<parallel>, #tpu.dimension_semantics<parallel>, #tpu.dimension_semantics<arbitrary>], iteration_bounds = array<i64: 2, 8, 1>, scalar_prefetch = 0 : i64, scratch_operands = 0 : i64, tpu.core_type = #tpu.core_type<tc>, window_params = [{transform_indices = @transform_0, window_bounds = array<i64: 1>}, {transform_indices = @transform_1, window_bounds = array<i64: 1, 1, 104, 32>}, {transform_indices = @transform_2, window_bounds = array<i64: 1, 1, 104, 32>}, {transform_indices = @transform_3, window_bounds = array<i64: 1, 1, 104, 32>}, {pipeline_mode = #tpu.pipeline_mode<synchronous>, transform_indices = @transform_4, window_bounds = array<i64: 27, 32, 32>}, {pipeline_mode = #tpu.pipeline_mode<synchronous>, transform_indices = @transform_5, window_bounds = array<i64: 1, 32>}, {transform_indices = @transform_6, window_bounds = array<i64: 1, 1, 64, 32>}]} {
    %0 = tpu.iota {dimensions = array<i32: 0>} : vector<64x1xi32>
    %c8_i32 = arith.constant 8 : i32
    %c0_i32 = arith.constant 0 : i32
    %1 = arith.cmpi eq, %c8_i32, %c0_i32 : i32
    %c1_i32 = arith.constant 1 : i32
    %2 = arith.select %1, %c1_i32, %c8_i32 : i32
    %3 = vector.broadcast %2 : i32 to vector<64x1xi32>
    %4 = arith.remsi %0, %3 : vector<64x1xi32>
    %c0_i32_0 = arith.constant 0 : i32
    %5 = vector.broadcast %c0_i32_0 : i32 to vector<64x1xi32>
    %6 = arith.cmpi ne, %4, %5 : vector<64x1xi32>
    %c0_i32_1 = arith.constant 0 : i32
    %7 = vector.broadcast %c0_i32_1 : i32 to vector<64x1xi32>
    %8 = arith.cmpi slt, %4, %7 : vector<64x1xi32>
    %c0_i32_2 = arith.constant 0 : i32
    %9 = arith.cmpi slt, %2, %c0_i32_2 : i32
    %10 = vector.broadcast %9 : i1 to vector<64x1xi1>
    %11 = vector.broadcast %10 : vector<64x1xi1> to vector<64x1xi1>
    %12 = arith.xori %8, %11 : vector<64x1xi1>
    %13 = arith.andi %12, %6 : vector<64x1xi1>
    %14 = vector.broadcast %2 : i32 to vector<64x1xi32>
    %15 = arith.addi %4, %14 : vector<64x1xi32>
    %16 = arith.select %13, %15, %4 : vector<64x1xi1>, vector<64x1xi32>
    %c0_i32_3 = arith.constant 0 : i32
    %17 = vector.broadcast %c0_i32_3 : i32 to vector<64x1xi32>
    %18 = arith.cmpi ne, %16, %17 : vector<64x1xi32>
    %c7_i32 = arith.constant 7 : i32
    %19 = vector.broadcast %c7_i32 : i32 to vector<64x1xi32>
    %20 = arith.cmpi ne, %16, %19 : vector<64x1xi32>
    %cst = arith.constant 0.000000e+00 : f32
    %21 = vector.broadcast %cst : f32 to vector<64x32xf32>
    %c0 = arith.constant 0 : index
    %c0_4 = arith.constant 0 : index
    %c7 = arith.constant 7 : index
    %c0_5 = arith.constant 0 : index
    %22 = vector.load %arg4[%c0, %c0_4, %c7, %c0_5] : memref<1x1x104x32xbf16, #tpu.memory_space<vmem>>, vector<1x1x64x32xbf16>
    %23 = vector.shape_cast %22 : vector<1x1x64x32xbf16> to vector<64x32xbf16>
    %c0_i32_6 = arith.constant 0 : i32
    %24 = arith.sitofp %c0_i32_6 : i32 to bf16
    %25 = vector.shape_cast %18 : vector<64x1xi1> to vector<64x1xi1>
    %26 = vector.broadcast %25 : vector<64x1xi1> to vector<64x32xi1>
    %27 = vector.broadcast %24 : bf16 to vector<64x32xbf16>
    %28 = arith.select %26, %23, %27 : vector<64x32xi1>, vector<64x32xbf16>
    %c0_7 = arith.constant 0 : index
    %c0_8 = arith.constant 0 : index
    %c0_9 = arith.constant 0 : index
    %29 = vector.load %arg7[%c0_7, %c0_8, %c0_9] : memref<27x32x32xbf16, #tpu.memory_space<vmem>>, vector<1x32x32xbf16>
    %30 = vector.shape_cast %29 : vector<1x32x32xbf16> to vector<32x32xbf16>
    %cst_10 = arith.constant dense<0.000000e+00> : vector<64x32xf32>
    %31 = tpu.matmul %28, %30, %cst_10 {dimension_numbers = #tpu.dot_dimension_numbers<[1], [0], [0], [1], [0, 0, 1, 1], [], []>} : vector<64x32xbf16>, vector<32x32xbf16>, vector<64x32xf32> -> vector<64x32xf32>
    %32 = arith.addf %21, %31 : vector<64x32xf32>
    %c0_11 = arith.constant 0 : index
    %c0_12 = arith.constant 0 : index
    %c8 = arith.constant 8 : index
    %c0_13 = arith.constant 0 : index
    %33 = vector.load %arg4[%c0_11, %c0_12, %c8, %c0_13] : memref<1x1x104x32xbf16, #tpu.memory_space<vmem>>, vector<1x1x64x32xbf16>
    %34 = vector.shape_cast %33 : vector<1x1x64x32xbf16> to vector<64x32xbf16>
    %c1 = arith.constant 1 : index
    %c0_14 = arith.constant 0 : index
    %c0_15 = arith.constant 0 : index
    %35 = vector.load %arg7[%c1, %c0_14, %c0_15] : memref<27x32x32xbf16, #tpu.memory_space<vmem>>, vector<1x32x32xbf16>
    %36 = vector.shape_cast %35 : vector<1x32x32xbf16> to vector<32x32xbf16>
    %cst_16 = arith.constant dense<0.000000e+00> : vector<64x32xf32>
    %37 = tpu.matmul %34, %36, %cst_16 {dimension_numbers = #tpu.dot_dimension_numbers<[1], [0], [0], [1], [0, 0, 1, 1], [], []>} : vector<64x32xbf16>, vector<32x32xbf16>, vector<64x32xf32> -> vector<64x32xf32>
    %38 = arith.addf %32, %37 : vector<64x32xf32>
    %c0_17 = arith.constant 0 : index
    %c0_18 = arith.constant 0 : index
    %c9 = arith.constant 9 : index
    %c0_19 = arith.constant 0 : index
    %39 = vector.load %arg4[%c0_17, %c0_18, %c9, %c0_19] : memref<1x1x104x32xbf16, #tpu.memory_space<vmem>>, vector<1x1x64x32xbf16>
    %40 = vector.shape_cast %39 : vector<1x1x64x32xbf16> to vector<64x32xbf16>
    %c0_i32_20 = arith.constant 0 : i32
    %41 = arith.sitofp %c0_i32_20 : i32 to bf16
    %42 = vector.shape_cast %20 : vector<64x1xi1> to vector<64x1xi1>
    %43 = vector.broadcast %42 : vector<64x1xi1> to vector<64x32xi1>
    %44 = vector.broadcast %41 : bf16 to vector<64x32xbf16>
    %45 = arith.select %43, %40, %44 : vector<64x32xi1>, vector<64x32xbf16>
    %c2 = arith.constant 2 : index
    %c0_21 = arith.constant 0 : index
    %c0_22 = arith.constant 0 : index
    %46 = vector.load %arg7[%c2, %c0_21, %c0_22] : memref<27x32x32xbf16, #tpu.memory_space<vmem>>, vector<1x32x32xbf16>
    %47 = vector.shape_cast %46 : vector<1x32x32xbf16> to vector<32x32xbf16>
    %cst_23 = arith.constant dense<0.000000e+00> : vector<64x32xf32>
    %48 = tpu.matmul %45, %47, %cst_23 {dimension_numbers = #tpu.dot_dimension_numbers<[1], [0], [0], [1], [0, 0, 1, 1], [], []>} : vector<64x32xbf16>, vector<32x32xbf16>, vector<64x32xf32> -> vector<64x32xf32>
    %49 = arith.addf %38, %48 : vector<64x32xf32>
    %c0_24 = arith.constant 0 : index
    %c0_25 = arith.constant 0 : index
    %c15 = arith.constant 15 : index
    %c0_26 = arith.constant 0 : index
    %50 = vector.load %arg4[%c0_24, %c0_25, %c15, %c0_26] : memref<1x1x104x32xbf16, #tpu.memory_space<vmem>>, vector<1x1x64x32xbf16>
    %51 = vector.shape_cast %50 : vector<1x1x64x32xbf16> to vector<64x32xbf16>
    %c0_i32_27 = arith.constant 0 : i32
    %52 = arith.sitofp %c0_i32_27 : i32 to bf16
    %53 = vector.shape_cast %18 : vector<64x1xi1> to vector<64x1xi1>
    %54 = vector.broadcast %53 : vector<64x1xi1> to vector<64x32xi1>
    %55 = vector.broadcast %52 : bf16 to vector<64x32xbf16>
    %56 = arith.select %54, %51, %55 : vector<64x32xi1>, vector<64x32xbf16>
    %c3 = arith.constant 3 : index
    %c0_28 = arith.constant 0 : index
    %c0_29 = arith.constant 0 : index
    %57 = vector.load %arg7[%c3, %c0_28, %c0_29] : memref<27x32x32xbf16, #tpu.memory_space<vmem>>, vector<1x32x32xbf16>
    %58 = vector.shape_cast %57 : vector<1x32x32xbf16> to vector<32x32xbf16>
    %cst_30 = arith.constant dense<0.000000e+00> : vector<64x32xf32>
    %59 = tpu.matmul %56, %58, %cst_30 {dimension_numbers = #tpu.dot_dimension_numbers<[1], [0], [0], [1], [0, 0, 1, 1], [], []>} : vector<64x32xbf16>, vector<32x32xbf16>, vector<64x32xf32> -> vector<64x32xf32>
    %60 = arith.addf %49, %59 : vector<64x32xf32>
    %c0_31 = arith.constant 0 : index
    %c0_32 = arith.constant 0 : index
    %c16 = arith.constant 16 : index
    %c0_33 = arith.constant 0 : index
    %61 = vector.load %arg4[%c0_31, %c0_32, %c16, %c0_33] : memref<1x1x104x32xbf16, #tpu.memory_space<vmem>>, vector<1x1x64x32xbf16>
    %62 = vector.shape_cast %61 : vector<1x1x64x32xbf16> to vector<64x32xbf16>
    %c4 = arith.constant 4 : index
    %c0_34 = arith.constant 0 : index
    %c0_35 = arith.constant 0 : index
    %63 = vector.load %arg7[%c4, %c0_34, %c0_35] : memref<27x32x32xbf16, #tpu.memory_space<vmem>>, vector<1x32x32xbf16>
    %64 = vector.shape_cast %63 : vector<1x32x32xbf16> to vector<32x32xbf16>
    %cst_36 = arith.constant dense<0.000000e+00> : vector<64x32xf32>
    %65 = tpu.matmul %62, %64, %cst_36 {dimension_numbers = #tpu.dot_dimension_numbers<[1], [0], [0], [1], [0, 0, 1, 1], [], []>} : vector<64x32xbf16>, vector<32x32xbf16>, vector<64x32xf32> -> vector<64x32xf32>
    %66 = arith.addf %60, %65 : vector<64x32xf32>
    %c0_37 = arith.constant 0 : index
    %c0_38 = arith.constant 0 : index
    %c17 = arith.constant 17 : index
    %c0_39 = arith.constant 0 : index
    %67 = vector.load %arg4[%c0_37, %c0_38, %c17, %c0_39] : memref<1x1x104x32xbf16, #tpu.memory_space<vmem>>, vector<1x1x64x32xbf16>
    %68 = vector.shape_cast %67 : vector<1x1x64x32xbf16> to vector<64x32xbf16>
    %c0_i32_40 = arith.constant 0 : i32
    %69 = arith.sitofp %c0_i32_40 : i32 to bf16
    %70 = vector.shape_cast %20 : vector<64x1xi1> to vector<64x1xi1>
    %71 = vector.broadcast %70 : vector<64x1xi1> to vector<64x32xi1>
    %72 = vector.broadcast %69 : bf16 to vector<64x32xbf16>
    %73 = arith.select %71, %68, %72 : vector<64x32xi1>, vector<64x32xbf16>
    %c5 = arith.constant 5 : index
    %c0_41 = arith.constant 0 : index
    %c0_42 = arith.constant 0 : index
    %74 = vector.load %arg7[%c5, %c0_41, %c0_42] : memref<27x32x32xbf16, #tpu.memory_space<vmem>>, vector<1x32x32xbf16>
    %75 = vector.shape_cast %74 : vector<1x32x32xbf16> to vector<32x32xbf16>
    %cst_43 = arith.constant dense<0.000000e+00> : vector<64x32xf32>
    %76 = tpu.matmul %73, %75, %cst_43 {dimension_numbers = #tpu.dot_dimension_numbers<[1], [0], [0], [1], [0, 0, 1, 1], [], []>} : vector<64x32xbf16>, vector<32x32xbf16>, vector<64x32xf32> -> vector<64x32xf32>
    %77 = arith.addf %66, %76 : vector<64x32xf32>
    %c0_44 = arith.constant 0 : index
    %c0_45 = arith.constant 0 : index
    %c23 = arith.constant 23 : index
    %c0_46 = arith.constant 0 : index
    %78 = vector.load %arg4[%c0_44, %c0_45, %c23, %c0_46] : memref<1x1x104x32xbf16, #tpu.memory_space<vmem>>, vector<1x1x64x32xbf16>
    %79 = vector.shape_cast %78 : vector<1x1x64x32xbf16> to vector<64x32xbf16>
    %c0_i32_47 = arith.constant 0 : i32
    %80 = arith.sitofp %c0_i32_47 : i32 to bf16
    %81 = vector.shape_cast %18 : vector<64x1xi1> to vector<64x1xi1>
    %82 = vector.broadcast %81 : vector<64x1xi1> to vector<64x32xi1>
    %83 = vector.broadcast %80 : bf16 to vector<64x32xbf16>
    %84 = arith.select %82, %79, %83 : vector<64x32xi1>, vector<64x32xbf16>
    %c6 = arith.constant 6 : index
    %c0_48 = arith.constant 0 : index
    %c0_49 = arith.constant 0 : index
    %85 = vector.load %arg7[%c6, %c0_48, %c0_49] : memref<27x32x32xbf16, #tpu.memory_space<vmem>>, vector<1x32x32xbf16>
    %86 = vector.shape_cast %85 : vector<1x32x32xbf16> to vector<32x32xbf16>
    %cst_50 = arith.constant dense<0.000000e+00> : vector<64x32xf32>
    %87 = tpu.matmul %84, %86, %cst_50 {dimension_numbers = #tpu.dot_dimension_numbers<[1], [0], [0], [1], [0, 0, 1, 1], [], []>} : vector<64x32xbf16>, vector<32x32xbf16>, vector<64x32xf32> -> vector<64x32xf32>
    %88 = arith.addf %77, %87 : vector<64x32xf32>
    %c0_51 = arith.constant 0 : index
    %c0_52 = arith.constant 0 : index
    %c24 = arith.constant 24 : index
    %c0_53 = arith.constant 0 : index
    %89 = vector.load %arg4[%c0_51, %c0_52, %c24, %c0_53] : memref<1x1x104x32xbf16, #tpu.memory_space<vmem>>, vector<1x1x64x32xbf16>
    %90 = vector.shape_cast %89 : vector<1x1x64x32xbf16> to vector<64x32xbf16>
    %c7_54 = arith.constant 7 : index
    %c0_55 = arith.constant 0 : index
    %c0_56 = arith.constant 0 : index
    %91 = vector.load %arg7[%c7_54, %c0_55, %c0_56] : memref<27x32x32xbf16, #tpu.memory_space<vmem>>, vector<1x32x32xbf16>
    %92 = vector.shape_cast %91 : vector<1x32x32xbf16> to vector<32x32xbf16>
    %cst_57 = arith.constant dense<0.000000e+00> : vector<64x32xf32>
    %93 = tpu.matmul %90, %92, %cst_57 {dimension_numbers = #tpu.dot_dimension_numbers<[1], [0], [0], [1], [0, 0, 1, 1], [], []>} : vector<64x32xbf16>, vector<32x32xbf16>, vector<64x32xf32> -> vector<64x32xf32>
    %94 = arith.addf %88, %93 : vector<64x32xf32>
    %c0_58 = arith.constant 0 : index
    %c0_59 = arith.constant 0 : index
    %c25 = arith.constant 25 : index
    %c0_60 = arith.constant 0 : index
    %95 = vector.load %arg4[%c0_58, %c0_59, %c25, %c0_60] : memref<1x1x104x32xbf16, #tpu.memory_space<vmem>>, vector<1x1x64x32xbf16>
    %96 = vector.shape_cast %95 : vector<1x1x64x32xbf16> to vector<64x32xbf16>
    %c0_i32_61 = arith.constant 0 : i32
    %97 = arith.sitofp %c0_i32_61 : i32 to bf16
    %98 = vector.shape_cast %20 : vector<64x1xi1> to vector<64x1xi1>
    %99 = vector.broadcast %98 : vector<64x1xi1> to vector<64x32xi1>
    %100 = vector.broadcast %97 : bf16 to vector<64x32xbf16>
    %101 = arith.select %99, %96, %100 : vector<64x32xi1>, vector<64x32xbf16>
    %c8_62 = arith.constant 8 : index
    %c0_63 = arith.constant 0 : index
    %c0_64 = arith.constant 0 : index
    %102 = vector.load %arg7[%c8_62, %c0_63, %c0_64] : memref<27x32x32xbf16, #tpu.memory_space<vmem>>, vector<1x32x32xbf16>
    %103 = vector.shape_cast %102 : vector<1x32x32xbf16> to vector<32x32xbf16>
    %cst_65 = arith.constant dense<0.000000e+00> : vector<64x32xf32>
    %104 = tpu.matmul %101, %103, %cst_65 {dimension_numbers = #tpu.dot_dimension_numbers<[1], [0], [0], [1], [0, 0, 1, 1], [], []>} : vector<64x32xbf16>, vector<32x32xbf16>, vector<64x32xf32> -> vector<64x32xf32>
    %105 = arith.addf %94, %104 : vector<64x32xf32>
    %c0_66 = arith.constant 0 : index
    %c0_67 = arith.constant 0 : index
    %c7_68 = arith.constant 7 : index
    %c0_69 = arith.constant 0 : index
    %106 = vector.load %arg5[%c0_66, %c0_67, %c7_68, %c0_69] : memref<1x1x104x32xbf16, #tpu.memory_space<vmem>>, vector<1x1x64x32xbf16>
    %107 = vector.shape_cast %106 : vector<1x1x64x32xbf16> to vector<64x32xbf16>
    %c0_i32_70 = arith.constant 0 : i32
    %108 = arith.sitofp %c0_i32_70 : i32 to bf16
    %109 = vector.shape_cast %18 : vector<64x1xi1> to vector<64x1xi1>
    %110 = vector.broadcast %109 : vector<64x1xi1> to vector<64x32xi1>
    %111 = vector.broadcast %108 : bf16 to vector<64x32xbf16>
    %112 = arith.select %110, %107, %111 : vector<64x32xi1>, vector<64x32xbf16>
    %c9_71 = arith.constant 9 : index
    %c0_72 = arith.constant 0 : index
    %c0_73 = arith.constant 0 : index
    %113 = vector.load %arg7[%c9_71, %c0_72, %c0_73] : memref<27x32x32xbf16, #tpu.memory_space<vmem>>, vector<1x32x32xbf16>
    %114 = vector.shape_cast %113 : vector<1x32x32xbf16> to vector<32x32xbf16>
    %cst_74 = arith.constant dense<0.000000e+00> : vector<64x32xf32>
    %115 = tpu.matmul %112, %114, %cst_74 {dimension_numbers = #tpu.dot_dimension_numbers<[1], [0], [0], [1], [0, 0, 1, 1], [], []>} : vector<64x32xbf16>, vector<32x32xbf16>, vector<64x32xf32> -> vector<64x32xf32>
    %116 = arith.addf %105, %115 : vector<64x32xf32>
    %c0_75 = arith.constant 0 : index
    %c0_76 = arith.constant 0 : index
    %c8_77 = arith.constant 8 : index
    %c0_78 = arith.constant 0 : index
    %117 = vector.load %arg5[%c0_75, %c0_76, %c8_77, %c0_78] : memref<1x1x104x32xbf16, #tpu.memory_space<vmem>>, vector<1x1x64x32xbf16>
    %118 = vector.shape_cast %117 : vector<1x1x64x32xbf16> to vector<64x32xbf16>
    %c10 = arith.constant 10 : index
    %c0_79 = arith.constant 0 : index
    %c0_80 = arith.constant 0 : index
    %119 = vector.load %arg7[%c10, %c0_79, %c0_80] : memref<27x32x32xbf16, #tpu.memory_space<vmem>>, vector<1x32x32xbf16>
    %120 = vector.shape_cast %119 : vector<1x32x32xbf16> to vector<32x32xbf16>
    %cst_81 = arith.constant dense<0.000000e+00> : vector<64x32xf32>
    %121 = tpu.matmul %118, %120, %cst_81 {dimension_numbers = #tpu.dot_dimension_numbers<[1], [0], [0], [1], [0, 0, 1, 1], [], []>} : vector<64x32xbf16>, vector<32x32xbf16>, vector<64x32xf32> -> vector<64x32xf32>
    %122 = arith.addf %116, %121 : vector<64x32xf32>
    %c0_82 = arith.constant 0 : index
    %c0_83 = arith.constant 0 : index
    %c9_84 = arith.constant 9 : index
    %c0_85 = arith.constant 0 : index
    %123 = vector.load %arg5[%c0_82, %c0_83, %c9_84, %c0_85] : memref<1x1x104x32xbf16, #tpu.memory_space<vmem>>, vector<1x1x64x32xbf16>
    %124 = vector.shape_cast %123 : vector<1x1x64x32xbf16> to vector<64x32xbf16>
    %c0_i32_86 = arith.constant 0 : i32
    %125 = arith.sitofp %c0_i32_86 : i32 to bf16
    %126 = vector.shape_cast %20 : vector<64x1xi1> to vector<64x1xi1>
    %127 = vector.broadcast %126 : vector<64x1xi1> to vector<64x32xi1>
    %128 = vector.broadcast %125 : bf16 to vector<64x32xbf16>
    %129 = arith.select %127, %124, %128 : vector<64x32xi1>, vector<64x32xbf16>
    %c11 = arith.constant 11 : index
    %c0_87 = arith.constant 0 : index
    %c0_88 = arith.constant 0 : index
    %130 = vector.load %arg7[%c11, %c0_87, %c0_88] : memref<27x32x32xbf16, #tpu.memory_space<vmem>>, vector<1x32x32xbf16>
    %131 = vector.shape_cast %130 : vector<1x32x32xbf16> to vector<32x32xbf16>
    %cst_89 = arith.constant dense<0.000000e+00> : vector<64x32xf32>
    %132 = tpu.matmul %129, %131, %cst_89 {dimension_numbers = #tpu.dot_dimension_numbers<[1], [0], [0], [1], [0, 0, 1, 1], [], []>} : vector<64x32xbf16>, vector<32x32xbf16>, vector<64x32xf32> -> vector<64x32xf32>
    %133 = arith.addf %122, %132 : vector<64x32xf32>
    %c0_90 = arith.constant 0 : index
    %c0_91 = arith.constant 0 : index
    %c15_92 = arith.constant 15 : index
    %c0_93 = arith.constant 0 : index
    %134 = vector.load %arg5[%c0_90, %c0_91, %c15_92, %c0_93] : memref<1x1x104x32xbf16, #tpu.memory_space<vmem>>, vector<1x1x64x32xbf16>
    %135 = vector.shape_cast %134 : vector<1x1x64x32xbf16> to vector<64x32xbf16>
    %c0_i32_94 = arith.constant 0 : i32
    %136 = arith.sitofp %c0_i32_94 : i32 to bf16
    %137 = vector.shape_cast %18 : vector<64x1xi1> to vector<64x1xi1>
    %138 = vector.broadcast %137 : vector<64x1xi1> to vector<64x32xi1>
    %139 = vector.broadcast %136 : bf16 to vector<64x32xbf16>
    %140 = arith.select %138, %135, %139 : vector<64x32xi1>, vector<64x32xbf16>
    %c12 = arith.constant 12 : index
    %c0_95 = arith.constant 0 : index
    %c0_96 = arith.constant 0 : index
    %141 = vector.load %arg7[%c12, %c0_95, %c0_96] : memref<27x32x32xbf16, #tpu.memory_space<vmem>>, vector<1x32x32xbf16>
    %142 = vector.shape_cast %141 : vector<1x32x32xbf16> to vector<32x32xbf16>
    %cst_97 = arith.constant dense<0.000000e+00> : vector<64x32xf32>
    %143 = tpu.matmul %140, %142, %cst_97 {dimension_numbers = #tpu.dot_dimension_numbers<[1], [0], [0], [1], [0, 0, 1, 1], [], []>} : vector<64x32xbf16>, vector<32x32xbf16>, vector<64x32xf32> -> vector<64x32xf32>
    %144 = arith.addf %133, %143 : vector<64x32xf32>
    %c0_98 = arith.constant 0 : index
    %c0_99 = arith.constant 0 : index
    %c16_100 = arith.constant 16 : index
    %c0_101 = arith.constant 0 : index
    %145 = vector.load %arg5[%c0_98, %c0_99, %c16_100, %c0_101] : memref<1x1x104x32xbf16, #tpu.memory_space<vmem>>, vector<1x1x64x32xbf16>
    %146 = vector.shape_cast %145 : vector<1x1x64x32xbf16> to vector<64x32xbf16>
    %c13 = arith.constant 13 : index
    %c0_102 = arith.constant 0 : index
    %c0_103 = arith.constant 0 : index
    %147 = vector.load %arg7[%c13, %c0_102, %c0_103] : memref<27x32x32xbf16, #tpu.memory_space<vmem>>, vector<1x32x32xbf16>
    %148 = vector.shape_cast %147 : vector<1x32x32xbf16> to vector<32x32xbf16>
    %cst_104 = arith.constant dense<0.000000e+00> : vector<64x32xf32>
    %149 = tpu.matmul %146, %148, %cst_104 {dimension_numbers = #tpu.dot_dimension_numbers<[1], [0], [0], [1], [0, 0, 1, 1], [], []>} : vector<64x32xbf16>, vector<32x32xbf16>, vector<64x32xf32> -> vector<64x32xf32>
    %150 = arith.addf %144, %149 : vector<64x32xf32>
    %c0_105 = arith.constant 0 : index
    %c0_106 = arith.constant 0 : index
    %c17_107 = arith.constant 17 : index
    %c0_108 = arith.constant 0 : index
    %151 = vector.load %arg5[%c0_105, %c0_106, %c17_107, %c0_108] : memref<1x1x104x32xbf16, #tpu.memory_space<vmem>>, vector<1x1x64x32xbf16>
    %152 = vector.shape_cast %151 : vector<1x1x64x32xbf16> to vector<64x32xbf16>
    %c0_i32_109 = arith.constant 0 : i32
    %153 = arith.sitofp %c0_i32_109 : i32 to bf16
    %154 = vector.shape_cast %20 : vector<64x1xi1> to vector<64x1xi1>
    %155 = vector.broadcast %154 : vector<64x1xi1> to vector<64x32xi1>
    %156 = vector.broadcast %153 : bf16 to vector<64x32xbf16>
    %157 = arith.select %155, %152, %156 : vector<64x32xi1>, vector<64x32xbf16>
    %c14 = arith.constant 14 : index
    %c0_110 = arith.constant 0 : index
    %c0_111 = arith.constant 0 : index
    %158 = vector.load %arg7[%c14, %c0_110, %c0_111] : memref<27x32x32xbf16, #tpu.memory_space<vmem>>, vector<1x32x32xbf16>
    %159 = vector.shape_cast %158 : vector<1x32x32xbf16> to vector<32x32xbf16>
    %cst_112 = arith.constant dense<0.000000e+00> : vector<64x32xf32>
    %160 = tpu.matmul %157, %159, %cst_112 {dimension_numbers = #tpu.dot_dimension_numbers<[1], [0], [0], [1], [0, 0, 1, 1], [], []>} : vector<64x32xbf16>, vector<32x32xbf16>, vector<64x32xf32> -> vector<64x32xf32>
    %161 = arith.addf %150, %160 : vector<64x32xf32>
    %c0_113 = arith.constant 0 : index
    %c0_114 = arith.constant 0 : index
    %c23_115 = arith.constant 23 : index
    %c0_116 = arith.constant 0 : index
    %162 = vector.load %arg5[%c0_113, %c0_114, %c23_115, %c0_116] : memref<1x1x104x32xbf16, #tpu.memory_space<vmem>>, vector<1x1x64x32xbf16>
    %163 = vector.shape_cast %162 : vector<1x1x64x32xbf16> to vector<64x32xbf16>
    %c0_i32_117 = arith.constant 0 : i32
    %164 = arith.sitofp %c0_i32_117 : i32 to bf16
    %165 = vector.shape_cast %18 : vector<64x1xi1> to vector<64x1xi1>
    %166 = vector.broadcast %165 : vector<64x1xi1> to vector<64x32xi1>
    %167 = vector.broadcast %164 : bf16 to vector<64x32xbf16>
    %168 = arith.select %166, %163, %167 : vector<64x32xi1>, vector<64x32xbf16>
    %c15_118 = arith.constant 15 : index
    %c0_119 = arith.constant 0 : index
    %c0_120 = arith.constant 0 : index
    %169 = vector.load %arg7[%c15_118, %c0_119, %c0_120] : memref<27x32x32xbf16, #tpu.memory_space<vmem>>, vector<1x32x32xbf16>
    %170 = vector.shape_cast %169 : vector<1x32x32xbf16> to vector<32x32xbf16>
    %cst_121 = arith.constant dense<0.000000e+00> : vector<64x32xf32>
    %171 = tpu.matmul %168, %170, %cst_121 {dimension_numbers = #tpu.dot_dimension_numbers<[1], [0], [0], [1], [0, 0, 1, 1], [], []>} : vector<64x32xbf16>, vector<32x32xbf16>, vector<64x32xf32> -> vector<64x32xf32>
    %172 = arith.addf %161, %171 : vector<64x32xf32>
    %c0_122 = arith.constant 0 : index
    %c0_123 = arith.constant 0 : index
    %c24_124 = arith.constant 24 : index
    %c0_125 = arith.constant 0 : index
    %173 = vector.load %arg5[%c0_122, %c0_123, %c24_124, %c0_125] : memref<1x1x104x32xbf16, #tpu.memory_space<vmem>>, vector<1x1x64x32xbf16>
    %174 = vector.shape_cast %173 : vector<1x1x64x32xbf16> to vector<64x32xbf16>
    %c16_126 = arith.constant 16 : index
    %c0_127 = arith.constant 0 : index
    %c0_128 = arith.constant 0 : index
    %175 = vector.load %arg7[%c16_126, %c0_127, %c0_128] : memref<27x32x32xbf16, #tpu.memory_space<vmem>>, vector<1x32x32xbf16>
    %176 = vector.shape_cast %175 : vector<1x32x32xbf16> to vector<32x32xbf16>
    %cst_129 = arith.constant dense<0.000000e+00> : vector<64x32xf32>
    %177 = tpu.matmul %174, %176, %cst_129 {dimension_numbers = #tpu.dot_dimension_numbers<[1], [0], [0], [1], [0, 0, 1, 1], [], []>} : vector<64x32xbf16>, vector<32x32xbf16>, vector<64x32xf32> -> vector<64x32xf32>
    %178 = arith.addf %172, %177 : vector<64x32xf32>
    %c0_130 = arith.constant 0 : index
    %c0_131 = arith.constant 0 : index
    %c25_132 = arith.constant 25 : index
    %c0_133 = arith.constant 0 : index
    %179 = vector.load %arg5[%c0_130, %c0_131, %c25_132, %c0_133] : memref<1x1x104x32xbf16, #tpu.memory_space<vmem>>, vector<1x1x64x32xbf16>
    %180 = vector.shape_cast %179 : vector<1x1x64x32xbf16> to vector<64x32xbf16>
    %c0_i32_134 = arith.constant 0 : i32
    %181 = arith.sitofp %c0_i32_134 : i32 to bf16
    %182 = vector.shape_cast %20 : vector<64x1xi1> to vector<64x1xi1>
    %183 = vector.broadcast %182 : vector<64x1xi1> to vector<64x32xi1>
    %184 = vector.broadcast %181 : bf16 to vector<64x32xbf16>
    %185 = arith.select %183, %180, %184 : vector<64x32xi1>, vector<64x32xbf16>
    %c17_135 = arith.constant 17 : index
    %c0_136 = arith.constant 0 : index
    %c0_137 = arith.constant 0 : index
    %186 = vector.load %arg7[%c17_135, %c0_136, %c0_137] : memref<27x32x32xbf16, #tpu.memory_space<vmem>>, vector<1x32x32xbf16>
    %187 = vector.shape_cast %186 : vector<1x32x32xbf16> to vector<32x32xbf16>
    %cst_138 = arith.constant dense<0.000000e+00> : vector<64x32xf32>
    %188 = tpu.matmul %185, %187, %cst_138 {dimension_numbers = #tpu.dot_dimension_numbers<[1], [0], [0], [1], [0, 0, 1, 1], [], []>} : vector<64x32xbf16>, vector<32x32xbf16>, vector<64x32xf32> -> vector<64x32xf32>
    %189 = arith.addf %178, %188 : vector<64x32xf32>
    %c0_139 = arith.constant 0 : index
    %c0_140 = arith.constant 0 : index
    %c7_141 = arith.constant 7 : index
    %c0_142 = arith.constant 0 : index
    %190 = vector.load %arg6[%c0_139, %c0_140, %c7_141, %c0_142] : memref<1x1x104x32xbf16, #tpu.memory_space<vmem>>, vector<1x1x64x32xbf16>
    %191 = vector.shape_cast %190 : vector<1x1x64x32xbf16> to vector<64x32xbf16>
    %c0_i32_143 = arith.constant 0 : i32
    %192 = arith.sitofp %c0_i32_143 : i32 to bf16
    %193 = vector.shape_cast %18 : vector<64x1xi1> to vector<64x1xi1>
    %194 = vector.broadcast %193 : vector<64x1xi1> to vector<64x32xi1>
    %195 = vector.broadcast %192 : bf16 to vector<64x32xbf16>
    %196 = arith.select %194, %191, %195 : vector<64x32xi1>, vector<64x32xbf16>
    %c18 = arith.constant 18 : index
    %c0_144 = arith.constant 0 : index
    %c0_145 = arith.constant 0 : index
    %197 = vector.load %arg7[%c18, %c0_144, %c0_145] : memref<27x32x32xbf16, #tpu.memory_space<vmem>>, vector<1x32x32xbf16>
    %198 = vector.shape_cast %197 : vector<1x32x32xbf16> to vector<32x32xbf16>
    %cst_146 = arith.constant dense<0.000000e+00> : vector<64x32xf32>
    %199 = tpu.matmul %196, %198, %cst_146 {dimension_numbers = #tpu.dot_dimension_numbers<[1], [0], [0], [1], [0, 0, 1, 1], [], []>} : vector<64x32xbf16>, vector<32x32xbf16>, vector<64x32xf32> -> vector<64x32xf32>
    %200 = arith.addf %189, %199 : vector<64x32xf32>
    %c0_147 = arith.constant 0 : index
    %c0_148 = arith.constant 0 : index
    %c8_149 = arith.constant 8 : index
    %c0_150 = arith.constant 0 : index
    %201 = vector.load %arg6[%c0_147, %c0_148, %c8_149, %c0_150] : memref<1x1x104x32xbf16, #tpu.memory_space<vmem>>, vector<1x1x64x32xbf16>
    %202 = vector.shape_cast %201 : vector<1x1x64x32xbf16> to vector<64x32xbf16>
    %c19 = arith.constant 19 : index
    %c0_151 = arith.constant 0 : index
    %c0_152 = arith.constant 0 : index
    %203 = vector.load %arg7[%c19, %c0_151, %c0_152] : memref<27x32x32xbf16, #tpu.memory_space<vmem>>, vector<1x32x32xbf16>
    %204 = vector.shape_cast %203 : vector<1x32x32xbf16> to vector<32x32xbf16>
    %cst_153 = arith.constant dense<0.000000e+00> : vector<64x32xf32>
    %205 = tpu.matmul %202, %204, %cst_153 {dimension_numbers = #tpu.dot_dimension_numbers<[1], [0], [0], [1], [0, 0, 1, 1], [], []>} : vector<64x32xbf16>, vector<32x32xbf16>, vector<64x32xf32> -> vector<64x32xf32>
    %206 = arith.addf %200, %205 : vector<64x32xf32>
    %c0_154 = arith.constant 0 : index
    %c0_155 = arith.constant 0 : index
    %c9_156 = arith.constant 9 : index
    %c0_157 = arith.constant 0 : index
    %207 = vector.load %arg6[%c0_154, %c0_155, %c9_156, %c0_157] : memref<1x1x104x32xbf16, #tpu.memory_space<vmem>>, vector<1x1x64x32xbf16>
    %208 = vector.shape_cast %207 : vector<1x1x64x32xbf16> to vector<64x32xbf16>
    %c0_i32_158 = arith.constant 0 : i32
    %209 = arith.sitofp %c0_i32_158 : i32 to bf16
    %210 = vector.shape_cast %20 : vector<64x1xi1> to vector<64x1xi1>
    %211 = vector.broadcast %210 : vector<64x1xi1> to vector<64x32xi1>
    %212 = vector.broadcast %209 : bf16 to vector<64x32xbf16>
    %213 = arith.select %211, %208, %212 : vector<64x32xi1>, vector<64x32xbf16>
    %c20 = arith.constant 20 : index
    %c0_159 = arith.constant 0 : index
    %c0_160 = arith.constant 0 : index
    %214 = vector.load %arg7[%c20, %c0_159, %c0_160] : memref<27x32x32xbf16, #tpu.memory_space<vmem>>, vector<1x32x32xbf16>
    %215 = vector.shape_cast %214 : vector<1x32x32xbf16> to vector<32x32xbf16>
    %cst_161 = arith.constant dense<0.000000e+00> : vector<64x32xf32>
    %216 = tpu.matmul %213, %215, %cst_161 {dimension_numbers = #tpu.dot_dimension_numbers<[1], [0], [0], [1], [0, 0, 1, 1], [], []>} : vector<64x32xbf16>, vector<32x32xbf16>, vector<64x32xf32> -> vector<64x32xf32>
    %217 = arith.addf %206, %216 : vector<64x32xf32>
    %c0_162 = arith.constant 0 : index
    %c0_163 = arith.constant 0 : index
    %c15_164 = arith.constant 15 : index
    %c0_165 = arith.constant 0 : index
    %218 = vector.load %arg6[%c0_162, %c0_163, %c15_164, %c0_165] : memref<1x1x104x32xbf16, #tpu.memory_space<vmem>>, vector<1x1x64x32xbf16>
    %219 = vector.shape_cast %218 : vector<1x1x64x32xbf16> to vector<64x32xbf16>
    %c0_i32_166 = arith.constant 0 : i32
    %220 = arith.sitofp %c0_i32_166 : i32 to bf16
    %221 = vector.shape_cast %18 : vector<64x1xi1> to vector<64x1xi1>
    %222 = vector.broadcast %221 : vector<64x1xi1> to vector<64x32xi1>
    %223 = vector.broadcast %220 : bf16 to vector<64x32xbf16>
    %224 = arith.select %222, %219, %223 : vector<64x32xi1>, vector<64x32xbf16>
    %c21 = arith.constant 21 : index
    %c0_167 = arith.constant 0 : index
    %c0_168 = arith.constant 0 : index
    %225 = vector.load %arg7[%c21, %c0_167, %c0_168] : memref<27x32x32xbf16, #tpu.memory_space<vmem>>, vector<1x32x32xbf16>
    %226 = vector.shape_cast %225 : vector<1x32x32xbf16> to vector<32x32xbf16>
    %cst_169 = arith.constant dense<0.000000e+00> : vector<64x32xf32>
    %227 = tpu.matmul %224, %226, %cst_169 {dimension_numbers = #tpu.dot_dimension_numbers<[1], [0], [0], [1], [0, 0, 1, 1], [], []>} : vector<64x32xbf16>, vector<32x32xbf16>, vector<64x32xf32> -> vector<64x32xf32>
    %228 = arith.addf %217, %227 : vector<64x32xf32>
    %c0_170 = arith.constant 0 : index
    %c0_171 = arith.constant 0 : index
    %c16_172 = arith.constant 16 : index
    %c0_173 = arith.constant 0 : index
    %229 = vector.load %arg6[%c0_170, %c0_171, %c16_172, %c0_173] : memref<1x1x104x32xbf16, #tpu.memory_space<vmem>>, vector<1x1x64x32xbf16>
    %230 = vector.shape_cast %229 : vector<1x1x64x32xbf16> to vector<64x32xbf16>
    %c22 = arith.constant 22 : index
    %c0_174 = arith.constant 0 : index
    %c0_175 = arith.constant 0 : index
    %231 = vector.load %arg7[%c22, %c0_174, %c0_175] : memref<27x32x32xbf16, #tpu.memory_space<vmem>>, vector<1x32x32xbf16>
    %232 = vector.shape_cast %231 : vector<1x32x32xbf16> to vector<32x32xbf16>
    %cst_176 = arith.constant dense<0.000000e+00> : vector<64x32xf32>
    %233 = tpu.matmul %230, %232, %cst_176 {dimension_numbers = #tpu.dot_dimension_numbers<[1], [0], [0], [1], [0, 0, 1, 1], [], []>} : vector<64x32xbf16>, vector<32x32xbf16>, vector<64x32xf32> -> vector<64x32xf32>
    %234 = arith.addf %228, %233 : vector<64x32xf32>
    %c0_177 = arith.constant 0 : index
    %c0_178 = arith.constant 0 : index
    %c17_179 = arith.constant 17 : index
    %c0_180 = arith.constant 0 : index
    %235 = vector.load %arg6[%c0_177, %c0_178, %c17_179, %c0_180] : memref<1x1x104x32xbf16, #tpu.memory_space<vmem>>, vector<1x1x64x32xbf16>
    %236 = vector.shape_cast %235 : vector<1x1x64x32xbf16> to vector<64x32xbf16>
    %c0_i32_181 = arith.constant 0 : i32
    %237 = arith.sitofp %c0_i32_181 : i32 to bf16
    %238 = vector.shape_cast %20 : vector<64x1xi1> to vector<64x1xi1>
    %239 = vector.broadcast %238 : vector<64x1xi1> to vector<64x32xi1>
    %240 = vector.broadcast %237 : bf16 to vector<64x32xbf16>
    %241 = arith.select %239, %236, %240 : vector<64x32xi1>, vector<64x32xbf16>
    %c23_182 = arith.constant 23 : index
    %c0_183 = arith.constant 0 : index
    %c0_184 = arith.constant 0 : index
    %242 = vector.load %arg7[%c23_182, %c0_183, %c0_184] : memref<27x32x32xbf16, #tpu.memory_space<vmem>>, vector<1x32x32xbf16>
    %243 = vector.shape_cast %242 : vector<1x32x32xbf16> to vector<32x32xbf16>
    %cst_185 = arith.constant dense<0.000000e+00> : vector<64x32xf32>
    %244 = tpu.matmul %241, %243, %cst_185 {dimension_numbers = #tpu.dot_dimension_numbers<[1], [0], [0], [1], [0, 0, 1, 1], [], []>} : vector<64x32xbf16>, vector<32x32xbf16>, vector<64x32xf32> -> vector<64x32xf32>
    %245 = arith.addf %234, %244 : vector<64x32xf32>
    %c0_186 = arith.constant 0 : index
    %c0_187 = arith.constant 0 : index
    %c23_188 = arith.constant 23 : index
    %c0_189 = arith.constant 0 : index
    %246 = vector.load %arg6[%c0_186, %c0_187, %c23_188, %c0_189] : memref<1x1x104x32xbf16, #tpu.memory_space<vmem>>, vector<1x1x64x32xbf16>
    %247 = vector.shape_cast %246 : vector<1x1x64x32xbf16> to vector<64x32xbf16>
    %c0_i32_190 = arith.constant 0 : i32
    %248 = arith.sitofp %c0_i32_190 : i32 to bf16
    %249 = vector.shape_cast %18 : vector<64x1xi1> to vector<64x1xi1>
    %250 = vector.broadcast %249 : vector<64x1xi1> to vector<64x32xi1>
    %251 = vector.broadcast %248 : bf16 to vector<64x32xbf16>
    %252 = arith.select %250, %247, %251 : vector<64x32xi1>, vector<64x32xbf16>
    %c24_191 = arith.constant 24 : index
    %c0_192 = arith.constant 0 : index
    %c0_193 = arith.constant 0 : index
    %253 = vector.load %arg7[%c24_191, %c0_192, %c0_193] : memref<27x32x32xbf16, #tpu.memory_space<vmem>>, vector<1x32x32xbf16>
    %254 = vector.shape_cast %253 : vector<1x32x32xbf16> to vector<32x32xbf16>
    %cst_194 = arith.constant dense<0.000000e+00> : vector<64x32xf32>
    %255 = tpu.matmul %252, %254, %cst_194 {dimension_numbers = #tpu.dot_dimension_numbers<[1], [0], [0], [1], [0, 0, 1, 1], [], []>} : vector<64x32xbf16>, vector<32x32xbf16>, vector<64x32xf32> -> vector<64x32xf32>
    %256 = arith.addf %245, %255 : vector<64x32xf32>
    %c0_195 = arith.constant 0 : index
    %c0_196 = arith.constant 0 : index
    %c24_197 = arith.constant 24 : index
    %c0_198 = arith.constant 0 : index
    %257 = vector.load %arg6[%c0_195, %c0_196, %c24_197, %c0_198] : memref<1x1x104x32xbf16, #tpu.memory_space<vmem>>, vector<1x1x64x32xbf16>
    %258 = vector.shape_cast %257 : vector<1x1x64x32xbf16> to vector<64x32xbf16>
    %c25_199 = arith.constant 25 : index
    %c0_200 = arith.constant 0 : index
    %c0_201 = arith.constant 0 : index
    %259 = vector.load %arg7[%c25_199, %c0_200, %c0_201] : memref<27x32x32xbf16, #tpu.memory_space<vmem>>, vector<1x32x32xbf16>
    %260 = vector.shape_cast %259 : vector<1x32x32xbf16> to vector<32x32xbf16>
    %cst_202 = arith.constant dense<0.000000e+00> : vector<64x32xf32>
    %261 = tpu.matmul %258, %260, %cst_202 {dimension_numbers = #tpu.dot_dimension_numbers<[1], [0], [0], [1], [0, 0, 1, 1], [], []>} : vector<64x32xbf16>, vector<32x32xbf16>, vector<64x32xf32> -> vector<64x32xf32>
    %262 = arith.addf %256, %261 : vector<64x32xf32>
    %c0_203 = arith.constant 0 : index
    %c0_204 = arith.constant 0 : index
    %c25_205 = arith.constant 25 : index
    %c0_206 = arith.constant 0 : index
    %263 = vector.load %arg6[%c0_203, %c0_204, %c25_205, %c0_206] : memref<1x1x104x32xbf16, #tpu.memory_space<vmem>>, vector<1x1x64x32xbf16>
    %264 = vector.shape_cast %263 : vector<1x1x64x32xbf16> to vector<64x32xbf16>
    %c0_i32_207 = arith.constant 0 : i32
    %265 = arith.sitofp %c0_i32_207 : i32 to bf16
    %266 = vector.shape_cast %20 : vector<64x1xi1> to vector<64x1xi1>
    %267 = vector.broadcast %266 : vector<64x1xi1> to vector<64x32xi1>
    %268 = vector.broadcast %265 : bf16 to vector<64x32xbf16>
    %269 = arith.select %267, %264, %268 : vector<64x32xi1>, vector<64x32xbf16>
    %c26 = arith.constant 26 : index
    %c0_208 = arith.constant 0 : index
    %c0_209 = arith.constant 0 : index
    %270 = vector.load %arg7[%c26, %c0_208, %c0_209] : memref<27x32x32xbf16, #tpu.memory_space<vmem>>, vector<1x32x32xbf16>
    %271 = vector.shape_cast %270 : vector<1x32x32xbf16> to vector<32x32xbf16>
    %cst_210 = arith.constant dense<0.000000e+00> : vector<64x32xf32>
    %272 = tpu.matmul %269, %271, %cst_210 {dimension_numbers = #tpu.dot_dimension_numbers<[1], [0], [0], [1], [0, 0, 1, 1], [], []>} : vector<64x32xbf16>, vector<32x32xbf16>, vector<64x32xf32> -> vector<64x32xf32>
    %273 = arith.addf %262, %272 : vector<64x32xf32>
    %c0_211 = arith.constant 0 : index
    %c0_212 = arith.constant 0 : index
    %274 = vector.load %arg8[%c0_211, %c0_212] : memref<1x32xf32, #tpu.memory_space<vmem>>, vector<1x32xf32>
    %275 = vector.broadcast %274 : vector<1x32xf32> to vector<64x32xf32>
    %276 = arith.addf %273, %275 : vector<64x32xf32>
    %c0_213 = arith.constant 0 : index
    %277 = memref.load %arg3[%c0_213] : memref<1xf32, #tpu.memory_space<smem>>
    %cst_214 = arith.constant 0.000000e+00 : f32
    %278 = vector.broadcast %cst_214 : f32 to vector<64x32xf32>
    %279 = arith.cmpf oge, %276, %278 : vector<64x32xf32>
    %280 = vector.broadcast %277 : f32 to vector<64x32xf32>
    %281 = arith.mulf %280, %276 : vector<64x32xf32>
    %282 = arith.select %279, %276, %281 : vector<64x32xi1>, vector<64x32xf32>
    %283 = arith.truncf %282 : vector<64x32xf32> to vector<64x32xbf16>
    %c0_215 = arith.constant 0 : index
    %c0_216 = arith.constant 0 : index
    %c0_217 = arith.constant 0 : index
    %c0_218 = arith.constant 0 : index
    %284 = vector.load %arg9[%c0_215, %c0_216, %c0_217, %c0_218] : memref<1x1x64x32xbf16, #tpu.memory_space<vmem>>, vector<1x1x64x32xbf16>
    %285 = vector.shape_cast %284 : vector<1x1x64x32xbf16> to vector<64x32xbf16>
    %286 = vector.shape_cast %283 : vector<64x32xbf16> to vector<1x1x64x32xbf16>
    tpu.vector_store %arg9[%c0_215, %c0_216, %c0_217, %c0_218], %286 {strides = array<i32>} : memref<1x1x64x32xbf16, #tpu.memory_space<vmem>>, vector<1x1x64x32xbf16>,
    return
  }
  func.func @transform_0(%arg0: i32, %arg1: i32, %arg2: i32) -> i32 {
    %c0_i32 = arith.constant 0 : i32
    %c0_i32_0 = arith.constant 0 : i32
    return %c0_i32 : i32
  }
  func.func @transform_1(%arg0: i32, %arg1: i32, %arg2: i32) -> (i32, i32, i32, i32) {
    %c0_i32 = arith.constant 0 : i32
    %0 = arith.addi %arg1, %c0_i32 : i32
    %c0_i32_0 = arith.constant 0 : i32
    %c0_i32_1 = arith.constant 0 : i32
    %c0_i32_2 = arith.constant 0 : i32
    return %arg0, %0, %c0_i32_0, %c0_i32_1 : i32, i32, i32, i32
  }
  func.func @transform_2(%arg0: i32, %arg1: i32, %arg2: i32) -> (i32, i32, i32, i32) {
    %c1_i32 = arith.constant 1 : i32
    %0 = arith.addi %arg1, %c1_i32 : i32
    %c0_i32 = arith.constant 0 : i32
    %c0_i32_0 = arith.constant 0 : i32
    %c0_i32_1 = arith.constant 0 : i32
    return %arg0, %0, %c0_i32, %c0_i32_0 : i32, i32, i32, i32
  }
  func.func @transform_3(%arg0: i32, %arg1: i32, %arg2: i32) -> (i32, i32, i32, i32) {
    %c2_i32 = arith.constant 2 : i32
    %0 = arith.addi %arg1, %c2_i32 : i32
    %c0_i32 = arith.constant 0 : i32
    %c0_i32_0 = arith.constant 0 : i32
    %c0_i32_1 = arith.constant 0 : i32
    return %arg0, %0, %c0_i32, %c0_i32_0 : i32, i32, i32, i32
  }
  func.func @transform_4(%arg0: i32, %arg1: i32, %arg2: i32) -> (i32, i32, i32) {
    %c0_i32 = arith.constant 0 : i32
    %c0_i32_0 = arith.constant 0 : i32
    %c0_i32_1 = arith.constant 0 : i32
    %c0_i32_2 = arith.constant 0 : i32
    return %c0_i32, %c0_i32_0, %c0_i32_1 : i32, i32, i32
  }
  func.func @transform_5(%arg0: i32, %arg1: i32, %arg2: i32) -> (i32, i32) {
    %c0_i32 = arith.constant 0 : i32
    %c0_i32_0 = arith.constant 0 : i32
    %c0_i32_1 = arith.constant 0 : i32
    return %c0_i32, %c0_i32_0 : i32, i32
  }
  func.func @transform_6(%arg0: i32, %arg1: i32, %arg2: i32) -> (i32, i32, i32, i32) {
    %c0_i32 = arith.constant 0 : i32
    %c0_i32_0 = arith.constant 0 : i32
    return %arg0, %arg1, %arg2, %c0_i32 : i32, i32, i32, i32
  }
}

module attributes {stable_mosaic.version = 11 : i64} {
  func.func @_mm_bias_pool_kernel(%arg0: i32, %arg1: i32, %arg2: memref<1x512x32xbf16, #tpu.memory_space<vmem>>, %arg3: memref<32x64xbf16, #tpu.memory_space<vmem>>, %arg4: memref<1x64xf32, #tpu.memory_space<vmem>>, %arg5: memref<1x512x64xbf16, #tpu.memory_space<vmem>>, %arg6: memref<1x1x64xf32, #tpu.memory_space<vmem>>) attributes {dimension_semantics = [#tpu.dimension_semantics<parallel>, #tpu.dimension_semantics<arbitrary>], iteration_bounds = array<i64: 2, 1>, scalar_prefetch = 0 : i64, scratch_operands = 0 : i64, tpu.core_type = #tpu.core_type<tc>, window_params = [{transform_indices = @transform_0, window_bounds = array<i64: 1, 512, 32>}, {pipeline_mode = #tpu.pipeline_mode<synchronous>, transform_indices = @transform_1, window_bounds = array<i64: 32, 64>}, {pipeline_mode = #tpu.pipeline_mode<synchronous>, transform_indices = @transform_2, window_bounds = array<i64: 1, 64>}, {transform_indices = @transform_3, window_bounds = array<i64: 1, 512, 64>}, {transform_indices = @transform_4, window_bounds = array<i64: 1, 1, 64>}]} {
    %c0 = arith.constant 0 : index
    %c0_0 = arith.constant 0 : index
    %c0_1 = arith.constant 0 : index
    %0 = vector.load %arg2[%c0, %c0_0, %c0_1] : memref<1x512x32xbf16, #tpu.memory_space<vmem>>, vector<1x512x32xbf16>
    %1 = vector.shape_cast %0 : vector<1x512x32xbf16> to vector<512x32xbf16>
    %c0_2 = arith.constant 0 : index
    %c0_3 = arith.constant 0 : index
    %2 = vector.load %arg3[%c0_2, %c0_3] : memref<32x64xbf16, #tpu.memory_space<vmem>>, vector<32x64xbf16>
    %cst = arith.constant dense<0.000000e+00> : vector<512x64xf32>
    %3 = tpu.matmul %1, %2, %cst {dimension_numbers = #tpu.dot_dimension_numbers<[1], [0], [0], [1], [0, 0, 1, 1], [], []>} : vector<512x32xbf16>, vector<32x64xbf16>, vector<512x64xf32> -> vector<512x64xf32>
    %c0_4 = arith.constant 0 : index
    %c0_5 = arith.constant 0 : index
    %4 = vector.load %arg4[%c0_4, %c0_5] : memref<1x64xf32, #tpu.memory_space<vmem>>, vector<1x64xf32>
    %5 = vector.broadcast %4 : vector<1x64xf32> to vector<512x64xf32>
    %6 = arith.addf %3, %5 : vector<512x64xf32>
    %7 = arith.truncf %6 : vector<512x64xf32> to vector<512x64xbf16>
    %c0_6 = arith.constant 0 : index
    %c0_7 = arith.constant 0 : index
    %c0_8 = arith.constant 0 : index
    %8 = vector.load %arg5[%c0_6, %c0_7, %c0_8] : memref<1x512x64xbf16, #tpu.memory_space<vmem>>, vector<1x512x64xbf16>
    %9 = vector.shape_cast %8 : vector<1x512x64xbf16> to vector<512x64xbf16>
    %10 = vector.shape_cast %7 : vector<512x64xbf16> to vector<1x512x64xbf16>
    tpu.vector_store %arg5[%c0_6, %c0_7, %c0_8], %10 {strides = array<i32>} : memref<1x512x64xbf16, #tpu.memory_space<vmem>>, vector<1x512x64xbf16>,
    %c0_i32 = arith.constant 0 : i32
    %11 = arith.cmpi eq, %arg1, %c0_i32 : i32
    %12 = arith.extui %11 : i1 to i32
    %c0_i32_9 = arith.constant 0 : i32
    %13 = arith.cmpi ne, %12, %c0_i32_9 : i32
    scf.if %13 {
      %cst_17 = arith.constant 0.000000e+00 : f32
      %20 = vector.broadcast %cst_17 : f32 to vector<1x1x64xf32>
      %c0_18 = arith.constant 0 : index
      %c0_19 = arith.constant 0 : index
      %c0_20 = arith.constant 0 : index
      %21 = vector.load %arg6[%c0_18, %c0_19, %c0_20] : memref<1x1x64xf32, #tpu.memory_space<vmem>>, vector<1x1x64xf32>
      tpu.vector_store %arg6[%c0_18, %c0_19, %c0_20], %20 {strides = array<i32>} : memref<1x1x64xf32, #tpu.memory_space<vmem>>, vector<1x1x64xf32>,
    } else {
    }
    %c0_10 = arith.constant 0 : index
    %c0_11 = arith.constant 0 : index
    %c0_12 = arith.constant 0 : index
    %14 = vector.load %arg6[%c0_10, %c0_11, %c0_12] : memref<1x1x64xf32, #tpu.memory_space<vmem>>, vector<1x1x64xf32>
    %cst_13 = arith.constant dense<0.000000e+00> : vector<64xf32>
    %15 = vector.multi_reduction <add>, %6, %cst_13 [0] : vector<512x64xf32> to vector<64xf32>
    %16 = vector.shape_cast %15 : vector<64xf32> to vector<1x64xf32>
    %17 = vector.shape_cast %16 : vector<1x64xf32> to vector<1x1x64xf32>
    %18 = arith.addf %14, %17 : vector<1x1x64xf32>
    %c0_14 = arith.constant 0 : index
    %c0_15 = arith.constant 0 : index
    %c0_16 = arith.constant 0 : index
    %19 = vector.load %arg6[%c0_14, %c0_15, %c0_16] : memref<1x1x64xf32, #tpu.memory_space<vmem>>, vector<1x1x64xf32>
    tpu.vector_store %arg6[%c0_14, %c0_15, %c0_16], %18 {strides = array<i32>} : memref<1x1x64xf32, #tpu.memory_space<vmem>>, vector<1x1x64xf32>,
    return
  }
  func.func @transform_0(%arg0: i32, %arg1: i32) -> (i32, i32, i32) {
    %c0_i32 = arith.constant 0 : i32
    %c0_i32_0 = arith.constant 0 : i32
    return %arg0, %arg1, %c0_i32 : i32, i32, i32
  }
  func.func @transform_1(%arg0: i32, %arg1: i32) -> (i32, i32) {
    %c0_i32 = arith.constant 0 : i32
    %c0_i32_0 = arith.constant 0 : i32
    %c0_i32_1 = arith.constant 0 : i32
    return %c0_i32, %c0_i32_0 : i32, i32
  }
  func.func @transform_2(%arg0: i32, %arg1: i32) -> (i32, i32) {
    %c0_i32 = arith.constant 0 : i32
    %c0_i32_0 = arith.constant 0 : i32
    %c0_i32_1 = arith.constant 0 : i32
    return %c0_i32, %c0_i32_0 : i32, i32
  }
  func.func @transform_3(%arg0: i32, %arg1: i32) -> (i32, i32, i32) {
    %c0_i32 = arith.constant 0 : i32
    %c0_i32_0 = arith.constant 0 : i32
    return %arg0, %arg1, %c0_i32 : i32, i32, i32
  }
  func.func @transform_4(%arg0: i32, %arg1: i32) -> (i32, i32, i32) {
    %c0_i32 = arith.constant 0 : i32
    %c0_i32_0 = arith.constant 0 : i32
    %c0_i32_1 = arith.constant 0 : i32
    return %arg0, %c0_i32, %c0_i32_0 : i32, i32, i32
  }
}

module attributes {stable_mosaic.version = 11 : i64} {
  func.func @_se_scale_residual_kernel(%arg0: i32, %arg1: i32, %arg2: memref<1xf32, #tpu.memory_space<smem>>, %arg3: memref<1x512x64xbf16, #tpu.memory_space<vmem>>, %arg4: memref<1x1x64xf32, #tpu.memory_space<vmem>>, %arg5: memref<1x512x16xbf16, #tpu.memory_space<vmem>>, %arg6: memref<16x64xbf16, #tpu.memory_space<vmem>>, %arg7: memref<1x64xf32, #tpu.memory_space<vmem>>, %arg8: memref<1x512x64xf32, #tpu.memory_space<vmem>>) attributes {dimension_semantics = [#tpu.dimension_semantics<parallel>, #tpu.dimension_semantics<parallel>], iteration_bounds = array<i64: 2, 1>, scalar_prefetch = 0 : i64, scratch_operands = 0 : i64, tpu.core_type = #tpu.core_type<tc>, window_params = [{transform_indices = @transform_0, window_bounds = array<i64: 1>}, {transform_indices = @transform_1, window_bounds = array<i64: 1, 512, 64>}, {transform_indices = @transform_2, window_bounds = array<i64: 1, 1, 64>}, {transform_indices = @transform_3, window_bounds = array<i64: 1, 512, 16>}, {pipeline_mode = #tpu.pipeline_mode<synchronous>, transform_indices = @transform_4, window_bounds = array<i64: 16, 64>}, {pipeline_mode = #tpu.pipeline_mode<synchronous>, transform_indices = @transform_5, window_bounds = array<i64: 1, 64>}, {transform_indices = @transform_6, window_bounds = array<i64: 1, 512, 64>}]} {
    %c0 = arith.constant 0 : index
    %c0_0 = arith.constant 0 : index
    %c0_1 = arith.constant 0 : index
    %0 = vector.load %arg5[%c0, %c0_0, %c0_1] : memref<1x512x16xbf16, #tpu.memory_space<vmem>>, vector<1x512x16xbf16>
    %1 = vector.shape_cast %0 : vector<1x512x16xbf16> to vector<512x16xbf16>
    %c0_2 = arith.constant 0 : index
    %c0_3 = arith.constant 0 : index
    %2 = vector.load %arg6[%c0_2, %c0_3] : memref<16x64xbf16, #tpu.memory_space<vmem>>, vector<16x64xbf16>
    %cst = arith.constant dense<0.000000e+00> : vector<512x64xf32>
    %3 = tpu.matmul %1, %2, %cst {dimension_numbers = #tpu.dot_dimension_numbers<[1], [0], [0], [1], [0, 0, 1, 1], [], []>} : vector<512x16xbf16>, vector<16x64xbf16>, vector<512x64xf32> -> vector<512x64xf32>
    %c0_4 = arith.constant 0 : index
    %c0_5 = arith.constant 0 : index
    %4 = vector.load %arg7[%c0_4, %c0_5] : memref<1x64xf32, #tpu.memory_space<vmem>>, vector<1x64xf32>
    %5 = vector.broadcast %4 : vector<1x64xf32> to vector<512x64xf32>
    %6 = arith.addf %3, %5 : vector<512x64xf32>
    %c0_6 = arith.constant 0 : index
    %c0_7 = arith.constant 0 : index
    %c0_8 = arith.constant 0 : index
    %7 = vector.load %arg3[%c0_6, %c0_7, %c0_8] : memref<1x512x64xbf16, #tpu.memory_space<vmem>>, vector<1x512x64xbf16>
    %8 = vector.shape_cast %7 : vector<1x512x64xbf16> to vector<512x64xbf16>
    %9 = arith.extf %8 : vector<512x64xbf16> to vector<512x64xf32>
    %c0_9 = arith.constant 0 : index
    %c0_10 = arith.constant 0 : index
    %c0_11 = arith.constant 0 : index
    %10 = vector.load %arg4[%c0_9, %c0_10, %c0_11] : memref<1x1x64xf32, #tpu.memory_space<vmem>>, vector<1x1x64xf32>
    %11 = vector.shape_cast %10 : vector<1x1x64xf32> to vector<1x64xf32>
    %12 = vector.broadcast %11 : vector<1x64xf32> to vector<512x64xf32>
    %13 = arith.mulf %9, %12 : vector<512x64xf32>
    %14 = arith.addf %13, %6 : vector<512x64xf32>
    %c0_12 = arith.constant 0 : index
    %15 = memref.load %arg2[%c0_12] : memref<1xf32, #tpu.memory_space<smem>>
    %cst_13 = arith.constant 0.000000e+00 : f32
    %16 = vector.broadcast %cst_13 : f32 to vector<512x64xf32>
    %17 = arith.cmpf oge, %14, %16 : vector<512x64xf32>
    %18 = vector.broadcast %15 : f32 to vector<512x64xf32>
    %19 = arith.mulf %18, %14 : vector<512x64xf32>
    %20 = arith.select %17, %14, %19 : vector<512x64xi1>, vector<512x64xf32>
    %c0_14 = arith.constant 0 : index
    %c0_15 = arith.constant 0 : index
    %c0_16 = arith.constant 0 : index
    %21 = vector.load %arg8[%c0_14, %c0_15, %c0_16] : memref<1x512x64xf32, #tpu.memory_space<vmem>>, vector<1x512x64xf32>
    %22 = vector.shape_cast %21 : vector<1x512x64xf32> to vector<512x64xf32>
    %23 = vector.shape_cast %20 : vector<512x64xf32> to vector<1x512x64xf32>
    tpu.vector_store %arg8[%c0_14, %c0_15, %c0_16], %23 {strides = array<i32>} : memref<1x512x64xf32, #tpu.memory_space<vmem>>, vector<1x512x64xf32>,
    return
  }
  func.func @transform_0(%arg0: i32, %arg1: i32) -> i32 {
    %c0_i32 = arith.constant 0 : i32
    %c0_i32_0 = arith.constant 0 : i32
    return %c0_i32 : i32
  }
  func.func @transform_1(%arg0: i32, %arg1: i32) -> (i32, i32, i32) {
    %c0_i32 = arith.constant 0 : i32
    %c0_i32_0 = arith.constant 0 : i32
    return %arg0, %arg1, %c0_i32 : i32, i32, i32
  }
  func.func @transform_2(%arg0: i32, %arg1: i32) -> (i32, i32, i32) {
    %c0_i32 = arith.constant 0 : i32
    %c0_i32_0 = arith.constant 0 : i32
    %c0_i32_1 = arith.constant 0 : i32
    return %arg0, %c0_i32, %c0_i32_0 : i32, i32, i32
  }
  func.func @transform_3(%arg0: i32, %arg1: i32) -> (i32, i32, i32) {
    %c0_i32 = arith.constant 0 : i32
    %c0_i32_0 = arith.constant 0 : i32
    return %arg0, %arg1, %c0_i32 : i32, i32, i32
  }
  func.func @transform_4(%arg0: i32, %arg1: i32) -> (i32, i32) {
    %c0_i32 = arith.constant 0 : i32
    %c0_i32_0 = arith.constant 0 : i32
    %c0_i32_1 = arith.constant 0 : i32
    return %c0_i32, %c0_i32_0 : i32, i32
  }
  func.func @transform_5(%arg0: i32, %arg1: i32) -> (i32, i32) {
    %c0_i32 = arith.constant 0 : i32
    %c0_i32_0 = arith.constant 0 : i32
    %c0_i32_1 = arith.constant 0 : i32
    return %c0_i32, %c0_i32_0 : i32, i32
  }
  func.func @transform_6(%arg0: i32, %arg1: i32) -> (i32, i32, i32) {
    %c0_i32 = arith.constant 0 : i32
    %c0_i32_0 = arith.constant 0 : i32
    return %arg0, %arg1, %c0_i32 : i32, i32, i32
  }
}

</mosaic_0001>

<llo_original>
// kernel: senet_bottleneck_pallas.4
$region0: #{senet_bottleneck_pallas.4}
  #allocation0 [shape = 'u32[]', space=smem, size = 0x4, offset = 0x4, fixed_abs, tag = 'smem constant byte address 0x4 - core index']
  #allocation1 [shape = 'u32[144,128]{1,0:T(1,128)}', space=vmem, size = 0x12000, scoped, tag = 'internal scratch']
  #allocation2 [shape = 'f32[1]{0:T(128)S(6)}', space=smem, size = 0x200, scoped, tag = 'scoped memory for senet_bottleneck_pallas.4']
  %s0 = inlined_call_operand.<no memory space> [shape: f32[1], index: 0, kind: input, shape index: {}]
  %s1 = inlined_call_operand.vmem [shape: bf16[1024,16], index: 1, kind: input, shape index: {}]
  %s2 = inlined_call_operand.vmem [shape: bf16[16,32], index: 2, kind: input, shape index: {}]
  %s3 = inlined_call_operand.vmem [shape: f32[1,32], index: 3, kind: input, shape index: {}]
  %s4 = inlined_call_operand.vmem [shape: bf16[1024,32], index: 4, kind: output, shape index: {}]
  %s5 = sld [smem:[#allocation0]]
  $region26: #{senet_bottleneck_pallas.4} parent=0
    _
  %s7 = ssub.s32 1, %s5
  %s8 = scalar_select 0, %s7, %s5
  %9 = sst [smem:[#allocation2]] %s0
  // Predicated region
  $region2: #{senet_bottleneck_pallas.4} parent=0 // pred_check
    _
  $region3: #{senet_bottleneck_pallas.4} parent=0 // pred_check_branch
    %11 = sbr.rel (0) target = $region5
  $region4: #{senet_bottleneck_pallas.4} parent=0 // pred_region
    _
  $region5: #{senet_bottleneck_pallas.4} parent=0 // pred_fallthru
    _
  // Predicated region
  $region6: #{senet_bottleneck_pallas.4} parent=0 // pred_check
    _
  $region7: #{senet_bottleneck_pallas.4} parent=0 // pred_check_branch
    %13 = sbr.rel (0) target = $region9
  $region8: #{senet_bottleneck_pallas.4} parent=0 // pred_region
    _
  $region9: #{senet_bottleneck_pallas.4} parent=0 // pred_fallthru
    _
  // Predicated region
  $region10: #{senet_bottleneck_pallas.4} parent=0 // pred_check
    _
  $region11: #{senet_bottleneck_pallas.4} parent=0 // pred_check_branch
    %15 = sbr.rel (0) target = $region13
  $region12: #{senet_bottleneck_pallas.4} parent=0 // pred_region
    _
  $region13: #{senet_bottleneck_pallas.4} parent=0 // pred_fallthru
    _
  // Predicated region
  $region14: #{senet_bottleneck_pallas.4} parent=0 // pred_check
    _
  $region15: #{senet_bottleneck_pallas.4} parent=0 // pred_check_branch
    %17 = sbr.rel (0) target = $region17
  $region16: #{senet_bottleneck_pallas.4} parent=0 // pred_region
    _
  $region17: #{senet_bottleneck_pallas.4} parent=0 // pred_fallthru
    _
  %v19 = vld [vmem:[%s1] sm:$0xf]
  %v20 = vld [vmem:[%s1 + $0x4] sm:$0xf]
  %v21 = vld [vmem:[%s1 + $0x8] sm:$0xf]
  %v22 = vld [vmem:[%s1 + $0xc] sm:$0xf]
  %v23 = vld [vmem:[%s1 + $0x10] sm:$0xf]
  %v24 = vld [vmem:[%s1 + $0x14] sm:$0xf]
  %v25 = vld [vmem:[%s1 + $0x18] sm:$0xf]
  %v26 = vld [vmem:[%s1 + $0x1c] sm:$0xf]
  %v27 = vld [vmem:[%s1 + $0x20] sm:$0xf]
  %v28 = vld [vmem:[%s1 + $0x24] sm:$0xf]
  %v29 = vld [vmem:[%s1 + $0x28] sm:$0xf]
  %v30 = vld [vmem:[%s1 + $0x2c] sm:$0xf]
  %v31 = vld [vmem:[%s1 + $0x30] sm:$0xf]
  %v32 = vld [vmem:[%s1 + $0x34] sm:$0xf]
  %v33 = vld [vmem:[%s1 + $0x38] sm:$0xf]
  %v34 = vld [vmem:[%s1 + $0x3c] sm:$0xf]
  %v35 = vld [vmem:[%s1 + $0x40] sm:$0xf]
  %v36 = vld [vmem:[%s1 + $0x44] sm:$0xf]
  %v37 = vld [vmem:[%s1 + $0x48] sm:$0xf]
  %v38 = vld [vmem:[%s1 + $0x4c] sm:$0xf]
  %v39 = vld [vmem:[%s1 + $0x50] sm:$0xf]
  %v40 = vld [vmem:[%s1 + $0x54] sm:$0xf]
  %v41 = vld [vmem:[%s1 + $0x58] sm:$0xf]
  %v42 = vld [vmem:[%s1 + $0x5c] sm:$0xf]
  %v43 = vld [vmem:[%s1 + $0x60] sm:$0xf]
  %v44 = vld [vmem:[%s1 + $0x64] sm:$0xf]
  %v45 = vld [vmem:[%s1 + $0x68] sm:$0xf]
  %v46 = vld [vmem:[%s1 + $0x6c] sm:$0xf]
  %v47 = vld [vmem:[%s1 + $0x70] sm:$0xf]
  %v48 = vld [vmem:[%s1 + $0x74] sm:$0xf]
  %v49 = vld [vmem:[%s1 + $0x78] sm:$0xf]
  %v50 = vld [vmem:[%s1 + $0x7c] sm:$0xf]
  %v51 = vld [vmem:[%s1 + $0x80] sm:$0xf]
  %v52 = vld [vmem:[%s1 + $0x84] sm:$0xf]
  %v53 = vld [vmem:[%s1 + $0x88] sm:$0xf]
  %v54 = vld [vmem:[%s1 + $0x8c] sm:$0xf]
  %v55 = vld [vmem:[%s1 + $0x90] sm:$0xf]
  %v56 = vld [vmem:[%s1 + $0x94] sm:$0xf]
  %v57 = vld [vmem:[%s1 + $0x98] sm:$0xf]
  %v58 = vld [vmem:[%s1 + $0x9c] sm:$0xf]
  %v59 = vld [vmem:[%s1 + $0xa0] sm:$0xf]
  %v60 = vld [vmem:[%s1 + $0xa4] sm:$0xf]
  %v61 = vld [vmem:[%s1 + $0xa8] sm:$0xf]
  %v62 = vld [vmem:[%s1 + $0xac] sm:$0xf]
  %v63 = vld [vmem:[%s1 + $0xb0] sm:$0xf]
  %v64 = vld [vmem:[%s1 + $0xb4] sm:$0xf]
  %v65 = vld [vmem:[%s1 + $0xb8] sm:$0xf]
  %v66 = vld [vmem:[%s1 + $0xbc] sm:$0xf]
  %v67 = vld [vmem:[%s1 + $0xc0] sm:$0xf]
  %v68 = vld [vmem:[%s1 + $0xc4] sm:$0xf]
  %v69 = vld [vmem:[%s1 + $0xc8] sm:$0xf]
  %v70 = vld [vmem:[%s1 + $0xcc] sm:$0xf]
  %v71 = vld [vmem:[%s1 + $0xd0] sm:$0xf]
  %v72 = vld [vmem:[%s1 + $0xd4] sm:$0xf]
  %v73 = vld [vmem:[%s1 + $0xd8] sm:$0xf]
  %v74 = vld [vmem:[%s1 + $0xdc] sm:$0xf]
  %v75 = vld [vmem:[%s1 + $0xe0] sm:$0xf]
  %v76 = vld [vmem:[%s1 + $0xe4] sm:$0xf]
  %v77 = vld [vmem:[%s1 + $0xe8] sm:$0xf]
  %v78 = vld [vmem:[%s1 + $0xec] sm:$0xf]
  %v79 = vld [vmem:[%s1 + $0xf0] sm:$0xf]
  %v80 = vld [vmem:[%s1 + $0xf4] sm:$0xf]
  %v81 = vld [vmem:[%s1 + $0xf8] sm:$0xf]
  %v82 = vld [vmem:[%s1 + $0xfc] sm:$0xf]
  %v83 = vld [vmem:[%s1 + $0x100] sm:$0xf]
  %v84 = vld [vmem:[%s1 + $0x104] sm:$0xf]
  %v85 = vld [vmem:[%s1 + $0x108] sm:$0xf]
  %v86 = vld [vmem:[%s1 + $0x10c] sm:$0xf]
  %v87 = vld [vmem:[%s1 + $0x110] sm:$0xf]
  %v88 = vld [vmem:[%s1 + $0x114] sm:$0xf]
  %v89 = vld [vmem:[%s1 + $0x118] sm:$0xf]
  %v90 = vld [vmem:[%s1 + $0x11c] sm:$0xf]
  %v91 = vld [vmem:[%s1 + $0x120] sm:$0xf]
  %v92 = vld [vmem:[%s1 + $0x124] sm:$0xf]
  %v93 = vld [vmem:[%s1 + $0x128] sm:$0xf]
  %v94 = vld [vmem:[%s1 + $0x12c] sm:$0xf]
  %v95 = vld [vmem:[%s1 + $0x130] sm:$0xf]
  %v96 = vld [vmem:[%s1 + $0x134] sm:$0xf]
  %v97 = vld [vmem:[%s1 + $0x138] sm:$0xf]
  %v98 = vld [vmem:[%s1 + $0x13c] sm:$0xf]
  %v99 = vld [vmem:[%s1 + $0x140] sm:$0xf]
  %v100 = vld [vmem:[%s1 + $0x144] sm:$0xf]
  %v101 = vld [vmem:[%s1 + $0x148] sm:$0xf]
  %v102 = vld [vmem:[%s1 + $0x14c] sm:$0xf]
  %v103 = vld [vmem:[%s1 + $0x150] sm:$0xf]
  %v104 = vld [vmem:[%s1 + $0x154] sm:$0xf]
  %v105 = vld [vmem:[%s1 + $0x158] sm:$0xf]
  %v106 = vld [vmem:[%s1 + $0x15c] sm:$0xf]
  %v107 = vld [vmem:[%s1 + $0x160] sm:$0xf]
  %v108 = vld [vmem:[%s1 + $0x164] sm:$0xf]
  %v109 = vld [vmem:[%s1 + $0x168] sm:$0xf]
  %v110 = vld [vmem:[%s1 + $0x16c] sm:$0xf]
  %v111 = vld [vmem:[%s1 + $0x170] sm:$0xf]
  %v112 = vld [vmem:[%s1 + $0x174] sm:$0xf]
  %v113 = vld [vmem:[%s1 + $0x178] sm:$0xf]
  %v114 = vld [vmem:[%s1 + $0x17c] sm:$0xf]
  %v115 = vld [vmem:[%s1 + $0x180] sm:$0xf]
  %v116 = vld [vmem:[%s1 + $0x184] sm:$0xf]
  %v117 = vld [vmem:[%s1 + $0x188] sm:$0xf]
  %v118 = vld [vmem:[%s1 + $0x18c] sm:$0xf]
  %v119 = vld [vmem:[%s1 + $0x190] sm:$0xf]
  %v120 = vld [vmem:[%s1 + $0x194] sm:$0xf]
  %v121 = vld [vmem:[%s1 + $0x198] sm:$0xf]
  %v122 = vld [vmem:[%s1 + $0x19c] sm:$0xf]
  %v123 = vld [vmem:[%s1 + $0x1a0] sm:$0xf]
  %v124 = vld [vmem:[%s1 + $0x1a4] sm:$0xf]
  %v125 = vld [vmem:[%s1 + $0x1a8] sm:$0xf]
  %v126 = vld [vmem:[%s1 + $0x1ac] sm:$0xf]
  %v127 = vld [vmem:[%s1 + $0x1b0] sm:$0xf]
  %v128 = vld [vmem:[%s1 + $0x1b4] sm:$0xf]
  %v129 = vld [vmem:[%s1 + $0x1b8] sm:$0xf]
  %v130 = vld [vmem:[%s1 + $0x1bc] sm:$0xf]
  %v131 = vld [vmem:[%s1 + $0x1c0] sm:$0xf]
  %v132 = vld [vmem:[%s1 + $0x1c4] sm:$0xf]
  %v133 = vld [vmem:[%s1 + $0x1c8] sm:$0xf]
  %v134 = vld [vmem:[%s1 + $0x1cc] sm:$0xf]
  %v135 = vld [vmem:[%s1 + $0x1d0] sm:$0xf]
  %v136 = vld [vmem:[%s1 + $0x1d4] sm:$0xf]
  %v137 = vld [vmem:[%s1 + $0x1d8] sm:$0xf]
  %v138 = vld [vmem:[%s1 + $0x1dc] sm:$0xf]
  %v139 = vld [vmem:[%s1 + $0x1e0] sm:$0xf]
  %v140 = vld [vmem:[%s1 + $0x1e4] sm:$0xf]
  %v141 = vld [vmem:[%s1 + $0x1e8] sm:$0xf]
  %v142 = vld [vmem:[%s1 + $0x1ec] sm:$0xf]
  %v143 = vld [vmem:[%s1 + $0x1f0] sm:$0xf]
  %v144 = vld [vmem:[%s1 + $0x1f4] sm:$0xf]
  %v145 = vld [vmem:[%s1 + $0x1f8] sm:$0xf]
  %v146 = vld [vmem:[%s1 + $0x1fc] sm:$0xf]
  %v147 = vld [vmem:[%s2] sm:$0xf]
  %v148 = vld [vmem:[%s2 + $0x4] sm:$0xf]
  %v149 = vld [vmem:[%s3] sm:$0x1]
  %v151 = vlaneseq
  %v152 = vshrl.u32 %v151, 7
  %v153 = vsub.s32 0, %v152
  %v154 = vrot.slane %v149, %v153
  %v284 = vunpack.c.l.b16 %v19
  %v285 = vunpack.c.l.b16 %v20
  %v286 = vunpack.c.l.b16 %v21
  %v287 = vunpack.c.l.b16 %v22
  %v288 = vunpack.c.l.b16 %v23
  %v289 = vunpack.c.l.b16 %v24
  %v290 = vunpack.c.l.b16 %v25
  %v291 = vunpack.c.l.b16 %v26
  %v292 = vunpack.c.l.b16 %v27
  %v293 = vunpack.c.l.b16 %v28
  %v294 = vunpack.c.l.b16 %v29
  %v295 = vunpack.c.l.b16 %v30
  %v296 = vunpack.c.l.b16 %v31
  %v297 = vunpack.c.l.b16 %v32
  %v298 = vunpack.c.l.b16 %v33
  %v299 = vunpack.c.l.b16 %v34
  %v300 = vunpack.c.l.b16 %v35
  %v301 = vunpack.c.l.b16 %v36
  %v302 = vunpack.c.l.b16 %v37
  %v303 = vunpack.c.l.b16 %v38
  %v304 = vunpack.c.l.b16 %v39
  %v305 = vunpack.c.l.b16 %v40
  %v306 = vunpack.c.l.b16 %v41
  %v307 = vunpack.c.l.b16 %v42
  %v308 = vunpack.c.l.b16 %v43
  %v309 = vunpack.c.l.b16 %v44
  %v310 = vunpack.c.l.b16 %v45
  %v311 = vunpack.c.l.b16 %v46
  %v312 = vunpack.c.l.b16 %v47
  %v313 = vunpack.c.l.b16 %v48
  %v314 = vunpack.c.l.b16 %v49
  %v315 = vunpack.c.l.b16 %v50
  %v316 = vunpack.c.l.b16 %v51
  %v317 = vunpack.c.l.b16 %v52
  %v318 = vunpack.c.l.b16 %v53
  %v319 = vunpack.c.l.b16 %v54
  %v320 = vunpack.c.l.b16 %v55
  %v321 = vunpack.c.l.b16 %v56
  %v322 = vunpack.c.l.b16 %v57
  %v323 = vunpack.c.l.b16 %v58
  %v324 = vunpack.c.l.b16 %v59
  %v325 = vunpack.c.l.b16 %v60
  %v326 = vunpack.c.l.b16 %v61
  %v327 = vunpack.c.l.b16 %v62
  %v328 = vunpack.c.l.b16 %v63
  %v329 = vunpack.c.l.b16 %v64
  %v330 = vunpack.c.l.b16 %v65
  %v331 = vunpack.c.l.b16 %v66
  %v332 = vunpack.c.l.b16 %v67
  %v333 = vunpack.c.l.b16 %v68
  %v334 = vunpack.c.l.b16 %v69
  %v335 = vunpack.c.l.b16 %v70
  %v336 = vunpack.c.l.b16 %v71
  %v337 = vunpack.c.l.b16 %v72
  %v338 = vunpack.c.l.b16 %v73
  %v339 = vunpack.c.l.b16 %v74
  %v340 = vunpack.c.l.b16 %v75
  %v341 = vunpack.c.l.b16 %v76
  %v342 = vunpack.c.l.b16 %v77
  %v343 = vunpack.c.l.b16 %v78
  %v344 = vunpack.c.l.b16 %v79
  %v345 = vunpack.c.l.b16 %v80
  %v346 = vunpack.c.l.b16 %v81
  %v347 = vunpack.c.l.b16 %v82
  %v348 = vunpack.c.l.b16 %v83
  %v349 = vunpack.c.l.b16 %v84
  %v350 = vunpack.c.l.b16 %v85
  %v351 = vunpack.c.l.b16 %v86
  %v352 = vunpack.c.l.b16 %v87
  %v353 = vunpack.c.l.b16 %v88
  %v354 = vunpack.c.l.b16 %v89
  %v355 = vunpack.c.l.b16 %v90
  %v356 = vunpack.c.l.b16 %v91
  %v357 = vunpack.c.l.b16 %v92
  %v358 = vunpack.c.l.b16 %v93
  %v359 = vunpack.c.l.b16 %v94
  %v360 = vunpack.c.l.b16 %v95
  %v361 = vunpack.c.l.b16 %v96
  %v362 = vunpack.c.l.b16 %v97
  %v363 = vunpack.c.l.b16 %v98
  %v364 = vunpack.c.l.b16 %v99
  %v365 = vunpack.c.l.b16 %v100
  %v366 = vunpack.c.l.b16 %v101
  %v367 = vunpack.c.l.b16 %v102
  %v368 = vunpack.c.l.b16 %v103
  %v369 = vunpack.c.l.b16 %v104
  %v370 = vunpack.c.l.b16 %v105
  %v371 = vunpack.c.l.b16 %v106
  %v372 = vunpack.c.l.b16 %v107
  %v373 = vunpack.c.l.b16 %v108
  %v374 = vunpack.c.l.b16 %v109
  %v375 = vunpack.c.l.b16 %v110
  %v376 = vunpack.c.l.b16 %v111
  %v377 = vunpack.c.l.b16 %v112
  %v378 = vunpack.c.l.b16 %v113
  %v379 = vunpack.c.l.b16 %v114
  %v380 = vunpack.c.l.b16 %v115
  %v381 = vunpack.c.l.b16 %v116
  %v382 = vunpack.c.l.b16 %v117
  %v383 = vunpack.c.l.b16 %v118
  %v384 = vunpack.c.l.b16 %v119
  %v385 = vunpack.c.l.b16 %v120
  %v386 = vunpack.c.l.b16 %v121
  %v387 = vunpack.c.l.b16 %v122
  %v388 = vunpack.c.l.b16 %v123
  %v389 = vunpack.c.l.b16 %v124
  %v390 = vunpack.c.l.b16 %v125
  %v391 = vunpack.c.l.b16 %v126
  %v392 = vunpack.c.l.b16 %v127
  %v393 = vunpack.c.l.b16 %v128
  %v394 = vunpack.c.l.b16 %v129
  %v395 = vunpack.c.l.b16 %v130
  %v396 = vunpack.c.l.b16 %v131
  %v397 = vunpack.c.l.b16 %v132
  %v398 = vunpack.c.l.b16 %v133
  %v399 = vunpack.c.l.b16 %v134
  %v400 = vunpack.c.l.b16 %v135
  %v401 = vunpack.c.l.b16 %v136
  %v402 = vunpack.c.l.b16 %v137
  %v403 = vunpack.c.l.b16 %v138
  %v404 = vunpack.c.l.b16 %v139
  %v405 = vunpack.c.l.b16 %v140
  %v406 = vunpack.c.l.b16 %v141
  %v407 = vunpack.c.l.b16 %v142
  %v408 = vunpack.c.l.b16 %v143
  %v409 = vunpack.c.l.b16 %v144
  %v410 = vunpack.c.l.b16 %v145
  %v411 = vunpack.c.l.b16 %v146
  %v412 = vpack.c.b16 %v285, %v284
  %v413 = vpack.c.b16 %v287, %v286
  %v414 = vpack.c.b16 %v289, %v288
  %v415 = vpack.c.b16 %v291, %v290
  %v416 = vpack.c.b16 %v293, %v292
  %v417 = vpack.c.b16 %v295, %v294
  %v418 = vpack.c.b16 %v297, %v296
  %v419 = vpack.c.b16 %v299, %v298
  %v420 = vpack.c.b16 %v301, %v300
  %v421 = vpack.c.b16 %v303, %v302
  %v422 = vpack.c.b16 %v305, %v304
  %v423 = vpack.c.b16 %v307, %v306
  %v424 = vpack.c.b16 %v309, %v308
  %v425 = vpack.c.b16 %v311, %v310
  %v426 = vpack.c.b16 %v313, %v312
  %v427 = vpack.c.b16 %v315, %v314
  %v428 = vpack.c.b16 %v317, %v316
  %v429 = vpack.c.b16 %v319, %v318
  %v430 = vpack.c.b16 %v321, %v320
  %v431 = vpack.c.b16 %v323, %v322
  %v432 = vpack.c.b16 %v325, %v324
  %v433 = vpack.c.b16 %v327, %v326
  %v434 = vpack.c.b16 %v329, %v328
  %v435 = vpack.c.b16 %v331, %v330
  %v436 = vpack.c.b16 %v333, %v332
  %v437 = vpack.c.b16 %v335, %v334
  %v438 = vpack.c.b16 %v337, %v336
  %v439 = vpack.c.b16 %v339, %v338
  %v440 = vpack.c.b16 %v341, %v340
  %v441 = vpack.c.b16 %v343, %v342
  %v442 = vpack.c.b16 %v345, %v344
  %v443 = vpack.c.b16 %v347, %v346
  %v444 = vpack.c.b16 %v349, %v348
  %v445 = vpack.c.b16 %v351, %v350
  %v446 = vpack.c.b16 %v353, %v352
  %v447 = vpack.c.b16 %v355, %v354
  %v448 = vpack.c.b16 %v357, %v356
  %v449 = vpack.c.b16 %v359, %v358
  %v450 = vpack.c.b16 %v361, %v360
  %v451 = vpack.c.b16 %v363, %v362
  %v452 = vpack.c.b16 %v365, %v364
  %v453 = vpack.c.b16 %v367, %v366
  %v454 = vpack.c.b16 %v369, %v368
  %v455 = vpack.c.b16 %v371, %v370
  %v456 = vpack.c.b16 %v373, %v372
  %v457 = vpack.c.b16 %v375, %v374
  %v458 = vpack.c.b16 %v377, %v376
  %v459 = vpack.c.b16 %v379, %v378
  %v460 = vpack.c.b16 %v381, %v380
  %v461 = vpack.c.b16 %v383, %v382
  %v462 = vpack.c.b16 %v385, %v384
  %v463 = vpack.c.b16 %v387, %v386
  %v464 = vpack.c.b16 %v389, %v388
  %v465 = vpack.c.b16 %v391, %v390
  %v466 = vpack.c.b16 %v393, %v392
  %v467 = vpack.c.b16 %v395, %v394
  %v468 = vpack.c.b16 %v397, %v396
  %v469 = vpack.c.b16 %v399, %v398
  %v470 = vpack.c.b16 %v401, %v400
  %v471 = vpack.c.b16 %v403, %v402
  %v472 = vpack.c.b16 %v405, %v404
  %v473 = vpack.c.b16 %v407, %v406
  %v474 = vpack.c.b16 %v409, %v408
  %v475 = vpack.c.b16 %v411, %v410
  %v478 = vunpack.c.l.b16 %v147
  %v479 = vunpack.c.l.b16 %v148
  %v480 = vpack.c.b16 %v479, %v478
  %vm482 = vcmask 130048
  %v484 = vsel %vm482, %v412, 0
  %v487 = vsel %vm482, %v413, 0
  %v490 = vsel %vm482, %v414, 0
  %v493 = vsel %vm482, %v415, 0
  %v496 = vsel %vm482, %v416, 0
  %v499 = vsel %vm482, %v417, 0
  %v502 = vsel %vm482, %v418, 0
  %v505 = vsel %vm482, %v419, 0
  %v508 = vsel %vm482, %v420, 0
  %v511 = vsel %vm482, %v421, 0
  %v514 = vsel %vm482, %v422, 0
  %v517 = vsel %vm482, %v423, 0
  %v520 = vsel %vm482, %v424, 0
  %v523 = vsel %vm482, %v425, 0
  %v526 = vsel %vm482, %v426, 0
  %v529 = vsel %vm482, %v427, 0
  %v532 = vsel %vm482, %v428, 0
  %v535 = vsel %vm482, %v429, 0
  %v538 = vsel %vm482, %v430, 0
  %v541 = vsel %vm482, %v431, 0
  %v544 = vsel %vm482, %v432, 0
  %v547 = vsel %vm482, %v433, 0
  %v550 = vsel %vm482, %v434, 0
  %v553 = vsel %vm482, %v435, 0
  %v556 = vsel %vm482, %v436, 0
  %v559 = vsel %vm482, %v437, 0
  %v562 = vsel %vm482, %v438, 0
  %v565 = vsel %vm482, %v439, 0
  %v568 = vsel %vm482, %v440, 0
  %v571 = vsel %vm482, %v441, 0
  %v574 = vsel %vm482, %v442, 0
  %v577 = vsel %vm482, %v443, 0
  %v580 = vsel %vm482, %v444, 0
  %v583 = vsel %vm482, %v445, 0
  %v586 = vsel %vm482, %v446, 0
  %v589 = vsel %vm482, %v447, 0
  %v592 = vsel %vm482, %v448, 0
  %v595 = vsel %vm482, %v449, 0
  %v598 = vsel %vm482, %v450, 0
  %v601 = vsel %vm482, %v451, 0
  %v604 = vsel %vm482, %v452, 0
  %v607 = vsel %vm482, %v453, 0
  %v610 = vsel %vm482, %v454, 0
  %v613 = vsel %vm482, %v455, 0
  %v616 = vsel %vm482, %v456, 0
  %v619 = vsel %vm482, %v457, 0
  %v622 = vsel %vm482, %v458, 0
  %v625 = vsel %vm482, %v459, 0
  %v628 = vsel %vm482, %v460, 0
  %v631 = vsel %vm482, %v461, 0
  %v634 = vsel %vm482, %v462, 0
  %v637 = vsel %vm482, %v463, 0
  %v640 = vsel %vm482, %v464, 0
  %v643 = vsel %vm482, %v465, 0
  %v646 = vsel %vm482, %v466, 0
  %v649 = vsel %vm482, %v467, 0
  %v652 = vsel %vm482, %v468, 0
  %v655 = vsel %vm482, %v469, 0
  %v658 = vsel %vm482, %v470, 0
  %v661 = vsel %vm482, %v471, 0
  %v664 = vsel %vm482, %v472, 0
  %v667 = vsel %vm482, %v473, 0
  %v670 = vsel %vm482, %v474, 0
  %v673 = vsel %vm482, %v475, 0
  %675 = vmatprep.subr.bf16.mxu0 0
  %676 = vmatpush1.bf16.msra.mxu0 0
  %677 = vmatprep.subr.bf16.mxu0 0
  %678 = vmatpush1.bf16.msra.mxu0 0
  %679 = vmatprep.subr.bf16.mxu0 0
  %680 = vmatpush1.bf16.msra.mxu0 0
  %681 = vmatprep.subr.bf16.mxu0 0
  %682 = vmatpush1.bf16.msra.mxu0 0
  %683 = vmatprep.subr.bf16.mxu0 0
  %684 = vmatpush1.bf16.msra.mxu0 0
  %685 = vmatprep.subr.bf16.mxu0 0
  %686 = vmatpush1.bf16.msra.mxu0 0
  %687 = vmatprep.subr.bf16.mxu0 0
  %688 = vmatpush1.bf16.msra.mxu0 0
  %689 = vmatprep.subr.bf16.mxu0 0
  %690 = vmatpush1.bf16.msra.mxu0 %v480
  %691 = vmatprep.subr.bf16.mxu0 0
  %692 = vmatpush2.bf16.msra.mxu0 0
  %693 = vmatprep.subr.bf16.mxu0 0
  %694 = vmatpush2.bf16.msra.mxu0 0
  %695 = vmatprep.subr.bf16.mxu0 0
  %696 = vmatpush2.bf16.msra.mxu0 0
  %697 = vmatprep.subr.bf16.mxu0 0
  %698 = vmatpush2.bf16.msra.mxu0 0
  %699 = vmatprep.subr.bf16.mxu0 0
  %700 = vmatpush2.bf16.msra.mxu0 0
  %701 = vmatprep.subr.bf16.mxu0 0
  %702 = vmatpush2.bf16.msra.mxu0 0
  %703 = vmatprep.subr.bf16.mxu0 0
  %704 = vmatpush2.bf16.msra.mxu0 0
  %705 = vmatprep.subr.bf16.mxu0 0
  %706 = vmatpush2.bf16.msra.mxu0 0
  %707 = vmatprep.mubr.bf16.mxu0 0
  %708 = vmatmul.mubr.bf16.gmra.mxu0 %v484
  %v709 = vpop.f32.mrf.mxu0
  %v710 = vadd.f32 %v154, %v709
  %v711 = vpop.f32.mrf.mxu0
  %v712 = vpop.f32.mrf.mxu0
  %v713 = vadd.f32 %v154, %v712
  %v714 = vpop.f32.mrf.mxu0
  %715 = vmatprep.mubr.bf16.mxu0 0
  %716 = vmatmul.mubr.bf16.gmra.mxu0 %v487
  %v717 = vpop.f32.mrf.mxu0
  %v718 = vadd.f32 %v154, %v717
  %v719 = vpop.f32.mrf.mxu0
  %v720 = vpop.f32.mrf.mxu0
  %v721 = vadd.f32 %v154, %v720
  %v722 = vpop.f32.mrf.mxu0
  %723 = vmatprep.mubr.bf16.mxu0 0
  %724 = vmatmul.mubr.bf16.gmra.mxu0 %v490
  %v725 = vpop.f32.mrf.mxu0
  %v726 = vadd.f32 %v154, %v725
  %v727 = vpop.f32.mrf.mxu0
  %v728 = vpop.f32.mrf.mxu0
  %v729 = vadd.f32 %v154, %v728
  %v730 = vpop.f32.mrf.mxu0
  %731 = vmatprep.mubr.bf16.mxu0 0
  %732 = vmatmul.mubr.bf16.gmra.mxu0 %v493
  %v733 = vpop.f32.mrf.mxu0
  %v734 = vadd.f32 %v154, %v733
  %v735 = vpop.f32.mrf.mxu0
  %v736 = vpop.f32.mrf.mxu0
  %v737 = vadd.f32 %v154, %v736
  %v738 = vpop.f32.mrf.mxu0
  %739 = vmatprep.mubr.bf16.mxu0 0
  %740 = vmatmul.mubr.bf16.gmra.mxu0 %v496
  %v741 = vpop.f32.mrf.mxu0
  %v742 = vadd.f32 %v154, %v741
  %v743 = vpop.f32.mrf.mxu0
  %v744 = vpop.f32.mrf.mxu0
  %v745 = vadd.f32 %v154, %v744
  %v746 = vpop.f32.mrf.mxu0
  %747 = vmatprep.mubr.bf16.mxu0 0
  %748 = vmatmul.mubr.bf16.gmra.mxu0 %v499
  %v749 = vpop.f32.mrf.mxu0
  %v750 = vadd.f32 %v154, %v749
  %v751 = vpop.f32.mrf.mxu0
  %v752 = vpop.f32.mrf.mxu0
  %v753 = vadd.f32 %v154, %v752
  %v754 = vpop.f32.mrf.mxu0
  %755 = vmatprep.mubr.bf16.mxu0 0
  %756 = vmatmul.mubr.bf16.gmra.mxu0 %v502
  %v757 = vpop.f32.mrf.mxu0
  %v758 = vadd.f32 %v154, %v757
  %v759 = vpop.f32.mrf.mxu0
  %v760 = vpop.f32.mrf.mxu0
  %v761 = vadd.f32 %v154, %v760
  %v762 = vpop.f32.mrf.mxu0
  %763 = vmatprep.mubr.bf16.mxu0 0
  %764 = vmatmul.mubr.bf16.gmra.mxu0 %v505
  %v765 = vpop.f32.mrf.mxu0
  %v766 = vadd.f32 %v154, %v765
  %v767 = vpop.f32.mrf.mxu0
  %v768 = vpop.f32.mrf.mxu0
  %v769 = vadd.f32 %v154, %v768
  %v770 = vpop.f32.mrf.mxu0
  %771 = vmatprep.mubr.bf16.mxu0 0
  %772 = vmatmul.mubr.bf16.gmra.mxu0 %v508
  %v773 = vpop.f32.mrf.mxu0
  %v774 = vadd.f32 %v154, %v773
  %v775 = vpop.f32.mrf.mxu0
  %v776 = vpop.f32.mrf.mxu0
  %v777 = vadd.f32 %v154, %v776
  %v778 = vpop.f32.mrf.mxu0
  %779 = vmatprep.mubr.bf16.mxu0 0
  %780 = vmatmul.mubr.bf16.gmra.mxu0 %v511
  %v781 = vpop.f32.mrf.mxu0
  %v782 = vadd.f32 %v154, %v781
  %v783 = vpop.f32.mrf.mxu0
  %v784 = vpop.f32.mrf.mxu0
  %v785 = vadd.f32 %v154, %v784
  %v786 = vpop.f32.mrf.mxu0
  %787 = vmatprep.mubr.bf16.mxu0 0
  %788 = vmatmul.mubr.bf16.gmra.mxu0 %v514
  %v789 = vpop.f32.mrf.mxu0
  %v790 = vadd.f32 %v154, %v789
  %v791 = vpop.f32.mrf.mxu0
  %v792 = vpop.f32.mrf.mxu0
  %v793 = vadd.f32 %v154, %v792
  %v794 = vpop.f32.mrf.mxu0
  %795 = vmatprep.mubr.bf16.mxu0 0
  %796 = vmatmul.mubr.bf16.gmra.mxu0 %v517
  %v797 = vpop.f32.mrf.mxu0
  %v798 = vadd.f32 %v154, %v797
  %v799 = vpop.f32.mrf.mxu0
  %v800 = vpop.f32.mrf.mxu0
  %v801 = vadd.f32 %v154, %v800
  %v802 = vpop.f32.mrf.mxu0
  %803 = vmatprep.mubr.bf16.mxu0 0
  %804 = vmatmul.mubr.bf16.gmra.mxu0 %v520
  %v805 = vpop.f32.mrf.mxu0
  %v806 = vadd.f32 %v154, %v805
  %v807 = vpop.f32.mrf.mxu0
  %v808 = vpop.f32.mrf.mxu0
  %v809 = vadd.f32 %v154, %v808
  %v810 = vpop.f32.mrf.mxu0
  %811 = vmatprep.mubr.bf16.mxu0 0
  %812 = vmatmul.mubr.bf16.gmra.mxu0 %v523
  %v813 = vpop.f32.mrf.mxu0
  %v814 = vadd.f32 %v154, %v813
  %v815 = vpop.f32.mrf.mxu0
  %v816 = vpop.f32.mrf.mxu0
  %v817 = vadd.f32 %v154, %v816
  %v818 = vpop.f32.mrf.mxu0
  %819 = vmatprep.mubr.bf16.mxu0 0
  %820 = vmatmul.mubr.bf16.gmra.mxu0 %v526
  %v821 = vpop.f32.mrf.mxu0
  %v822 = vadd.f32 %v154, %v821
  %v823 = vpop.f32.mrf.mxu0
  %v824 = vpop.f32.mrf.mxu0
  %v825 = vadd.f32 %v154, %v824
  %v826 = vpop.f32.mrf.mxu0
  %827 = vmatprep.mubr.bf16.mxu0 0
  %828 = vmatmul.mubr.bf16.gmra.mxu0 %v529
  %v829 = vpop.f32.mrf.mxu0
  %v830 = vadd.f32 %v154, %v829
  %v831 = vpop.f32.mrf.mxu0
  %v832 = vpop.f32.mrf.mxu0
  %v833 = vadd.f32 %v154, %v832
  %v834 = vpop.f32.mrf.mxu0
  %835 = vmatprep.mubr.bf16.mxu0 0
  %836 = vmatmul.mubr.bf16.gmra.mxu0 %v532
  %v837 = vpop.f32.mrf.mxu0
  %v838 = vadd.f32 %v154, %v837
  %v839 = vpop.f32.mrf.mxu0
  %v840 = vpop.f32.mrf.mxu0
  %v841 = vadd.f32 %v154, %v840
  %v842 = vpop.f32.mrf.mxu0
  %843 = vmatprep.mubr.bf16.mxu0 0
  %844 = vmatmul.mubr.bf16.gmra.mxu0 %v535
  %v845 = vpop.f32.mrf.mxu0
  %v846 = vadd.f32 %v154, %v845
  %v847 = vpop.f32.mrf.mxu0
  %v848 = vpop.f32.mrf.mxu0
  %v849 = vadd.f32 %v154, %v848
  %v850 = vpop.f32.mrf.mxu0
  %851 = vmatprep.mubr.bf16.mxu0 0
  %852 = vmatmul.mubr.bf16.gmra.mxu0 %v538
  %v853 = vpop.f32.mrf.mxu0
  %v854 = vadd.f32 %v154, %v853
  %v855 = vpop.f32.mrf.mxu0
  %v856 = vpop.f32.mrf.mxu0
  %v857 = vadd.f32 %v154, %v856
  %v858 = vpop.f32.mrf.mxu0
  %859 = vmatprep.mubr.bf16.mxu0 0
  %860 = vmatmul.mubr.bf16.gmra.mxu0 %v541
  %v861 = vpop.f32.mrf.mxu0
  %v862 = vadd.f32 %v154, %v861
  %v863 = vpop.f32.mrf.mxu0
  %v864 = vpop.f32.mrf.mxu0
  %v865 = vadd.f32 %v154, %v864
  %v866 = vpop.f32.mrf.mxu0
  %867 = vmatprep.mubr.bf16.mxu0 0
  %868 = vmatmul.mubr.bf16.gmra.mxu0 %v544
  %v869 = vpop.f32.mrf.mxu0
  %v870 = vadd.f32 %v154, %v869
  %v871 = vpop.f32.mrf.mxu0
  %v872 = vpop.f32.mrf.mxu0
  %v873 = vadd.f32 %v154, %v872
  %v874 = vpop.f32.mrf.mxu0
  %875 = vmatprep.mubr.bf16.mxu0 0
  %876 = vmatmul.mubr.bf16.gmra.mxu0 %v547
  %v877 = vpop.f32.mrf.mxu0
  %v878 = vadd.f32 %v154, %v877
  %v879 = vpop.f32.mrf.mxu0
  %v880 = vpop.f32.mrf.mxu0
  %v881 = vadd.f32 %v154, %v880
  %v882 = vpop.f32.mrf.mxu0
  %883 = vmatprep.mubr.bf16.mxu0 0
  %884 = vmatmul.mubr.bf16.gmra.mxu0 %v550
  %v885 = vpop.f32.mrf.mxu0
  %v886 = vadd.f32 %v154, %v885
  %v887 = vpop.f32.mrf.mxu0
  %v888 = vpop.f32.mrf.mxu0
  %v889 = vadd.f32 %v154, %v888
  %v890 = vpop.f32.mrf.mxu0
  %891 = vmatprep.mubr.bf16.mxu0 0
  %892 = vmatmul.mubr.bf16.gmra.mxu0 %v553
  %v893 = vpop.f32.mrf.mxu0
  %v894 = vadd.f32 %v154, %v893
  %v895 = vpop.f32.mrf.mxu0
  %v896 = vpop.f32.mrf.mxu0
  %v897 = vadd.f32 %v154, %v896
  %v898 = vpop.f32.mrf.mxu0
  %899 = vmatprep.mubr.bf16.mxu0 0
  %900 = vmatmul.mubr.bf16.gmra.mxu0 %v556
  %v901 = vpop.f32.mrf.mxu0
  %v902 = vadd.f32 %v154, %v901
  %v903 = vpop.f32.mrf.mxu0
  %v904 = vpop.f32.mrf.mxu0
  %v905 = vadd.f32 %v154, %v904
  %v906 = vpop.f32.mrf.mxu0
  %907 = vmatprep.mubr.bf16.mxu0 0
  %908 = vmatmul.mubr.bf16.gmra.mxu0 %v559
  %v909 = vpop.f32.mrf.mxu0
  %v910 = vadd.f32 %v154, %v909
  %v911 = vpop.f32.mrf.mxu0
  %v912 = vpop.f32.mrf.mxu0
  %v913 = vadd.f32 %v154, %v912
  %v914 = vpop.f32.mrf.mxu0
  %915 = vmatprep.mubr.bf16.mxu0 0
  %916 = vmatmul.mubr.bf16.gmra.mxu0 %v562
  %v917 = vpop.f32.mrf.mxu0
  %v918 = vadd.f32 %v154, %v917
  %v919 = vpop.f32.mrf.mxu0
  %v920 = vpop.f32.mrf.mxu0
  %v921 = vadd.f32 %v154, %v920
  %v922 = vpop.f32.mrf.mxu0
  %923 = vmatprep.mubr.bf16.mxu0 0
  %924 = vmatmul.mubr.bf16.gmra.mxu0 %v565
  %v925 = vpop.f32.mrf.mxu0
  %v926 = vadd.f32 %v154, %v925
  %v927 = vpop.f32.mrf.mxu0
  %v928 = vpop.f32.mrf.mxu0
  %v929 = vadd.f32 %v154, %v928
  %v930 = vpop.f32.mrf.mxu0
  %931 = vmatprep.mubr.bf16.mxu0 0
  %932 = vmatmul.mubr.bf16.gmra.mxu0 %v568
  %v933 = vpop.f32.mrf.mxu0
  %v934 = vadd.f32 %v154, %v933
  %v935 = vpop.f32.mrf.mxu0
  %v936 = vpop.f32.mrf.mxu0
  %v937 = vadd.f32 %v154, %v936
  %v938 = vpop.f32.mrf.mxu0
  %939 = vmatprep.mubr.bf16.mxu0 0
  %940 = vmatmul.mubr.bf16.gmra.mxu0 %v571
  %v941 = vpop.f32.mrf.mxu0
  %v942 = vadd.f32 %v154, %v941
  %v943 = vpop.f32.mrf.mxu0
  %v944 = vpop.f32.mrf.mxu0
  %v945 = vadd.f32 %v154, %v944
  %v946 = vpop.f32.mrf.mxu0
  %947 = vmatprep.mubr.bf16.mxu0 0
  %948 = vmatmul.mubr.bf16.gmra.mxu0 %v574
  %v949 = vpop.f32.mrf.mxu0
  %v950 = vadd.f32 %v154, %v949
  %v951 = vpop.f32.mrf.mxu0
  %v952 = vpop.f32.mrf.mxu0
  %v953 = vadd.f32 %v154, %v952
  %v954 = vpop.f32.mrf.mxu0
  %955 = vmatprep.mubr.bf16.mxu0 0
  %956 = vmatmul.mubr.bf16.gmra.mxu0 %v577
  %v957 = vpop.f32.mrf.mxu0
  %v958 = vadd.f32 %v154, %v957
  %v959 = vpop.f32.mrf.mxu0
  %v960 = vpop.f32.mrf.mxu0
  %v961 = vadd.f32 %v154, %v960
  %v962 = vpop.f32.mrf.mxu0
  %963 = vmatprep.mubr.bf16.mxu0 0
  %964 = vmatmul.mubr.bf16.gmra.mxu0 %v580
  %v965 = vpop.f32.mrf.mxu0
  %v966 = vadd.f32 %v154, %v965
  %v967 = vpop.f32.mrf.mxu0
  %v968 = vpop.f32.mrf.mxu0
  %v969 = vadd.f32 %v154, %v968
  %v970 = vpop.f32.mrf.mxu0
  %971 = vmatprep.mubr.bf16.mxu0 0
  %972 = vmatmul.mubr.bf16.gmra.mxu0 %v583
  %v973 = vpop.f32.mrf.mxu0
  %v974 = vadd.f32 %v154, %v973
  %v975 = vpop.f32.mrf.mxu0
  %v976 = vpop.f32.mrf.mxu0
  %v977 = vadd.f32 %v154, %v976
  %v978 = vpop.f32.mrf.mxu0
  %979 = vmatprep.mubr.bf16.mxu0 0
  %980 = vmatmul.mubr.bf16.gmra.mxu0 %v586
  %v981 = vpop.f32.mrf.mxu0
  %v982 = vadd.f32 %v154, %v981
  %v983 = vpop.f32.mrf.mxu0
  %v984 = vpop.f32.mrf.mxu0
  %v985 = vadd.f32 %v154, %v984
  %v986 = vpop.f32.mrf.mxu0
  %987 = vmatprep.mubr.bf16.mxu0 0
  %988 = vmatmul.mubr.bf16.gmra.mxu0 %v589
  %v989 = vpop.f32.mrf.mxu0
  %v990 = vadd.f32 %v154, %v989
  %v991 = vpop.f32.mrf.mxu0
  %v992 = vpop.f32.mrf.mxu0
  %v993 = vadd.f32 %v154, %v992
  %v994 = vpop.f32.mrf.mxu0
  %995 = vmatprep.mubr.bf16.mxu0 0
  %996 = vmatmul.mubr.bf16.gmra.mxu0 %v592
  %v997 = vpop.f32.mrf.mxu0
  %v998 = vadd.f32 %v154, %v997
  %v999 = vpop.f32.mrf.mxu0
  %v1000 = vpop.f32.mrf.mxu0
  %v1001 = vadd.f32 %v154, %v1000
  %v1002 = vpop.f32.mrf.mxu0
  %1003 = vmatprep.mubr.bf16.mxu0 0
  %1004 = vmatmul.mubr.bf16.gmra.mxu0 %v595
  %v1005 = vpop.f32.mrf.mxu0
  %v1006 = vadd.f32 %v154, %v1005
  %v1007 = vpop.f32.mrf.mxu0
  %v1008 = vpop.f32.mrf.mxu0
  %v1009 = vadd.f32 %v154, %v1008
  %v1010 = vpop.f32.mrf.mxu0
  %1011 = vmatprep.mubr.bf16.mxu0 0
  %1012 = vmatmul.mubr.bf16.gmra.mxu0 %v598
  %v1013 = vpop.f32.mrf.mxu0
  %v1014 = vadd.f32 %v154, %v1013
  %v1015 = vpop.f32.mrf.mxu0
  %v1016 = vpop.f32.mrf.mxu0
  %v1017 = vadd.f32 %v154, %v1016
  %v1018 = vpop.f32.mrf.mxu0
  %1019 = vmatprep.mubr.bf16.mxu0 0
  %1020 = vmatmul.mubr.bf16.gmra.mxu0 %v601
  %v1021 = vpop.f32.mrf.mxu0
  %v1022 = vadd.f32 %v154, %v1021
  %v1023 = vpop.f32.mrf.mxu0
  %v1024 = vpop.f32.mrf.mxu0
  %v1025 = vadd.f32 %v154, %v1024
  %v1026 = vpop.f32.mrf.mxu0
  %1027 = vmatprep.mubr.bf16.mxu0 0
  %1028 = vmatmul.mubr.bf16.gmra.mxu0 %v604
  %v1029 = vpop.f32.mrf.mxu0
  %v1030 = vadd.f32 %v154, %v1029
  %v1031 = vpop.f32.mrf.mxu0
  %v1032 = vpop.f32.mrf.mxu0
  %v1033 = vadd.f32 %v154, %v1032
  %v1034 = vpop.f32.mrf.mxu0
  %1035 = vmatprep.mubr.bf16.mxu0 0
  %1036 = vmatmul.mubr.bf16.gmra.mxu0 %v607
  %v1037 = vpop.f32.mrf.mxu0
  %v1038 = vadd.f32 %v154, %v1037
  %v1039 = vpop.f32.mrf.mxu0
  %v1040 = vpop.f32.mrf.mxu0
  %v1041 = vadd.f32 %v154, %v1040
  %v1042 = vpop.f32.mrf.mxu0
  %1043 = vmatprep.mubr.bf16.mxu0 0
  %1044 = vmatmul.mubr.bf16.gmra.mxu0 %v610
  %v1045 = vpop.f32.mrf.mxu0
  %v1046 = vadd.f32 %v154, %v1045
  %v1047 = vpop.f32.mrf.mxu0
  %v1048 = vpop.f32.mrf.mxu0
  %v1049 = vadd.f32 %v154, %v1048
  %v1050 = vpop.f32.mrf.mxu0
  %1051 = vmatprep.mubr.bf16.mxu0 0
  %1052 = vmatmul.mubr.bf16.gmra.mxu0 %v613
  %v1053 = vpop.f32.mrf.mxu0
  %v1054 = vadd.f32 %v154, %v1053
  %v1055 = vpop.f32.mrf.mxu0
  %v1056 = vpop.f32.mrf.mxu0
  %v1057 = vadd.f32 %v154, %v1056
  %v1058 = vpop.f32.mrf.mxu0
  %1059 = vmatprep.mubr.bf16.mxu0 0
  %1060 = vmatmul.mubr.bf16.gmra.mxu0 %v616
  %v1061 = vpop.f32.mrf.mxu0
  %v1062 = vadd.f32 %v154, %v1061
  %v1063 = vpop.f32.mrf.mxu0
  %v1064 = vpop.f32.mrf.mxu0
  %v1065 = vadd.f32 %v154, %v1064
  %v1066 = vpop.f32.mrf.mxu0
  %1067 = vmatprep.mubr.bf16.mxu0 0
  %1068 = vmatmul.mubr.bf16.gmra.mxu0 %v619
  %v1069 = vpop.f32.mrf.mxu0
  %v1070 = vadd.f32 %v154, %v1069
  %v1071 = vpop.f32.mrf.mxu0
  %v1072 = vpop.f32.mrf.mxu0
  %v1073 = vadd.f32 %v154, %v1072
  %v1074 = vpop.f32.mrf.mxu0
  %1075 = vmatprep.mubr.bf16.mxu0 0
  %1076 = vmatmul.mubr.bf16.gmra.mxu0 %v622
  %v1077 = vpop.f32.mrf.mxu0
  %v1078 = vadd.f32 %v154, %v1077
  %v1079 = vpop.f32.mrf.mxu0
  %v1080 = vpop.f32.mrf.mxu0
  %v1081 = vadd.f32 %v154, %v1080
  %v1082 = vpop.f32.mrf.mxu0
  %1083 = vmatprep.mubr.bf16.mxu0 0
  %1084 = vmatmul.mubr.bf16.gmra.mxu0 %v625
  %v1085 = vpop.f32.mrf.mxu0
  %v1086 = vadd.f32 %v154, %v1085
  %v1087 = vpop.f32.mrf.mxu0
  %v1088 = vpop.f32.mrf.mxu0
  %v1089 = vadd.f32 %v154, %v1088
  %v1090 = vpop.f32.mrf.mxu0
  %1091 = vmatprep.mubr.bf16.mxu0 0
  %1092 = vmatmul.mubr.bf16.gmra.mxu0 %v628
  %v1093 = vpop.f32.mrf.mxu0
  %v1094 = vadd.f32 %v154, %v1093
  %v1095 = vpop.f32.mrf.mxu0
  %v1096 = vpop.f32.mrf.mxu0
  %v1097 = vadd.f32 %v154, %v1096
  %v1098 = vpop.f32.mrf.mxu0
  %1099 = vmatprep.mubr.bf16.mxu0 0
  %1100 = vmatmul.mubr.bf16.gmra.mxu0 %v631
  %v1101 = vpop.f32.mrf.mxu0
  %v1102 = vadd.f32 %v154, %v1101
  %v1103 = vpop.f32.mrf.mxu0
  %v1104 = vpop.f32.mrf.mxu0
  %v1105 = vadd.f32 %v154, %v1104
  %v1106 = vpop.f32.mrf.mxu0
  %1107 = vmatprep.mubr.bf16.mxu0 0
  %1108 = vmatmul.mubr.bf16.gmra.mxu0 %v634
  %v1109 = vpop.f32.mrf.mxu0
  %v1110 = vadd.f32 %v154, %v1109
  %v1111 = vpop.f32.mrf.mxu0
  %v1112 = vpop.f32.mrf.mxu0
  %v1113 = vadd.f32 %v154, %v1112
  %v1114 = vpop.f32.mrf.mxu0
  %1115 = vmatprep.mubr.bf16.mxu0 0
  %1116 = vmatmul.mubr.bf16.gmra.mxu0 %v637
  %v1117 = vpop.f32.mrf.mxu0
  %v1118 = vadd.f32 %v154, %v1117
  %v1119 = vpop.f32.mrf.mxu0
  %v1120 = vpop.f32.mrf.mxu0
  %v1121 = vadd.f32 %v154, %v1120
  %v1122 = vpop.f32.mrf.mxu0
  %1123 = vmatprep.mubr.bf16.mxu0 0
  %1124 = vmatmul.mubr.bf16.gmra.mxu0 %v640
  %v1125 = vpop.f32.mrf.mxu0
  %v1126 = vadd.f32 %v154, %v1125
  %v1127 = vpop.f32.mrf.mxu0
  %v1128 = vpop.f32.mrf.mxu0
  %v1129 = vadd.f32 %v154, %v1128
  %v1130 = vpop.f32.mrf.mxu0
  %1131 = vmatprep.mubr.bf16.mxu0 0
  %1132 = vmatmul.mubr.bf16.gmra.mxu0 %v643
  %v1133 = vpop.f32.mrf.mxu0
  %v1134 = vadd.f32 %v154, %v1133
  %v1135 = vpop.f32.mrf.mxu0
  %v1136 = vpop.f32.mrf.mxu0
  %v1137 = vadd.f32 %v154, %v1136
  %v1138 = vpop.f32.mrf.mxu0
  %1139 = vmatprep.mubr.bf16.mxu0 0
  %1140 = vmatmul.mubr.bf16.gmra.mxu0 %v646
  %v1141 = vpop.f32.mrf.mxu0
  %v1142 = vadd.f32 %v154, %v1141
  %v1143 = vpop.f32.mrf.mxu0
  %v1144 = vpop.f32.mrf.mxu0
  %v1145 = vadd.f32 %v154, %v1144
  %v1146 = vpop.f32.mrf.mxu0
  %1147 = vmatprep.mubr.bf16.mxu0 0
  %1148 = vmatmul.mubr.bf16.gmra.mxu0 %v649
  %v1149 = vpop.f32.mrf.mxu0
  %v1150 = vadd.f32 %v154, %v1149
  %v1151 = vpop.f32.mrf.mxu0
  %v1152 = vpop.f32.mrf.mxu0
  %v1153 = vadd.f32 %v154, %v1152
  %v1154 = vpop.f32.mrf.mxu0
  %1155 = vmatprep.mubr.bf16.mxu0 0
  %1156 = vmatmul.mubr.bf16.gmra.mxu0 %v652
  %v1157 = vpop.f32.mrf.mxu0
  %v1158 = vadd.f32 %v154, %v1157
  %v1159 = vpop.f32.mrf.mxu0
  %v1160 = vpop.f32.mrf.mxu0
  %v1161 = vadd.f32 %v154, %v1160
  %v1162 = vpop.f32.mrf.mxu0
  %1163 = vmatprep.mubr.bf16.mxu0 0
  %1164 = vmatmul.mubr.bf16.gmra.mxu0 %v655
  %v1165 = vpop.f32.mrf.mxu0
  %v1166 = vadd.f32 %v154, %v1165
  %v1167 = vpop.f32.mrf.mxu0
  %v1168 = vpop.f32.mrf.mxu0
  %v1169 = vadd.f32 %v154, %v1168
  %v1170 = vpop.f32.mrf.mxu0
  %1171 = vmatprep.mubr.bf16.mxu0 0
  %1172 = vmatmul.mubr.bf16.gmra.mxu0 %v658
  %v1173 = vpop.f32.mrf.mxu0
  %v1174 = vadd.f32 %v154, %v1173
  %v1175 = vpop.f32.mrf.mxu0
  %v1176 = vpop.f32.mrf.mxu0
  %v1177 = vadd.f32 %v154, %v1176
  %v1178 = vpop.f32.mrf.mxu0
  %1179 = vmatprep.mubr.bf16.mxu0 0
  %1180 = vmatmul.mubr.bf16.gmra.mxu0 %v661
  %v1181 = vpop.f32.mrf.mxu0
  %v1182 = vadd.f32 %v154, %v1181
  %v1183 = vpop.f32.mrf.mxu0
  %v1184 = vpop.f32.mrf.mxu0
  %v1185 = vadd.f32 %v154, %v1184
  %v1186 = vpop.f32.mrf.mxu0
  %1187 = vmatprep.mubr.bf16.mxu0 0
  %1188 = vmatmul.mubr.bf16.gmra.mxu0 %v664
  %v1189 = vpop.f32.mrf.mxu0
  %v1190 = vadd.f32 %v154, %v1189
  %v1191 = vpop.f32.mrf.mxu0
  %v1192 = vpop.f32.mrf.mxu0
  %v1193 = vadd.f32 %v154, %v1192
  %v1194 = vpop.f32.mrf.mxu0
  %1195 = vmatprep.mubr.bf16.mxu0 0
  %1196 = vmatmul.mubr.bf16.gmra.mxu0 %v667
  %v1197 = vpop.f32.mrf.mxu0
  %v1198 = vadd.f32 %v154, %v1197
  %v1199 = vpop.f32.mrf.mxu0
  %v1200 = vpop.f32.mrf.mxu0
  %v1201 = vadd.f32 %v154, %v1200
  %v1202 = vpop.f32.mrf.mxu0
  %1203 = vmatprep.mubr.bf16.mxu0 0
  %1204 = vmatmul.mubr.bf16.gmra.mxu0 %v670
  %v1205 = vpop.f32.mrf.mxu0
  %v1206 = vadd.f32 %v154, %v1205
  %v1207 = vpop.f32.mrf.mxu0
  %v1208 = vpop.f32.mrf.mxu0
  %v1209 = vadd.f32 %v154, %v1208
  %v1210 = vpop.f32.mrf.mxu0
  %1211 = vmatprep.mubr.bf16.mxu0 0
  %1212 = vmatmul.mubr.bf16.gmra.mxu0 %v673
  %v1213 = vpop.f32.mrf.mxu0
  %v1214 = vadd.f32 %v154, %v1213
  %v1215 = vpop.f32.mrf.mxu0
  %v1216 = vpop.f32.mrf.mxu0
  %v1217 = vadd.f32 %v154, %v1216
  %v1218 = vpop.f32.mrf.mxu0
  %1219 = vdwg.mxu0
  %s1220 = sld [smem:[#allocation2]]
  %vm1221 = vcmp.ge.f32.partialorder %v710, 0.0
  %vm1222 = vcmp.ge.f32.partialorder %v713, 0.0
  %vm1223 = vcmp.ge.f32.partialorder %v718, 0.0
  %vm1224 = vcmp.ge.f32.partialorder %v721, 0.0
  %vm1225 = vcmp.ge.f32.partialorder %v726, 0.0
  %vm1226 = vcmp.ge.f32.partialorder %v729, 0.0
  %vm1227 = vcmp.ge.f32.partialorder %v734, 0.0
  %vm1228 = vcmp.ge.f32.partialorder %v737, 0.0
  %vm1229 = vcmp.ge.f32.partialorder %v742, 0.0
  %vm1230 = vcmp.ge.f32.partialorder %v745, 0.0
  %vm1231 = vcmp.ge.f32.partialorder %v750, 0.0
  %vm1232 = vcmp.ge.f32.partialorder %v753, 0.0
  %vm1233 = vcmp.ge.f32.partialorder %v758, 0.0
  %vm1234 = vcmp.ge.f32.partialorder %v761, 0.0
  %vm1235 = vcmp.ge.f32.partialorder %v766, 0.0
  %vm1236 = vcmp.ge.f32.partialorder %v769, 0.0
  %vm1237 = vcmp.ge.f32.partialorder %v774, 0.0
  %vm1238 = vcmp.ge.f32.partialorder %v777, 0.0
  %vm1239 = vcmp.ge.f32.partialorder %v782, 0.0
  %vm1240 = vcmp.ge.f32.partialorder %v785, 0.0
  %vm1241 = vcmp.ge.f32.partialorder %v790, 0.0
  %vm1242 = vcmp.ge.f32.partialorder %v793, 0.0
  %vm1243 = vcmp.ge.f32.partialorder %v798, 0.0
  %vm1244 = vcmp.ge.f32.partialorder %v801, 0.0
  %vm1245 = vcmp.ge.f32.partialorder %v806, 0.0
  %vm1246 = vcmp.ge.f32.partialorder %v809, 0.0
  %vm1247 = vcmp.ge.f32.partialorder %v814, 0.0
  %vm1248 = vcmp.ge.f32.partialorder %v817, 0.0
  %vm1249 = vcmp.ge.f32.partialorder %v822, 0.0
  %vm1250 = vcmp.ge.f32.partialorder %v825, 0.0
  %vm1251 = vcmp.ge.f32.partialorder %v830, 0.0
  %vm1252 = vcmp.ge.f32.partialorder %v833, 0.0
  %vm1253 = vcmp.ge.f32.partialorder %v838, 0.0
  %vm1254 = vcmp.ge.f32.partialorder %v841, 0.0
  %vm1255 = vcmp.ge.f32.partialorder %v846, 0.0
  %vm1256 = vcmp.ge.f32.partialorder %v849, 0.0
  %vm1257 = vcmp.ge.f32.partialorder %v854, 0.0
  %vm1258 = vcmp.ge.f32.partialorder %v857, 0.0
  %vm1259 = vcmp.ge.f32.partialorder %v862, 0.0
  %vm1260 = vcmp.ge.f32.partialorder %v865, 0.0
  %vm1261 = vcmp.ge.f32.partialorder %v870, 0.0
  %vm1262 = vcmp.ge.f32.partialorder %v873, 0.0
  %vm1263 = vcmp.ge.f32.partialorder %v878, 0.0
  %vm1264 = vcmp.ge.f32.partialorder %v881, 0.0
  %vm1265 = vcmp.ge.f32.partialorder %v886, 0.0
  %vm1266 = vcmp.ge.f32.partialorder %v889, 0.0
  %vm1267 = vcmp.ge.f32.partialorder %v894, 0.0
  %vm1268 = vcmp.ge.f32.partialorder %v897, 0.0
  %vm1269 = vcmp.ge.f32.partialorder %v902, 0.0
  %vm1270 = vcmp.ge.f32.partialorder %v905, 0.0
  %vm1271 = vcmp.ge.f32.partialorder %v910, 0.0
  %vm1272 = vcmp.ge.f32.partialorder %v913, 0.0
  %vm1273 = vcmp.ge.f32.partialorder %v918, 0.0
  %vm1274 = vcmp.ge.f32.partialorder %v921, 0.0
  %vm1275 = vcmp.ge.f32.partialorder %v926, 0.0
  %vm1276 = vcmp.ge.f32.partialorder %v929, 0.0
  %vm1277 = vcmp.ge.f32.partialorder %v934, 0.0
  %vm1278 = vcmp.ge.f32.partialorder %v937, 0.0
  %vm1279 = vcmp.ge.f32.partialorder %v942, 0.0
  %vm1280 = vcmp.ge.f32.partialorder %v945, 0.0
  %vm1281 = vcmp.ge.f32.partialorder %v950, 0.0
  %vm1282 = vcmp.ge.f32.partialorder %v953, 0.0
  %vm1283 = vcmp.ge.f32.partialorder %v958, 0.0
  %vm1284 = vcmp.ge.f32.partialorder %v961, 0.0
  %vm1285 = vcmp.ge.f32.partialorder %v966, 0.0
  %vm1286 = vcmp.ge.f32.partialorder %v969, 0.0
  %vm1287 = vcmp.ge.f32.partialorder %v974, 0.0
  %vm1288 = vcmp.ge.f32.partialorder %v977, 0.0
  %vm1289 = vcmp.ge.f32.partialorder %v982, 0.0
  %vm1290 = vcmp.ge.f32.partialorder %v985, 0.0
  %vm1291 = vcmp.ge.f32.partialorder %v990, 0.0
  %vm1292 = vcmp.ge.f32.partialorder %v993, 0.0
  %vm1293 = vcmp.ge.f32.partialorder %v998, 0.0
  %vm1294 = vcmp.ge.f32.partialorder %v1001, 0.0
  %vm1295 = vcmp.ge.f32.partialorder %v1006, 0.0
  %vm1296 = vcmp.ge.f32.partialorder %v1009, 0.0
  %vm1297 = vcmp.ge.f32.partialorder %v1014, 0.0
  %vm1298 = vcmp.ge.f32.partialorder %v1017, 0.0
  %vm1299 = vcmp.ge.f32.partialorder %v1022, 0.0
  %vm1300 = vcmp.ge.f32.partialorder %v1025, 0.0
  %vm1301 = vcmp.ge.f32.partialorder %v1030, 0.0
  %vm1302 = vcmp.ge.f32.partialorder %v1033, 0.0
  %vm1303 = vcmp.ge.f32.partialorder %v1038, 0.0
  %vm1304 = vcmp.ge.f32.partialorder %v1041, 0.0
  %vm1305 = vcmp.ge.f32.partialorder %v1046, 0.0
  %vm1306 = vcmp.ge.f32.partialorder %v1049, 0.0
  %vm1307 = vcmp.ge.f32.partialorder %v1054, 0.0
  %vm1308 = vcmp.ge.f32.partialorder %v1057, 0.0
  %vm1309 = vcmp.ge.f32.partialorder %v1062, 0.0
  %vm1310 = vcmp.ge.f32.partialorder %v1065, 0.0
  %vm1311 = vcmp.ge.f32.partialorder %v1070, 0.0
  %vm1312 = vcmp.ge.f32.partialorder %v1073, 0.0
  %vm1313 = vcmp.ge.f32.partialorder %v1078, 0.0
  %vm1314 = vcmp.ge.f32.partialorder %v1081, 0.0
  %vm1315 = vcmp.ge.f32.partialorder %v1086, 0.0
  %vm1316 = vcmp.ge.f32.partialorder %v1089, 0.0
  %vm1317 = vcmp.ge.f32.partialorder %v1094, 0.0
  %vm1318 = vcmp.ge.f32.partialorder %v1097, 0.0
  %vm1319 = vcmp.ge.f32.partialorder %v1102, 0.0
  %vm1320 = vcmp.ge.f32.partialorder %v1105, 0.0
  %vm1321 = vcmp.ge.f32.partialorder %v1110, 0.0
  %vm1322 = vcmp.ge.f32.partialorder %v1113, 0.0
  %vm1323 = vcmp.ge.f32.partialorder %v1118, 0.0
  %vm1324 = vcmp.ge.f32.partialorder %v1121, 0.0
  %vm1325 = vcmp.ge.f32.partialorder %v1126, 0.0
  %vm1326 = vcmp.ge.f32.partialorder %v1129, 0.0
  %vm1327 = vcmp.ge.f32.partialorder %v1134, 0.0
  %vm1328 = vcmp.ge.f32.partialorder %v1137, 0.0
  %vm1329 = vcmp.ge.f32.partialorder %v1142, 0.0
  %vm1330 = vcmp.ge.f32.partialorder %v1145, 0.0
  %vm1331 = vcmp.ge.f32.partialorder %v1150, 0.0
  %vm1332 = vcmp.ge.f32.partialorder %v1153, 0.0
  %vm1333 = vcmp.ge.f32.partialorder %v1158, 0.0
  %vm1334 = vcmp.ge.f32.partialorder %v1161, 0.0
  %vm1335 = vcmp.ge.f32.partialorder %v1166, 0.0
  %vm1336 = vcmp.ge.f32.partialorder %v1169, 0.0
  %vm1337 = vcmp.ge.f32.partialorder %v1174, 0.0
  %vm1338 = vcmp.ge.f32.partialorder %v1177, 0.0
  %vm1339 = vcmp.ge.f32.partialorder %v1182, 0.0
  %vm1340 = vcmp.ge.f32.partialorder %v1185, 0.0
  %vm1341 = vcmp.ge.f32.partialorder %v1190, 0.0
  %vm1342 = vcmp.ge.f32.partialorder %v1193, 0.0
  %vm1343 = vcmp.ge.f32.partialorder %v1198, 0.0
  %vm1344 = vcmp.ge.f32.partialorder %v1201, 0.0
  %vm1345 = vcmp.ge.f32.partialorder %v1206, 0.0
  %vm1346 = vcmp.ge.f32.partialorder %v1209, 0.0
  %vm1347 = vcmp.ge.f32.partialorder %v1214, 0.0
  %vm1348 = vcmp.ge.f32.partialorder %v1217, 0.0
  %v1349 = vstv %s1220
  %v1350 = vmul.f32 %v1349, %v710
  %v1351 = vmul.f32 %v1349, %v713
  %v1352 = vmul.f32 %v1349, %v718
  %v1353 = vmul.f32 %v1349, %v721
  %v1354 = vmul.f32 %v1349, %v726
  %v1355 = vmul.f32 %v1349, %v729
  %v1356 = vmul.f32 %v1349, %v734
  %v1357 = vmul.f32 %v1349, %v737
  %v1358 = vmul.f32 %v1349, %v742
  %v1359 = vmul.f32 %v1349, %v745
  %v1360 = vmul.f32 %v1349, %v750
  %v1361 = vmul.f32 %v1349, %v753
  %v1362 = vmul.f32 %v1349, %v758
  %v1363 = vmul.f32 %v1349, %v761
  %v1364 = vmul.f32 %v1349, %v766
  %v1365 = vmul.f32 %v1349, %v769
  %v1366 = vmul.f32 %v1349, %v774
  %v1367 = vmul.f32 %v1349, %v777
  %v1368 = vmul.f32 %v1349, %v782
  %v1369 = vmul.f32 %v1349, %v785
  %v1370 = vmul.f32 %v1349, %v790
  %v1371 = vmul.f32 %v1349, %v793
  %v1372 = vmul.f32 %v1349, %v798
  %v1373 = vmul.f32 %v1349, %v801
  %v1374 = vmul.f32 %v1349, %v806
  %v1375 = vmul.f32 %v1349, %v809
  %v1376 = vmul.f32 %v1349, %v814
  %v1377 = vmul.f32 %v1349, %v817
  %v1378 = vmul.f32 %v1349, %v822
  %v1379 = vmul.f32 %v1349, %v825
  %v1380 = vmul.f32 %v1349, %v830
  %v1381 = vmul.f32 %v1349, %v833
  %v1382 = vmul.f32 %v1349, %v838
  %v1383 = vmul.f32 %v1349, %v841
  %v1384 = vmul.f32 %v1349, %v846
  %v1385 = vmul.f32 %v1349, %v849
  %v1386 = vmul.f32 %v1349, %v854
  %v1387 = vmul.f32 %v1349, %v857
  %v1388 = vmul.f32 %v1349, %v862
  %v1389 = vmul.f32 %v1349, %v865
  %v1390 = vmul.f32 %v1349, %v870
  %v1391 = vmul.f32 %v1349, %v873
  %v1392 = vmul.f32 %v1349, %v878
  %v1393 = vmul.f32 %v1349, %v881
  %v1394 = vmul.f32 %v1349, %v886
  %v1395 = vmul.f32 %v1349, %v889
  %v1396 = vmul.f32 %v1349, %v894
  %v1397 = vmul.f32 %v1349, %v897
  %v1398 = vmul.f32 %v1349, %v902
  %v1399 = vmul.f32 %v1349, %v905
  %v1400 = vmul.f32 %v1349, %v910
  %v1401 = vmul.f32 %v1349, %v913
  %v1402 = vmul.f32 %v1349, %v918
  %v1403 = vmul.f32 %v1349, %v921
  %v1404 = vmul.f32 %v1349, %v926
  %v1405 = vmul.f32 %v1349, %v929
  %v1406 = vmul.f32 %v1349, %v934
  %v1407 = vmul.f32 %v1349, %v937
  %v1408 = vmul.f32 %v1349, %v942
  %v1409 = vmul.f32 %v1349, %v945
  %v1410 = vmul.f32 %v1349, %v950
  %v1411 = vmul.f32 %v1349, %v953
  %v1412 = vmul.f32 %v1349, %v958
  %v1413 = vmul.f32 %v1349, %v961
  %v1414 = vmul.f32 %v1349, %v966
  %v1415 = vmul.f32 %v1349, %v969
  %v1416 = vmul.f32 %v1349, %v974
  %v1417 = vmul.f32 %v1349, %v977
  %v1418 = vmul.f32 %v1349, %v982
  %v1419 = vmul.f32 %v1349, %v985
  %v1420 = vmul.f32 %v1349, %v990
  %v1421 = vmul.f32 %v1349, %v993
  %v1422 = vmul.f32 %v1349, %v998
  %v1423 = vmul.f32 %v1349, %v1001
  %v1424 = vmul.f32 %v1349, %v1006
  %v1425 = vmul.f32 %v1349, %v1009
  %v1426 = vmul.f32 %v1349, %v1014
  %v1427 = vmul.f32 %v1349, %v1017
  %v1428 = vmul.f32 %v1349, %v1022
  %v1429 = vmul.f32 %v1349, %v1025
  %v1430 = vmul.f32 %v1349, %v1030
  %v1431 = vmul.f32 %v1349, %v1033
  %v1432 = vmul.f32 %v1349, %v1038
  %v1433 = vmul.f32 %v1349, %v1041
  %v1434 = vmul.f32 %v1349, %v1046
  %v1435 = vmul.f32 %v1349, %v1049
  %v1436 = vmul.f32 %v1349, %v1054
  %v1437 = vmul.f32 %v1349, %v1057
  %v1438 = vmul.f32 %v1349, %v1062
  %v1439 = vmul.f32 %v1349, %v1065
  %v1440 = vmul.f32 %v1349, %v1070
  %v1441 = vmul.f32 %v1349, %v1073
  %v1442 = vmul.f32 %v1349, %v1078
  %v1443 = vmul.f32 %v1349, %v1081
  %v1444 = vmul.f32 %v1349, %v1086
  %v1445 = vmul.f32 %v1349, %v1089
  %v1446 = vmul.f32 %v1349, %v1094
  %v1447 = vmul.f32 %v1349, %v1097
  %v1448 = vmul.f32 %v1349, %v1102
  %v1449 = vmul.f32 %v1349, %v1105
  %v1450 = vmul.f32 %v1349, %v1110
  %v1451 = vmul.f32 %v1349, %v1113
  %v1452 = vmul.f32 %v1349, %v1118
  %v1453 = vmul.f32 %v1349, %v1121
  %v1454 = vmul.f32 %v1349, %v1126
  %v1455 = vmul.f32 %v1349, %v1129
  %v1456 = vmul.f32 %v1349, %v1134
  %v1457 = vmul.f32 %v1349, %v1137
  %v1458 = vmul.f32 %v1349, %v1142
  %v1459 = vmul.f32 %v1349, %v1145
  %v1460 = vmul.f32 %v1349, %v1150
  %v1461 = vmul.f32 %v1349, %v1153
  %v1462 = vmul.f32 %v1349, %v1158
  %v1463 = vmul.f32 %v1349, %v1161
  %v1464 = vmul.f32 %v1349, %v1166
  %v1465 = vmul.f32 %v1349, %v1169
  %v1466 = vmul.f32 %v1349, %v1174
  %v1467 = vmul.f32 %v1349, %v1177
  %v1468 = vmul.f32 %v1349, %v1182
  %v1469 = vmul.f32 %v1349, %v1185
  %v1470 = vmul.f32 %v1349, %v1190
  %v1471 = vmul.f32 %v1349, %v1193
  %v1472 = vmul.f32 %v1349, %v1198
  %v1473 = vmul.f32 %v1349, %v1201
  %v1474 = vmul.f32 %v1349, %v1206
  %v1475 = vmul.f32 %v1349, %v1209
  %v1476 = vmul.f32 %v1349, %v1214
  %v1477 = vmul.f32 %v1349, %v1217
  %v1478 = vsel %vm1221, %v710, %v1350
  %v1479 = vsel %vm1222, %v713, %v1351
  %v1480 = vsel %vm1223, %v718, %v1352
  %v1481 = vsel %vm1224, %v721, %v1353
  %v1482 = vsel %vm1225, %v726, %v1354
  %v1483 = vsel %vm1226, %v729, %v1355
  %v1484 = vsel %vm1227, %v734, %v1356
  %v1485 = vsel %vm1228, %v737, %v1357
  %v1486 = vsel %vm1229, %v742, %v1358
  %v1487 = vsel %vm1230, %v745, %v1359
  %v1488 = vsel %vm1231, %v750, %v1360
  %v1489 = vsel %vm1232, %v753, %v1361
  %v1490 = vsel %vm1233, %v758, %v1362
  %v1491 = vsel %vm1234, %v761, %v1363
  %v1492 = vsel %vm1235, %v766, %v1364
  %v1493 = vsel %vm1236, %v769, %v1365
  %v1494 = vsel %vm1237, %v774, %v1366
  %v1495 = vsel %vm1238, %v777, %v1367
  %v1496 = vsel %vm1239, %v782, %v1368
  %v1497 = vsel %vm1240, %v785, %v1369
  %v1498 = vsel %vm1241, %v790, %v1370
  %v1499 = vsel %vm1242, %v793, %v1371
  %v1500 = vsel %vm1243, %v798, %v1372
  %v1501 = vsel %vm1244, %v801, %v1373
  %v1502 = vsel %vm1245, %v806, %v1374
  %v1503 = vsel %vm1246, %v809, %v1375
  %v1504 = vsel %vm1247, %v814, %v1376
  %v1505 = vsel %vm1248, %v817, %v1377
  %v1506 = vsel %vm1249, %v822, %v1378
  %v1507 = vsel %vm1250, %v825, %v1379
  %v1508 = vsel %vm1251, %v830, %v1380
  %v1509 = vsel %vm1252, %v833, %v1381
  %v1510 = vsel %vm1253, %v838, %v1382
  %v1511 = vsel %vm1254, %v841, %v1383
  %v1512 = vsel %vm1255, %v846, %v1384
  %v1513 = vsel %vm1256, %v849, %v1385
  %v1514 = vsel %vm1257, %v854, %v1386
  %v1515 = vsel %vm1258, %v857, %v1387
  %v1516 = vsel %vm1259, %v862, %v1388
  %v1517 = vsel %vm1260, %v865, %v1389
  %v1518 = vsel %vm1261, %v870, %v1390
  %v1519 = vsel %vm1262, %v873, %v1391
  %v1520 = vsel %vm1263, %v878, %v1392
  %v1521 = vsel %vm1264, %v881, %v1393
  %v1522 = vsel %vm1265, %v886, %v1394
  %v1523 = vsel %vm1266, %v889, %v1395
  %v1524 = vsel %vm1267, %v894, %v1396
  %v1525 = vsel %vm1268, %v897, %v1397
  %v1526 = vsel %vm1269, %v902, %v1398
  %v1527 = vsel %vm1270, %v905, %v1399
  %v1528 = vsel %vm1271, %v910, %v1400
  %v1529 = vsel %vm1272, %v913, %v1401
  %v1530 = vsel %vm1273, %v918, %v1402
  %v1531 = vsel %vm1274, %v921, %v1403
  %v1532 = vsel %vm1275, %v926, %v1404
  %v1533 = vsel %vm1276, %v929, %v1405
  %v1534 = vsel %vm1277, %v934, %v1406
  %v1535 = vsel %vm1278, %v937, %v1407
  %v1536 = vsel %vm1279, %v942, %v1408
  %v1537 = vsel %vm1280, %v945, %v1409
  %v1538 = vsel %vm1281, %v950, %v1410
  %v1539 = vsel %vm1282, %v953, %v1411
  %v1540 = vsel %vm1283, %v958, %v1412
  %v1541 = vsel %vm1284, %v961, %v1413
  %v1542 = vsel %vm1285, %v966, %v1414
  %v1543 = vsel %vm1286, %v969, %v1415
  %v1544 = vsel %vm1287, %v974, %v1416
  %v1545 = vsel %vm1288, %v977, %v1417
  %v1546 = vsel %vm1289, %v982, %v1418
  %v1547 = vsel %vm1290, %v985, %v1419
  %v1548 = vsel %vm1291, %v990, %v1420
  %v1549 = vsel %vm1292, %v993, %v1421
  %v1550 = vsel %vm1293, %v998, %v1422
  %v1551 = vsel %vm1294, %v1001, %v1423
  %v1552 = vsel %vm1295, %v1006, %v1424
  %v1553 = vsel %vm1296, %v1009, %v1425
  %v1554 = vsel %vm1297, %v1014, %v1426
  %v1555 = vsel %vm1298, %v1017, %v1427
  %v1556 = vsel %vm1299, %v1022, %v1428
  %v1557 = vsel %vm1300, %v1025, %v1429
  %v1558 = vsel %vm1301, %v1030, %v1430
  %v1559 = vsel %vm1302, %v1033, %v1431
  %v1560 = vsel %vm1303, %v1038, %v1432
  %v1561 = vsel %vm1304, %v1041, %v1433
  %v1562 = vsel %vm1305, %v1046, %v1434
  %v1563 = vsel %vm1306, %v1049, %v1435
  %v1564 = vsel %vm1307, %v1054, %v1436
  %v1565 = vsel %vm1308, %v1057, %v1437
  %v1566 = vsel %vm1309, %v1062, %v1438
  %v1567 = vsel %vm1310, %v1065, %v1439
  %v1568 = vsel %vm1311, %v1070, %v1440
  %v1569 = vsel %vm1312, %v1073, %v1441
  %v1570 = vsel %vm1313, %v1078, %v1442
  %v1571 = vsel %vm1314, %v1081, %v1443
  %v1572 = vsel %vm1315, %v1086, %v1444
  %v1573 = vsel %vm1316, %v1089, %v1445
  %v1574 = vsel %vm1317, %v1094, %v1446
  %v1575 = vsel %vm1318, %v1097, %v1447
  %v1576 = vsel %vm1319, %v1102, %v1448
  %v1577 = vsel %vm1320, %v1105, %v1449
  %v1578 = vsel %vm1321, %v1110, %v1450
  %v1579 = vsel %vm1322, %v1113, %v1451
  %v1580 = vsel %vm1323, %v1118, %v1452
  %v1581 = vsel %vm1324, %v1121, %v1453
  %v1582 = vsel %vm1325, %v1126, %v1454
  %v1583 = vsel %vm1326, %v1129, %v1455
  %v1584 = vsel %vm1327, %v1134, %v1456
  %v1585 = vsel %vm1328, %v1137, %v1457
  %v1586 = vsel %vm1329, %v1142, %v1458
  %v1587 = vsel %vm1330, %v1145, %v1459
  %v1588 = vsel %vm1331, %v1150, %v1460
  %v1589 = vsel %vm1332, %v1153, %v1461
  %v1590 = vsel %vm1333, %v1158, %v1462
  %v1591 = vsel %vm1334, %v1161, %v1463
  %v1592 = vsel %vm1335, %v1166, %v1464
  %v1593 = vsel %vm1336, %v1169, %v1465
  %v1594 = vsel %vm1337, %v1174, %v1466
  %v1595 = vsel %vm1338, %v1177, %v1467
  %v1596 = vsel %vm1339, %v1182, %v1468
  %v1597 = vsel %vm1340, %v1185, %v1469
  %v1598 = vsel %vm1341, %v1190, %v1470
  %v1599 = vsel %vm1342, %v1193, %v1471
  %v1600 = vsel %vm1343, %v1198, %v1472
  %v1601 = vsel %vm1344, %v1201, %v1473
  %v1602 = vsel %vm1345, %v1206, %v1474
  %v1603 = vsel %vm1346, %v1209, %v1475
  %v1604 = vsel %vm1347, %v1214, %v1476
  %v1605 = vsel %vm1348, %v1217, %v1477
  %v1606 = vpack.c.bf16 %v1479, %v1478
  %v1607 = vpack.c.bf16 %v1481, %v1480
  %v1608 = vpack.c.bf16 %v1483, %v1482
  %v1609 = vpack.c.bf16 %v1485, %v1484
  %v1610 = vpack.c.bf16 %v1487, %v1486
  %v1611 = vpack.c.bf16 %v1489, %v1488
  %v1612 = vpack.c.bf16 %v1491, %v1490
  %v1613 = vpack.c.bf16 %v1493, %v1492
  %v1614 = vpack.c.bf16 %v1495, %v1494
  %v1615 = vpack.c.bf16 %v1497, %v1496
  %v1616 = vpack.c.bf16 %v1499, %v1498
  %v1617 = vpack.c.bf16 %v1501, %v1500
  %v1618 = vpack.c.bf16 %v1503, %v1502
  %v1619 = vpack.c.bf16 %v1505, %v1504
  %v1620 = vpack.c.bf16 %v1507, %v1506
  %v1621 = vpack.c.bf16 %v1509, %v1508
  %v1622 = vpack.c.bf16 %v1511, %v1510
  %v1623 = vpack.c.bf16 %v1513, %v1512
  %v1624 = vpack.c.bf16 %v1515, %v1514
  %v1625 = vpack.c.bf16 %v1517, %v1516
  %v1626 = vpack.c.bf16 %v1519, %v1518
  %v1627 = vpack.c.bf16 %v1521, %v1520
  %v1628 = vpack.c.bf16 %v1523, %v1522
  %v1629 = vpack.c.bf16 %v1525, %v1524
  %v1630 = vpack.c.bf16 %v1527, %v1526
  %v1631 = vpack.c.bf16 %v1529, %v1528
  %v1632 = vpack.c.bf16 %v1531, %v1530
  %v1633 = vpack.c.bf16 %v1533, %v1532
  %v1634 = vpack.c.bf16 %v1535, %v1534
  %v1635 = vpack.c.bf16 %v1537, %v1536
  %v1636 = vpack.c.bf16 %v1539, %v1538
  %v1637 = vpack.c.bf16 %v1541, %v1540
  %v1638 = vpack.c.bf16 %v1543, %v1542
  %v1639 = vpack.c.bf16 %v1545, %v1544
  %v1640 = vpack.c.bf16 %v1547, %v1546
  %v1641 = vpack.c.bf16 %v1549, %v1548
  %v1642 = vpack.c.bf16 %v1551, %v1550
  %v1643 = vpack.c.bf16 %v1553, %v1552
  %v1644 = vpack.c.bf16 %v1555, %v1554
  %v1645 = vpack.c.bf16 %v1557, %v1556
  %v1646 = vpack.c.bf16 %v1559, %v1558
  %v1647 = vpack.c.bf16 %v1561, %v1560
  %v1648 = vpack.c.bf16 %v1563, %v1562
  %v1649 = vpack.c.bf16 %v1565, %v1564
  %v1650 = vpack.c.bf16 %v1567, %v1566
  %v1651 = vpack.c.bf16 %v1569, %v1568
  %v1652 = vpack.c.bf16 %v1571, %v1570
  %v1653 = vpack.c.bf16 %v1573, %v1572
  %v1654 = vpack.c.bf16 %v1575, %v1574
  %v1655 = vpack.c.bf16 %v1577, %v1576
  %v1656 = vpack.c.bf16 %v1579, %v1578
  %v1657 = vpack.c.bf16 %v1581, %v1580
  %v1658 = vpack.c.bf16 %v1583, %v1582
  %v1659 = vpack.c.bf16 %v1585, %v1584
  %v1660 = vpack.c.bf16 %v1587, %v1586
  %v1661 = vpack.c.bf16 %v1589, %v1588
  %v1662 = vpack.c.bf16 %v1591, %v1590
  %v1663 = vpack.c.bf16 %v1593, %v1592
  %v1664 = vpack.c.bf16 %v1595, %v1594
  %v1665 = vpack.c.bf16 %v1597, %v1596
  %v1666 = vpack.c.bf16 %v1599, %v1598
  %v1667 = vpack.c.bf16 %v1601, %v1600
  %v1668 = vpack.c.bf16 %v1603, %v1602
  %v1669 = vpack.c.bf16 %v1605, %v1604
  %v1734 = vunpack.c.l.b16 %v1606
  %v1735 = vunpack.c.h.b16 %v1606
  %v1736 = vunpack.c.l.b16 %v1607
  %v1737 = vunpack.c.h.b16 %v1607
  %v1738 = vunpack.c.l.b16 %v1608
  %v1739 = vunpack.c.h.b16 %v1608
  %v1740 = vunpack.c.l.b16 %v1609
  %v1741 = vunpack.c.h.b16 %v1609
  %v1742 = vunpack.c.l.b16 %v1610
  %v1743 = vunpack.c.h.b16 %v1610
  %v1744 = vunpack.c.l.b16 %v1611
  %v1745 = vunpack.c.h.b16 %v1611
  %v1746 = vunpack.c.l.b16 %v1612
  %v1747 = vunpack.c.h.b16 %v1612
  %v1748 = vunpack.c.l.b16 %v1613
  %v1749 = vunpack.c.h.b16 %v1613
  %v1750 = vunpack.c.l.b16 %v1614
  %v1751 = vunpack.c.h.b16 %v1614
  %v1752 = vunpack.c.l.b16 %v1615
  %v1753 = vunpack.c.h.b16 %v1615
  %v1754 = vunpack.c.l.b16 %v1616
  %v1755 = vunpack.c.h.b16 %v1616
  %v1756 = vunpack.c.l.b16 %v1617
  %v1757 = vunpack.c.h.b16 %v1617
  %v1758 = vunpack.c.l.b16 %v1618
  %v1759 = vunpack.c.h.b16 %v1618
  %v1760 = vunpack.c.l.b16 %v1619
  %v1761 = vunpack.c.h.b16 %v1619
  %v1762 = vunpack.c.l.b16 %v1620
  %v1763 = vunpack.c.h.b16 %v1620
  %v1764 = vunpack.c.l.b16 %v1621
  %v1765 = vunpack.c.h.b16 %v1621
  %v1766 = vunpack.c.l.b16 %v1622
  %v1767 = vunpack.c.h.b16 %v1622
  %v1768 = vunpack.c.l.b16 %v1623
  %v1769 = vunpack.c.h.b16 %v1623
  %v1770 = vunpack.c.l.b16 %v1624
  %v1771 = vunpack.c.h.b16 %v1624
  %v1772 = vunpack.c.l.b16 %v1625
  %v1773 = vunpack.c.h.b16 %v1625
  %v1774 = vunpack.c.l.b16 %v1626
  %v1775 = vunpack.c.h.b16 %v1626
  %v1776 = vunpack.c.l.b16 %v1627
  %v1777 = vunpack.c.h.b16 %v1627
  %v1778 = vunpack.c.l.b16 %v1628
  %v1779 = vunpack.c.h.b16 %v1628
  %v1780 = vunpack.c.l.b16 %v1629
  %v1781 = vunpack.c.h.b16 %v1629
  %v1782 = vunpack.c.l.b16 %v1630
  %v1783 = vunpack.c.h.b16 %v1630
  %v1784 = vunpack.c.l.b16 %v1631
  %v1785 = vunpack.c.h.b16 %v1631
  %v1786 = vunpack.c.l.b16 %v1632
  %v1787 = vunpack.c.h.b16 %v1632
  %v1788 = vunpack.c.l.b16 %v1633
  %v1789 = vunpack.c.h.b16 %v1633
  %v1790 = vunpack.c.l.b16 %v1634
  %v1791 = vunpack.c.h.b16 %v1634
  %v1792 = vunpack.c.l.b16 %v1635
  %v1793 = vunpack.c.h.b16 %v1635
  %v1794 = vunpack.c.l.b16 %v1636
  %v1795 = vunpack.c.h.b16 %v1636
  %v1796 = vunpack.c.l.b16 %v1637
  %v1797 = vunpack.c.h.b16 %v1637
  %v1798 = vunpack.c.l.b16 %v1638
  %v1799 = vunpack.c.h.b16 %v1638
  %v1800 = vunpack.c.l.b16 %v1639
  %v1801 = vunpack.c.h.b16 %v1639
  %v1802 = vunpack.c.l.b16 %v1640
  %v1803 = vunpack.c.h.b16 %v1640
  %v1804 = vunpack.c.l.b16 %v1641
  %v1805 = vunpack.c.h.b16 %v1641
  %v1806 = vunpack.c.l.b16 %v1642
  %v1807 = vunpack.c.h.b16 %v1642
  %v1808 = vunpack.c.l.b16 %v1643
  %v1809 = vunpack.c.h.b16 %v1643
  %v1810 = vunpack.c.l.b16 %v1644
  %v1811 = vunpack.c.h.b16 %v1644
  %v1812 = vunpack.c.l.b16 %v1645
  %v1813 = vunpack.c.h.b16 %v1645
  %v1814 = vunpack.c.l.b16 %v1646
  %v1815 = vunpack.c.h.b16 %v1646
  %v1816 = vunpack.c.l.b16 %v1647
  %v1817 = vunpack.c.h.b16 %v1647
  %v1818 = vunpack.c.l.b16 %v1648
  %v1819 = vunpack.c.h.b16 %v1648
  %v1820 = vunpack.c.l.b16 %v1649
  %v1821 = vunpack.c.h.b16 %v1649
  %v1822 = vunpack.c.l.b16 %v1650
  %v1823 = vunpack.c.h.b16 %v1650
  %v1824 = vunpack.c.l.b16 %v1651
  %v1825 = vunpack.c.h.b16 %v1651
  %v1826 = vunpack.c.l.b16 %v1652
  %v1827 = vunpack.c.h.b16 %v1652
  %v1828 = vunpack.c.l.b16 %v1653
  %v1829 = vunpack.c.h.b16 %v1653
  %v1830 = vunpack.c.l.b16 %v1654
  %v1831 = vunpack.c.h.b16 %v1654
  %v1832 = vunpack.c.l.b16 %v1655
  %v1833 = vunpack.c.h.b16 %v1655
  %v1834 = vunpack.c.l.b16 %v1656
  %v1835 = vunpack.c.h.b16 %v1656
  %v1836 = vunpack.c.l.b16 %v1657
  %v1837 = vunpack.c.h.b16 %v1657
  %v1838 = vunpack.c.l.b16 %v1658
  %v1839 = vunpack.c.h.b16 %v1658
  %v1840 = vunpack.c.l.b16 %v1659
  %v1841 = vunpack.c.h.b16 %v1659
  %v1842 = vunpack.c.l.b16 %v1660
  %v1843 = vunpack.c.h.b16 %v1660
  %v1844 = vunpack.c.l.b16 %v1661
  %v1845 = vunpack.c.h.b16 %v1661
  %v1846 = vunpack.c.l.b16 %v1662
  %v1847 = vunpack.c.h.b16 %v1662
  %v1848 = vunpack.c.l.b16 %v1663
  %v1849 = vunpack.c.h.b16 %v1663
  %v1850 = vunpack.c.l.b16 %v1664
  %v1851 = vunpack.c.h.b16 %v1664
  %v1852 = vunpack.c.l.b16 %v1665
  %v1853 = vunpack.c.h.b16 %v1665
  %v1854 = vunpack.c.l.b16 %v1666
  %v1855 = vunpack.c.h.b16 %v1666
  %v1856 = vunpack.c.l.b16 %v1667
  %v1857 = vunpack.c.h.b16 %v1667
  %v1858 = vunpack.c.l.b16 %v1668
  %v1859 = vunpack.c.h.b16 %v1668
  %v1860 = vunpack.c.l.b16 %v1669
  %v1861 = vunpack.c.h.b16 %v1669
  %v1862 = vpack.c.b16 %v1734, %v1734
  %v1863 = vpack.c.b16 %v1735, %v1735
  %v1864 = vpack.c.b16 %v1736, %v1736
  %v1865 = vpack.c.b16 %v1737, %v1737
  %v1866 = vpack.c.b16 %v1738, %v1738
  %v1867 = vpack.c.b16 %v1739, %v1739
  %v1868 = vpack.c.b16 %v1740, %v1740
  %v1869 = vpack.c.b16 %v1741, %v1741
  %v1870 = vpack.c.b16 %v1742, %v1742
  %v1871 = vpack.c.b16 %v1743, %v1743
  %v1872 = vpack.c.b16 %v1744, %v1744
  %v1873 = vpack.c.b16 %v1745, %v1745
  %v1874 = vpack.c.b16 %v1746, %v1746
  %v1875 = vpack.c.b16 %v1747, %v1747
  %v1876 = vpack.c.b16 %v1748, %v1748
  %v1877 = vpack.c.b16 %v1749, %v1749
  %v1878 = vpack.c.b16 %v1750, %v1750
  %v1879 = vpack.c.b16 %v1751, %v1751
  %v1880 = vpack.c.b16 %v1752, %v1752
  %v1881 = vpack.c.b16 %v1753, %v1753
  %v1882 = vpack.c.b16 %v1754, %v1754
  %v1883 = vpack.c.b16 %v1755, %v1755
  %v1884 = vpack.c.b16 %v1756, %v1756
  %v1885 = vpack.c.b16 %v1757, %v1757
  %v1886 = vpack.c.b16 %v1758, %v1758
  %v1887 = vpack.c.b16 %v1759, %v1759
  %v1888 = vpack.c.b16 %v1760, %v1760
  %v1889 = vpack.c.b16 %v1761, %v1761
  %v1890 = vpack.c.b16 %v1762, %v1762
  %v1891 = vpack.c.b16 %v1763, %v1763
  %v1892 = vpack.c.b16 %v1764, %v1764
  %v1893 = vpack.c.b16 %v1765, %v1765
  %v1894 = vpack.c.b16 %v1766, %v1766
  %v1895 = vpack.c.b16 %v1767, %v1767
  %v1896 = vpack.c.b16 %v1768, %v1768
  %v1897 = vpack.c.b16 %v1769, %v1769
  %v1898 = vpack.c.b16 %v1770, %v1770
  %v1899 = vpack.c.b16 %v1771, %v1771
  %v1900 = vpack.c.b16 %v1772, %v1772
  %v1901 = vpack.c.b16 %v1773, %v1773
  %v1902 = vpack.c.b16 %v1774, %v1774
  %v1903 = vpack.c.b16 %v1775, %v1775
  %v1904 = vpack.c.b16 %v1776, %v1776
  %v1905 = vpack.c.b16 %v1777, %v1777
  %v1906 = vpack.c.b16 %v1778, %v1778
  %v1907 = vpack.c.b16 %v1779, %v1779
  %v1908 = vpack.c.b16 %v1780, %v1780
  %v1909 = vpack.c.b16 %v1781, %v1781
  %v1910 = vpack.c.b16 %v1782, %v1782
  %v1911 = vpack.c.b16 %v1783, %v1783
  %v1912 = vpack.c.b16 %v1784, %v1784
  %v1913 = vpack.c.b16 %v1785, %v1785
  %v1914 = vpack.c.b16 %v1786, %v1786
  %v1915 = vpack.c.b16 %v1787, %v1787
  %v1916 = vpack.c.b16 %v1788, %v1788
  %v1917 = vpack.c.b16 %v1789, %v1789
  %v1918 = vpack.c.b16 %v1790, %v1790
  %v1919 = vpack.c.b16 %v1791, %v1791
  %v1920 = vpack.c.b16 %v1792, %v1792
  %v1921 = vpack.c.b16 %v1793, %v1793
  %v1922 = vpack.c.b16 %v1794, %v1794
  %v1923 = vpack.c.b16 %v1795, %v1795
  %v1924 = vpack.c.b16 %v1796, %v1796
  %v1925 = vpack.c.b16 %v1797, %v1797
  %v1926 = vpack.c.b16 %v1798, %v1798
  %v1927 = vpack.c.b16 %v1799, %v1799
  %v1928 = vpack.c.b16 %v1800, %v1800
  %v1929 = vpack.c.b16 %v1801, %v1801
  %v1930 = vpack.c.b16 %v1802, %v1802
  %v1931 = vpack.c.b16 %v1803, %v1803
  %v1932 = vpack.c.b16 %v1804, %v1804
  %v1933 = vpack.c.b16 %v1805, %v1805
  %v1934 = vpack.c.b16 %v1806, %v1806
  %v1935 = vpack.c.b16 %v1807, %v1807
  %v1936 = vpack.c.b16 %v1808, %v1808
  %v1937 = vpack.c.b16 %v1809, %v1809
  %v1938 = vpack.c.b16 %v1810, %v1810
  %v1939 = vpack.c.b16 %v1811, %v1811
  %v1940 = vpack.c.b16 %v1812, %v1812
  %v1941 = vpack.c.b16 %v1813, %v1813
  %v1942 = vpack.c.b16 %v1814, %v1814
  %v1943 = vpack.c.b16 %v1815, %v1815
  %v1944 = vpack.c.b16 %v1816, %v1816
  %v1945 = vpack.c.b16 %v1817, %v1817
  %v1946 = vpack.c.b16 %v1818, %v1818
  %v1947 = vpack.c.b16 %v1819, %v1819
  %v1948 = vpack.c.b16 %v1820, %v1820
  %v1949 = vpack.c.b16 %v1821, %v1821
  %v1950 = vpack.c.b16 %v1822, %v1822
  %v1951 = vpack.c.b16 %v1823, %v1823
  %v1952 = vpack.c.b16 %v1824, %v1824
  %v1953 = vpack.c.b16 %v1825, %v1825
  %v1954 = vpack.c.b16 %v1826, %v1826
  %v1955 = vpack.c.b16 %v1827, %v1827
  %v1956 = vpack.c.b16 %v1828, %v1828
  %v1957 = vpack.c.b16 %v1829, %v1829
  %v1958 = vpack.c.b16 %v1830, %v1830
  %v1959 = vpack.c.b16 %v1831, %v1831
  %v1960 = vpack.c.b16 %v1832, %v1832
  %v1961 = vpack.c.b16 %v1833, %v1833
  %v1962 = vpack.c.b16 %v1834, %v1834
  %v1963 = vpack.c.b16 %v1835, %v1835
  %v1964 = vpack.c.b16 %v1836, %v1836
  %v1965 = vpack.c.b16 %v1837, %v1837
  %v1966 = vpack.c.b16 %v1838, %v1838
  %v1967 = vpack.c.b16 %v1839, %v1839
  %v1968 = vpack.c.b16 %v1840, %v1840
  %v1969 = vpack.c.b16 %v1841, %v1841
  %v1970 = vpack.c.b16 %v1842, %v1842
  %v1971 = vpack.c.b16 %v1843, %v1843
  %v1972 = vpack.c.b16 %v1844, %v1844
  %v1973 = vpack.c.b16 %v1845, %v1845
  %v1974 = vpack.c.b16 %v1846, %v1846
  %v1975 = vpack.c.b16 %v1847, %v1847
  %v1976 = vpack.c.b16 %v1848, %v1848
  %v1977 = vpack.c.b16 %v1849, %v1849
  %v1978 = vpack.c.b16 %v1850, %v1850
  %v1979 = vpack.c.b16 %v1851, %v1851
  %v1980 = vpack.c.b16 %v1852, %v1852
  %v1981 = vpack.c.b16 %v1853, %v1853
  %v1982 = vpack.c.b16 %v1854, %v1854
  %v1983 = vpack.c.b16 %v1855, %v1855
  %v1984 = vpack.c.b16 %v1856, %v1856
  %v1985 = vpack.c.b16 %v1857, %v1857
  %v1986 = vpack.c.b16 %v1858, %v1858
  %v1987 = vpack.c.b16 %v1859, %v1859
  %v1988 = vpack.c.b16 %v1860, %v1860
  %v1989 = vpack.c.b16 %v1861, %v1861
  %vm2118 = vcmask 257024
  %2119 = vst.msk [vmem:[%s4] sm:$0xf] %vm2118, %v1862
  %2120 = vst.msk [vmem:[%s4 + $0x4] sm:$0xf] %vm2118, %v1863
  %2121 = vst.msk [vmem:[%s4 + $0x8] sm:$0xf] %vm2118, %v1864
  %2122 = vst.msk [vmem:[%s4 + $0xc] sm:$0xf] %vm2118, %v1865
  %2123 = vst.msk [vmem:[%s4 + $0x10] sm:$0xf] %vm2118, %v1866
  %2124 = vst.msk [vmem:[%s4 + $0x14] sm:$0xf] %vm2118, %v1867
  %2125 = vst.msk [vmem:[%s4 + $0x18] sm:$0xf] %vm2118, %v1868
  %2126 = vst.msk [vmem:[%s4 + $0x1c] sm:$0xf] %vm2118, %v1869
  %2127 = vst.msk [vmem:[%s4 + $0x20] sm:$0xf] %vm2118, %v1870
  %2128 = vst.msk [vmem:[%s4 + $0x24] sm:$0xf] %vm2118, %v1871
  %2129 = vst.msk [vmem:[%s4 + $0x28] sm:$0xf] %vm2118, %v1872
  %2130 = vst.msk [vmem:[%s4 + $0x2c] sm:$0xf] %vm2118, %v1873
  %2131 = vst.msk [vmem:[%s4 + $0x30] sm:$0xf] %vm2118, %v1874
  %2132 = vst.msk [vmem:[%s4 + $0x34] sm:$0xf] %vm2118, %v1875
  %2133 = vst.msk [vmem:[%s4 + $0x38] sm:$0xf] %vm2118, %v1876
  %2134 = vst.msk [vmem:[%s4 + $0x3c] sm:$0xf] %vm2118, %v1877
  %2135 = vst.msk [vmem:[%s4 + $0x40] sm:$0xf] %vm2118, %v1878
  %2136 = vst.msk [vmem:[%s4 + $0x44] sm:$0xf] %vm2118, %v1879
  %2137 = vst.msk [vmem:[%s4 + $0x48] sm:$0xf] %vm2118, %v1880
  %2138 = vst.msk [vmem:[%s4 + $0x4c] sm:$0xf] %vm2118, %v1881
  %2139 = vst.msk [vmem:[%s4 + $0x50] sm:$0xf] %vm2118, %v1882
  %2140 = vst.msk [vmem:[%s4 + $0x54] sm:$0xf] %vm2118, %v1883
  %2141 = vst.msk [vmem:[%s4 + $0x58] sm:$0xf] %vm2118, %v1884
  %2142 = vst.msk [vmem:[%s4 + $0x5c] sm:$0xf] %vm2118, %v1885
  %2143 = vst.msk [vmem:[%s4 + $0x60] sm:$0xf] %vm2118, %v1886
  %2144 = vst.msk [vmem:[%s4 + $0x64] sm:$0xf] %vm2118, %v1887
  %2145 = vst.msk [vmem:[%s4 + $0x68] sm:$0xf] %vm2118, %v1888
  %2146 = vst.msk [vmem:[%s4 + $0x6c] sm:$0xf] %vm2118, %v1889
  %2147 = vst.msk [vmem:[%s4 + $0x70] sm:$0xf] %vm2118, %v1890
  %2148 = vst.msk [vmem:[%s4 + $0x74] sm:$0xf] %vm2118, %v1891
  %2149 = vst.msk [vmem:[%s4 + $0x78] sm:$0xf] %vm2118, %v1892
  %2150 = vst.msk [vmem:[%s4 + $0x7c] sm:$0xf] %vm2118, %v1893
  %2151 = vst.msk [vmem:[%s4 + $0x80] sm:$0xf] %vm2118, %v1894
  %2152 = vst.msk [vmem:[%s4 + $0x84] sm:$0xf] %vm2118, %v1895
  %2153 = vst.msk [vmem:[%s4 + $0x88] sm:$0xf] %vm2118, %v1896
  %2154 = vst.msk [vmem:[%s4 + $0x8c] sm:$0xf] %vm2118, %v1897
  %2155 = vst.msk [vmem:[%s4 + $0x90] sm:$0xf] %vm2118, %v1898
  %2156 = vst.msk [vmem:[%s4 + $0x94] sm:$0xf] %vm2118, %v1899
  %2157 = vst.msk [vmem:[%s4 + $0x98] sm:$0xf] %vm2118, %v1900
  %2158 = vst.msk [vmem:[%s4 + $0x9c] sm:$0xf] %vm2118, %v1901
  %2159 = vst.msk [vmem:[%s4 + $0xa0] sm:$0xf] %vm2118, %v1902
  %2160 = vst.msk [vmem:[%s4 + $0xa4] sm:$0xf] %vm2118, %v1903
  %2161 = vst.msk [vmem:[%s4 + $0xa8] sm:$0xf] %vm2118, %v1904
  %2162 = vst.msk [vmem:[%s4 + $0xac] sm:$0xf] %vm2118, %v1905
  %2163 = vst.msk [vmem:[%s4 + $0xb0] sm:$0xf] %vm2118, %v1906
  %2164 = vst.msk [vmem:[%s4 + $0xb4] sm:$0xf] %vm2118, %v1907
  %2165 = vst.msk [vmem:[%s4 + $0xb8] sm:$0xf] %vm2118, %v1908
  %2166 = vst.msk [vmem:[%s4 + $0xbc] sm:$0xf] %vm2118, %v1909
  %2167 = vst.msk [vmem:[%s4 + $0xc0] sm:$0xf] %vm2118, %v1910
  %2168 = vst.msk [vmem:[%s4 + $0xc4] sm:$0xf] %vm2118, %v1911
  %2169 = vst.msk [vmem:[%s4 + $0xc8] sm:$0xf] %vm2118, %v1912
  %2170 = vst.msk [vmem:[%s4 + $0xcc] sm:$0xf] %vm2118, %v1913
  %2171 = vst.msk [vmem:[%s4 + $0xd0] sm:$0xf] %vm2118, %v1914
  %2172 = vst.msk [vmem:[%s4 + $0xd4] sm:$0xf] %vm2118, %v1915
  %2173 = vst.msk [vmem:[%s4 + $0xd8] sm:$0xf] %vm2118, %v1916
  %2174 = vst.msk [vmem:[%s4 + $0xdc] sm:$0xf] %vm2118, %v1917
  %2175 = vst.msk [vmem:[%s4 + $0xe0] sm:$0xf] %vm2118, %v1918
  %2176 = vst.msk [vmem:[%s4 + $0xe4] sm:$0xf] %vm2118, %v1919
  %2177 = vst.msk [vmem:[%s4 + $0xe8] sm:$0xf] %vm2118, %v1920
  %2178 = vst.msk [vmem:[%s4 + $0xec] sm:$0xf] %vm2118, %v1921
  %2179 = vst.msk [vmem:[%s4 + $0xf0] sm:$0xf] %vm2118, %v1922
  %2180 = vst.msk [vmem:[%s4 + $0xf4] sm:$0xf] %vm2118, %v1923
  %2181 = vst.msk [vmem:[%s4 + $0xf8] sm:$0xf] %vm2118, %v1924
  %2182 = vst.msk [vmem:[%s4 + $0xfc] sm:$0xf] %vm2118, %v1925
  %2183 = vst.msk [vmem:[%s4 + $0x100] sm:$0xf] %vm2118, %v1926
  %2184 = vst.msk [vmem:[%s4 + $0x104] sm:$0xf] %vm2118, %v1927
  %2185 = vst.msk [vmem:[%s4 + $0x108] sm:$0xf] %vm2118, %v1928
  %2186 = vst.msk [vmem:[%s4 + $0x10c] sm:$0xf] %vm2118, %v1929
  %2187 = vst.msk [vmem:[%s4 + $0x110] sm:$0xf] %vm2118, %v1930
  %2188 = vst.msk [vmem:[%s4 + $0x114] sm:$0xf] %vm2118, %v1931
  %2189 = vst.msk [vmem:[%s4 + $0x118] sm:$0xf] %vm2118, %v1932
  %2190 = vst.msk [vmem:[%s4 + $0x11c] sm:$0xf] %vm2118, %v1933
  %2191 = vst.msk [vmem:[%s4 + $0x120] sm:$0xf] %vm2118, %v1934
  %2192 = vst.msk [vmem:[%s4 + $0x124] sm:$0xf] %vm2118, %v1935
  %2193 = vst.msk [vmem:[%s4 + $0x128] sm:$0xf] %vm2118, %v1936
  %2194 = vst.msk [vmem:[%s4 + $0x12c] sm:$0xf] %vm2118, %v1937
  %2195 = vst.msk [vmem:[%s4 + $0x130] sm:$0xf] %vm2118, %v1938
  %2196 = vst.msk [vmem:[%s4 + $0x134] sm:$0xf] %vm2118, %v1939
  %2197 = vst.msk [vmem:[%s4 + $0x138] sm:$0xf] %vm2118, %v1940
  %2198 = vst.msk [vmem:[%s4 + $0x13c] sm:$0xf] %vm2118, %v1941
  %2199 = vst.msk [vmem:[%s4 + $0x140] sm:$0xf] %vm2118, %v1942
  %2200 = vst.msk [vmem:[%s4 + $0x144] sm:$0xf] %vm2118, %v1943
  %2201 = vst.msk [vmem:[%s4 + $0x148] sm:$0xf] %vm2118, %v1944
  %2202 = vst.msk [vmem:[%s4 + $0x14c] sm:$0xf] %vm2118, %v1945
  %2203 = vst.msk [vmem:[%s4 + $0x150] sm:$0xf] %vm2118, %v1946
  %2204 = vst.msk [vmem:[%s4 + $0x154] sm:$0xf] %vm2118, %v1947
  %2205 = vst.msk [vmem:[%s4 + $0x158] sm:$0xf] %vm2118, %v1948
  %2206 = vst.msk [vmem:[%s4 + $0x15c] sm:$0xf] %vm2118, %v1949
  %2207 = vst.msk [vmem:[%s4 + $0x160] sm:$0xf] %vm2118, %v1950
  %2208 = vst.msk [vmem:[%s4 + $0x164] sm:$0xf] %vm2118, %v1951
  %2209 = vst.msk [vmem:[%s4 + $0x168] sm:$0xf] %vm2118, %v1952
  %2210 = vst.msk [vmem:[%s4 + $0x16c] sm:$0xf] %vm2118, %v1953
  %2211 = vst.msk [vmem:[%s4 + $0x170] sm:$0xf] %vm2118, %v1954
  %2212 = vst.msk [vmem:[%s4 + $0x174] sm:$0xf] %vm2118, %v1955
  %2213 = vst.msk [vmem:[%s4 + $0x178] sm:$0xf] %vm2118, %v1956
  %2214 = vst.msk [vmem:[%s4 + $0x17c] sm:$0xf] %vm2118, %v1957
  %2215 = vst.msk [vmem:[%s4 + $0x180] sm:$0xf] %vm2118, %v1958
  %2216 = vst.msk [vmem:[%s4 + $0x184] sm:$0xf] %vm2118, %v1959
  %2217 = vst.msk [vmem:[%s4 + $0x188] sm:$0xf] %vm2118, %v1960
  %2218 = vst.msk [vmem:[%s4 + $0x18c] sm:$0xf] %vm2118, %v1961
  %2219 = vst.msk [vmem:[%s4 + $0x190] sm:$0xf] %vm2118, %v1962
  %2220 = vst.msk [vmem:[%s4 + $0x194] sm:$0xf] %vm2118, %v1963
  %2221 = vst.msk [vmem:[%s4 + $0x198] sm:$0xf] %vm2118, %v1964
  %2222 = vst.msk [vmem:[%s4 + $0x19c] sm:$0xf] %vm2118, %v1965
  %2223 = vst.msk [vmem:[%s4 + $0x1a0] sm:$0xf] %vm2118, %v1966
  %2224 = vst.msk [vmem:[%s4 + $0x1a4] sm:$0xf] %vm2118, %v1967
  %2225 = vst.msk [vmem:[%s4 + $0x1a8] sm:$0xf] %vm2118, %v1968
  %2226 = vst.msk [vmem:[%s4 + $0x1ac] sm:$0xf] %vm2118, %v1969
  %2227 = vst.msk [vmem:[%s4 + $0x1b0] sm:$0xf] %vm2118, %v1970
  %2228 = vst.msk [vmem:[%s4 + $0x1b4] sm:$0xf] %vm2118, %v1971
  %2229 = vst.msk [vmem:[%s4 + $0x1b8] sm:$0xf] %vm2118, %v1972
  %2230 = vst.msk [vmem:[%s4 + $0x1bc] sm:$0xf] %vm2118, %v1973
  %2231 = vst.msk [vmem:[%s4 + $0x1c0] sm:$0xf] %vm2118, %v1974
  %2232 = vst.msk [vmem:[%s4 + $0x1c4] sm:$0xf] %vm2118, %v1975
  %2233 = vst.msk [vmem:[%s4 + $0x1c8] sm:$0xf] %vm2118, %v1976
  %2234 = vst.msk [vmem:[%s4 + $0x1cc] sm:$0xf] %vm2118, %v1977
  %2235 = vst.msk [vmem:[%s4 + $0x1d0] sm:$0xf] %vm2118, %v1978
  %2236 = vst.msk [vmem:[%s4 + $0x1d4] sm:$0xf] %vm2118, %v1979
  %2237 = vst.msk [vmem:[%s4 + $0x1d8] sm:$0xf] %vm2118, %v1980
  %2238 = vst.msk [vmem:[%s4 + $0x1dc] sm:$0xf] %vm2118, %v1981
  %2239 = vst.msk [vmem:[%s4 + $0x1e0] sm:$0xf] %vm2118, %v1982
  %2240 = vst.msk [vmem:[%s4 + $0x1e4] sm:$0xf] %vm2118, %v1983
  %2241 = vst.msk [vmem:[%s4 + $0x1e8] sm:$0xf] %vm2118, %v1984
  %2242 = vst.msk [vmem:[%s4 + $0x1ec] sm:$0xf] %vm2118, %v1985
  %2243 = vst.msk [vmem:[%s4 + $0x1f0] sm:$0xf] %vm2118, %v1986
  %2244 = vst.msk [vmem:[%s4 + $0x1f4] sm:$0xf] %vm2118, %v1987
  %2245 = vst.msk [vmem:[%s4 + $0x1f8] sm:$0xf] %vm2118, %v1988
  %2246 = vst.msk [vmem:[%s4 + $0x1fc] sm:$0xf] %vm2118, %v1989
  // Predicated region
  $region18: #{senet_bottleneck_pallas.4} parent=0 // pred_check
    _
  $region19: #{senet_bottleneck_pallas.4} parent=0 // pred_check_branch
    %2248 = sbr.rel (0) target = $region21
  $region20: #{senet_bottleneck_pallas.4} parent=0 // pred_region
    _
  $region21: #{senet_bottleneck_pallas.4} parent=0 // pred_fallthru
    _
  // Predicated region
  $region22: #{senet_bottleneck_pallas.4} parent=0 // pred_check
    _
  $region23: #{senet_bottleneck_pallas.4} parent=0 // pred_check_branch
    %2250 = sbr.rel (0) target = $region25
  $region24: #{senet_bottleneck_pallas.4} parent=0 // pred_region
    _
  $region25: #{senet_bottleneck_pallas.4} parent=0 // pred_fallthru
    _

// kernel: senet_bottleneck_pallas.6
$region0: #{senet_bottleneck_pallas.6}
  #allocation0 [shape = 'u32[]', space=smem, size = 0x4, offset = 0x4, fixed_abs, tag = 'smem constant byte address 0x4 - core index']
  #allocation1 [shape = 'u32[144,128]{1,0:T(1,128)}', space=vmem, size = 0x12000, scoped, tag = 'internal scratch']
  %s0 = inlined_call_operand.vmem [shape: bf16[2,512,32], index: 0, kind: input, shape index: {}]
  %s1 = inlined_call_operand.vmem [shape: bf16[32,64], index: 1, kind: input, shape index: {}]
  %s2 = inlined_call_operand.vmem [shape: f32[1,64], index: 2, kind: input, shape index: {}]
  %s3 = inlined_call_operand.vmem [shape: bf16[2,512,64], index: 3, kind: output, shape index: {0}]
  %s4 = inlined_call_operand.vmem [shape: f32[2,1,64], index: 4, kind: output, shape index: {1}]
  %5 = xla_tuple %s3, %s4
  %s6 = sld [smem:[#allocation0]]
  $region57: #{senet_bottleneck_pallas.6} parent=0
    _
  %s8 = ssub.s32 1, %s6
  %s9 = scalar_select 0, %s8, %s6
  loop: start=0, step=1, limit=4
  $region2: #{senet_bottleneck_pallas.6} parent=0 // loop_pre_header
    _
  $region3: #{senet_bottleneck_pallas.6} parent=0 // loop_header
    %s11 = sphi 0, %s15
    %p12 = scmp.ge.s32.totalorder %s11, 4
    %s18 = sphi 0, %s30
    %s19 = sphi 0, %s26
    %s20 = sphi 0, %s18
    %s21 = sphi 0, %s19
    %s22 = sphi 0, %s20
    %s23 = sphi 0, %s21
    %s35 = sphi 0, %s37
    %s38 = sphi 0, %s35
    %s39 = sphi 0, %s38
    %s55 = sphi 0, %s39
    %s59 = sphi 0, %s59
    %s61 = sphi 0, %s59
    %s62 = sphi 0, %s61
    %s76 = sphi 0, %s62
    %s80 = sphi 0, %s80
    %s82 = sphi 0, %s80
    %s83 = sphi 0, %s82
    %s97 = sphi 0, %s83
    %s105 = sphi 0, %s107
    %s108 = sphi 0, %s105
    %s109 = sphi 0, %s108
    %s125 = sphi 0, %s109
    %s131 = sphi 0, %s133
    %s134 = sphi 0, %s131
    %s135 = sphi 0, %s134
    %s151 = sphi 0, %s135
  $region4: #{senet_bottleneck_pallas.6} parent=0 // loop_header_branch
    %14 = sbr.rel (%p12) target = $region8
  $region5: #{senet_bottleneck_pallas.6} parent=0 // loop_body
    %s16 = ssub.s32 %s11, 1
    %s17 = ssub.s32 %s11, 2
    %s24 = sadd.s32 1, %s19
    %p25 = scmp.ge.s32.totalorder %s24, 1
    %s26 = scalar_select %p25, 0, %s24
    %s27 = sadd.s32 1, %s18
    %s28 = scalar_select %p25, %s27, %s18
    %p29 = scmp.ge.s32.totalorder %s28, 2
    %s30 = scalar_select %p29, 0, %s28
    %s31 = ssub.s32 %s18, %s30
    %s32 = ssub.s32 %s19, %s26
    %s33 = sor.u32 %s31, %s32
    %p34 = scmp.eq.s32.totalorder %s33, 0
    %s36 = sadd.s32 %s35, 1
    %s37 = scalar_select %p34, %s35, %s36
    %p40 = pneg %p34
    %p41 = scmp.eq.s32.totalorder %s11, 1
    %p42 = por %p40, %p41
    %p43 = scmp.ne.s32.totalorder %s35, %s38
    %p44 = scmp.eq.s32.totalorder %s11, 0
    %p45 = por %p43, %p44
    %p46 = scmp.ne.s32.totalorder %s35, %s38
    %p47 = scmp.eq.s32.totalorder %s16, 1
    %p48 = por %p46, %p47
    %p49 = scmp.ne.s32.totalorder %s38, %s39
    %p50 = scmp.eq.s32.totalorder %s16, 0
    %p51 = por %p49, %p50
    %p52 = scmp.ne.s32.totalorder %s38, %s39
    %p53 = scmp.eq.s32.totalorder %s17, 1
    %p54 = por %p52, %p53
    %p56 = scmp.ne.s32.totalorder %s39, %s55
    %p57 = scmp.eq.s32.totalorder %s17, 0
    %p58 = por %p56, %p57
    %s60 = sadd.s32 %s59, 1
    %p63 = scmp.eq.s32.totalorder %s11, 1
    %p64 = scmp.ne.s32.totalorder %s59, %s61
    %p65 = scmp.eq.s32.totalorder %s11, 0
    %p66 = por %p64, %p65
    %p67 = scmp.ne.s32.totalorder %s59, %s61
    %p68 = scmp.eq.s32.totalorder %s16, 1
    %p69 = por %p67, %p68
    %p70 = scmp.ne.s32.totalorder %s61, %s62
    %p71 = scmp.eq.s32.totalorder %s16, 0
    %p72 = por %p70, %p71
    %p73 = scmp.ne.s32.totalorder %s61, %s62
    %p74 = scmp.eq.s32.totalorder %s17, 1
    %p75 = por %p73, %p74
    %p77 = scmp.ne.s32.totalorder %s62, %s76
    %p78 = scmp.eq.s32.totalorder %s17, 0
    %p79 = por %p77, %p78
    %s81 = sadd.s32 %s80, 1
    %p84 = scmp.eq.s32.totalorder %s11, 1
    %p85 = scmp.ne.s32.totalorder %s80, %s82
    %p86 = scmp.eq.s32.totalorder %s11, 0
    %p87 = por %p85, %p86
    %p88 = scmp.ne.s32.totalorder %s80, %s82
    %p89 = scmp.eq.s32.totalorder %s16, 1
    %p90 = por %p88, %p89
    %p91 = scmp.ne.s32.totalorder %s82, %s83
    %p92 = scmp.eq.s32.totalorder %s16, 0
    %p93 = por %p91, %p92
    %p94 = scmp.ne.s32.totalorder %s82, %s83
    %p95 = scmp.eq.s32.totalorder %s17, 1
    %p96 = por %p94, %p95
    %p98 = scmp.ne.s32.totalorder %s83, %s97
    %p99 = scmp.eq.s32.totalorder %s17, 0
    %p100 = por %p98, %p99
    %s101 = ssub.s32 %s18, %s30
    %s102 = ssub.s32 %s19, %s26
    %s103 = sor.u32 %s101, %s102
    %p104 = scmp.eq.s32.totalorder %s103, 0
    %s106 = sadd.s32 %s105, 1
    %s107 = scalar_select %p104, %s105, %s106
    %p110 = pneg %p104
    %p111 = scmp.eq.s32.totalorder %s11, 1
    %p112 = por %p110, %p111
    %p113 = scmp.ne.s32.totalorder %s105, %s108
    %p114 = scmp.eq.s32.totalorder %s11, 0
    %p115 = por %p113, %p114
    %p116 = scmp.ne.s32.totalorder %s105, %s108
    %p117 = scmp.eq.s32.totalorder %s16, 1
    %p118 = por %p116, %p117
    %p119 = scmp.ne.s32.totalorder %s108, %s109
    %p120 = scmp.eq.s32.totalorder %s16, 0
    %p121 = por %p119, %p120
    %p122 = scmp.ne.s32.totalorder %s108, %s109
    %p123 = scmp.eq.s32.totalorder %s17, 1
    %p124 = por %p122, %p123
    %p126 = scmp.ne.s32.totalorder %s109, %s125
    %p127 = scmp.eq.s32.totalorder %s17, 0
    %p128 = por %p126, %p127
    %s129 = ssub.s32 %s18, %s30
    %p130 = scmp.eq.s32.totalorder %s129, 0
    %s132 = sadd.s32 %s131, 1
    %s133 = scalar_select %p130, %s131, %s132
    %p136 = pneg %p130
    %p137 = scmp.eq.s32.totalorder %s11, 1
    %p138 = por %p136, %p137
    %p139 = scmp.ne.s32.totalorder %s131, %s134
    %p140 = scmp.eq.s32.totalorder %s11, 0
    %p141 = por %p139, %p140
    %p142 = scmp.ne.s32.totalorder %s131, %s134
    %p143 = scmp.eq.s32.totalorder %s16, 1
    %p144 = por %p142, %p143
    %p145 = scmp.ne.s32.totalorder %s134, %s135
    %p146 = scmp.eq.s32.totalorder %s16, 0
    %p147 = por %p145, %p146
    %p148 = scmp.ne.s32.totalorder %s134, %s135
    %p149 = scmp.eq.s32.totalorder %s17, 1
    %p150 = por %p148, %p149
    %p152 = scmp.ne.s32.totalorder %s135, %s151
    %p153 = scmp.eq.s32.totalorder %s17, 0
    %p154 = por %p152, %p153
    %p155 = scmp.le.s32.totalorder 1, %s11
    %p156 = scmp.lt.s32.totalorder %s11, 3
    %p157 = pnand %p155, %p156
    %p158 = pneg %p157
    // Predicated region
    $region9: #{senet_bottleneck_pallas.6} parent=5 // pred_check
      _
    $region10: #{senet_bottleneck_pallas.6} parent=5 // pred_check_branch
      %160 = sbr.rel (%p157) target = $region12
    $region11: #{senet_bottleneck_pallas.6} parent=5 // pred_region
      %s161 = ssub.s32 %s11, 1
      // Predicated region
      $region13: #{senet_bottleneck_pallas.6} parent=11 // pred_check
        %p162 = pneg %p72
      $region14: #{senet_bottleneck_pallas.6} parent=11 // pred_check_branch
        %164 = sbr.rel (%p162) target = $region16
      $region15: #{senet_bottleneck_pallas.6} parent=11 // pred_region
        _
      $region16: #{senet_bottleneck_pallas.6} parent=11 // pred_fallthru
        _
      // Predicated region
      $region17: #{senet_bottleneck_pallas.6} parent=11 // pred_check
        %p165 = pneg %p93
      $region18: #{senet_bottleneck_pallas.6} parent=11 // pred_check_branch
        %167 = sbr.rel (%p165) target = $region20
      $region19: #{senet_bottleneck_pallas.6} parent=11 // pred_region
        _
      $region20: #{senet_bottleneck_pallas.6} parent=11 // pred_fallthru
        _
    $region12: #{senet_bottleneck_pallas.6} parent=5 // pred_fallthru
      _
    %p168 = scmp.lt.s32.totalorder %s11, 2
    // Predicated region
    $region21: #{senet_bottleneck_pallas.6} parent=5 // pred_check
      %p169 = pneg %p168
    $region22: #{senet_bottleneck_pallas.6} parent=5 // pred_check_branch
      %171 = sbr.rel (%p169) target = $region24
    $region23: #{senet_bottleneck_pallas.6} parent=5 // pred_region
      // Predicated region
      $region25: #{senet_bottleneck_pallas.6} parent=23 // pred_check
        %p172 = pneg %p45
      $region26: #{senet_bottleneck_pallas.6} parent=23 // pred_check_branch
        %174 = sbr.rel (%p172) target = $region28
      $region27: #{senet_bottleneck_pallas.6} parent=23 // pred_region
        %s175 = smul.u32 64, %s19
        %p176 = scmp.lt.s32.totalorder %s18, 1
        %s177 = scalar_select %p176, %s18, 1
        %p178 = scmp.lt.s32.totalorder %s175, 63
        %s179 = scalar_select %p178, %s175, 63
        %s180 = smul.addr %s177, 64
        %s181 = sadd.s32 %s179, %s180
        %s182 = smul.addr %s181, 4
        %s183 = scalar_lea.vmem %s0, %s182
        %s184 = smul.u32 64, %s19
      $region28: #{senet_bottleneck_pallas.6} parent=23 // pred_fallthru
        _
    $region24: #{senet_bottleneck_pallas.6} parent=5 // pred_fallthru
      _
    %p185 = scmp.le.s32.totalorder 1, %s11
    %p186 = scmp.lt.s32.totalorder %s11, 3
    %p187 = pnand %p185, %p186
    %p188 = pneg %p187
    // Predicated region
    $region29: #{senet_bottleneck_pallas.6} parent=5 // pred_check
      _
    $region30: #{senet_bottleneck_pallas.6} parent=5 // pred_check_branch
      %190 = sbr.rel (%p187) target = $region32
    $region31: #{senet_bottleneck_pallas.6} parent=5 // pred_region
      %s191 = ssub.s32 %s11, 1
      %s192 = smul.u32 64, %s21
      %p193 = scmp.lt.s32.totalorder %s20, 1
      %s194 = scalar_select %p193, %s20, 1
      %p195 = scmp.lt.s32.totalorder %s192, 63
      %s196 = scalar_select %p195, %s192, 63
      %s197 = smul.addr %s194, 64
      %s198 = sadd.s32 %s196, %s197
      %s199 = smul.addr %s198, 4
      %s200 = scalar_lea.vmem %s0, %s199
      %p201 = pneg %p51
      %p202 = pneg %p48
      %p203 = pneg %p72
      %p204 = pneg %p69
      %p205 = pneg %p93
      %p206 = pneg %p90
      %p207 = pneg %p121
      %p208 = pneg %p118
      %s209 = smul.u32 64, %s21
      %p210 = scmp.lt.s32.totalorder %s20, 1
      %s211 = scalar_select %p210, %s20, 1
      %p212 = scmp.lt.s32.totalorder %s209, 63
      %s213 = scalar_select %p212, %s209, 63
      %s214 = smul.addr %s211, 64
      %s215 = sadd.s32 %s213, %s214
      %s216 = smul.addr %s215, 4
      %s217 = scalar_lea.vmem %s3, %s216
      %p218 = pneg %p147
      %p219 = pneg %p144
      %p220 = scmp.lt.s32.totalorder %s20, 1
      %s221 = scalar_select %p220, %s20, 1
      %s222 = scalar_lea.vmem %s4, %s221
      %s223 = smul.u32 64, %s21
      %p224 = scmp.lt.s32.totalorder %s20, 1
      %s225 = scalar_select %p224, %s20, 1
      %p226 = scmp.lt.s32.totalorder %s223, 63
      %s227 = scalar_select %p226, %s223, 63
      %s228 = smul.addr %s225, 64
      %s229 = sadd.s32 %s227, %s228
      %s230 = smul.addr %s229, 4
      %s231 = scalar_lea.vmem %s0, %s230
      %s232 = smul.u32 64, %s21
      %s233 = smul.u32 64, %s21
      %p234 = scmp.lt.s32.totalorder %s20, 1
      %s235 = scalar_select %p234, %s20, 1
      %p236 = scmp.lt.s32.totalorder %s233, 63
      %s237 = scalar_select %p236, %s233, 63
      %s238 = smul.addr %s235, 64
      %s239 = sadd.s32 %s237, %s238
      %s240 = smul.addr %s239, 4
      %s241 = scalar_lea.vmem %s3, %s240
      %s242 = smul.u32 64, %s21
      %p243 = scmp.lt.s32.totalorder %s20, 1
      %s244 = scalar_select %p243, %s20, 1
      %s245 = scalar_lea.vmem %s4, %s244
      %v247 = vld [vmem:[%s231] sm:$0xf]
      %v248 = vld [vmem:[%s231 + $0x4] sm:$0xf]
      %v249 = vld [vmem:[%s231 + $0x8] sm:$0xf]
      %v250 = vld [vmem:[%s231 + $0xc] sm:$0xf]
      %v251 = vld [vmem:[%s231 + $0x10] sm:$0xf]
      %v252 = vld [vmem:[%s231 + $0x14] sm:$0xf]
      %v253 = vld [vmem:[%s231 + $0x18] sm:$0xf]
      %v254 = vld [vmem:[%s231 + $0x1c] sm:$0xf]
      %v255 = vld [vmem:[%s231 + $0x20] sm:$0xf]
      %v256 = vld [vmem:[%s231 + $0x24] sm:$0xf]
      %v257 = vld [vmem:[%s231 + $0x28] sm:$0xf]
      %v258 = vld [vmem:[%s231 + $0x2c] sm:$0xf]
      %v259 = vld [vmem:[%s231 + $0x30] sm:$0xf]
      %v260 = vld [vmem:[%s231 + $0x34] sm:$0xf]
      %v261 = vld [vmem:[%s231 + $0x38] sm:$0xf]
      %v262 = vld [vmem:[%s231 + $0x3c] sm:$0xf]
      %v263 = vld [vmem:[%s231 + $0x40] sm:$0xf]
      %v264 = vld [vmem:[%s231 + $0x44] sm:$0xf]
      %v265 = vld [vmem:[%s231 + $0x48] sm:$0xf]
      %v266 = vld [vmem:[%s231 + $0x4c] sm:$0xf]
      %v267 = vld [vmem:[%s231 + $0x50] sm:$0xf]
      %v268 = vld [vmem:[%s231 + $0x54] sm:$0xf]
      %v269 = vld [vmem:[%s231 + $0x58] sm:$0xf]
      %v270 = vld [vmem:[%s231 + $0x5c] sm:$0xf]
      %v271 = vld [vmem:[%s231 + $0x60] sm:$0xf]
      %v272 = vld [vmem:[%s231 + $0x64] sm:$0xf]
      %v273 = vld [vmem:[%s231 + $0x68] sm:$0xf]
      %v274 = vld [vmem:[%s231 + $0x6c] sm:$0xf]
      %v275 = vld [vmem:[%s231 + $0x70] sm:$0xf]
      %v276 = vld [vmem:[%s231 + $0x74] sm:$0xf]
      %v277 = vld [vmem:[%s231 + $0x78] sm:$0xf]
      %v278 = vld [vmem:[%s231 + $0x7c] sm:$0xf]
      %v279 = vld [vmem:[%s231 + $0x80] sm:$0xf]
      %v280 = vld [vmem:[%s231 + $0x84] sm:$0xf]
      %v281 = vld [vmem:[%s231 + $0x88] sm:$0xf]
      %v282 = vld [vmem:[%s231 + $0x8c] sm:$0xf]
      %v283 = vld [vmem:[%s231 + $0x90] sm:$0xf]
      %v284 = vld [vmem:[%s231 + $0x94] sm:$0xf]
      %v285 = vld [vmem:[%s231 + $0x98] sm:$0xf]
      %v286 = vld [vmem:[%s231 + $0x9c] sm:$0xf]
      %v287 = vld [vmem:[%s231 + $0xa0] sm:$0xf]
      %v288 = vld [vmem:[%s231 + $0xa4] sm:$0xf]
      %v289 = vld [vmem:[%s231 + $0xa8] sm:$0xf]
      %v290 = vld [vmem:[%s231 + $0xac] sm:$0xf]
      %v291 = vld [vmem:[%s231 + $0xb0] sm:$0xf]
      %v292 = vld [vmem:[%s231 + $0xb4] sm:$0xf]
      %v293 = vld [vmem:[%s231 + $0xb8] sm:$0xf]
      %v294 = vld [vmem:[%s231 + $0xbc] sm:$0xf]
      %v295 = vld [vmem:[%s231 + $0xc0] sm:$0xf]
      %v296 = vld [vmem:[%s231 + $0xc4] sm:$0xf]
      %v297 = vld [vmem:[%s231 + $0xc8] sm:$0xf]
      %v298 = vld [vmem:[%s231 + $0xcc] sm:$0xf]
      %v299 = vld [vmem:[%s231 + $0xd0] sm:$0xf]
      %v300 = vld [vmem:[%s231 + $0xd4] sm:$0xf]
      %v301 = vld [vmem:[%s231 + $0xd8] sm:$0xf]
      %v302 = vld [vmem:[%s231 + $0xdc] sm:$0xf]
      %v303 = vld [vmem:[%s231 + $0xe0] sm:$0xf]
      %v304 = vld [vmem:[%s231 + $0xe4] sm:$0xf]
      %v305 = vld [vmem:[%s231 + $0xe8] sm:$0xf]
      %v306 = vld [vmem:[%s231 + $0xec] sm:$0xf]
      %v307 = vld [vmem:[%s231 + $0xf0] sm:$0xf]
      %v308 = vld [vmem:[%s231 + $0xf4] sm:$0xf]
      %v309 = vld [vmem:[%s231 + $0xf8] sm:$0xf]
      %v310 = vld [vmem:[%s231 + $0xfc] sm:$0xf]
      %v311 = vld [vmem:[%s1] sm:$0xf]
      %v312 = vld [vmem:[%s1 + $0x4] sm:$0xf]
      %v313 = vld [vmem:[%s1 + $0x8] sm:$0xf]
      %v314 = vld [vmem:[%s1 + $0xc] sm:$0xf]
      %v315 = vld [vmem:[%s2] sm:$0x1]
      %v317 = vlaneseq
      %v318 = vshrl.u32 %v317, 7
      %v319 = vsub.s32 0, %v318
      %v320 = vrot.slane %v315, %v319
      %v386 = vunpack.c.l.b16 %v247
      %v387 = vunpack.c.l.b16 %v248
      %v388 = vunpack.c.l.b16 %v249
      %v389 = vunpack.c.l.b16 %v250
      %v390 = vunpack.c.l.b16 %v251
      %v391 = vunpack.c.l.b16 %v252
      %v392 = vunpack.c.l.b16 %v253
      %v393 = vunpack.c.l.b16 %v254
      %v394 = vunpack.c.l.b16 %v255
      %v395 = vunpack.c.l.b16 %v256
      %v396 = vunpack.c.l.b16 %v257
      %v397 = vunpack.c.l.b16 %v258
      %v398 = vunpack.c.l.b16 %v259
      %v399 = vunpack.c.l.b16 %v260
      %v400 = vunpack.c.l.b16 %v261
      %v401 = vunpack.c.l.b16 %v262
      %v402 = vunpack.c.l.b16 %v263
      %v403 = vunpack.c.l.b16 %v264
      %v404 = vunpack.c.l.b16 %v265
      %v405 = vunpack.c.l.b16 %v266
      %v406 = vunpack.c.l.b16 %v267
      %v407 = vunpack.c.l.b16 %v268
      %v408 = vunpack.c.l.b16 %v269
      %v409 = vunpack.c.l.b16 %v270
      %v410 = vunpack.c.l.b16 %v271
      %v411 = vunpack.c.l.b16 %v272
      %v412 = vunpack.c.l.b16 %v273
      %v413 = vunpack.c.l.b16 %v274
      %v414 = vunpack.c.l.b16 %v275
      %v415 = vunpack.c.l.b16 %v276
      %v416 = vunpack.c.l.b16 %v277
      %v417 = vunpack.c.l.b16 %v278
      %v418 = vunpack.c.l.b16 %v279
      %v419 = vunpack.c.l.b16 %v280
      %v420 = vunpack.c.l.b16 %v281
      %v421 = vunpack.c.l.b16 %v282
      %v422 = vunpack.c.l.b16 %v283
      %v423 = vunpack.c.l.b16 %v284
      %v424 = vunpack.c.l.b16 %v285
      %v425 = vunpack.c.l.b16 %v286
      %v426 = vunpack.c.l.b16 %v287
      %v427 = vunpack.c.l.b16 %v288
      %v428 = vunpack.c.l.b16 %v289
      %v429 = vunpack.c.l.b16 %v290
      %v430 = vunpack.c.l.b16 %v291
      %v431 = vunpack.c.l.b16 %v292
      %v432 = vunpack.c.l.b16 %v293
      %v433 = vunpack.c.l.b16 %v294
      %v434 = vunpack.c.l.b16 %v295
      %v435 = vunpack.c.l.b16 %v296
      %v436 = vunpack.c.l.b16 %v297
      %v437 = vunpack.c.l.b16 %v298
      %v438 = vunpack.c.l.b16 %v299
      %v439 = vunpack.c.l.b16 %v300
      %v440 = vunpack.c.l.b16 %v301
      %v441 = vunpack.c.l.b16 %v302
      %v442 = vunpack.c.l.b16 %v303
      %v443 = vunpack.c.l.b16 %v304
      %v444 = vunpack.c.l.b16 %v305
      %v445 = vunpack.c.l.b16 %v306
      %v446 = vunpack.c.l.b16 %v307
      %v447 = vunpack.c.l.b16 %v308
      %v448 = vunpack.c.l.b16 %v309
      %v449 = vunpack.c.l.b16 %v310
      %v450 = vpack.c.b16 %v387, %v386
      %v451 = vpack.c.b16 %v389, %v388
      %v452 = vpack.c.b16 %v391, %v390
      %v453 = vpack.c.b16 %v393, %v392
      %v454 = vpack.c.b16 %v395, %v394
      %v455 = vpack.c.b16 %v397, %v396
      %v456 = vpack.c.b16 %v399, %v398
      %v457 = vpack.c.b16 %v401, %v400
      %v458 = vpack.c.b16 %v403, %v402
      %v459 = vpack.c.b16 %v405, %v404
      %v460 = vpack.c.b16 %v407, %v406
      %v461 = vpack.c.b16 %v409, %v408
      %v462 = vpack.c.b16 %v411, %v410
      %v463 = vpack.c.b16 %v413, %v412
      %v464 = vpack.c.b16 %v415, %v414
      %v465 = vpack.c.b16 %v417, %v416
      %v466 = vpack.c.b16 %v419, %v418
      %v467 = vpack.c.b16 %v421, %v420
      %v468 = vpack.c.b16 %v423, %v422
      %v469 = vpack.c.b16 %v425, %v424
      %v470 = vpack.c.b16 %v427, %v426
      %v471 = vpack.c.b16 %v429, %v428
      %v472 = vpack.c.b16 %v431, %v430
      %v473 = vpack.c.b16 %v433, %v432
      %v474 = vpack.c.b16 %v435, %v434
      %v475 = vpack.c.b16 %v437, %v436
      %v476 = vpack.c.b16 %v439, %v438
      %v477 = vpack.c.b16 %v441, %v440
      %v478 = vpack.c.b16 %v443, %v442
      %v479 = vpack.c.b16 %v445, %v444
      %v480 = vpack.c.b16 %v447, %v446
      %v481 = vpack.c.b16 %v449, %v448
      %v486 = vunpack.c.l.b16 %v311
      %v487 = vunpack.c.l.b16 %v312
      %v488 = vunpack.c.l.b16 %v313
      %v489 = vunpack.c.l.b16 %v314
      %v490 = vpack.c.b16 %v487, %v486
      %v491 = vpack.c.b16 %v489, %v488
      %vm494 = vcmask 261120
      %v496 = vsel %vm494, %v450, 0
      %v499 = vsel %vm494, %v451, 0
      %v502 = vsel %vm494, %v452, 0
      %v505 = vsel %vm494, %v453, 0
      %v508 = vsel %vm494, %v454, 0
      %v511 = vsel %vm494, %v455, 0
      %v514 = vsel %vm494, %v456, 0
      %v517 = vsel %vm494, %v457, 0
      %v520 = vsel %vm494, %v458, 0
      %v523 = vsel %vm494, %v459, 0
      %v526 = vsel %vm494, %v460, 0
      %v529 = vsel %vm494, %v461, 0
      %v532 = vsel %vm494, %v462, 0
      %v535 = vsel %vm494, %v463, 0
      %v538 = vsel %vm494, %v464, 0
      %v541 = vsel %vm494, %v465, 0
      %v544 = vsel %vm494, %v466, 0
      %v547 = vsel %vm494, %v467, 0
      %v550 = vsel %vm494, %v468, 0
      %v553 = vsel %vm494, %v469, 0
      %v556 = vsel %vm494, %v470, 0
      %v559 = vsel %vm494, %v471, 0
      %v562 = vsel %vm494, %v472, 0
      %v565 = vsel %vm494, %v473, 0
      %v568 = vsel %vm494, %v474, 0
      %v571 = vsel %vm494, %v475, 0
      %v574 = vsel %vm494, %v476, 0
      %v577 = vsel %vm494, %v477, 0
      %v580 = vsel %vm494, %v478, 0
      %v583 = vsel %vm494, %v479, 0
      %v586 = vsel %vm494, %v480, 0
      %v589 = vsel %vm494, %v481, 0
      %591 = vmatprep.subr.bf16.mxu0 0
      %592 = vmatpush1.bf16.msra.mxu0 0
      %593 = vmatprep.subr.bf16.mxu0 0
      %594 = vmatpush1.bf16.msra.mxu0 0
      %595 = vmatprep.subr.bf16.mxu0 0
      %596 = vmatpush1.bf16.msra.mxu0 0
      %597 = vmatprep.subr.bf16.mxu0 0
      %598 = vmatpush1.bf16.msra.mxu0 0
      %599 = vmatprep.subr.bf16.mxu0 0
      %600 = vmatpush1.bf16.msra.mxu0 0
      %601 = vmatprep.subr.bf16.mxu0 0
      %602 = vmatpush1.bf16.msra.mxu0 0
      %603 = vmatprep.subr.bf16.mxu0 0
      %604 = vmatpush1.bf16.msra.mxu0 %v491
      %605 = vmatprep.subr.bf16.mxu0 0
      %606 = vmatpush1.bf16.msra.mxu0 %v490
      %607 = vmatprep.subr.bf16.mxu0 0
      %608 = vmatpush2.bf16.msra.mxu0 0
      %609 = vmatprep.subr.bf16.mxu0 0
      %610 = vmatpush2.bf16.msra.mxu0 0
      %611 = vmatprep.subr.bf16.mxu0 0
      %612 = vmatpush2.bf16.msra.mxu0 0
      %613 = vmatprep.subr.bf16.mxu0 0
      %614 = vmatpush2.bf16.msra.mxu0 0
      %615 = vmatprep.subr.bf16.mxu0 0
      %616 = vmatpush2.bf16.msra.mxu0 0
      %617 = vmatprep.subr.bf16.mxu0 0
      %618 = vmatpush2.bf16.msra.mxu0 0
      %619 = vmatprep.subr.bf16.mxu0 0
      %620 = vmatpush2.bf16.msra.mxu0 0
      %621 = vmatprep.subr.bf16.mxu0 0
      %622 = vmatpush2.bf16.msra.mxu0 0
      %623 = vmatprep.mubr.bf16.mxu0 0
      %624 = vmatmul.mubr.bf16.gmra.mxu0 %v496
      %v625 = vpop.f32.mrf.mxu0
      %v626 = vadd.f32 %v320, %v625
      %v627 = vpop.f32.mrf.mxu0
      %v628 = vpop.f32.mrf.mxu0
      %v629 = vadd.f32 %v320, %v628
      %v630 = vpop.f32.mrf.mxu0
      %631 = vmatprep.mubr.bf16.mxu0 0
      %632 = vmatmul.mubr.bf16.gmra.mxu0 %v499
      %v633 = vpop.f32.mrf.mxu0
      %v634 = vadd.f32 %v320, %v633
      %v635 = vpop.f32.mrf.mxu0
      %v636 = vpop.f32.mrf.mxu0
      %v637 = vadd.f32 %v320, %v636
      %v638 = vpop.f32.mrf.mxu0
      %639 = vmatprep.mubr.bf16.mxu0 0
      %640 = vmatmul.mubr.bf16.gmra.mxu0 %v502
      %v641 = vpop.f32.mrf.mxu0
      %v642 = vadd.f32 %v320, %v641
      %v643 = vpop.f32.mrf.mxu0
      %v644 = vpop.f32.mrf.mxu0
      %v645 = vadd.f32 %v320, %v644
      %v646 = vpop.f32.mrf.mxu0
      %647 = vmatprep.mubr.bf16.mxu0 0
      %648 = vmatmul.mubr.bf16.gmra.mxu0 %v505
      %v649 = vpop.f32.mrf.mxu0
      %v650 = vadd.f32 %v320, %v649
      %v651 = vpop.f32.mrf.mxu0
      %v652 = vpop.f32.mrf.mxu0
      %v653 = vadd.f32 %v320, %v652
      %v654 = vpop.f32.mrf.mxu0
      %655 = vmatprep.mubr.bf16.mxu0 0
      %656 = vmatmul.mubr.bf16.gmra.mxu0 %v508
      %v657 = vpop.f32.mrf.mxu0
      %v658 = vadd.f32 %v320, %v657
      %v659 = vpop.f32.mrf.mxu0
      %v660 = vpop.f32.mrf.mxu0
      %v661 = vadd.f32 %v320, %v660
      %v662 = vpop.f32.mrf.mxu0
      %663 = vmatprep.mubr.bf16.mxu0 0
      %664 = vmatmul.mubr.bf16.gmra.mxu0 %v511
      %v665 = vpop.f32.mrf.mxu0
      %v666 = vadd.f32 %v320, %v665
      %v667 = vpop.f32.mrf.mxu0
      %v668 = vpop.f32.mrf.mxu0
      %v669 = vadd.f32 %v320, %v668
      %v670 = vpop.f32.mrf.mxu0
      %671 = vmatprep.mubr.bf16.mxu0 0
      %672 = vmatmul.mubr.bf16.gmra.mxu0 %v514
      %v673 = vpop.f32.mrf.mxu0
      %v674 = vadd.f32 %v320, %v673
      %v675 = vpop.f32.mrf.mxu0
      %v676 = vpop.f32.mrf.mxu0
      %v677 = vadd.f32 %v320, %v676
      %v678 = vpop.f32.mrf.mxu0
      %679 = vmatprep.mubr.bf16.mxu0 0
      %680 = vmatmul.mubr.bf16.gmra.mxu0 %v517
      %v681 = vpop.f32.mrf.mxu0
      %v682 = vadd.f32 %v320, %v681
      %v683 = vpop.f32.mrf.mxu0
      %v684 = vpop.f32.mrf.mxu0
      %v685 = vadd.f32 %v320, %v684
      %v686 = vpop.f32.mrf.mxu0
      %687 = vmatprep.mubr.bf16.mxu0 0
      %688 = vmatmul.mubr.bf16.gmra.mxu0 %v520
      %v689 = vpop.f32.mrf.mxu0
      %v690 = vadd.f32 %v320, %v689
      %v691 = vpop.f32.mrf.mxu0
      %v692 = vpop.f32.mrf.mxu0
      %v693 = vadd.f32 %v320, %v692
      %v694 = vpop.f32.mrf.mxu0
      %695 = vmatprep.mubr.bf16.mxu0 0
      %696 = vmatmul.mubr.bf16.gmra.mxu0 %v523
      %v697 = vpop.f32.mrf.mxu0
      %v698 = vadd.f32 %v320, %v697
      %v699 = vpop.f32.mrf.mxu0
      %v700 = vpop.f32.mrf.mxu0
      %v701 = vadd.f32 %v320, %v700
      %v702 = vpop.f32.mrf.mxu0
      %703 = vmatprep.mubr.bf16.mxu0 0
      %704 = vmatmul.mubr.bf16.gmra.mxu0 %v526
      %v705 = vpop.f32.mrf.mxu0
      %v706 = vadd.f32 %v320, %v705
      %v707 = vpop.f32.mrf.mxu0
      %v708 = vpop.f32.mrf.mxu0
      %v709 = vadd.f32 %v320, %v708
      %v710 = vpop.f32.mrf.mxu0
      %711 = vmatprep.mubr.bf16.mxu0 0
      %712 = vmatmul.mubr.bf16.gmra.mxu0 %v529
      %v713 = vpop.f32.mrf.mxu0
      %v714 = vadd.f32 %v320, %v713
      %v715 = vpop.f32.mrf.mxu0
      %v716 = vpop.f32.mrf.mxu0
      %v717 = vadd.f32 %v320, %v716
      %v718 = vpop.f32.mrf.mxu0
      %719 = vmatprep.mubr.bf16.mxu0 0
      %720 = vmatmul.mubr.bf16.gmra.mxu0 %v532
      %v721 = vpop.f32.mrf.mxu0
      %v722 = vadd.f32 %v320, %v721
      %v723 = vpop.f32.mrf.mxu0
      %v724 = vpop.f32.mrf.mxu0
      %v725 = vadd.f32 %v320, %v724
      %v726 = vpop.f32.mrf.mxu0
      %727 = vmatprep.mubr.bf16.mxu0 0
      %728 = vmatmul.mubr.bf16.gmra.mxu0 %v535
      %v729 = vpop.f32.mrf.mxu0
      %v730 = vadd.f32 %v320, %v729
      %v731 = vpop.f32.mrf.mxu0
      %v732 = vpop.f32.mrf.mxu0
      %v733 = vadd.f32 %v320, %v732
      %v734 = vpop.f32.mrf.mxu0
      %735 = vmatprep.mubr.bf16.mxu0 0
      %736 = vmatmul.mubr.bf16.gmra.mxu0 %v538
      %v737 = vpop.f32.mrf.mxu0
      %v738 = vadd.f32 %v320, %v737
      %v739 = vpop.f32.mrf.mxu0
      %v740 = vpop.f32.mrf.mxu0
      %v741 = vadd.f32 %v320, %v740
      %v742 = vpop.f32.mrf.mxu0
      %743 = vmatprep.mubr.bf16.mxu0 0
      %744 = vmatmul.mubr.bf16.gmra.mxu0 %v541
      %v745 = vpop.f32.mrf.mxu0
      %v746 = vadd.f32 %v320, %v745
      %v747 = vpop.f32.mrf.mxu0
      %v748 = vpop.f32.mrf.mxu0
      %v749 = vadd.f32 %v320, %v748
      %v750 = vpop.f32.mrf.mxu0
      %751 = vmatprep.mubr.bf16.mxu0 0
      %752 = vmatmul.mubr.bf16.gmra.mxu0 %v544
      %v753 = vpop.f32.mrf.mxu0
      %v754 = vadd.f32 %v320, %v753
      %v755 = vpop.f32.mrf.mxu0
      %v756 = vpop.f32.mrf.mxu0
      %v757 = vadd.f32 %v320, %v756
      %v758 = vpop.f32.mrf.mxu0
      %759 = vmatprep.mubr.bf16.mxu0 0
      %760 = vmatmul.mubr.bf16.gmra.mxu0 %v547
      %v761 = vpop.f32.mrf.mxu0
      %v762 = vadd.f32 %v320, %v761
      %v763 = vpop.f32.mrf.mxu0
      %v764 = vpop.f32.mrf.mxu0
      %v765 = vadd.f32 %v320, %v764
      %v766 = vpop.f32.mrf.mxu0
      %767 = vmatprep.mubr.bf16.mxu0 0
      %768 = vmatmul.mubr.bf16.gmra.mxu0 %v550
      %v769 = vpop.f32.mrf.mxu0
      %v770 = vadd.f32 %v320, %v769
      %v771 = vpop.f32.mrf.mxu0
      %v772 = vpop.f32.mrf.mxu0
      %v773 = vadd.f32 %v320, %v772
      %v774 = vpop.f32.mrf.mxu0
      %775 = vmatprep.mubr.bf16.mxu0 0
      %776 = vmatmul.mubr.bf16.gmra.mxu0 %v553
      %v777 = vpop.f32.mrf.mxu0
      %v778 = vadd.f32 %v320, %v777
      %v779 = vpop.f32.mrf.mxu0
      %v780 = vpop.f32.mrf.mxu0
      %v781 = vadd.f32 %v320, %v780
      %v782 = vpop.f32.mrf.mxu0
      %783 = vmatprep.mubr.bf16.mxu0 0
      %784 = vmatmul.mubr.bf16.gmra.mxu0 %v556
      %v785 = vpop.f32.mrf.mxu0
      %v786 = vadd.f32 %v320, %v785
      %v787 = vpop.f32.mrf.mxu0
      %v788 = vpop.f32.mrf.mxu0
      %v789 = vadd.f32 %v320, %v788
      %v790 = vpop.f32.mrf.mxu0
      %791 = vmatprep.mubr.bf16.mxu0 0
      %792 = vmatmul.mubr.bf16.gmra.mxu0 %v559
      %v793 = vpop.f32.mrf.mxu0
      %v794 = vadd.f32 %v320, %v793
      %v795 = vpop.f32.mrf.mxu0
      %v796 = vpop.f32.mrf.mxu0
      %v797 = vadd.f32 %v320, %v796
      %v798 = vpop.f32.mrf.mxu0
      %799 = vmatprep.mubr.bf16.mxu0 0
      %800 = vmatmul.mubr.bf16.gmra.mxu0 %v562
      %v801 = vpop.f32.mrf.mxu0
      %v802 = vadd.f32 %v320, %v801
      %v803 = vpop.f32.mrf.mxu0
      %v804 = vpop.f32.mrf.mxu0
      %v805 = vadd.f32 %v320, %v804
      %v806 = vpop.f32.mrf.mxu0
      %807 = vmatprep.mubr.bf16.mxu0 0
      %808 = vmatmul.mubr.bf16.gmra.mxu0 %v565
      %v809 = vpop.f32.mrf.mxu0
      %v810 = vadd.f32 %v320, %v809
      %v811 = vpop.f32.mrf.mxu0
      %v812 = vpop.f32.mrf.mxu0
      %v813 = vadd.f32 %v320, %v812
      %v814 = vpop.f32.mrf.mxu0
      %815 = vmatprep.mubr.bf16.mxu0 0
      %816 = vmatmul.mubr.bf16.gmra.mxu0 %v568
      %v817 = vpop.f32.mrf.mxu0
      %v818 = vadd.f32 %v320, %v817
      %v819 = vpop.f32.mrf.mxu0
      %v820 = vpop.f32.mrf.mxu0
      %v821 = vadd.f32 %v320, %v820
      %v822 = vpop.f32.mrf.mxu0
      %823 = vmatprep.mubr.bf16.mxu0 0
      %824 = vmatmul.mubr.bf16.gmra.mxu0 %v571
      %v825 = vpop.f32.mrf.mxu0
      %v826 = vadd.f32 %v320, %v825
      %v827 = vpop.f32.mrf.mxu0
      %v828 = vpop.f32.mrf.mxu0
      %v829 = vadd.f32 %v320, %v828
      %v830 = vpop.f32.mrf.mxu0
      %831 = vmatprep.mubr.bf16.mxu0 0
      %832 = vmatmul.mubr.bf16.gmra.mxu0 %v574
      %v833 = vpop.f32.mrf.mxu0
      %v834 = vadd.f32 %v320, %v833
      %v835 = vpop.f32.mrf.mxu0
      %v836 = vpop.f32.mrf.mxu0
      %v837 = vadd.f32 %v320, %v836
      %v838 = vpop.f32.mrf.mxu0
      %839 = vmatprep.mubr.bf16.mxu0 0
      %840 = vmatmul.mubr.bf16.gmra.mxu0 %v577
      %v841 = vpop.f32.mrf.mxu0
      %v842 = vadd.f32 %v320, %v841
      %v843 = vpop.f32.mrf.mxu0
      %v844 = vpop.f32.mrf.mxu0
      %v845 = vadd.f32 %v320, %v844
      %v846 = vpop.f32.mrf.mxu0
      %847 = vmatprep.mubr.bf16.mxu0 0
      %848 = vmatmul.mubr.bf16.gmra.mxu0 %v580
      %v849 = vpop.f32.mrf.mxu0
      %v850 = vadd.f32 %v320, %v849
      %v851 = vpop.f32.mrf.mxu0
      %v852 = vpop.f32.mrf.mxu0
      %v853 = vadd.f32 %v320, %v852
      %v854 = vpop.f32.mrf.mxu0
      %855 = vmatprep.mubr.bf16.mxu0 0
      %856 = vmatmul.mubr.bf16.gmra.mxu0 %v583
      %v857 = vpop.f32.mrf.mxu0
      %v858 = vadd.f32 %v320, %v857
      %v859 = vpop.f32.mrf.mxu0
      %v860 = vpop.f32.mrf.mxu0
      %v861 = vadd.f32 %v320, %v860
      %v862 = vpop.f32.mrf.mxu0
      %863 = vmatprep.mubr.bf16.mxu0 0
      %864 = vmatmul.mubr.bf16.gmra.mxu0 %v586
      %v865 = vpop.f32.mrf.mxu0
      %v866 = vadd.f32 %v320, %v865
      %v867 = vpop.f32.mrf.mxu0
      %v868 = vpop.f32.mrf.mxu0
      %v869 = vadd.f32 %v320, %v868
      %v870 = vpop.f32.mrf.mxu0
      %871 = vmatprep.mubr.bf16.mxu0 0
      %872 = vmatmul.mubr.bf16.gmra.mxu0 %v589
      %v873 = vpop.f32.mrf.mxu0
      %v874 = vadd.f32 %v320, %v873
      %v875 = vpop.f32.mrf.mxu0
      %v876 = vpop.f32.mrf.mxu0
      %v877 = vadd.f32 %v320, %v876
      %v878 = vpop.f32.mrf.mxu0
      %879 = vdwg.mxu0
      %v880 = vpack.c.bf16 %v629, %v626
      %v881 = vpack.c.bf16 %v637, %v634
      %v882 = vpack.c.bf16 %v645, %v642
      %v883 = vpack.c.bf16 %v653, %v650
      %v884 = vpack.c.bf16 %v661, %v658
      %v885 = vpack.c.bf16 %v669, %v666
      %v886 = vpack.c.bf16 %v677, %v674
      %v887 = vpack.c.bf16 %v685, %v682
      %v888 = vpack.c.bf16 %v693, %v690
      %v889 = vpack.c.bf16 %v701, %v698
      %v890 = vpack.c.bf16 %v709, %v706
      %v891 = vpack.c.bf16 %v717, %v714
      %v892 = vpack.c.bf16 %v725, %v722
      %v893 = vpack.c.bf16 %v733, %v730
      %v894 = vpack.c.bf16 %v741, %v738
      %v895 = vpack.c.bf16 %v749, %v746
      %v896 = vpack.c.bf16 %v757, %v754
      %v897 = vpack.c.bf16 %v765, %v762
      %v898 = vpack.c.bf16 %v773, %v770
      %v899 = vpack.c.bf16 %v781, %v778
      %v900 = vpack.c.bf16 %v789, %v786
      %v901 = vpack.c.bf16 %v797, %v794
      %v902 = vpack.c.bf16 %v805, %v802
      %v903 = vpack.c.bf16 %v813, %v810
      %v904 = vpack.c.bf16 %v821, %v818
      %v905 = vpack.c.bf16 %v829, %v826
      %v906 = vpack.c.bf16 %v837, %v834
      %v907 = vpack.c.bf16 %v845, %v842
      %v908 = vpack.c.bf16 %v853, %v850
      %v909 = vpack.c.bf16 %v861, %v858
      %v910 = vpack.c.bf16 %v869, %v866
      %v911 = vpack.c.bf16 %v877, %v874
      %v944 = vunpack.c.l.b16 %v880
      %v945 = vunpack.c.h.b16 %v880
      %v946 = vunpack.c.l.b16 %v881
      %v947 = vunpack.c.h.b16 %v881
      %v948 = vunpack.c.l.b16 %v882
      %v949 = vunpack.c.h.b16 %v882
      %v950 = vunpack.c.l.b16 %v883
      %v951 = vunpack.c.h.b16 %v883
      %v952 = vunpack.c.l.b16 %v884
      %v953 = vunpack.c.h.b16 %v884
      %v954 = vunpack.c.l.b16 %v885
      %v955 = vunpack.c.h.b16 %v885
      %v956 = vunpack.c.l.b16 %v886
      %v957 = vunpack.c.h.b16 %v886
      %v958 = vunpack.c.l.b16 %v887
      %v959 = vunpack.c.h.b16 %v887
      %v960 = vunpack.c.l.b16 %v888
      %v961 = vunpack.c.h.b16 %v888
      %v962 = vunpack.c.l.b16 %v889
      %v963 = vunpack.c.h.b16 %v889
      %v964 = vunpack.c.l.b16 %v890
      %v965 = vunpack.c.h.b16 %v890
      %v966 = vunpack.c.l.b16 %v891
      %v967 = vunpack.c.h.b16 %v891
      %v968 = vunpack.c.l.b16 %v892
      %v969 = vunpack.c.h.b16 %v892
      %v970 = vunpack.c.l.b16 %v893
      %v971 = vunpack.c.h.b16 %v893
      %v972 = vunpack.c.l.b16 %v894
      %v973 = vunpack.c.h.b16 %v894
      %v974 = vunpack.c.l.b16 %v895
      %v975 = vunpack.c.h.b16 %v895
      %v976 = vunpack.c.l.b16 %v896
      %v977 = vunpack.c.h.b16 %v896
      %v978 = vunpack.c.l.b16 %v897
      %v979 = vunpack.c.h.b16 %v897
      %v980 = vunpack.c.l.b16 %v898
      %v981 = vunpack.c.h.b16 %v898
      %v982 = vunpack.c.l.b16 %v899
      %v983 = vunpack.c.h.b16 %v899
      %v984 = vunpack.c.l.b16 %v900
      %v985 = vunpack.c.h.b16 %v900
      %v986 = vunpack.c.l.b16 %v901
      %v987 = vunpack.c.h.b16 %v901
      %v988 = vunpack.c.l.b16 %v902
      %v989 = vunpack.c.h.b16 %v902
      %v990 = vunpack.c.l.b16 %v903
      %v991 = vunpack.c.h.b16 %v903
      %v992 = vunpack.c.l.b16 %v904
      %v993 = vunpack.c.h.b16 %v904
      %v994 = vunpack.c.l.b16 %v905
      %v995 = vunpack.c.h.b16 %v905
      %v996 = vunpack.c.l.b16 %v906
      %v997 = vunpack.c.h.b16 %v906
      %v998 = vunpack.c.l.b16 %v907
      %v999 = vunpack.c.h.b16 %v907
      %v1000 = vunpack.c.l.b16 %v908
      %v1001 = vunpack.c.h.b16 %v908
      %v1002 = vunpack.c.l.b16 %v909
      %v1003 = vunpack.c.h.b16 %v909
      %v1004 = vunpack.c.l.b16 %v910
      %v1005 = vunpack.c.h.b16 %v910
      %v1006 = vunpack.c.l.b16 %v911
      %v1007 = vunpack.c.h.b16 %v911
      %v1008 = vpack.c.b16 %v944, %v944
      %v1009 = vpack.c.b16 %v945, %v945
      %v1010 = vpack.c.b16 %v946, %v946
      %v1011 = vpack.c.b16 %v947, %v947
      %v1012 = vpack.c.b16 %v948, %v948
      %v1013 = vpack.c.b16 %v949, %v949
      %v1014 = vpack.c.b16 %v950, %v950
      %v1015 = vpack.c.b16 %v951, %v951
      %v1016 = vpack.c.b16 %v952, %v952
      %v1017 = vpack.c.b16 %v953, %v953
      %v1018 = vpack.c.b16 %v954, %v954
      %v1019 = vpack.c.b16 %v955, %v955
      %v1020 = vpack.c.b16 %v956, %v956
      %v1021 = vpack.c.b16 %v957, %v957
      %v1022 = vpack.c.b16 %v958, %v958
      %v1023 = vpack.c.b16 %v959, %v959
      %v1024 = vpack.c.b16 %v960, %v960
      %v1025 = vpack.c.b16 %v961, %v961
      %v1026 = vpack.c.b16 %v962, %v962
      %v1027 = vpack.c.b16 %v963, %v963
      %v1028 = vpack.c.b16 %v964, %v964
      %v1029 = vpack.c.b16 %v965, %v965
      %v1030 = vpack.c.b16 %v966, %v966
      %v1031 = vpack.c.b16 %v967, %v967
      %v1032 = vpack.c.b16 %v968, %v968
      %v1033 = vpack.c.b16 %v969, %v969
      %v1034 = vpack.c.b16 %v970, %v970
      %v1035 = vpack.c.b16 %v971, %v971
      %v1036 = vpack.c.b16 %v972, %v972
      %v1037 = vpack.c.b16 %v973, %v973
      %v1038 = vpack.c.b16 %v974, %v974
      %v1039 = vpack.c.b16 %v975, %v975
      %v1040 = vpack.c.b16 %v976, %v976
      %v1041 = vpack.c.b16 %v977, %v977
      %v1042 = vpack.c.b16 %v978, %v978
      %v1043 = vpack.c.b16 %v979, %v979
      %v1044 = vpack.c.b16 %v980, %v980
      %v1045 = vpack.c.b16 %v981, %v981
      %v1046 = vpack.c.b16 %v982, %v982
      %v1047 = vpack.c.b16 %v983, %v983
      %v1048 = vpack.c.b16 %v984, %v984
      %v1049 = vpack.c.b16 %v985, %v985
      %v1050 = vpack.c.b16 %v986, %v986
      %v1051 = vpack.c.b16 %v987, %v987
      %v1052 = vpack.c.b16 %v988, %v988
      %v1053 = vpack.c.b16 %v989, %v989
      %v1054 = vpack.c.b16 %v990, %v990
      %v1055 = vpack.c.b16 %v991, %v991
      %v1056 = vpack.c.b16 %v992, %v992
      %v1057 = vpack.c.b16 %v993, %v993
      %v1058 = vpack.c.b16 %v994, %v994
      %v1059 = vpack.c.b16 %v995, %v995
      %v1060 = vpack.c.b16 %v996, %v996
      %v1061 = vpack.c.b16 %v997, %v997
      %v1062 = vpack.c.b16 %v998, %v998
      %v1063 = vpack.c.b16 %v999, %v999
      %v1064 = vpack.c.b16 %v1000, %v1000
      %v1065 = vpack.c.b16 %v1001, %v1001
      %v1066 = vpack.c.b16 %v1002, %v1002
      %v1067 = vpack.c.b16 %v1003, %v1003
      %v1068 = vpack.c.b16 %v1004, %v1004
      %v1069 = vpack.c.b16 %v1005, %v1005
      %v1070 = vpack.c.b16 %v1006, %v1006
      %v1071 = vpack.c.b16 %v1007, %v1007
      %vm1136 = vcmask 519168
      %1137 = vst.msk [vmem:[%s241] sm:$0xf] %vm1136, %v1008
      %1138 = vst.msk [vmem:[%s241 + $0x4] sm:$0xf] %vm1136, %v1009
      %1139 = vst.msk [vmem:[%s241 + $0x8] sm:$0xf] %vm1136, %v1010
      %1140 = vst.msk [vmem:[%s241 + $0xc] sm:$0xf] %vm1136, %v1011
      %1141 = vst.msk [vmem:[%s241 + $0x10] sm:$0xf] %vm1136, %v1012
      %1142 = vst.msk [vmem:[%s241 + $0x14] sm:$0xf] %vm1136, %v1013
      %1143 = vst.msk [vmem:[%s241 + $0x18] sm:$0xf] %vm1136, %v1014
      %1144 = vst.msk [vmem:[%s241 + $0x1c] sm:$0xf] %vm1136, %v1015
      %1145 = vst.msk [vmem:[%s241 + $0x20] sm:$0xf] %vm1136, %v1016
      %1146 = vst.msk [vmem:[%s241 + $0x24] sm:$0xf] %vm1136, %v1017
      %1147 = vst.msk [vmem:[%s241 + $0x28] sm:$0xf] %vm1136, %v1018
      %1148 = vst.msk [vmem:[%s241 + $0x2c] sm:$0xf] %vm1136, %v1019
      %1149 = vst.msk [vmem:[%s241 + $0x30] sm:$0xf] %vm1136, %v1020
      %1150 = vst.msk [vmem:[%s241 + $0x34] sm:$0xf] %vm1136, %v1021
      %1151 = vst.msk [vmem:[%s241 + $0x38] sm:$0xf] %vm1136, %v1022
      %1152 = vst.msk [vmem:[%s241 + $0x3c] sm:$0xf] %vm1136, %v1023
      %1153 = vst.msk [vmem:[%s241 + $0x40] sm:$0xf] %vm1136, %v1024
      %1154 = vst.msk [vmem:[%s241 + $0x44] sm:$0xf] %vm1136, %v1025
      %1155 = vst.msk [vmem:[%s241 + $0x48] sm:$0xf] %vm1136, %v1026
      %1156 = vst.msk [vmem:[%s241 + $0x4c] sm:$0xf] %vm1136, %v1027
      %1157 = vst.msk [vmem:[%s241 + $0x50] sm:$0xf] %vm1136, %v1028
      %1158 = vst.msk [vmem:[%s241 + $0x54] sm:$0xf] %vm1136, %v1029
      %1159 = vst.msk [vmem:[%s241 + $0x58] sm:$0xf] %vm1136, %v1030
      %1160 = vst.msk [vmem:[%s241 + $0x5c] sm:$0xf] %vm1136, %v1031
      %1161 = vst.msk [vmem:[%s241 + $0x60] sm:$0xf] %vm1136, %v1032
      %1162 = vst.msk [vmem:[%s241 + $0x64] sm:$0xf] %vm1136, %v1033
      %1163 = vst.msk [vmem:[%s241 + $0x68] sm:$0xf] %vm1136, %v1034
      %1164 = vst.msk [vmem:[%s241 + $0x6c] sm:$0xf] %vm1136, %v1035
      %1165 = vst.msk [vmem:[%s241 + $0x70] sm:$0xf] %vm1136, %v1036
      %1166 = vst.msk [vmem:[%s241 + $0x74] sm:$0xf] %vm1136, %v1037
      %1167 = vst.msk [vmem:[%s241 + $0x78] sm:$0xf] %vm1136, %v1038
      %1168 = vst.msk [vmem:[%s241 + $0x7c] sm:$0xf] %vm1136, %v1039
      %1169 = vst.msk [vmem:[%s241 + $0x80] sm:$0xf] %vm1136, %v1040
      %1170 = vst.msk [vmem:[%s241 + $0x84] sm:$0xf] %vm1136, %v1041
      %1171 = vst.msk [vmem:[%s241 + $0x88] sm:$0xf] %vm1136, %v1042
      %1172 = vst.msk [vmem:[%s241 + $0x8c] sm:$0xf] %vm1136, %v1043
      %1173 = vst.msk [vmem:[%s241 + $0x90] sm:$0xf] %vm1136, %v1044
      %1174 = vst.msk [vmem:[%s241 + $0x94] sm:$0xf] %vm1136, %v1045
      %1175 = vst.msk [vmem:[%s241 + $0x98] sm:$0xf] %vm1136, %v1046
      %1176 = vst.msk [vmem:[%s241 + $0x9c] sm:$0xf] %vm1136, %v1047
      %1177 = vst.msk [vmem:[%s241 + $0xa0] sm:$0xf] %vm1136, %v1048
      %1178 = vst.msk [vmem:[%s241 + $0xa4] sm:$0xf] %vm1136, %v1049
      %1179 = vst.msk [vmem:[%s241 + $0xa8] sm:$0xf] %vm1136, %v1050
      %1180 = vst.msk [vmem:[%s241 + $0xac] sm:$0xf] %vm1136, %v1051
      %1181 = vst.msk [vmem:[%s241 + $0xb0] sm:$0xf] %vm1136, %v1052
      %1182 = vst.msk [vmem:[%s241 + $0xb4] sm:$0xf] %vm1136, %v1053
      %1183 = vst.msk [vmem:[%s241 + $0xb8] sm:$0xf] %vm1136, %v1054
      %1184 = vst.msk [vmem:[%s241 + $0xbc] sm:$0xf] %vm1136, %v1055
      %1185 = vst.msk [vmem:[%s241 + $0xc0] sm:$0xf] %vm1136, %v1056
      %1186 = vst.msk [vmem:[%s241 + $0xc4] sm:$0xf] %vm1136, %v1057
      %1187 = vst.msk [vmem:[%s241 + $0xc8] sm:$0xf] %vm1136, %v1058
      %1188 = vst.msk [vmem:[%s241 + $0xcc] sm:$0xf] %vm1136, %v1059
      %1189 = vst.msk [vmem:[%s241 + $0xd0] sm:$0xf] %vm1136, %v1060
      %1190 = vst.msk [vmem:[%s241 + $0xd4] sm:$0xf] %vm1136, %v1061
      %1191 = vst.msk [vmem:[%s241 + $0xd8] sm:$0xf] %vm1136, %v1062
      %1192 = vst.msk [vmem:[%s241 + $0xdc] sm:$0xf] %vm1136, %v1063
      %1193 = vst.msk [vmem:[%s241 + $0xe0] sm:$0xf] %vm1136, %v1064
      %1194 = vst.msk [vmem:[%s241 + $0xe4] sm:$0xf] %vm1136, %v1065
      %1195 = vst.msk [vmem:[%s241 + $0xe8] sm:$0xf] %vm1136, %v1066
      %1196 = vst.msk [vmem:[%s241 + $0xec] sm:$0xf] %vm1136, %v1067
      %1197 = vst.msk [vmem:[%s241 + $0xf0] sm:$0xf] %vm1136, %v1068
      %1198 = vst.msk [vmem:[%s241 + $0xf4] sm:$0xf] %vm1136, %v1069
      %1199 = vst.msk [vmem:[%s241 + $0xf8] sm:$0xf] %vm1136, %v1070
      %1200 = vst.msk [vmem:[%s241 + $0xfc] sm:$0xf] %vm1136, %v1071
      %p1201 = scmp.eq.s32.totalorder %s21, 0
      // Predicated region
      $region33: #{senet_bottleneck_pallas.6} parent=31 // pred_check
        %p1202 = pneg %p1201
      $region34: #{senet_bottleneck_pallas.6} parent=31 // pred_check_branch
        %1204 = sbr.rel (%p1202) target = $region36
      $region35: #{senet_bottleneck_pallas.6} parent=31 // pred_region
        %vm1205 = vcmask 516096
        %1206 = vst.msk [vmem:[%s245] sm:$0x1] %vm1205, 0.0
      $region36: #{senet_bottleneck_pallas.6} parent=31 // pred_fallthru
        _
      %v1207 = vld [vmem:[%s245] sm:$0x1]
      %vm1208 = vcmask 523264
      %v1209 = vsel %vm1208, %v626, 0.0
      %v1210 = vsel %vm1208, %v629, 0.0
      %v1211 = vadd.f32 %v1209, %v1210
      %v1212 = vsel %vm1208, %v634, 0.0
      %v1213 = vadd.f32 %v1211, %v1212
      %v1214 = vsel %vm1208, %v637, 0.0
      %v1215 = vadd.f32 %v1213, %v1214
      %v1216 = vsel %vm1208, %v642, 0.0
      %v1217 = vadd.f32 %v1215, %v1216
      %v1218 = vsel %vm1208, %v645, 0.0
      %v1219 = vadd.f32 %v1217, %v1218
      %v1220 = vsel %vm1208, %v650, 0.0
      %v1221 = vadd.f32 %v1219, %v1220
      %v1222 = vsel %vm1208, %v653, 0.0
      %v1223 = vadd.f32 %v1221, %v1222
      %v1224 = vsel %vm1208, %v658, 0.0
      %v1225 = vadd.f32 %v1223, %v1224
      %v1226 = vsel %vm1208, %v661, 0.0
      %v1227 = vadd.f32 %v1225, %v1226
      %v1228 = vsel %vm1208, %v666, 0.0
      %v1229 = vadd.f32 %v1227, %v1228
      %v1230 = vsel %vm1208, %v669, 0.0
      %v1231 = vadd.f32 %v1229, %v1230
      %v1232 = vsel %vm1208, %v674, 0.0
      %v1233 = vadd.f32 %v1231, %v1232
      %v1234 = vsel %vm1208, %v677, 0.0
      %v1235 = vadd.f32 %v1233, %v1234
      %v1236 = vsel %vm1208, %v682, 0.0
      %v1237 = vadd.f32 %v1235, %v1236
      %v1238 = vsel %vm1208, %v685, 0.0
      %v1239 = vadd.f32 %v1237, %v1238
      %v1240 = vsel %vm1208, %v690, 0.0
      %v1241 = vadd.f32 %v1239, %v1240
      %v1242 = vsel %vm1208, %v693, 0.0
      %v1243 = vadd.f32 %v1241, %v1242
      %v1244 = vsel %vm1208, %v698, 0.0
      %v1245 = vadd.f32 %v1243, %v1244
      %v1246 = vsel %vm1208, %v701, 0.0
      %v1247 = vadd.f32 %v1245, %v1246
      %v1248 = vsel %vm1208, %v706, 0.0
      %v1249 = vadd.f32 %v1247, %v1248
      %v1250 = vsel %vm1208, %v709, 0.0
      %v1251 = vadd.f32 %v1249, %v1250
      %v1252 = vsel %vm1208, %v714, 0.0
      %v1253 = vadd.f32 %v1251, %v1252
      %v1254 = vsel %vm1208, %v717, 0.0
      %v1255 = vadd.f32 %v1253, %v1254
      %v1256 = vsel %vm1208, %v722, 0.0
      %v1257 = vadd.f32 %v1255, %v1256
      %v1258 = vsel %vm1208, %v725, 0.0
      %v1259 = vadd.f32 %v1257, %v1258
      %v1260 = vsel %vm1208, %v730, 0.0
      %v1261 = vadd.f32 %v1259, %v1260
      %v1262 = vsel %vm1208, %v733, 0.0
      %v1263 = vadd.f32 %v1261, %v1262
      %v1264 = vsel %vm1208, %v738, 0.0
      %v1265 = vadd.f32 %v1263, %v1264
      %v1266 = vsel %vm1208, %v741, 0.0
      %v1267 = vadd.f32 %v1265, %v1266
      %v1268 = vsel %vm1208, %v746, 0.0
      %v1269 = vadd.f32 %v1267, %v1268
      %v1270 = vsel %vm1208, %v749, 0.0
      %v1271 = vadd.f32 %v1269, %v1270
      %v1272 = vsel %vm1208, %v754, 0.0
      %v1273 = vadd.f32 %v1271, %v1272
      %v1274 = vsel %vm1208, %v757, 0.0
      %v1275 = vadd.f32 %v1273, %v1274
      %v1276 = vsel %vm1208, %v762, 0.0
      %v1277 = vadd.f32 %v1275, %v1276
      %v1278 = vsel %vm1208, %v765, 0.0
      %v1279 = vadd.f32 %v1277, %v1278
      %v1280 = vsel %vm1208, %v770, 0.0
      %v1281 = vadd.f32 %v1279, %v1280
      %v1282 = vsel %vm1208, %v773, 0.0
      %v1283 = vadd.f32 %v1281, %v1282
      %v1284 = vsel %vm1208, %v778, 0.0
      %v1285 = vadd.f32 %v1283, %v1284
      %v1286 = vsel %vm1208, %v781, 0.0
      %v1287 = vadd.f32 %v1285, %v1286
      %v1288 = vsel %vm1208, %v786, 0.0
      %v1289 = vadd.f32 %v1287, %v1288
      %v1290 = vsel %vm1208, %v789, 0.0
      %v1291 = vadd.f32 %v1289, %v1290
      %v1292 = vsel %vm1208, %v794, 0.0
      %v1293 = vadd.f32 %v1291, %v1292
      %v1294 = vsel %vm1208, %v797, 0.0
      %v1295 = vadd.f32 %v1293, %v1294
      %v1296 = vsel %vm1208, %v802, 0.0
      %v1297 = vadd.f32 %v1295, %v1296
      %v1298 = vsel %vm1208, %v805, 0.0
      %v1299 = vadd.f32 %v1297, %v1298
      %v1300 = vsel %vm1208, %v810, 0.0
      %v1301 = vadd.f32 %v1299, %v1300
      %v1302 = vsel %vm1208, %v813, 0.0
      %v1303 = vadd.f32 %v1301, %v1302
      %v1304 = vsel %vm1208, %v818, 0.0
      %v1305 = vadd.f32 %v1303, %v1304
      %v1306 = vsel %vm1208, %v821, 0.0
      %v1307 = vadd.f32 %v1305, %v1306
      %v1308 = vsel %vm1208, %v826, 0.0
      %v1309 = vadd.f32 %v1307, %v1308
      %v1310 = vsel %vm1208, %v829, 0.0
      %v1311 = vadd.f32 %v1309, %v1310
      %v1312 = vsel %vm1208, %v834, 0.0
      %v1313 = vadd.f32 %v1311, %v1312
      %v1314 = vsel %vm1208, %v837, 0.0
      %v1315 = vadd.f32 %v1313, %v1314
      %v1316 = vsel %vm1208, %v842, 0.0
      %v1317 = vadd.f32 %v1315, %v1316
      %v1318 = vsel %vm1208, %v845, 0.0
      %v1319 = vadd.f32 %v1317, %v1318
      %v1320 = vsel %vm1208, %v850, 0.0
      %v1321 = vadd.f32 %v1319, %v1320
      %v1322 = vsel %vm1208, %v853, 0.0
      %v1323 = vadd.f32 %v1321, %v1322
      %v1324 = vsel %vm1208, %v858, 0.0
      %v1325 = vadd.f32 %v1323, %v1324
      %v1326 = vsel %vm1208, %v861, 0.0
      %v1327 = vadd.f32 %v1325, %v1326
      %v1328 = vsel %vm1208, %v866, 0.0
      %v1329 = vadd.f32 %v1327, %v1328
      %v1330 = vsel %vm1208, %v869, 0.0
      %v1331 = vadd.f32 %v1329, %v1330
      %v1332 = vsel %vm1208, %v874, 0.0
      %v1333 = vadd.f32 %v1331, %v1332
      %v1334 = vsel %vm1208, %v877, 0.0
      %v1335 = vadd.f32 %v1333, %v1334
      %v1336 = vrot.slane %v1335, 4
      %v1337 = vadd.f32 %v1335, %v1336
      %v1338 = vrot.slane %v1337, 2
      %v1339 = vadd.f32 %v1337, %v1338
      %v1340 = vrot.slane %v1339, 1
      %v1341 = vadd.f32 %v1339, %v1340
      %v1342 = vadd.f32 %v1207, %v1341
      %vm1343 = vcmask 516096
      %1344 = vst.msk [vmem:[%s245] sm:$0x1] %vm1343, %v1342
      %s1345 = smul.u32 64, %s21
      %p1346 = scmp.lt.s32.totalorder %s20, 1
      %s1347 = scalar_select %p1346, %s20, 1
      %p1348 = scmp.lt.s32.totalorder %s1345, 63
      %s1349 = scalar_select %p1348, %s1345, 63
      %s1350 = smul.addr %s1347, 64
      %s1351 = sadd.s32 %s1349, %s1350
      %s1352 = smul.addr %s1351, 4
      %s1353 = scalar_lea.vmem %s3, %s1352
      %p1354 = scmp.lt.s32.totalorder %s20, 1
      %s1355 = scalar_select %p1354, %s20, 1
      %s1356 = scalar_lea.vmem %s4, %s1355
      // Predicated region
      $region37: #{senet_bottleneck_pallas.6} parent=31 // pred_check
        %p1357 = pneg %p118
      $region38: #{senet_bottleneck_pallas.6} parent=31 // pred_check_branch
        %1359 = sbr.rel (%p1357) target = $region40
      $region39: #{senet_bottleneck_pallas.6} parent=31 // pred_region
        %s1360 = smul.u32 64, %s21
      $region40: #{senet_bottleneck_pallas.6} parent=31 // pred_fallthru
        _
      // Predicated region
      $region41: #{senet_bottleneck_pallas.6} parent=31 // pred_check
        %p1361 = pneg %p144
      $region42: #{senet_bottleneck_pallas.6} parent=31 // pred_check_branch
        %1363 = sbr.rel (%p1361) target = $region44
      $region43: #{senet_bottleneck_pallas.6} parent=31 // pred_region
        _
      $region44: #{senet_bottleneck_pallas.6} parent=31 // pred_fallthru
        _
    $region32: #{senet_bottleneck_pallas.6} parent=5 // pred_fallthru
      _
    %p1364 = scmp.le.s32.totalorder 2, %s11
    // Predicated region
    $region45: #{senet_bottleneck_pallas.6} parent=5 // pred_check
      %p1365 = pneg %p1364
    $region46: #{senet_bottleneck_pallas.6} parent=5 // pred_check_branch
      %1367 = sbr.rel (%p1365) target = $region48
    $region47: #{senet_bottleneck_pallas.6} parent=5 // pred_region
      %s1368 = ssub.s32 %s11, 2
      // Predicated region
      $region49: #{senet_bottleneck_pallas.6} parent=47 // pred_check
        %p1369 = pneg %p124
      $region50: #{senet_bottleneck_pallas.6} parent=47 // pred_check_branch
        %1371 = sbr.rel (%p1369) target = $region52
      $region51: #{senet_bottleneck_pallas.6} parent=47 // pred_region
        %s1372 = smul.u32 64, %s23
        %p1373 = scmp.lt.s32.totalorder %s22, 1
        %s1374 = scalar_select %p1373, %s22, 1
        %p1375 = scmp.lt.s32.totalorder %s1372, 63
        %s1376 = scalar_select %p1375, %s1372, 63
        %s1377 = smul.addr %s1374, 64
        %s1378 = sadd.s32 %s1376, %s1377
        %s1379 = smul.addr %s1378, 4
        %s1380 = scalar_lea.vmem %s3, %s1379
      $region52: #{senet_bottleneck_pallas.6} parent=47 // pred_fallthru
        _
      // Predicated region
      $region53: #{senet_bottleneck_pallas.6} parent=47 // pred_check
        %p1381 = pneg %p150
      $region54: #{senet_bottleneck_pallas.6} parent=47 // pred_check_branch
        %1383 = sbr.rel (%p1381) target = $region56
      $region55: #{senet_bottleneck_pallas.6} parent=47 // pred_region
        %p1384 = scmp.lt.s32.totalorder %s22, 1
        %s1385 = scalar_select %p1384, %s22, 1
        %s1386 = scalar_lea.vmem %s4, %s1385
      $region56: #{senet_bottleneck_pallas.6} parent=47 // pred_fallthru
        _
    $region48: #{senet_bottleneck_pallas.6} parent=5 // pred_fallthru
      _
  $region6: #{senet_bottleneck_pallas.6} parent=0 // loop_footer
    %s15 = sadd.s32 1, %s11
  $region7: #{senet_bottleneck_pallas.6} parent=0 // loop_footer_branch
    %10 = sbr.rel target = $region3
  $region8: #{senet_bottleneck_pallas.6} parent=0 // loop_exit
    _

// kernel: senet_bottleneck_pallas.7
$region0: #{senet_bottleneck_pallas.7}
  #allocation0 [shape = 'u32[]', space=smem, size = 0x4, offset = 0x4, fixed_abs, tag = 'smem constant byte address 0x4 - core index']
  #allocation1 [shape = 'u32[144,128]{1,0:T(1,128)}', space=vmem, size = 0x12000, scoped, tag = 'internal scratch']
  #allocation2 [shape = 'f32[1]{0:T(128)S(6)}', space=smem, size = 0x200, scoped, tag = 'scoped memory for senet_bottleneck_pallas.7']
  %s0 = inlined_call_operand.<no memory space> [shape: f32[1], index: 0, kind: input, shape index: {}]
  %s1 = inlined_call_operand.vmem [shape: bf16[2,512,64], index: 1, kind: input, shape index: {}]
  %s2 = inlined_call_operand.vmem [shape: f32[2,1,64], index: 2, kind: input, shape index: {}]
  %s3 = inlined_call_operand.vmem [shape: bf16[2,512,16], index: 3, kind: input, shape index: {}]
  %s4 = inlined_call_operand.vmem [shape: bf16[16,64], index: 4, kind: input, shape index: {}]
  %s5 = inlined_call_operand.vmem [shape: f32[1,64], index: 5, kind: input, shape index: {}]
  %s6 = inlined_call_operand.hbm [shape: f32[2,512,64], index: 6, kind: output, shape index: {}]
  %s7 = sld [smem:[#allocation0]]
  $region57: #{senet_bottleneck_pallas.7} parent=0
    _
  %s9 = ssub.s32 1, %s7
  %s10 = scalar_select 0, %s9, %s7
  %11 = sst [smem:[#allocation2]] %s0
  $region1: #{senet_bottleneck_pallas.7} parent=0
    #allocation3 [shape = 'u8[524288]{0}', space=vmem, size = 0x80000, scoped, tag = 'output window, operand 0']
    #allocation4 [shape = 's32[2]{0}', space=sflag, size = 0x8, scoped, tag = 'scoped memory for senet_bottleneck_pallas.7']
    %12 = vsyncpa [#allocation4], 0
    %s13 = scalar_lea.sflag [#allocation4], 1
    %14 = vsyncpa %s13, 0
    loop: start=0, step=1, limit=4
    $region2: #{senet_bottleneck_pallas.7} parent=1 // loop_pre_header
      _
    $region3: #{senet_bottleneck_pallas.7} parent=1 // loop_header
      %s16 = sphi 0, %s20
      %p17 = scmp.ge.s32.totalorder %s16, 4
      %s23 = sphi 0, %s35
      %s24 = sphi 0, %s31
      %s25 = sphi 0, %s23
      %s26 = sphi 0, %s24
      %s27 = sphi 0, %s25
      %s28 = sphi 0, %s26
      %s36 = sphi 0, %s36
      %s38 = sphi 0, %s36
      %s39 = sphi 0, %s38
      %s53 = sphi 0, %s39
      %s61 = sphi 0, %s63
      %s64 = sphi 0, %s61
      %s65 = sphi 0, %s64
      %s81 = sphi 0, %s65
      %s87 = sphi 0, %s89
      %s90 = sphi 0, %s87
      %s91 = sphi 0, %s90
      %s107 = sphi 0, %s91
      %s115 = sphi 0, %s117
      %s118 = sphi 0, %s115
      %s119 = sphi 0, %s118
      %s135 = sphi 0, %s119
      %s139 = sphi 0, %s139
      %s141 = sphi 0, %s139
      %s142 = sphi 0, %s141
      %s156 = sphi 0, %s142
      %s160 = sphi 0, %s160
      %s162 = sphi 0, %s160
      %s163 = sphi 0, %s162
      %s177 = sphi 0, %s163
      %s185 = sphi 0, %s187
      %s188 = sphi 0, %s185
      %s189 = sphi 0, %s188
      %s205 = sphi 0, %s189
    $region4: #{senet_bottleneck_pallas.7} parent=1 // loop_header_branch
      %19 = sbr.rel (%p17) target = $region8
    $region5: #{senet_bottleneck_pallas.7} parent=1 // loop_body
      %s21 = ssub.s32 %s16, 1
      %s22 = ssub.s32 %s16, 2
      %s29 = sadd.s32 1, %s24
      %p30 = scmp.ge.s32.totalorder %s29, 1
      %s31 = scalar_select %p30, 0, %s29
      %s32 = sadd.s32 1, %s23
      %s33 = scalar_select %p30, %s32, %s23
      %p34 = scmp.ge.s32.totalorder %s33, 2
      %s35 = scalar_select %p34, 0, %s33
      %s37 = sadd.s32 %s36, 1
      %p40 = scmp.eq.s32.totalorder %s16, 1
      %p41 = scmp.ne.s32.totalorder %s36, %s38
      %p42 = scmp.eq.s32.totalorder %s16, 0
      %p43 = por %p41, %p42
      %p44 = scmp.ne.s32.totalorder %s36, %s38
      %p45 = scmp.eq.s32.totalorder %s21, 1
      %p46 = por %p44, %p45
      %p47 = scmp.ne.s32.totalorder %s38, %s39
      %p48 = scmp.eq.s32.totalorder %s21, 0
      %p49 = por %p47, %p48
      %p50 = scmp.ne.s32.totalorder %s38, %s39
      %p51 = scmp.eq.s32.totalorder %s22, 1
      %p52 = por %p50, %p51
      %p54 = scmp.ne.s32.totalorder %s39, %s53
      %p55 = scmp.eq.s32.totalorder %s22, 0
      %p56 = por %p54, %p55
      %s57 = ssub.s32 %s23, %s35
      %s58 = ssub.s32 %s24, %s31
      %s59 = sor.u32 %s57, %s58
      %p60 = scmp.eq.s32.totalorder %s59, 0
      %s62 = sadd.s32 %s61, 1
      %s63 = scalar_select %p60, %s61, %s62
      %p66 = pneg %p60
      %p67 = scmp.eq.s32.totalorder %s16, 1
      %p68 = por %p66, %p67
      %p69 = scmp.ne.s32.totalorder %s61, %s64
      %p70 = scmp.eq.s32.totalorder %s16, 0
      %p71 = por %p69, %p70
      %p72 = scmp.ne.s32.totalorder %s61, %s64
      %p73 = scmp.eq.s32.totalorder %s21, 1
      %p74 = por %p72, %p73
      %p75 = scmp.ne.s32.totalorder %s64, %s65
      %p76 = scmp.eq.s32.totalorder %s21, 0
      %p77 = por %p75, %p76
      %p78 = scmp.ne.s32.totalorder %s64, %s65
      %p79 = scmp.eq.s32.totalorder %s22, 1
      %p80 = por %p78, %p79
      %p82 = scmp.ne.s32.totalorder %s65, %s81
      %p83 = scmp.eq.s32.totalorder %s22, 0
      %p84 = por %p82, %p83
      %s85 = ssub.s32 %s23, %s35
      %p86 = scmp.eq.s32.totalorder %s85, 0
      %s88 = sadd.s32 %s87, 1
      %s89 = scalar_select %p86, %s87, %s88
      %p92 = pneg %p86
      %p93 = scmp.eq.s32.totalorder %s16, 1
      %p94 = por %p92, %p93
      %p95 = scmp.ne.s32.totalorder %s87, %s90
      %p96 = scmp.eq.s32.totalorder %s16, 0
      %p97 = por %p95, %p96
      %p98 = scmp.ne.s32.totalorder %s87, %s90
      %p99 = scmp.eq.s32.totalorder %s21, 1
      %p100 = por %p98, %p99
      %p101 = scmp.ne.s32.totalorder %s90, %s91
      %p102 = scmp.eq.s32.totalorder %s21, 0
      %p103 = por %p101, %p102
      %p104 = scmp.ne.s32.totalorder %s90, %s91
      %p105 = scmp.eq.s32.totalorder %s22, 1
      %p106 = por %p104, %p105
      %p108 = scmp.ne.s32.totalorder %s91, %s107
      %p109 = scmp.eq.s32.totalorder %s22, 0
      %p110 = por %p108, %p109
      %s111 = ssub.s32 %s23, %s35
      %s112 = ssub.s32 %s24, %s31
      %s113 = sor.u32 %s111, %s112
      %p114 = scmp.eq.s32.totalorder %s113, 0
      %s116 = sadd.s32 %s115, 1
      %s117 = scalar_select %p114, %s115, %s116
      %p120 = pneg %p114
      %p121 = scmp.eq.s32.totalorder %s16, 1
      %p122 = por %p120, %p121
      %p123 = scmp.ne.s32.totalorder %s115, %s118
      %p124 = scmp.eq.s32.totalorder %s16, 0
      %p125 = por %p123, %p124
      %p126 = scmp.ne.s32.totalorder %s115, %s118
      %p127 = scmp.eq.s32.totalorder %s21, 1
      %p128 = por %p126, %p127
      %p129 = scmp.ne.s32.totalorder %s118, %s119
      %p130 = scmp.eq.s32.totalorder %s21, 0
      %p131 = por %p129, %p130
      %p132 = scmp.ne.s32.totalorder %s118, %s119
      %p133 = scmp.eq.s32.totalorder %s22, 1
      %p134 = por %p132, %p133
      %p136 = scmp.ne.s32.totalorder %s119, %s135
      %p137 = scmp.eq.s32.totalorder %s22, 0
      %p138 = por %p136, %p137
      %s140 = sadd.s32 %s139, 1
      %p143 = scmp.eq.s32.totalorder %s16, 1
      %p144 = scmp.ne.s32.totalorder %s139, %s141
      %p145 = scmp.eq.s32.totalorder %s16, 0
      %p146 = por %p144, %p145
      %p147 = scmp.ne.s32.totalorder %s139, %s141
      %p148 = scmp.eq.s32.totalorder %s21, 1
      %p149 = por %p147, %p148
      %p150 = scmp.ne.s32.totalorder %s141, %s142
      %p151 = scmp.eq.s32.totalorder %s21, 0
      %p152 = por %p150, %p151
      %p153 = scmp.ne.s32.totalorder %s141, %s142
      %p154 = scmp.eq.s32.totalorder %s22, 1
      %p155 = por %p153, %p154
      %p157 = scmp.ne.s32.totalorder %s142, %s156
      %p158 = scmp.eq.s32.totalorder %s22, 0
      %p159 = por %p157, %p158
      %s161 = sadd.s32 %s160, 1
      %p164 = scmp.eq.s32.totalorder %s16, 1
      %p165 = scmp.ne.s32.totalorder %s160, %s162
      %p166 = scmp.eq.s32.totalorder %s16, 0
      %p167 = por %p165, %p166
      %p168 = scmp.ne.s32.totalorder %s160, %s162
      %p169 = scmp.eq.s32.totalorder %s21, 1
      %p170 = por %p168, %p169
      %p171 = scmp.ne.s32.totalorder %s162, %s163
      %p172 = scmp.eq.s32.totalorder %s21, 0
      %p173 = por %p171, %p172
      %p174 = scmp.ne.s32.totalorder %s162, %s163
      %p175 = scmp.eq.s32.totalorder %s22, 1
      %p176 = por %p174, %p175
      %p178 = scmp.ne.s32.totalorder %s163, %s177
      %p179 = scmp.eq.s32.totalorder %s22, 0
      %p180 = por %p178, %p179
      %s181 = ssub.s32 %s23, %s35
      %s182 = ssub.s32 %s24, %s31
      %s183 = sor.u32 %s181, %s182
      %p184 = scmp.eq.s32.totalorder %s183, 0
      %s186 = sadd.s32 %s185, 1
      %s187 = scalar_select %p184, %s185, %s186
      %p190 = pneg %p184
      %p191 = scmp.eq.s32.totalorder %s16, 1
      %p192 = por %p190, %p191
      %p193 = scmp.ne.s32.totalorder %s185, %s188
      %p194 = scmp.eq.s32.totalorder %s16, 0
      %p195 = por %p193, %p194
      %p196 = scmp.ne.s32.totalorder %s185, %s188
      %p197 = scmp.eq.s32.totalorder %s21, 1
      %p198 = por %p196, %p197
      %p199 = scmp.ne.s32.totalorder %s188, %s189
      %p200 = scmp.eq.s32.totalorder %s21, 0
      %p201 = por %p199, %p200
      %p202 = scmp.ne.s32.totalorder %s188, %s189
      %p203 = scmp.eq.s32.totalorder %s22, 1
      %p204 = por %p202, %p203
      %p206 = scmp.ne.s32.totalorder %s189, %s205
      %p207 = scmp.eq.s32.totalorder %s22, 0
      %p208 = por %p206, %p207
      %p209 = scmp.le.s32.totalorder 1, %s16
      %p210 = scmp.lt.s32.totalorder %s16, 3
      %p211 = pnand %p209, %p210
      %p212 = pneg %p211
      // Predicated region
      $region9: #{senet_bottleneck_pallas.7} parent=5 // pred_check
        _
      $region10: #{senet_bottleneck_pallas.7} parent=5 // pred_check_branch
        %214 = sbr.rel (%p211) target = $region12
      $region11: #{senet_bottleneck_pallas.7} parent=5 // pred_region
        %s215 = ssub.s32 %s16, 1
        // Predicated region
        $region13: #{senet_bottleneck_pallas.7} parent=11 // pred_check
          %p216 = pneg %p49
        $region14: #{senet_bottleneck_pallas.7} parent=11 // pred_check_branch
          %218 = sbr.rel (%p216) target = $region16
        $region15: #{senet_bottleneck_pallas.7} parent=11 // pred_region
          _
        $region16: #{senet_bottleneck_pallas.7} parent=11 // pred_fallthru
          _
        // Predicated region
        $region17: #{senet_bottleneck_pallas.7} parent=11 // pred_check
          %p219 = pneg %p152
        $region18: #{senet_bottleneck_pallas.7} parent=11 // pred_check_branch
          %221 = sbr.rel (%p219) target = $region20
        $region19: #{senet_bottleneck_pallas.7} parent=11 // pred_region
          _
        $region20: #{senet_bottleneck_pallas.7} parent=11 // pred_fallthru
          _
        // Predicated region
        $region21: #{senet_bottleneck_pallas.7} parent=11 // pred_check
          %p222 = pneg %p173
        $region22: #{senet_bottleneck_pallas.7} parent=11 // pred_check_branch
          %224 = sbr.rel (%p222) target = $region24
        $region23: #{senet_bottleneck_pallas.7} parent=11 // pred_region
          _
        $region24: #{senet_bottleneck_pallas.7} parent=11 // pred_fallthru
          _
      $region12: #{senet_bottleneck_pallas.7} parent=5 // pred_fallthru
        _
      %p225 = scmp.lt.s32.totalorder %s16, 2
      // Predicated region
      $region25: #{senet_bottleneck_pallas.7} parent=5 // pred_check
        %p226 = pneg %p225
      $region26: #{senet_bottleneck_pallas.7} parent=5 // pred_check_branch
        %228 = sbr.rel (%p226) target = $region28
      $region27: #{senet_bottleneck_pallas.7} parent=5 // pred_region
        // Predicated region
        $region29: #{senet_bottleneck_pallas.7} parent=27 // pred_check
          %p229 = pneg %p71
        $region30: #{senet_bottleneck_pallas.7} parent=27 // pred_check_branch
          %231 = sbr.rel (%p229) target = $region32
        $region31: #{senet_bottleneck_pallas.7} parent=27 // pred_region
          %s232 = smul.u32 64, %s24
          %p233 = scmp.lt.s32.totalorder %s23, 1
          %s234 = scalar_select %p233, %s23, 1
          %p235 = scmp.lt.s32.totalorder %s232, 63
          %s236 = scalar_select %p235, %s232, 63
          %s237 = smul.addr %s234, 64
          %s238 = sadd.s32 %s236, %s237
          %s239 = smul.addr %s238, 4
          %s240 = scalar_lea.vmem %s1, %s239
          %s241 = smul.u32 64, %s24
        $region32: #{senet_bottleneck_pallas.7} parent=27 // pred_fallthru
          _
        // Predicated region
        $region33: #{senet_bottleneck_pallas.7} parent=27 // pred_check
          %p242 = pneg %p97
        $region34: #{senet_bottleneck_pallas.7} parent=27 // pred_check_branch
          %244 = sbr.rel (%p242) target = $region36
        $region35: #{senet_bottleneck_pallas.7} parent=27 // pred_region
          %p245 = scmp.lt.s32.totalorder %s23, 1
          %s246 = scalar_select %p245, %s23, 1
          %s247 = scalar_lea.vmem %s2, %s246
        $region36: #{senet_bottleneck_pallas.7} parent=27 // pred_fallthru
          _
        // Predicated region
        $region37: #{senet_bottleneck_pallas.7} parent=27 // pred_check
          %p248 = pneg %p125
        $region38: #{senet_bottleneck_pallas.7} parent=27 // pred_check_branch
          %250 = sbr.rel (%p248) target = $region40
        $region39: #{senet_bottleneck_pallas.7} parent=27 // pred_region
          %s251 = smul.u32 64, %s24
          %p252 = scmp.lt.s32.totalorder %s23, 1
          %s253 = scalar_select %p252, %s23, 1
          %p254 = scmp.lt.s32.totalorder %s251, 63
          %s255 = scalar_select %p254, %s251, 63
          %s256 = smul.addr %s253, 64
          %s257 = sadd.s32 %s255, %s256
          %s258 = smul.addr %s257, 4
          %s259 = scalar_lea.vmem %s3, %s258
          %s260 = smul.u32 64, %s24
        $region40: #{senet_bottleneck_pallas.7} parent=27 // pred_fallthru
          _
      $region28: #{senet_bottleneck_pallas.7} parent=5 // pred_fallthru
        _
      %p261 = scmp.le.s32.totalorder 1, %s16
      %p262 = scmp.lt.s32.totalorder %s16, 3
      %p263 = pnand %p261, %p262
      %p264 = pneg %p263
      // Predicated region
      $region41: #{senet_bottleneck_pallas.7} parent=5 // pred_check
        _
      $region42: #{senet_bottleneck_pallas.7} parent=5 // pred_check_branch
        %266 = sbr.rel (%p263) target = $region44
      $region43: #{senet_bottleneck_pallas.7} parent=5 // pred_region
        %s267 = ssub.s32 %s16, 1
        %p268 = pneg %p49
        %p269 = pneg %p46
        %s270 = smul.u32 64, %s26
        %p271 = scmp.lt.s32.totalorder %s25, 1
        %s272 = scalar_select %p271, %s25, 1
        %p273 = scmp.lt.s32.totalorder %s270, 63
        %s274 = scalar_select %p273, %s270, 63
        %s275 = smul.addr %s272, 64
        %s276 = sadd.s32 %s274, %s275
        %s277 = smul.addr %s276, 4
        %s278 = scalar_lea.vmem %s1, %s277
        %p279 = pneg %p77
        %p280 = pneg %p74
        %p281 = scmp.lt.s32.totalorder %s25, 1
        %s282 = scalar_select %p281, %s25, 1
        %s283 = scalar_lea.vmem %s2, %s282
        %p284 = pneg %p103
        %p285 = pneg %p100
        %s286 = smul.u32 64, %s26
        %p287 = scmp.lt.s32.totalorder %s25, 1
        %s288 = scalar_select %p287, %s25, 1
        %p289 = scmp.lt.s32.totalorder %s286, 63
        %s290 = scalar_select %p289, %s286, 63
        %s291 = smul.addr %s288, 64
        %s292 = sadd.s32 %s290, %s291
        %s293 = smul.addr %s292, 4
        %s294 = scalar_lea.vmem %s3, %s293
        %p295 = pneg %p131
        %p296 = pneg %p128
        %p297 = pneg %p152
        %p298 = pneg %p149
        %p299 = pneg %p173
        %p300 = pneg %p170
        %p301 = pneg %p201
        %p302 = pneg %p198
        %s303 = sand.u32 %s188, 1
        %s304 = scalar_lea.sflag [#allocation4], %s303
        %s305 = sand.u32 %s188, 1
        %s306 = smul.addr %s305, 512
        %s307 = scalar_lea.vmem [#allocation3], %s306
        %s308 = smul.u32 64, %s26
        %p309 = scmp.lt.s32.totalorder %s25, 1
        %s310 = scalar_select %p309, %s25, 1
        %p311 = scmp.lt.s32.totalorder %s308, 63
        %s312 = scalar_select %p311, %s308, 63
        %s313 = smul.addr %s310, 64
        %s314 = sadd.s32 %s312, %s313
        %s315 = smul.addr %s314, 4
        %s316 = scalar_lea.vmem %s1, %s315
        %s317 = smul.u32 64, %s26
        %p318 = scmp.lt.s32.totalorder %s25, 1
        %s319 = scalar_select %p318, %s25, 1
        %s320 = scalar_lea.vmem %s2, %s319
        %s321 = smul.u32 64, %s26
        %p322 = scmp.lt.s32.totalorder %s25, 1
        %s323 = scalar_select %p322, %s25, 1
        %p324 = scmp.lt.s32.totalorder %s321, 63
        %s325 = scalar_select %p324, %s321, 63
        %s326 = smul.addr %s323, 64
        %s327 = sadd.s32 %s325, %s326
        %s328 = smul.addr %s327, 4
        %s329 = scalar_lea.vmem %s3, %s328
        %s330 = smul.u32 64, %s26
        %s331 = smul.u32 64, %s26
        %v333 = vld [vmem:[%s329] sm:$0xf]
        %v334 = vld [vmem:[%s329 + $0x4] sm:$0xf]
        %v335 = vld [vmem:[%s329 + $0x8] sm:$0xf]
        %v336 = vld [vmem:[%s329 + $0xc] sm:$0xf]
        %v337 = vld [vmem:[%s329 + $0x10] sm:$0xf]
        %v338 = vld [vmem:[%s329 + $0x14] sm:$0xf]
        %v339 = vld [vmem:[%s329 + $0x18] sm:$0xf]
        %v340 = vld [vmem:[%s329 + $0x1c] sm:$0xf]
        %v341 = vld [vmem:[%s329 + $0x20] sm:$0xf]
        %v342 = vld [vmem:[%s329 + $0x24] sm:$0xf]
        %v343 = vld [vmem:[%s329 + $0x28] sm:$0xf]
        %v344 = vld [vmem:[%s329 + $0x2c] sm:$0xf]
        %v345 = vld [vmem:[%s329 + $0x30] sm:$0xf]
        %v346 = vld [vmem:[%s329 + $0x34] sm:$0xf]
        %v347 = vld [vmem:[%s329 + $0x38] sm:$0xf]
        %v348 = vld [vmem:[%s329 + $0x3c] sm:$0xf]
        %v349 = vld [vmem:[%s329 + $0x40] sm:$0xf]
        %v350 = vld [vmem:[%s329 + $0x44] sm:$0xf]
        %v351 = vld [vmem:[%s329 + $0x48] sm:$0xf]
        %v352 = vld [vmem:[%s329 + $0x4c] sm:$0xf]
        %v353 = vld [vmem:[%s329 + $0x50] sm:$0xf]
        %v354 = vld [vmem:[%s329 + $0x54] sm:$0xf]
        %v355 = vld [vmem:[%s329 + $0x58] sm:$0xf]
        %v356 = vld [vmem:[%s329 + $0x5c] sm:$0xf]
        %v357 = vld [vmem:[%s329 + $0x60] sm:$0xf]
        %v358 = vld [vmem:[%s329 + $0x64] sm:$0xf]
        %v359 = vld [vmem:[%s329 + $0x68] sm:$0xf]
        %v360 = vld [vmem:[%s329 + $0x6c] sm:$0xf]
        %v361 = vld [vmem:[%s329 + $0x70] sm:$0xf]
        %v362 = vld [vmem:[%s329 + $0x74] sm:$0xf]
        %v363 = vld [vmem:[%s329 + $0x78] sm:$0xf]
        %v364 = vld [vmem:[%s329 + $0x7c] sm:$0xf]
        %v365 = vld [vmem:[%s329 + $0x80] sm:$0xf]
        %v366 = vld [vmem:[%s329 + $0x84] sm:$0xf]
        %v367 = vld [vmem:[%s329 + $0x88] sm:$0xf]
        %v368 = vld [vmem:[%s329 + $0x8c] sm:$0xf]
        %v369 = vld [vmem:[%s329 + $0x90] sm:$0xf]
        %v370 = vld [vmem:[%s329 + $0x94] sm:$0xf]
        %v371 = vld [vmem:[%s329 + $0x98] sm:$0xf]
        %v372 = vld [vmem:[%s329 + $0x9c] sm:$0xf]
        %v373 = vld [vmem:[%s329 + $0xa0] sm:$0xf]
        %v374 = vld [vmem:[%s329 + $0xa4] sm:$0xf]
        %v375 = vld [vmem:[%s329 + $0xa8] sm:$0xf]
        %v376 = vld [vmem:[%s329 + $0xac] sm:$0xf]
        %v377 = vld [vmem:[%s329 + $0xb0] sm:$0xf]
        %v378 = vld [vmem:[%s329 + $0xb4] sm:$0xf]
        %v379 = vld [vmem:[%s329 + $0xb8] sm:$0xf]
        %v380 = vld [vmem:[%s329 + $0xbc] sm:$0xf]
        %v381 = vld [vmem:[%s329 + $0xc0] sm:$0xf]
        %v382 = vld [vmem:[%s329 + $0xc4] sm:$0xf]
        %v383 = vld [vmem:[%s329 + $0xc8] sm:$0xf]
        %v384 = vld [vmem:[%s329 + $0xcc] sm:$0xf]
        %v385 = vld [vmem:[%s329 + $0xd0] sm:$0xf]
        %v386 = vld [vmem:[%s329 + $0xd4] sm:$0xf]
        %v387 = vld [vmem:[%s329 + $0xd8] sm:$0xf]
        %v388 = vld [vmem:[%s329 + $0xdc] sm:$0xf]
        %v389 = vld [vmem:[%s329 + $0xe0] sm:$0xf]
        %v390 = vld [vmem:[%s329 + $0xe4] sm:$0xf]
        %v391 = vld [vmem:[%s329 + $0xe8] sm:$0xf]
        %v392 = vld [vmem:[%s329 + $0xec] sm:$0xf]
        %v393 = vld [vmem:[%s329 + $0xf0] sm:$0xf]
        %v394 = vld [vmem:[%s329 + $0xf4] sm:$0xf]
        %v395 = vld [vmem:[%s329 + $0xf8] sm:$0xf]
        %v396 = vld [vmem:[%s329 + $0xfc] sm:$0xf]
        %v397 = vld [vmem:[%s4] sm:$0xf]
        %v398 = vld [vmem:[%s4 + $0x4] sm:$0xf]
        %v399 = vld [vmem:[%s5] sm:$0x1]
        %v401 = vlaneseq
        %v402 = vshrl.u32 %v401, 7
        %v403 = vsub.s32 0, %v402
        %v404 = vrot.slane %v399, %v403
        %v470 = vunpack.c.l.b16 %v333
        %v471 = vunpack.c.l.b16 %v334
        %v472 = vunpack.c.l.b16 %v335
        %v473 = vunpack.c.l.b16 %v336
        %v474 = vunpack.c.l.b16 %v337
        %v475 = vunpack.c.l.b16 %v338
        %v476 = vunpack.c.l.b16 %v339
        %v477 = vunpack.c.l.b16 %v340
        %v478 = vunpack.c.l.b16 %v341
        %v479 = vunpack.c.l.b16 %v342
        %v480 = vunpack.c.l.b16 %v343
        %v481 = vunpack.c.l.b16 %v344
        %v482 = vunpack.c.l.b16 %v345
        %v483 = vunpack.c.l.b16 %v346
        %v484 = vunpack.c.l.b16 %v347
        %v485 = vunpack.c.l.b16 %v348
        %v486 = vunpack.c.l.b16 %v349
        %v487 = vunpack.c.l.b16 %v350
        %v488 = vunpack.c.l.b16 %v351
        %v489 = vunpack.c.l.b16 %v352
        %v490 = vunpack.c.l.b16 %v353
        %v491 = vunpack.c.l.b16 %v354
        %v492 = vunpack.c.l.b16 %v355
        %v493 = vunpack.c.l.b16 %v356
        %v494 = vunpack.c.l.b16 %v357
        %v495 = vunpack.c.l.b16 %v358
        %v496 = vunpack.c.l.b16 %v359
        %v497 = vunpack.c.l.b16 %v360
        %v498 = vunpack.c.l.b16 %v361
        %v499 = vunpack.c.l.b16 %v362
        %v500 = vunpack.c.l.b16 %v363
        %v501 = vunpack.c.l.b16 %v364
        %v502 = vunpack.c.l.b16 %v365
        %v503 = vunpack.c.l.b16 %v366
        %v504 = vunpack.c.l.b16 %v367
        %v505 = vunpack.c.l.b16 %v368
        %v506 = vunpack.c.l.b16 %v369
        %v507 = vunpack.c.l.b16 %v370
        %v508 = vunpack.c.l.b16 %v371
        %v509 = vunpack.c.l.b16 %v372
        %v510 = vunpack.c.l.b16 %v373
        %v511 = vunpack.c.l.b16 %v374
        %v512 = vunpack.c.l.b16 %v375
        %v513 = vunpack.c.l.b16 %v376
        %v514 = vunpack.c.l.b16 %v377
        %v515 = vunpack.c.l.b16 %v378
        %v516 = vunpack.c.l.b16 %v379
        %v517 = vunpack.c.l.b16 %v380
        %v518 = vunpack.c.l.b16 %v381
        %v519 = vunpack.c.l.b16 %v382
        %v520 = vunpack.c.l.b16 %v383
        %v521 = vunpack.c.l.b16 %v384
        %v522 = vunpack.c.l.b16 %v385
        %v523 = vunpack.c.l.b16 %v386
        %v524 = vunpack.c.l.b16 %v387
        %v525 = vunpack.c.l.b16 %v388
        %v526 = vunpack.c.l.b16 %v389
        %v527 = vunpack.c.l.b16 %v390
        %v528 = vunpack.c.l.b16 %v391
        %v529 = vunpack.c.l.b16 %v392
        %v530 = vunpack.c.l.b16 %v393
        %v531 = vunpack.c.l.b16 %v394
        %v532 = vunpack.c.l.b16 %v395
        %v533 = vunpack.c.l.b16 %v396
        %v534 = vpack.c.b16 %v471, %v470
        %v535 = vpack.c.b16 %v473, %v472
        %v536 = vpack.c.b16 %v475, %v474
        %v537 = vpack.c.b16 %v477, %v476
        %v538 = vpack.c.b16 %v479, %v478
        %v539 = vpack.c.b16 %v481, %v480
        %v540 = vpack.c.b16 %v483, %v482
        %v541 = vpack.c.b16 %v485, %v484
        %v542 = vpack.c.b16 %v487, %v486
        %v543 = vpack.c.b16 %v489, %v488
        %v544 = vpack.c.b16 %v491, %v490
        %v545 = vpack.c.b16 %v493, %v492
        %v546 = vpack.c.b16 %v495, %v494
        %v547 = vpack.c.b16 %v497, %v496
        %v548 = vpack.c.b16 %v499, %v498
        %v549 = vpack.c.b16 %v501, %v500
        %v550 = vpack.c.b16 %v503, %v502
        %v551 = vpack.c.b16 %v505, %v504
        %v552 = vpack.c.b16 %v507, %v506
        %v553 = vpack.c.b16 %v509, %v508
        %v554 = vpack.c.b16 %v511, %v510
        %v555 = vpack.c.b16 %v513, %v512
        %v556 = vpack.c.b16 %v515, %v514
        %v557 = vpack.c.b16 %v517, %v516
        %v558 = vpack.c.b16 %v519, %v518
        %v559 = vpack.c.b16 %v521, %v520
        %v560 = vpack.c.b16 %v523, %v522
        %v561 = vpack.c.b16 %v525, %v524
        %v562 = vpack.c.b16 %v527, %v526
        %v563 = vpack.c.b16 %v529, %v528
        %v564 = vpack.c.b16 %v531, %v530
        %v565 = vpack.c.b16 %v533, %v532
        %v568 = vunpack.c.l.b16 %v397
        %v569 = vunpack.c.l.b16 %v398
        %v570 = vpack.c.b16 %v569, %v568
        %vm572 = vcmask 130048
        %v574 = vsel %vm572, %v534, 0
        %v577 = vsel %vm572, %v535, 0
        %v580 = vsel %vm572, %v536, 0
        %v583 = vsel %vm572, %v537, 0
        %v586 = vsel %vm572, %v538, 0
        %v589 = vsel %vm572, %v539, 0
        %v592 = vsel %vm572, %v540, 0
        %v595 = vsel %vm572, %v541, 0
        %v598 = vsel %vm572, %v542, 0
        %v601 = vsel %vm572, %v543, 0
        %v604 = vsel %vm572, %v544, 0
        %v607 = vsel %vm572, %v545, 0
        %v610 = vsel %vm572, %v546, 0
        %v613 = vsel %vm572, %v547, 0
        %v616 = vsel %vm572, %v548, 0
        %v619 = vsel %vm572, %v549, 0
        %v622 = vsel %vm572, %v550, 0
        %v625 = vsel %vm572, %v551, 0
        %v628 = vsel %vm572, %v552, 0
        %v631 = vsel %vm572, %v553, 0
        %v634 = vsel %vm572, %v554, 0
        %v637 = vsel %vm572, %v555, 0
        %v640 = vsel %vm572, %v556, 0
        %v643 = vsel %vm572, %v557, 0
        %v646 = vsel %vm572, %v558, 0
        %v649 = vsel %vm572, %v559, 0
        %v652 = vsel %vm572, %v560, 0
        %v655 = vsel %vm572, %v561, 0
        %v658 = vsel %vm572, %v562, 0
        %v661 = vsel %vm572, %v563, 0
        %v664 = vsel %vm572, %v564, 0
        %v667 = vsel %vm572, %v565, 0
        %669 = vmatprep.subr.bf16.mxu0 0
        %670 = vmatpush1.bf16.msra.mxu0 0
        %671 = vmatprep.subr.bf16.mxu0 0
        %672 = vmatpush1.bf16.msra.mxu0 0
        %673 = vmatprep.subr.bf16.mxu0 0
        %674 = vmatpush1.bf16.msra.mxu0 0
        %675 = vmatprep.subr.bf16.mxu0 0
        %676 = vmatpush1.bf16.msra.mxu0 0
        %677 = vmatprep.subr.bf16.mxu0 0
        %678 = vmatpush1.bf16.msra.mxu0 0
        %679 = vmatprep.subr.bf16.mxu0 0
        %680 = vmatpush1.bf16.msra.mxu0 0
        %681 = vmatprep.subr.bf16.mxu0 0
        %682 = vmatpush1.bf16.msra.mxu0 0
        %683 = vmatprep.subr.bf16.mxu0 0
        %684 = vmatpush1.bf16.msra.mxu0 %v570
        %685 = vmatprep.subr.bf16.mxu0 0
        %686 = vmatpush2.bf16.msra.mxu0 0
        %687 = vmatprep.subr.bf16.mxu0 0
        %688 = vmatpush2.bf16.msra.mxu0 0
        %689 = vmatprep.subr.bf16.mxu0 0
        %690 = vmatpush2.bf16.msra.mxu0 0
        %691 = vmatprep.subr.bf16.mxu0 0
        %692 = vmatpush2.bf16.msra.mxu0 0
        %693 = vmatprep.subr.bf16.mxu0 0
        %694 = vmatpush2.bf16.msra.mxu0 0
        %695 = vmatprep.subr.bf16.mxu0 0
        %696 = vmatpush2.bf16.msra.mxu0 0
        %697 = vmatprep.subr.bf16.mxu0 0
        %698 = vmatpush2.bf16.msra.mxu0 0
        %699 = vmatprep.subr.bf16.mxu0 0
        %700 = vmatpush2.bf16.msra.mxu0 0
        %701 = vmatprep.mubr.bf16.mxu0 0
        %702 = vmatmul.mubr.bf16.gmra.mxu0 %v574
        %v703 = vpop.f32.mrf.mxu0
        %v704 = vadd.f32 %v404, %v703
        %v705 = vpop.f32.mrf.mxu0
        %v706 = vpop.f32.mrf.mxu0
        %v707 = vadd.f32 %v404, %v706
        %v708 = vpop.f32.mrf.mxu0
        %709 = vmatprep.mubr.bf16.mxu0 0
        %710 = vmatmul.mubr.bf16.gmra.mxu0 %v577
        %v711 = vpop.f32.mrf.mxu0
        %v712 = vadd.f32 %v404, %v711
        %v713 = vpop.f32.mrf.mxu0
        %v714 = vpop.f32.mrf.mxu0
        %v715 = vadd.f32 %v404, %v714
        %v716 = vpop.f32.mrf.mxu0
        %717 = vmatprep.mubr.bf16.mxu0 0
        %718 = vmatmul.mubr.bf16.gmra.mxu0 %v580
        %v719 = vpop.f32.mrf.mxu0
        %v720 = vadd.f32 %v404, %v719
        %v721 = vpop.f32.mrf.mxu0
        %v722 = vpop.f32.mrf.mxu0
        %v723 = vadd.f32 %v404, %v722
        %v724 = vpop.f32.mrf.mxu0
        %725 = vmatprep.mubr.bf16.mxu0 0
        %726 = vmatmul.mubr.bf16.gmra.mxu0 %v583
        %v727 = vpop.f32.mrf.mxu0
        %v728 = vadd.f32 %v404, %v727
        %v729 = vpop.f32.mrf.mxu0
        %v730 = vpop.f32.mrf.mxu0
        %v731 = vadd.f32 %v404, %v730
        %v732 = vpop.f32.mrf.mxu0
        %733 = vmatprep.mubr.bf16.mxu0 0
        %734 = vmatmul.mubr.bf16.gmra.mxu0 %v586
        %v735 = vpop.f32.mrf.mxu0
        %v736 = vadd.f32 %v404, %v735
        %v737 = vpop.f32.mrf.mxu0
        %v738 = vpop.f32.mrf.mxu0
        %v739 = vadd.f32 %v404, %v738
        %v740 = vpop.f32.mrf.mxu0
        %741 = vmatprep.mubr.bf16.mxu0 0
        %742 = vmatmul.mubr.bf16.gmra.mxu0 %v589
        %v743 = vpop.f32.mrf.mxu0
        %v744 = vadd.f32 %v404, %v743
        %v745 = vpop.f32.mrf.mxu0
        %v746 = vpop.f32.mrf.mxu0
        %v747 = vadd.f32 %v404, %v746
        %v748 = vpop.f32.mrf.mxu0
        %749 = vmatprep.mubr.bf16.mxu0 0
        %750 = vmatmul.mubr.bf16.gmra.mxu0 %v592
        %v751 = vpop.f32.mrf.mxu0
        %v752 = vadd.f32 %v404, %v751
        %v753 = vpop.f32.mrf.mxu0
        %v754 = vpop.f32.mrf.mxu0
        %v755 = vadd.f32 %v404, %v754
        %v756 = vpop.f32.mrf.mxu0
        %757 = vmatprep.mubr.bf16.mxu0 0
        %758 = vmatmul.mubr.bf16.gmra.mxu0 %v595
        %v759 = vpop.f32.mrf.mxu0
        %v760 = vadd.f32 %v404, %v759
        %v761 = vpop.f32.mrf.mxu0
        %v762 = vpop.f32.mrf.mxu0
        %v763 = vadd.f32 %v404, %v762
        %v764 = vpop.f32.mrf.mxu0
        %765 = vmatprep.mubr.bf16.mxu0 0
        %766 = vmatmul.mubr.bf16.gmra.mxu0 %v598
        %v767 = vpop.f32.mrf.mxu0
        %v768 = vadd.f32 %v404, %v767
        %v769 = vpop.f32.mrf.mxu0
        %v770 = vpop.f32.mrf.mxu0
        %v771 = vadd.f32 %v404, %v770
        %v772 = vpop.f32.mrf.mxu0
        %773 = vmatprep.mubr.bf16.mxu0 0
        %774 = vmatmul.mubr.bf16.gmra.mxu0 %v601
        %v775 = vpop.f32.mrf.mxu0
        %v776 = vadd.f32 %v404, %v775
        %v777 = vpop.f32.mrf.mxu0
        %v778 = vpop.f32.mrf.mxu0
        %v779 = vadd.f32 %v404, %v778
        %v780 = vpop.f32.mrf.mxu0
        %781 = vmatprep.mubr.bf16.mxu0 0
        %782 = vmatmul.mubr.bf16.gmra.mxu0 %v604
        %v783 = vpop.f32.mrf.mxu0
        %v784 = vadd.f32 %v404, %v783
        %v785 = vpop.f32.mrf.mxu0
        %v786 = vpop.f32.mrf.mxu0
        %v787 = vadd.f32 %v404, %v786
        %v788 = vpop.f32.mrf.mxu0
        %789 = vmatprep.mubr.bf16.mxu0 0
        %790 = vmatmul.mubr.bf16.gmra.mxu0 %v607
        %v791 = vpop.f32.mrf.mxu0
        %v792 = vadd.f32 %v404, %v791
        %v793 = vpop.f32.mrf.mxu0
        %v794 = vpop.f32.mrf.mxu0
        %v795 = vadd.f32 %v404, %v794
        %v796 = vpop.f32.mrf.mxu0
        %797 = vmatprep.mubr.bf16.mxu0 0
        %798 = vmatmul.mubr.bf16.gmra.mxu0 %v610
        %v799 = vpop.f32.mrf.mxu0
        %v800 = vadd.f32 %v404, %v799
        %v801 = vpop.f32.mrf.mxu0
        %v802 = vpop.f32.mrf.mxu0
        %v803 = vadd.f32 %v404, %v802
        %v804 = vpop.f32.mrf.mxu0
        %805 = vmatprep.mubr.bf16.mxu0 0
        %806 = vmatmul.mubr.bf16.gmra.mxu0 %v613
        %v807 = vpop.f32.mrf.mxu0
        %v808 = vadd.f32 %v404, %v807
        %v809 = vpop.f32.mrf.mxu0
        %v810 = vpop.f32.mrf.mxu0
        %v811 = vadd.f32 %v404, %v810
        %v812 = vpop.f32.mrf.mxu0
        %813 = vmatprep.mubr.bf16.mxu0 0
        %814 = vmatmul.mubr.bf16.gmra.mxu0 %v616
        %v815 = vpop.f32.mrf.mxu0
        %v816 = vadd.f32 %v404, %v815
        %v817 = vpop.f32.mrf.mxu0
        %v818 = vpop.f32.mrf.mxu0
        %v819 = vadd.f32 %v404, %v818
        %v820 = vpop.f32.mrf.mxu0
        %821 = vmatprep.mubr.bf16.mxu0 0
        %822 = vmatmul.mubr.bf16.gmra.mxu0 %v619
        %v823 = vpop.f32.mrf.mxu0
        %v824 = vadd.f32 %v404, %v823
        %v825 = vpop.f32.mrf.mxu0
        %v826 = vpop.f32.mrf.mxu0
        %v827 = vadd.f32 %v404, %v826
        %v828 = vpop.f32.mrf.mxu0
        %829 = vmatprep.mubr.bf16.mxu0 0
        %830 = vmatmul.mubr.bf16.gmra.mxu0 %v622
        %v831 = vpop.f32.mrf.mxu0
        %v832 = vadd.f32 %v404, %v831
        %v833 = vpop.f32.mrf.mxu0
        %v834 = vpop.f32.mrf.mxu0
        %v835 = vadd.f32 %v404, %v834
        %v836 = vpop.f32.mrf.mxu0
        %837 = vmatprep.mubr.bf16.mxu0 0
        %838 = vmatmul.mubr.bf16.gmra.mxu0 %v625
        %v839 = vpop.f32.mrf.mxu0
        %v840 = vadd.f32 %v404, %v839
        %v841 = vpop.f32.mrf.mxu0
        %v842 = vpop.f32.mrf.mxu0
        %v843 = vadd.f32 %v404, %v842
        %v844 = vpop.f32.mrf.mxu0
        %845 = vmatprep.mubr.bf16.mxu0 0
        %846 = vmatmul.mubr.bf16.gmra.mxu0 %v628
        %v847 = vpop.f32.mrf.mxu0
        %v848 = vadd.f32 %v404, %v847
        %v849 = vpop.f32.mrf.mxu0
        %v850 = vpop.f32.mrf.mxu0
        %v851 = vadd.f32 %v404, %v850
        %v852 = vpop.f32.mrf.mxu0
        %853 = vmatprep.mubr.bf16.mxu0 0
        %854 = vmatmul.mubr.bf16.gmra.mxu0 %v631
        %v855 = vpop.f32.mrf.mxu0
        %v856 = vadd.f32 %v404, %v855
        %v857 = vpop.f32.mrf.mxu0
        %v858 = vpop.f32.mrf.mxu0
        %v859 = vadd.f32 %v404, %v858
        %v860 = vpop.f32.mrf.mxu0
        %861 = vmatprep.mubr.bf16.mxu0 0
        %862 = vmatmul.mubr.bf16.gmra.mxu0 %v634
        %v863 = vpop.f32.mrf.mxu0
        %v864 = vadd.f32 %v404, %v863
        %v865 = vpop.f32.mrf.mxu0
        %v866 = vpop.f32.mrf.mxu0
        %v867 = vadd.f32 %v404, %v866
        %v868 = vpop.f32.mrf.mxu0
        %869 = vmatprep.mubr.bf16.mxu0 0
        %870 = vmatmul.mubr.bf16.gmra.mxu0 %v637
        %v871 = vpop.f32.mrf.mxu0
        %v872 = vadd.f32 %v404, %v871
        %v873 = vpop.f32.mrf.mxu0
        %v874 = vpop.f32.mrf.mxu0
        %v875 = vadd.f32 %v404, %v874
        %v876 = vpop.f32.mrf.mxu0
        %877 = vmatprep.mubr.bf16.mxu0 0
        %878 = vmatmul.mubr.bf16.gmra.mxu0 %v640
        %v879 = vpop.f32.mrf.mxu0
        %v880 = vadd.f32 %v404, %v879
        %v881 = vpop.f32.mrf.mxu0
        %v882 = vpop.f32.mrf.mxu0
        %v883 = vadd.f32 %v404, %v882
        %v884 = vpop.f32.mrf.mxu0
        %885 = vmatprep.mubr.bf16.mxu0 0
        %886 = vmatmul.mubr.bf16.gmra.mxu0 %v643
        %v887 = vpop.f32.mrf.mxu0
        %v888 = vadd.f32 %v404, %v887
        %v889 = vpop.f32.mrf.mxu0
        %v890 = vpop.f32.mrf.mxu0
        %v891 = vadd.f32 %v404, %v890
        %v892 = vpop.f32.mrf.mxu0
        %893 = vmatprep.mubr.bf16.mxu0 0
        %894 = vmatmul.mubr.bf16.gmra.mxu0 %v646
        %v895 = vpop.f32.mrf.mxu0
        %v896 = vadd.f32 %v404, %v895
        %v897 = vpop.f32.mrf.mxu0
        %v898 = vpop.f32.mrf.mxu0
        %v899 = vadd.f32 %v404, %v898
        %v900 = vpop.f32.mrf.mxu0
        %901 = vmatprep.mubr.bf16.mxu0 0
        %902 = vmatmul.mubr.bf16.gmra.mxu0 %v649
        %v903 = vpop.f32.mrf.mxu0
        %v904 = vadd.f32 %v404, %v903
        %v905 = vpop.f32.mrf.mxu0
        %v906 = vpop.f32.mrf.mxu0
        %v907 = vadd.f32 %v404, %v906
        %v908 = vpop.f32.mrf.mxu0
        %909 = vmatprep.mubr.bf16.mxu0 0
        %910 = vmatmul.mubr.bf16.gmra.mxu0 %v652
        %v911 = vpop.f32.mrf.mxu0
        %v912 = vadd.f32 %v404, %v911
        %v913 = vpop.f32.mrf.mxu0
        %v914 = vpop.f32.mrf.mxu0
        %v915 = vadd.f32 %v404, %v914
        %v916 = vpop.f32.mrf.mxu0
        %917 = vmatprep.mubr.bf16.mxu0 0
        %918 = vmatmul.mubr.bf16.gmra.mxu0 %v655
        %v919 = vpop.f32.mrf.mxu0
        %v920 = vadd.f32 %v404, %v919
        %v921 = vpop.f32.mrf.mxu0
        %v922 = vpop.f32.mrf.mxu0
        %v923 = vadd.f32 %v404, %v922
        %v924 = vpop.f32.mrf.mxu0
        %925 = vmatprep.mubr.bf16.mxu0 0
        %926 = vmatmul.mubr.bf16.gmra.mxu0 %v658
        %v927 = vpop.f32.mrf.mxu0
        %v928 = vadd.f32 %v404, %v927
        %v929 = vpop.f32.mrf.mxu0
        %v930 = vpop.f32.mrf.mxu0
        %v931 = vadd.f32 %v404, %v930
        %v932 = vpop.f32.mrf.mxu0
        %933 = vmatprep.mubr.bf16.mxu0 0
        %934 = vmatmul.mubr.bf16.gmra.mxu0 %v661
        %v935 = vpop.f32.mrf.mxu0
        %v936 = vadd.f32 %v404, %v935
        %v937 = vpop.f32.mrf.mxu0
        %v938 = vpop.f32.mrf.mxu0
        %v939 = vadd.f32 %v404, %v938
        %v940 = vpop.f32.mrf.mxu0
        %941 = vmatprep.mubr.bf16.mxu0 0
        %942 = vmatmul.mubr.bf16.gmra.mxu0 %v664
        %v943 = vpop.f32.mrf.mxu0
        %v944 = vadd.f32 %v404, %v943
        %v945 = vpop.f32.mrf.mxu0
        %v946 = vpop.f32.mrf.mxu0
        %v947 = vadd.f32 %v404, %v946
        %v948 = vpop.f32.mrf.mxu0
        %949 = vmatprep.mubr.bf16.mxu0 0
        %950 = vmatmul.mubr.bf16.gmra.mxu0 %v667
        %v951 = vpop.f32.mrf.mxu0
        %v952 = vadd.f32 %v404, %v951
        %v953 = vpop.f32.mrf.mxu0
        %v954 = vpop.f32.mrf.mxu0
        %v955 = vadd.f32 %v404, %v954
        %v956 = vpop.f32.mrf.mxu0
        %957 = vdwg.mxu0
        %v958 = vld [vmem:[%s316] sm:$0xf]
        %v959 = vld [vmem:[%s316 + $0x4] sm:$0xf]
        %v960 = vld [vmem:[%s316 + $0x8] sm:$0xf]
        %v961 = vld [vmem:[%s316 + $0xc] sm:$0xf]
        %v962 = vld [vmem:[%s316 + $0x10] sm:$0xf]
        %v963 = vld [vmem:[%s316 + $0x14] sm:$0xf]
        %v964 = vld [vmem:[%s316 + $0x18] sm:$0xf]
        %v965 = vld [vmem:[%s316 + $0x1c] sm:$0xf]
        %v966 = vld [vmem:[%s316 + $0x20] sm:$0xf]
        %v967 = vld [vmem:[%s316 + $0x24] sm:$0xf]
        %v968 = vld [vmem:[%s316 + $0x28] sm:$0xf]
        %v969 = vld [vmem:[%s316 + $0x2c] sm:$0xf]
        %v970 = vld [vmem:[%s316 + $0x30] sm:$0xf]
        %v971 = vld [vmem:[%s316 + $0x34] sm:$0xf]
        %v972 = vld [vmem:[%s316 + $0x38] sm:$0xf]
        %v973 = vld [vmem:[%s316 + $0x3c] sm:$0xf]
        %v974 = vld [vmem:[%s316 + $0x40] sm:$0xf]
        %v975 = vld [vmem:[%s316 + $0x44] sm:$0xf]
        %v976 = vld [vmem:[%s316 + $0x48] sm:$0xf]
        %v977 = vld [vmem:[%s316 + $0x4c] sm:$0xf]
        %v978 = vld [vmem:[%s316 + $0x50] sm:$0xf]
        %v979 = vld [vmem:[%s316 + $0x54] sm:$0xf]
        %v980 = vld [vmem:[%s316 + $0x58] sm:$0xf]
        %v981 = vld [vmem:[%s316 + $0x5c] sm:$0xf]
        %v982 = vld [vmem:[%s316 + $0x60] sm:$0xf]
        %v983 = vld [vmem:[%s316 + $0x64] sm:$0xf]
        %v984 = vld [vmem:[%s316 + $0x68] sm:$0xf]
        %v985 = vld [vmem:[%s316 + $0x6c] sm:$0xf]
        %v986 = vld [vmem:[%s316 + $0x70] sm:$0xf]
        %v987 = vld [vmem:[%s316 + $0x74] sm:$0xf]
        %v988 = vld [vmem:[%s316 + $0x78] sm:$0xf]
        %v989 = vld [vmem:[%s316 + $0x7c] sm:$0xf]
        %v990 = vld [vmem:[%s316 + $0x80] sm:$0xf]
        %v991 = vld [vmem:[%s316 + $0x84] sm:$0xf]
        %v992 = vld [vmem:[%s316 + $0x88] sm:$0xf]
        %v993 = vld [vmem:[%s316 + $0x8c] sm:$0xf]
        %v994 = vld [vmem:[%s316 + $0x90] sm:$0xf]
        %v995 = vld [vmem:[%s316 + $0x94] sm:$0xf]
        %v996 = vld [vmem:[%s316 + $0x98] sm:$0xf]
        %v997 = vld [vmem:[%s316 + $0x9c] sm:$0xf]
        %v998 = vld [vmem:[%s316 + $0xa0] sm:$0xf]
        %v999 = vld [vmem:[%s316 + $0xa4] sm:$0xf]
        %v1000 = vld [vmem:[%s316 + $0xa8] sm:$0xf]
        %v1001 = vld [vmem:[%s316 + $0xac] sm:$0xf]
        %v1002 = vld [vmem:[%s316 + $0xb0] sm:$0xf]
        %v1003 = vld [vmem:[%s316 + $0xb4] sm:$0xf]
        %v1004 = vld [vmem:[%s316 + $0xb8] sm:$0xf]
        %v1005 = vld [vmem:[%s316 + $0xbc] sm:$0xf]
        %v1006 = vld [vmem:[%s316 + $0xc0] sm:$0xf]
        %v1007 = vld [vmem:[%s316 + $0xc4] sm:$0xf]
        %v1008 = vld [vmem:[%s316 + $0xc8] sm:$0xf]
        %v1009 = vld [vmem:[%s316 + $0xcc] sm:$0xf]
        %v1010 = vld [vmem:[%s316 + $0xd0] sm:$0xf]
        %v1011 = vld [vmem:[%s316 + $0xd4] sm:$0xf]
        %v1012 = vld [vmem:[%s316 + $0xd8] sm:$0xf]
        %v1013 = vld [vmem:[%s316 + $0xdc] sm:$0xf]
        %v1014 = vld [vmem:[%s316 + $0xe0] sm:$0xf]
        %v1015 = vld [vmem:[%s316 + $0xe4] sm:$0xf]
        %v1016 = vld [vmem:[%s316 + $0xe8] sm:$0xf]
        %v1017 = vld [vmem:[%s316 + $0xec] sm:$0xf]
        %v1018 = vld [vmem:[%s316 + $0xf0] sm:$0xf]
        %v1019 = vld [vmem:[%s316 + $0xf4] sm:$0xf]
        %v1020 = vld [vmem:[%s316 + $0xf8] sm:$0xf]
        %v1021 = vld [vmem:[%s316 + $0xfc] sm:$0xf]
        %v1022 = vunpack.c.l.bf16 %v958
        %v1023 = vunpack.c.l.bf16 %v959
        %v1024 = vunpack.c.l.bf16 %v960
        %v1025 = vunpack.c.l.bf16 %v961
        %v1026 = vunpack.c.l.bf16 %v962
        %v1027 = vunpack.c.l.bf16 %v963
        %v1028 = vunpack.c.l.bf16 %v964
        %v1029 = vunpack.c.l.bf16 %v965
        %v1030 = vunpack.c.l.bf16 %v966
        %v1031 = vunpack.c.l.bf16 %v967
        %v1032 = vunpack.c.l.bf16 %v968
        %v1033 = vunpack.c.l.bf16 %v969
        %v1034 = vunpack.c.l.bf16 %v970
        %v1035 = vunpack.c.l.bf16 %v971
        %v1036 = vunpack.c.l.bf16 %v972
        %v1037 = vunpack.c.l.bf16 %v973
        %v1038 = vunpack.c.l.bf16 %v974
        %v1039 = vunpack.c.l.bf16 %v975
        %v1040 = vunpack.c.l.bf16 %v976
        %v1041 = vunpack.c.l.bf16 %v977
        %v1042 = vunpack.c.l.bf16 %v978
        %v1043 = vunpack.c.l.bf16 %v979
        %v1044 = vunpack.c.l.bf16 %v980
        %v1045 = vunpack.c.l.bf16 %v981
        %v1046 = vunpack.c.l.bf16 %v982
        %v1047 = vunpack.c.l.bf16 %v983
        %v1048 = vunpack.c.l.bf16 %v984
        %v1049 = vunpack.c.l.bf16 %v985
        %v1050 = vunpack.c.l.bf16 %v986
        %v1051 = vunpack.c.l.bf16 %v987
        %v1052 = vunpack.c.l.bf16 %v988
        %v1053 = vunpack.c.l.bf16 %v989
        %v1054 = vunpack.c.l.bf16 %v990
        %v1055 = vunpack.c.l.bf16 %v991
        %v1056 = vunpack.c.l.bf16 %v992
        %v1057 = vunpack.c.l.bf16 %v993
        %v1058 = vunpack.c.l.bf16 %v994
        %v1059 = vunpack.c.l.bf16 %v995
        %v1060 = vunpack.c.l.bf16 %v996
        %v1061 = vunpack.c.l.bf16 %v997
        %v1062 = vunpack.c.l.bf16 %v998
        %v1063 = vunpack.c.l.bf16 %v999
        %v1064 = vunpack.c.l.bf16 %v1000
        %v1065 = vunpack.c.l.bf16 %v1001
        %v1066 = vunpack.c.l.bf16 %v1002
        %v1067 = vunpack.c.l.bf16 %v1003
        %v1068 = vunpack.c.l.bf16 %v1004
        %v1069 = vunpack.c.l.bf16 %v1005
        %v1070 = vunpack.c.l.bf16 %v1006
        %v1071 = vunpack.c.l.bf16 %v1007
        %v1072 = vunpack.c.l.bf16 %v1008
        %v1073 = vunpack.c.l.bf16 %v1009
        %v1074 = vunpack.c.l.bf16 %v1010
        %v1075 = vunpack.c.l.bf16 %v1011
        %v1076 = vunpack.c.l.bf16 %v1012
        %v1077 = vunpack.c.l.bf16 %v1013
        %v1078 = vunpack.c.l.bf16 %v1014
        %v1079 = vunpack.c.l.bf16 %v1015
        %v1080 = vunpack.c.l.bf16 %v1016
        %v1081 = vunpack.c.l.bf16 %v1017
        %v1082 = vunpack.c.l.bf16 %v1018
        %v1083 = vunpack.c.l.bf16 %v1019
        %v1084 = vunpack.c.l.bf16 %v1020
        %v1085 = vunpack.c.l.bf16 %v1021
        %v1086 = vld [vmem:[%s320] sm:$0x1]
        %v1088 = vlaneseq
        %v1089 = vshrl.u32 %v1088, 7
        %v1090 = vsub.s32 0, %v1089
        %v1091 = vrot.slane %v1086, %v1090
        %v1093 = vmul.f32 %v1022, %v1091
        %v1094 = vmul.f32 %v1023, %v1091
        %v1095 = vmul.f32 %v1024, %v1091
        %v1096 = vmul.f32 %v1025, %v1091
        %v1097 = vmul.f32 %v1026, %v1091
        %v1098 = vmul.f32 %v1027, %v1091
        %v1099 = vmul.f32 %v1028, %v1091
        %v1100 = vmul.f32 %v1029, %v1091
        %v1101 = vmul.f32 %v1030, %v1091
        %v1102 = vmul.f32 %v1031, %v1091
        %v1103 = vmul.f32 %v1032, %v1091
        %v1104 = vmul.f32 %v1033, %v1091
        %v1105 = vmul.f32 %v1034, %v1091
        %v1106 = vmul.f32 %v1035, %v1091
        %v1107 = vmul.f32 %v1036, %v1091
        %v1108 = vmul.f32 %v1037, %v1091
        %v1109 = vmul.f32 %v1038, %v1091
        %v1110 = vmul.f32 %v1039, %v1091
        %v1111 = vmul.f32 %v1040, %v1091
        %v1112 = vmul.f32 %v1041, %v1091
        %v1113 = vmul.f32 %v1042, %v1091
        %v1114 = vmul.f32 %v1043, %v1091
        %v1115 = vmul.f32 %v1044, %v1091
        %v1116 = vmul.f32 %v1045, %v1091
        %v1117 = vmul.f32 %v1046, %v1091
        %v1118 = vmul.f32 %v1047, %v1091
        %v1119 = vmul.f32 %v1048, %v1091
        %v1120 = vmul.f32 %v1049, %v1091
        %v1121 = vmul.f32 %v1050, %v1091
        %v1122 = vmul.f32 %v1051, %v1091
        %v1123 = vmul.f32 %v1052, %v1091
        %v1124 = vmul.f32 %v1053, %v1091
        %v1125 = vmul.f32 %v1054, %v1091
        %v1126 = vmul.f32 %v1055, %v1091
        %v1127 = vmul.f32 %v1056, %v1091
        %v1128 = vmul.f32 %v1057, %v1091
        %v1129 = vmul.f32 %v1058, %v1091
        %v1130 = vmul.f32 %v1059, %v1091
        %v1131 = vmul.f32 %v1060, %v1091
        %v1132 = vmul.f32 %v1061, %v1091
        %v1133 = vmul.f32 %v1062, %v1091
        %v1134 = vmul.f32 %v1063, %v1091
        %v1135 = vmul.f32 %v1064, %v1091
        %v1136 = vmul.f32 %v1065, %v1091
        %v1137 = vmul.f32 %v1066, %v1091
        %v1138 = vmul.f32 %v1067, %v1091
        %v1139 = vmul.f32 %v1068, %v1091
        %v1140 = vmul.f32 %v1069, %v1091
        %v1141 = vmul.f32 %v1070, %v1091
        %v1142 = vmul.f32 %v1071, %v1091
        %v1143 = vmul.f32 %v1072, %v1091
        %v1144 = vmul.f32 %v1073, %v1091
        %v1145 = vmul.f32 %v1074, %v1091
        %v1146 = vmul.f32 %v1075, %v1091
        %v1147 = vmul.f32 %v1076, %v1091
        %v1148 = vmul.f32 %v1077, %v1091
        %v1149 = vmul.f32 %v1078, %v1091
        %v1150 = vmul.f32 %v1079, %v1091
        %v1151 = vmul.f32 %v1080, %v1091
        %v1152 = vmul.f32 %v1081, %v1091
        %v1153 = vmul.f32 %v1082, %v1091
        %v1154 = vmul.f32 %v1083, %v1091
        %v1155 = vmul.f32 %v1084, %v1091
        %v1156 = vmul.f32 %v1085, %v1091
        %v1157 = vadd.f32 %v1093, %v704
        %v1158 = vadd.f32 %v1094, %v707
        %v1159 = vadd.f32 %v1095, %v712
        %v1160 = vadd.f32 %v1096, %v715
        %v1161 = vadd.f32 %v1097, %v720
        %v1162 = vadd.f32 %v1098, %v723
        %v1163 = vadd.f32 %v1099, %v728
        %v1164 = vadd.f32 %v1100, %v731
        %v1165 = vadd.f32 %v1101, %v736
        %v1166 = vadd.f32 %v1102, %v739
        %v1167 = vadd.f32 %v1103, %v744
        %v1168 = vadd.f32 %v1104, %v747
        %v1169 = vadd.f32 %v1105, %v752
        %v1170 = vadd.f32 %v1106, %v755
        %v1171 = vadd.f32 %v1107, %v760
        %v1172 = vadd.f32 %v1108, %v763
        %v1173 = vadd.f32 %v1109, %v768
        %v1174 = vadd.f32 %v1110, %v771
        %v1175 = vadd.f32 %v1111, %v776
        %v1176 = vadd.f32 %v1112, %v779
        %v1177 = vadd.f32 %v1113, %v784
        %v1178 = vadd.f32 %v1114, %v787
        %v1179 = vadd.f32 %v1115, %v792
        %v1180 = vadd.f32 %v1116, %v795
        %v1181 = vadd.f32 %v1117, %v800
        %v1182 = vadd.f32 %v1118, %v803
        %v1183 = vadd.f32 %v1119, %v808
        %v1184 = vadd.f32 %v1120, %v811
        %v1185 = vadd.f32 %v1121, %v816
        %v1186 = vadd.f32 %v1122, %v819
        %v1187 = vadd.f32 %v1123, %v824
        %v1188 = vadd.f32 %v1124, %v827
        %v1189 = vadd.f32 %v1125, %v832
        %v1190 = vadd.f32 %v1126, %v835
        %v1191 = vadd.f32 %v1127, %v840
        %v1192 = vadd.f32 %v1128, %v843
        %v1193 = vadd.f32 %v1129, %v848
        %v1194 = vadd.f32 %v1130, %v851
        %v1195 = vadd.f32 %v1131, %v856
        %v1196 = vadd.f32 %v1132, %v859
        %v1197 = vadd.f32 %v1133, %v864
        %v1198 = vadd.f32 %v1134, %v867
        %v1199 = vadd.f32 %v1135, %v872
        %v1200 = vadd.f32 %v1136, %v875
        %v1201 = vadd.f32 %v1137, %v880
        %v1202 = vadd.f32 %v1138, %v883
        %v1203 = vadd.f32 %v1139, %v888
        %v1204 = vadd.f32 %v1140, %v891
        %v1205 = vadd.f32 %v1141, %v896
        %v1206 = vadd.f32 %v1142, %v899
        %v1207 = vadd.f32 %v1143, %v904
        %v1208 = vadd.f32 %v1144, %v907
        %v1209 = vadd.f32 %v1145, %v912
        %v1210 = vadd.f32 %v1146, %v915
        %v1211 = vadd.f32 %v1147, %v920
        %v1212 = vadd.f32 %v1148, %v923
        %v1213 = vadd.f32 %v1149, %v928
        %v1214 = vadd.f32 %v1150, %v931
        %v1215 = vadd.f32 %v1151, %v936
        %v1216 = vadd.f32 %v1152, %v939
        %v1217 = vadd.f32 %v1153, %v944
        %v1218 = vadd.f32 %v1154, %v947
        %v1219 = vadd.f32 %v1155, %v952
        %v1220 = vadd.f32 %v1156, %v955
        %s1221 = sld [smem:[#allocation2]]
        %vm1222 = vcmp.ge.f32.partialorder %v1157, 0.0
        %vm1223 = vcmp.ge.f32.partialorder %v1158, 0.0
        %vm1224 = vcmp.ge.f32.partialorder %v1159, 0.0
        %vm1225 = vcmp.ge.f32.partialorder %v1160, 0.0
        %vm1226 = vcmp.ge.f32.partialorder %v1161, 0.0
        %vm1227 = vcmp.ge.f32.partialorder %v1162, 0.0
        %vm1228 = vcmp.ge.f32.partialorder %v1163, 0.0
        %vm1229 = vcmp.ge.f32.partialorder %v1164, 0.0
        %vm1230 = vcmp.ge.f32.partialorder %v1165, 0.0
        %vm1231 = vcmp.ge.f32.partialorder %v1166, 0.0
        %vm1232 = vcmp.ge.f32.partialorder %v1167, 0.0
        %vm1233 = vcmp.ge.f32.partialorder %v1168, 0.0
        %vm1234 = vcmp.ge.f32.partialorder %v1169, 0.0
        %vm1235 = vcmp.ge.f32.partialorder %v1170, 0.0
        %vm1236 = vcmp.ge.f32.partialorder %v1171, 0.0
        %vm1237 = vcmp.ge.f32.partialorder %v1172, 0.0
        %vm1238 = vcmp.ge.f32.partialorder %v1173, 0.0
        %vm1239 = vcmp.ge.f32.partialorder %v1174, 0.0
        %vm1240 = vcmp.ge.f32.partialorder %v1175, 0.0
        %vm1241 = vcmp.ge.f32.partialorder %v1176, 0.0
        %vm1242 = vcmp.ge.f32.partialorder %v1177, 0.0
        %vm1243 = vcmp.ge.f32.partialorder %v1178, 0.0
        %vm1244 = vcmp.ge.f32.partialorder %v1179, 0.0
        %vm1245 = vcmp.ge.f32.partialorder %v1180, 0.0
        %vm1246 = vcmp.ge.f32.partialorder %v1181, 0.0
        %vm1247 = vcmp.ge.f32.partialorder %v1182, 0.0
        %vm1248 = vcmp.ge.f32.partialorder %v1183, 0.0
        %vm1249 = vcmp.ge.f32.partialorder %v1184, 0.0
        %vm1250 = vcmp.ge.f32.partialorder %v1185, 0.0
        %vm1251 = vcmp.ge.f32.partialorder %v1186, 0.0
        %vm1252 = vcmp.ge.f32.partialorder %v1187, 0.0
        %vm1253 = vcmp.ge.f32.partialorder %v1188, 0.0
        %vm1254 = vcmp.ge.f32.partialorder %v1189, 0.0
        %vm1255 = vcmp.ge.f32.partialorder %v1190, 0.0
        %vm1256 = vcmp.ge.f32.partialorder %v1191, 0.0
        %vm1257 = vcmp.ge.f32.partialorder %v1192, 0.0
        %vm1258 = vcmp.ge.f32.partialorder %v1193, 0.0
        %vm1259 = vcmp.ge.f32.partialorder %v1194, 0.0
        %vm1260 = vcmp.ge.f32.partialorder %v1195, 0.0
        %vm1261 = vcmp.ge.f32.partialorder %v1196, 0.0
        %vm1262 = vcmp.ge.f32.partialorder %v1197, 0.0
        %vm1263 = vcmp.ge.f32.partialorder %v1198, 0.0
        %vm1264 = vcmp.ge.f32.partialorder %v1199, 0.0
        %vm1265 = vcmp.ge.f32.partialorder %v1200, 0.0
        %vm1266 = vcmp.ge.f32.partialorder %v1201, 0.0
        %vm1267 = vcmp.ge.f32.partialorder %v1202, 0.0
        %vm1268 = vcmp.ge.f32.partialorder %v1203, 0.0
        %vm1269 = vcmp.ge.f32.partialorder %v1204, 0.0
        %vm1270 = vcmp.ge.f32.partialorder %v1205, 0.0
        %vm1271 = vcmp.ge.f32.partialorder %v1206, 0.0
        %vm1272 = vcmp.ge.f32.partialorder %v1207, 0.0
        %vm1273 = vcmp.ge.f32.partialorder %v1208, 0.0
        %vm1274 = vcmp.ge.f32.partialorder %v1209, 0.0
        %vm1275 = vcmp.ge.f32.partialorder %v1210, 0.0
        %vm1276 = vcmp.ge.f32.partialorder %v1211, 0.0
        %vm1277 = vcmp.ge.f32.partialorder %v1212, 0.0
        %vm1278 = vcmp.ge.f32.partialorder %v1213, 0.0
        %vm1279 = vcmp.ge.f32.partialorder %v1214, 0.0
        %vm1280 = vcmp.ge.f32.partialorder %v1215, 0.0
        %vm1281 = vcmp.ge.f32.partialorder %v1216, 0.0
        %vm1282 = vcmp.ge.f32.partialorder %v1217, 0.0
        %vm1283 = vcmp.ge.f32.partialorder %v1218, 0.0
        %vm1284 = vcmp.ge.f32.partialorder %v1219, 0.0
        %vm1285 = vcmp.ge.f32.partialorder %v1220, 0.0
        %v1286 = vstv %s1221
        %v1287 = vmul.f32 %v1286, %v1157
        %v1288 = vmul.f32 %v1286, %v1158
        %v1289 = vmul.f32 %v1286, %v1159
        %v1290 = vmul.f32 %v1286, %v1160
        %v1291 = vmul.f32 %v1286, %v1161
        %v1292 = vmul.f32 %v1286, %v1162
        %v1293 = vmul.f32 %v1286, %v1163
        %v1294 = vmul.f32 %v1286, %v1164
        %v1295 = vmul.f32 %v1286, %v1165
        %v1296 = vmul.f32 %v1286, %v1166
        %v1297 = vmul.f32 %v1286, %v1167
        %v1298 = vmul.f32 %v1286, %v1168
        %v1299 = vmul.f32 %v1286, %v1169
        %v1300 = vmul.f32 %v1286, %v1170
        %v1301 = vmul.f32 %v1286, %v1171
        %v1302 = vmul.f32 %v1286, %v1172
        %v1303 = vmul.f32 %v1286, %v1173
        %v1304 = vmul.f32 %v1286, %v1174
        %v1305 = vmul.f32 %v1286, %v1175
        %v1306 = vmul.f32 %v1286, %v1176
        %v1307 = vmul.f32 %v1286, %v1177
        %v1308 = vmul.f32 %v1286, %v1178
        %v1309 = vmul.f32 %v1286, %v1179
        %v1310 = vmul.f32 %v1286, %v1180
        %v1311 = vmul.f32 %v1286, %v1181
        %v1312 = vmul.f32 %v1286, %v1182
        %v1313 = vmul.f32 %v1286, %v1183
        %v1314 = vmul.f32 %v1286, %v1184
        %v1315 = vmul.f32 %v1286, %v1185
        %v1316 = vmul.f32 %v1286, %v1186
        %v1317 = vmul.f32 %v1286, %v1187
        %v1318 = vmul.f32 %v1286, %v1188
        %v1319 = vmul.f32 %v1286, %v1189
        %v1320 = vmul.f32 %v1286, %v1190
        %v1321 = vmul.f32 %v1286, %v1191
        %v1322 = vmul.f32 %v1286, %v1192
        %v1323 = vmul.f32 %v1286, %v1193
        %v1324 = vmul.f32 %v1286, %v1194
        %v1325 = vmul.f32 %v1286, %v1195
        %v1326 = vmul.f32 %v1286, %v1196
        %v1327 = vmul.f32 %v1286, %v1197
        %v1328 = vmul.f32 %v1286, %v1198
        %v1329 = vmul.f32 %v1286, %v1199
        %v1330 = vmul.f32 %v1286, %v1200
        %v1331 = vmul.f32 %v1286, %v1201
        %v1332 = vmul.f32 %v1286, %v1202
        %v1333 = vmul.f32 %v1286, %v1203
        %v1334 = vmul.f32 %v1286, %v1204
        %v1335 = vmul.f32 %v1286, %v1205
        %v1336 = vmul.f32 %v1286, %v1206
        %v1337 = vmul.f32 %v1286, %v1207
        %v1338 = vmul.f32 %v1286, %v1208
        %v1339 = vmul.f32 %v1286, %v1209
        %v1340 = vmul.f32 %v1286, %v1210
        %v1341 = vmul.f32 %v1286, %v1211
        %v1342 = vmul.f32 %v1286, %v1212
        %v1343 = vmul.f32 %v1286, %v1213
        %v1344 = vmul.f32 %v1286, %v1214
        %v1345 = vmul.f32 %v1286, %v1215
        %v1346 = vmul.f32 %v1286, %v1216
        %v1347 = vmul.f32 %v1286, %v1217
        %v1348 = vmul.f32 %v1286, %v1218
        %v1349 = vmul.f32 %v1286, %v1219
        %v1350 = vmul.f32 %v1286, %v1220
        %v1351 = vsel %vm1222, %v1157, %v1287
        %v1352 = vsel %vm1223, %v1158, %v1288
        %v1353 = vsel %vm1224, %v1159, %v1289
        %v1354 = vsel %vm1225, %v1160, %v1290
        %v1355 = vsel %vm1226, %v1161, %v1291
        %v1356 = vsel %vm1227, %v1162, %v1292
        %v1357 = vsel %vm1228, %v1163, %v1293
        %v1358 = vsel %vm1229, %v1164, %v1294
        %v1359 = vsel %vm1230, %v1165, %v1295
        %v1360 = vsel %vm1231, %v1166, %v1296
        %v1361 = vsel %vm1232, %v1167, %v1297
        %v1362 = vsel %vm1233, %v1168, %v1298
        %v1363 = vsel %vm1234, %v1169, %v1299
        %v1364 = vsel %vm1235, %v1170, %v1300
        %v1365 = vsel %vm1236, %v1171, %v1301
        %v1366 = vsel %vm1237, %v1172, %v1302
        %v1367 = vsel %vm1238, %v1173, %v1303
        %v1368 = vsel %vm1239, %v1174, %v1304
        %v1369 = vsel %vm1240, %v1175, %v1305
        %v1370 = vsel %vm1241, %v1176, %v1306
        %v1371 = vsel %vm1242, %v1177, %v1307
        %v1372 = vsel %vm1243, %v1178, %v1308
        %v1373 = vsel %vm1244, %v1179, %v1309
        %v1374 = vsel %vm1245, %v1180, %v1310
        %v1375 = vsel %vm1246, %v1181, %v1311
        %v1376 = vsel %vm1247, %v1182, %v1312
        %v1377 = vsel %vm1248, %v1183, %v1313
        %v1378 = vsel %vm1249, %v1184, %v1314
        %v1379 = vsel %vm1250, %v1185, %v1315
        %v1380 = vsel %vm1251, %v1186, %v1316
        %v1381 = vsel %vm1252, %v1187, %v1317
        %v1382 = vsel %vm1253, %v1188, %v1318
        %v1383 = vsel %vm1254, %v1189, %v1319
        %v1384 = vsel %vm1255, %v1190, %v1320
        %v1385 = vsel %vm1256, %v1191, %v1321
        %v1386 = vsel %vm1257, %v1192, %v1322
        %v1387 = vsel %vm1258, %v1193, %v1323
        %v1388 = vsel %vm1259, %v1194, %v1324
        %v1389 = vsel %vm1260, %v1195, %v1325
        %v1390 = vsel %vm1261, %v1196, %v1326
        %v1391 = vsel %vm1262, %v1197, %v1327
        %v1392 = vsel %vm1263, %v1198, %v1328
        %v1393 = vsel %vm1264, %v1199, %v1329
        %v1394 = vsel %vm1265, %v1200, %v1330
        %v1395 = vsel %vm1266, %v1201, %v1331
        %v1396 = vsel %vm1267, %v1202, %v1332
        %v1397 = vsel %vm1268, %v1203, %v1333
        %v1398 = vsel %vm1269, %v1204, %v1334
        %v1399 = vsel %vm1270, %v1205, %v1335
        %v1400 = vsel %vm1271, %v1206, %v1336
        %v1401 = vsel %vm1272, %v1207, %v1337
        %v1402 = vsel %vm1273, %v1208, %v1338
        %v1403 = vsel %vm1274, %v1209, %v1339
        %v1404 = vsel %vm1275, %v1210, %v1340
        %v1405 = vsel %vm1276, %v1211, %v1341
        %v1406 = vsel %vm1277, %v1212, %v1342
        %v1407 = vsel %vm1278, %v1213, %v1343
        %v1408 = vsel %vm1279, %v1214, %v1344
        %v1409 = vsel %vm1280, %v1215, %v1345
        %v1410 = vsel %vm1281, %v1216, %v1346
        %v1411 = vsel %vm1282, %v1217, %v1347
        %v1412 = vsel %vm1283, %v1218, %v1348
        %v1413 = vsel %vm1284, %v1219, %v1349
        %v1414 = vsel %vm1285, %v1220, %v1350
        %vm1415 = vcmask 523264
        %1416 = vst.msk [vmem:[%s307] sm:$0xff] %vm1415, %v1351
        %1417 = vst.msk [vmem:[%s307 + $0x8] sm:$0xff] %vm1415, %v1352
        %1418 = vst.msk [vmem:[%s307 + $0x10] sm:$0xff] %vm1415, %v1353
        %1419 = vst.msk [vmem:[%s307 + $0x18] sm:$0xff] %vm1415, %v1354
        %1420 = vst.msk [vmem:[%s307 + $0x20] sm:$0xff] %vm1415, %v1355
        %1421 = vst.msk [vmem:[%s307 + $0x28] sm:$0xff] %vm1415, %v1356
        %1422 = vst.msk [vmem:[%s307 + $0x30] sm:$0xff] %vm1415, %v1357
        %1423 = vst.msk [vmem:[%s307 + $0x38] sm:$0xff] %vm1415, %v1358
        %1424 = vst.msk [vmem:[%s307 + $0x40] sm:$0xff] %vm1415, %v1359
        %1425 = vst.msk [vmem:[%s307 + $0x48] sm:$0xff] %vm1415, %v1360
        %1426 = vst.msk [vmem:[%s307 + $0x50] sm:$0xff] %vm1415, %v1361
        %1427 = vst.msk [vmem:[%s307 + $0x58] sm:$0xff] %vm1415, %v1362
        %1428 = vst.msk [vmem:[%s307 + $0x60] sm:$0xff] %vm1415, %v1363
        %1429 = vst.msk [vmem:[%s307 + $0x68] sm:$0xff] %vm1415, %v1364
        %1430 = vst.msk [vmem:[%s307 + $0x70] sm:$0xff] %vm1415, %v1365
        %1431 = vst.msk [vmem:[%s307 + $0x78] sm:$0xff] %vm1415, %v1366
        %1432 = vst.msk [vmem:[%s307 + $0x80] sm:$0xff] %vm1415, %v1367
        %1433 = vst.msk [vmem:[%s307 + $0x88] sm:$0xff] %vm1415, %v1368
        %1434 = vst.msk [vmem:[%s307 + $0x90] sm:$0xff] %vm1415, %v1369
        %1435 = vst.msk [vmem:[%s307 + $0x98] sm:$0xff] %vm1415, %v1370
        %1436 = vst.msk [vmem:[%s307 + $0xa0] sm:$0xff] %vm1415, %v1371
        %1437 = vst.msk [vmem:[%s307 + $0xa8] sm:$0xff] %vm1415, %v1372
        %1438 = vst.msk [vmem:[%s307 + $0xb0] sm:$0xff] %vm1415, %v1373
        %1439 = vst.msk [vmem:[%s307 + $0xb8] sm:$0xff] %vm1415, %v1374
        %1440 = vst.msk [vmem:[%s307 + $0xc0] sm:$0xff] %vm1415, %v1375
        %1441 = vst.msk [vmem:[%s307 + $0xc8] sm:$0xff] %vm1415, %v1376
        %1442 = vst.msk [vmem:[%s307 + $0xd0] sm:$0xff] %vm1415, %v1377
        %1443 = vst.msk [vmem:[%s307 + $0xd8] sm:$0xff] %vm1415, %v1378
        %1444 = vst.msk [vmem:[%s307 + $0xe0] sm:$0xff] %vm1415, %v1379
        %1445 = vst.msk [vmem:[%s307 + $0xe8] sm:$0xff] %vm1415, %v1380
        %1446 = vst.msk [vmem:[%s307 + $0xf0] sm:$0xff] %vm1415, %v1381
        %1447 = vst.msk [vmem:[%s307 + $0xf8] sm:$0xff] %vm1415, %v1382
        %1448 = vst.msk [vmem:[%s307 + $0x100] sm:$0xff] %vm1415, %v1383
        %1449 = vst.msk [vmem:[%s307 + $0x108] sm:$0xff] %vm1415, %v1384
        %1450 = vst.msk [vmem:[%s307 + $0x110] sm:$0xff] %vm1415, %v1385
        %1451 = vst.msk [vmem:[%s307 + $0x118] sm:$0xff] %vm1415, %v1386
        %1452 = vst.msk [vmem:[%s307 + $0x120] sm:$0xff] %vm1415, %v1387
        %1453 = vst.msk [vmem:[%s307 + $0x128] sm:$0xff] %vm1415, %v1388
        %1454 = vst.msk [vmem:[%s307 + $0x130] sm:$0xff] %vm1415, %v1389
        %1455 = vst.msk [vmem:[%s307 + $0x138] sm:$0xff] %vm1415, %v1390
        %1456 = vst.msk [vmem:[%s307 + $0x140] sm:$0xff] %vm1415, %v1391
        %1457 = vst.msk [vmem:[%s307 + $0x148] sm:$0xff] %vm1415, %v1392
        %1458 = vst.msk [vmem:[%s307 + $0x150] sm:$0xff] %vm1415, %v1393
        %1459 = vst.msk [vmem:[%s307 + $0x158] sm:$0xff] %vm1415, %v1394
        %1460 = vst.msk [vmem:[%s307 + $0x160] sm:$0xff] %vm1415, %v1395
        %1461 = vst.msk [vmem:[%s307 + $0x168] sm:$0xff] %vm1415, %v1396
        %1462 = vst.msk [vmem:[%s307 + $0x170] sm:$0xff] %vm1415, %v1397
        %1463 = vst.msk [vmem:[%s307 + $0x178] sm:$0xff] %vm1415, %v1398
        %1464 = vst.msk [vmem:[%s307 + $0x180] sm:$0xff] %vm1415, %v1399
        %1465 = vst.msk [vmem:[%s307 + $0x188] sm:$0xff] %vm1415, %v1400
        %1466 = vst.msk [vmem:[%s307 + $0x190] sm:$0xff] %vm1415, %v1401
        %1467 = vst.msk [vmem:[%s307 + $0x198] sm:$0xff] %vm1415, %v1402
        %1468 = vst.msk [vmem:[%s307 + $0x1a0] sm:$0xff] %vm1415, %v1403
        %1469 = vst.msk [vmem:[%s307 + $0x1a8] sm:$0xff] %vm1415, %v1404
        %1470 = vst.msk [vmem:[%s307 + $0x1b0] sm:$0xff] %vm1415, %v1405
        %1471 = vst.msk [vmem:[%s307 + $0x1b8] sm:$0xff] %vm1415, %v1406
        %1472 = vst.msk [vmem:[%s307 + $0x1c0] sm:$0xff] %vm1415, %v1407
        %1473 = vst.msk [vmem:[%s307 + $0x1c8] sm:$0xff] %vm1415, %v1408
        %1474 = vst.msk [vmem:[%s307 + $0x1d0] sm:$0xff] %vm1415, %v1409
        %1475 = vst.msk [vmem:[%s307 + $0x1d8] sm:$0xff] %vm1415, %v1410
        %1476 = vst.msk [vmem:[%s307 + $0x1e0] sm:$0xff] %vm1415, %v1411
        %1477 = vst.msk [vmem:[%s307 + $0x1e8] sm:$0xff] %vm1415, %v1412
        %1478 = vst.msk [vmem:[%s307 + $0x1f0] sm:$0xff] %vm1415, %v1413
        %1479 = vst.msk [vmem:[%s307 + $0x1f8] sm:$0xff] %vm1415, %v1414
        %s1480 = sand.u32 %s188, 1
        %s1481 = scalar_lea.sflag [#allocation4], %s1480
        %s1482 = sand.u32 %s188, 1
        %s1483 = smul.addr %s1482, 512
        %s1484 = scalar_lea.vmem [#allocation3], %s1483
        // Predicated region
        $region45: #{senet_bottleneck_pallas.7} parent=43 // pred_check
          %p1485 = pneg %p198
        $region46: #{senet_bottleneck_pallas.7} parent=43 // pred_check_branch
          %1487 = sbr.rel (%p1485) target = $region48
        $region47: #{senet_bottleneck_pallas.7} parent=43 // pred_region
          %s1488 = smul.u32 64, %s26
          %s1490 = ssub.s32 8192, 8192
          %1491 = vsyncadd %s1481, %s1490
          %s1492 = smul.addr %s25, 64
          %s1493 = sadd.s32 %s1488, %s1492
          %s1494 = smul.addr %s1493, 128
          %s1495 = scalar_lea.hbm %s6, %s1494
          %s1496 = sshll.u32 %s1484, 4
          %s1497 = int_to_ptr.vmem [resolvable:$true] %s1496
          %1502 = dma.vmem_to_hbm [thread:$0]  %s1497, 8192, %s1495, %s1481, 128, 128, 8
        $region48: #{senet_bottleneck_pallas.7} parent=43 // pred_fallthru
          _
      $region44: #{senet_bottleneck_pallas.7} parent=5 // pred_fallthru
        _
      %p1503 = scmp.le.s32.totalorder 2, %s16
      // Predicated region
      $region49: #{senet_bottleneck_pallas.7} parent=5 // pred_check
        %p1504 = pneg %p1503
      $region50: #{senet_bottleneck_pallas.7} parent=5 // pred_check_branch
        %1506 = sbr.rel (%p1504) target = $region52
      $region51: #{senet_bottleneck_pallas.7} parent=5 // pred_region
        %s1507 = ssub.s32 %s16, 2
        // Predicated region
        $region53: #{senet_bottleneck_pallas.7} parent=51 // pred_check
          %p1508 = pneg %p204
        $region54: #{senet_bottleneck_pallas.7} parent=51 // pred_check_branch
          %1510 = sbr.rel (%p1508) target = $region56
        $region55: #{senet_bottleneck_pallas.7} parent=51 // pred_region
          %s1511 = sand.u32 %s189, 1
          %s1512 = scalar_lea.sflag [#allocation4], %s1511
          %s1513 = sand.u32 %s189, 1
          %s1514 = smul.addr %s1513, 512
          %s1515 = scalar_lea.vmem [#allocation3], %s1514
          %1516 = dma.done %s1512, 8192
        $region56: #{senet_bottleneck_pallas.7} parent=51 // pred_fallthru
          _
      $region52: #{senet_bottleneck_pallas.7} parent=5 // pred_fallthru
        _
    $region6: #{senet_bottleneck_pallas.7} parent=1 // loop_footer
      %s20 = sadd.s32 1, %s16
    $region7: #{senet_bottleneck_pallas.7} parent=1 // loop_footer_branch
      %15 = sbr.rel target = $region3
    $region8: #{senet_bottleneck_pallas.7} parent=1 // loop_exit
      _
    %1517 = vsyncpa [#allocation4], 1
    %s1518 = scalar_lea.sflag [#allocation4], 1
    %1519 = vsyncpa %s1518, 1

// kernel: senet_bottleneck_pallas.5
$region0: #{senet_bottleneck_pallas.5}
  #allocation0 [shape = 'u32[]', space=smem, size = 0x4, offset = 0x4, fixed_abs, tag = 'smem constant byte address 0x4 - core index']
  #allocation1 [shape = 'u32[144,128]{1,0:T(1,128)}', space=vmem, size = 0x12000, scoped, tag = 'internal scratch']
  #allocation2 [shape = 'f32[1]{0:T(128)S(6)}', space=smem, size = 0x200, scoped, tag = 'scoped memory for senet_bottleneck_pallas.5']
  %s0 = inlined_call_operand.<no memory space> [shape: f32[1], index: 0, kind: input, shape index: {}]
  %s1 = inlined_call_operand.vmem [shape: bf16[2,10,104,32], index: 1, kind: input, shape index: {}, may-alias: {1,2,3}]
  %s2 = inlined_call_operand.vmem [shape: bf16[2,10,104,32], index: 2, kind: input, shape index: {}, may-alias: {1,2,3}]
  %s3 = inlined_call_operand.vmem [shape: bf16[2,10,104,32], index: 3, kind: input, shape index: {}, may-alias: {1,2,3}]
  %s4 = inlined_call_operand.vmem [shape: bf16[27,32,32], index: 4, kind: input, shape index: {}]
  %s5 = inlined_call_operand.vmem [shape: f32[1,32], index: 5, kind: input, shape index: {}]
  %s6 = inlined_call_operand.vmem [shape: bf16[2,8,64,32], index: 6, kind: output, shape index: {}]
  %s7 = sld [smem:[#allocation0]]
  $region57: #{senet_bottleneck_pallas.5} parent=0
    _
  %s9 = ssub.s32 1, %s7
  %s10 = scalar_select 0, %s9, %s7
  %11 = sst [smem:[#allocation2]] %s0
  loop: start=0, step=1, limit=18
  $region2: #{senet_bottleneck_pallas.5} parent=0 // loop_pre_header
    _
  $region3: #{senet_bottleneck_pallas.5} parent=0 // loop_header
    %s13 = sphi 0, %s17
    %p14 = scmp.ge.s32.totalorder %s13, 18
    %s20 = sphi 0, %s39
    %s21 = sphi 0, %s35
    %s22 = sphi 0, %s31
    %s23 = sphi 0, %s20
    %s24 = sphi 0, %s21
    %s25 = sphi 0, %s22
    %s26 = sphi 0, %s23
    %s27 = sphi 0, %s24
    %s28 = sphi 0, %s25
    %s40 = sphi 0, %s40
    %s42 = sphi 0, %s40
    %s43 = sphi 0, %s42
    %s57 = sphi 0, %s43
    %s65 = sphi 0, %s67
    %s68 = sphi 0, %s65
    %s69 = sphi 0, %s68
    %s85 = sphi 0, %s69
    %s95 = sphi 0, %s97
    %s98 = sphi 0, %s95
    %s99 = sphi 0, %s98
    %s115 = sphi 0, %s99
    %s125 = sphi 0, %s127
    %s128 = sphi 0, %s125
    %s129 = sphi 0, %s128
    %s145 = sphi 0, %s129
    %s149 = sphi 0, %s149
    %s151 = sphi 0, %s149
    %s152 = sphi 0, %s151
    %s166 = sphi 0, %s152
    %s170 = sphi 0, %s170
    %s172 = sphi 0, %s170
    %s173 = sphi 0, %s172
    %s187 = sphi 0, %s173
    %s197 = sphi 0, %s199
    %s200 = sphi 0, %s197
    %s201 = sphi 0, %s200
    %s217 = sphi 0, %s201
  $region4: #{senet_bottleneck_pallas.5} parent=0 // loop_header_branch
    %16 = sbr.rel (%p14) target = $region8
  $region5: #{senet_bottleneck_pallas.5} parent=0 // loop_body
    %s18 = ssub.s32 %s13, 1
    %s19 = ssub.s32 %s13, 2
    %s29 = sadd.s32 1, %s22
    %p30 = scmp.ge.s32.totalorder %s29, 1
    %s31 = scalar_select %p30, 0, %s29
    %s32 = sadd.s32 1, %s21
    %s33 = scalar_select %p30, %s32, %s21
    %p34 = scmp.ge.s32.totalorder %s33, 8
    %s35 = scalar_select %p34, 0, %s33
    %s36 = sadd.s32 1, %s20
    %s37 = scalar_select %p34, %s36, %s20
    %p38 = scmp.ge.s32.totalorder %s37, 2
    %s39 = scalar_select %p38, 0, %s37
    %s41 = sadd.s32 %s40, 1
    %p44 = scmp.eq.s32.totalorder %s13, 15
    %p45 = scmp.ne.s32.totalorder %s40, %s42
    %p46 = scmp.eq.s32.totalorder %s13, 0
    %p47 = por %p45, %p46
    %p48 = scmp.ne.s32.totalorder %s40, %s42
    %p49 = scmp.eq.s32.totalorder %s18, 15
    %p50 = por %p48, %p49
    %p51 = scmp.ne.s32.totalorder %s42, %s43
    %p52 = scmp.eq.s32.totalorder %s18, 0
    %p53 = por %p51, %p52
    %p54 = scmp.ne.s32.totalorder %s42, %s43
    %p55 = scmp.eq.s32.totalorder %s19, 15
    %p56 = por %p54, %p55
    %p58 = scmp.ne.s32.totalorder %s43, %s57
    %p59 = scmp.eq.s32.totalorder %s19, 0
    %p60 = por %p58, %p59
    %s61 = ssub.s32 %s20, %s39
    %s62 = ssub.s32 %s21, %s35
    %s63 = sor.u32 %s61, %s62
    %p64 = scmp.eq.s32.totalorder %s63, 0
    %s66 = sadd.s32 %s65, 1
    %s67 = scalar_select %p64, %s65, %s66
    %p70 = pneg %p64
    %p71 = scmp.eq.s32.totalorder %s13, 15
    %p72 = por %p70, %p71
    %p73 = scmp.ne.s32.totalorder %s65, %s68
    %p74 = scmp.eq.s32.totalorder %s13, 0
    %p75 = por %p73, %p74
    %p76 = scmp.ne.s32.totalorder %s65, %s68
    %p77 = scmp.eq.s32.totalorder %s18, 15
    %p78 = por %p76, %p77
    %p79 = scmp.ne.s32.totalorder %s68, %s69
    %p80 = scmp.eq.s32.totalorder %s18, 0
    %p81 = por %p79, %p80
    %p82 = scmp.ne.s32.totalorder %s68, %s69
    %p83 = scmp.eq.s32.totalorder %s19, 15
    %p84 = por %p82, %p83
    %p86 = scmp.ne.s32.totalorder %s69, %s85
    %p87 = scmp.eq.s32.totalorder %s19, 0
    %p88 = por %p86, %p87
    %s89 = sadd.s32 %s21, 1
    %s90 = sadd.s32 %s35, 1
    %s91 = ssub.s32 %s20, %s39
    %s92 = ssub.s32 %s89, %s90
    %s93 = sor.u32 %s91, %s92
    %p94 = scmp.eq.s32.totalorder %s93, 0
    %s96 = sadd.s32 %s95, 1
    %s97 = scalar_select %p94, %s95, %s96
    %p100 = pneg %p94
    %p101 = scmp.eq.s32.totalorder %s13, 15
    %p102 = por %p100, %p101
    %p103 = scmp.ne.s32.totalorder %s95, %s98
    %p104 = scmp.eq.s32.totalorder %s13, 0
    %p105 = por %p103, %p104
    %p106 = scmp.ne.s32.totalorder %s95, %s98
    %p107 = scmp.eq.s32.totalorder %s18, 15
    %p108 = por %p106, %p107
    %p109 = scmp.ne.s32.totalorder %s98, %s99
    %p110 = scmp.eq.s32.totalorder %s18, 0
    %p111 = por %p109, %p110
    %p112 = scmp.ne.s32.totalorder %s98, %s99
    %p113 = scmp.eq.s32.totalorder %s19, 15
    %p114 = por %p112, %p113
    %p116 = scmp.ne.s32.totalorder %s99, %s115
    %p117 = scmp.eq.s32.totalorder %s19, 0
    %p118 = por %p116, %p117
    %s119 = sadd.s32 %s21, 2
    %s120 = sadd.s32 %s35, 2
    %s121 = ssub.s32 %s20, %s39
    %s122 = ssub.s32 %s119, %s120
    %s123 = sor.u32 %s121, %s122
    %p124 = scmp.eq.s32.totalorder %s123, 0
    %s126 = sadd.s32 %s125, 1
    %s127 = scalar_select %p124, %s125, %s126
    %p130 = pneg %p124
    %p131 = scmp.eq.s32.totalorder %s13, 15
    %p132 = por %p130, %p131
    %p133 = scmp.ne.s32.totalorder %s125, %s128
    %p134 = scmp.eq.s32.totalorder %s13, 0
    %p135 = por %p133, %p134
    %p136 = scmp.ne.s32.totalorder %s125, %s128
    %p137 = scmp.eq.s32.totalorder %s18, 15
    %p138 = por %p136, %p137
    %p139 = scmp.ne.s32.totalorder %s128, %s129
    %p140 = scmp.eq.s32.totalorder %s18, 0
    %p141 = por %p139, %p140
    %p142 = scmp.ne.s32.totalorder %s128, %s129
    %p143 = scmp.eq.s32.totalorder %s19, 15
    %p144 = por %p142, %p143
    %p146 = scmp.ne.s32.totalorder %s129, %s145
    %p147 = scmp.eq.s32.totalorder %s19, 0
    %p148 = por %p146, %p147
    %s150 = sadd.s32 %s149, 1
    %p153 = scmp.eq.s32.totalorder %s13, 15
    %p154 = scmp.ne.s32.totalorder %s149, %s151
    %p155 = scmp.eq.s32.totalorder %s13, 0
    %p156 = por %p154, %p155
    %p157 = scmp.ne.s32.totalorder %s149, %s151
    %p158 = scmp.eq.s32.totalorder %s18, 15
    %p159 = por %p157, %p158
    %p160 = scmp.ne.s32.totalorder %s151, %s152
    %p161 = scmp.eq.s32.totalorder %s18, 0
    %p162 = por %p160, %p161
    %p163 = scmp.ne.s32.totalorder %s151, %s152
    %p164 = scmp.eq.s32.totalorder %s19, 15
    %p165 = por %p163, %p164
    %p167 = scmp.ne.s32.totalorder %s152, %s166
    %p168 = scmp.eq.s32.totalorder %s19, 0
    %p169 = por %p167, %p168
    %s171 = sadd.s32 %s170, 1
    %p174 = scmp.eq.s32.totalorder %s13, 15
    %p175 = scmp.ne.s32.totalorder %s170, %s172
    %p176 = scmp.eq.s32.totalorder %s13, 0
    %p177 = por %p175, %p176
    %p178 = scmp.ne.s32.totalorder %s170, %s172
    %p179 = scmp.eq.s32.totalorder %s18, 15
    %p180 = por %p178, %p179
    %p181 = scmp.ne.s32.totalorder %s172, %s173
    %p182 = scmp.eq.s32.totalorder %s18, 0
    %p183 = por %p181, %p182
    %p184 = scmp.ne.s32.totalorder %s172, %s173
    %p185 = scmp.eq.s32.totalorder %s19, 15
    %p186 = por %p184, %p185
    %p188 = scmp.ne.s32.totalorder %s173, %s187
    %p189 = scmp.eq.s32.totalorder %s19, 0
    %p190 = por %p188, %p189
    %s191 = ssub.s32 %s20, %s39
    %s192 = ssub.s32 %s21, %s35
    %s193 = sor.u32 %s191, %s192
    %s194 = ssub.s32 %s22, %s31
    %s195 = sor.u32 %s193, %s194
    %p196 = scmp.eq.s32.totalorder %s195, 0
    %s198 = sadd.s32 %s197, 1
    %s199 = scalar_select %p196, %s197, %s198
    %p202 = pneg %p196
    %p203 = scmp.eq.s32.totalorder %s13, 15
    %p204 = por %p202, %p203
    %p205 = scmp.ne.s32.totalorder %s197, %s200
    %p206 = scmp.eq.s32.totalorder %s13, 0
    %p207 = por %p205, %p206
    %p208 = scmp.ne.s32.totalorder %s197, %s200
    %p209 = scmp.eq.s32.totalorder %s18, 15
    %p210 = por %p208, %p209
    %p211 = scmp.ne.s32.totalorder %s200, %s201
    %p212 = scmp.eq.s32.totalorder %s18, 0
    %p213 = por %p211, %p212
    %p214 = scmp.ne.s32.totalorder %s200, %s201
    %p215 = scmp.eq.s32.totalorder %s19, 15
    %p216 = por %p214, %p215
    %p218 = scmp.ne.s32.totalorder %s201, %s217
    %p219 = scmp.eq.s32.totalorder %s19, 0
    %p220 = por %p218, %p219
    %p221 = scmp.le.s32.totalorder 1, %s13
    %p222 = scmp.lt.s32.totalorder %s13, 17
    %p223 = pnand %p221, %p222
    %p224 = pneg %p223
    // Predicated region
    $region9: #{senet_bottleneck_pallas.5} parent=5 // pred_check
      _
    $region10: #{senet_bottleneck_pallas.5} parent=5 // pred_check_branch
      %226 = sbr.rel (%p223) target = $region12
    $region11: #{senet_bottleneck_pallas.5} parent=5 // pred_region
      %s227 = ssub.s32 %s13, 1
      // Predicated region
      $region13: #{senet_bottleneck_pallas.5} parent=11 // pred_check
        %p228 = pneg %p53
      $region14: #{senet_bottleneck_pallas.5} parent=11 // pred_check_branch
        %230 = sbr.rel (%p228) target = $region16
      $region15: #{senet_bottleneck_pallas.5} parent=11 // pred_region
        _
      $region16: #{senet_bottleneck_pallas.5} parent=11 // pred_fallthru
        _
      // Predicated region
      $region17: #{senet_bottleneck_pallas.5} parent=11 // pred_check
        %p231 = pneg %p162
      $region18: #{senet_bottleneck_pallas.5} parent=11 // pred_check_branch
        %233 = sbr.rel (%p231) target = $region20
      $region19: #{senet_bottleneck_pallas.5} parent=11 // pred_region
        _
      $region20: #{senet_bottleneck_pallas.5} parent=11 // pred_fallthru
        _
      // Predicated region
      $region21: #{senet_bottleneck_pallas.5} parent=11 // pred_check
        %p234 = pneg %p183
      $region22: #{senet_bottleneck_pallas.5} parent=11 // pred_check_branch
        %236 = sbr.rel (%p234) target = $region24
      $region23: #{senet_bottleneck_pallas.5} parent=11 // pred_region
        _
      $region24: #{senet_bottleneck_pallas.5} parent=11 // pred_fallthru
        _
    $region12: #{senet_bottleneck_pallas.5} parent=5 // pred_fallthru
      _
    %p237 = scmp.lt.s32.totalorder %s13, 16
    // Predicated region
    $region25: #{senet_bottleneck_pallas.5} parent=5 // pred_check
      %p238 = pneg %p237
    $region26: #{senet_bottleneck_pallas.5} parent=5 // pred_check_branch
      %240 = sbr.rel (%p238) target = $region28
    $region27: #{senet_bottleneck_pallas.5} parent=5 // pred_region
      // Predicated region
      $region29: #{senet_bottleneck_pallas.5} parent=27 // pred_check
        %p241 = pneg %p75
      $region30: #{senet_bottleneck_pallas.5} parent=27 // pred_check_branch
        %243 = sbr.rel (%p241) target = $region32
      $region31: #{senet_bottleneck_pallas.5} parent=27 // pred_region
        %p244 = scmp.lt.s32.totalorder %s20, 1
        %s245 = scalar_select %p244, %s20, 1
        %p246 = scmp.lt.s32.totalorder %s21, 9
        %s247 = scalar_select %p246, %s21, 9
        %s248 = smul.addr %s247, 13
        %s249 = smul.addr %s245, 130
        %s250 = sadd.s32 %s248, %s249
        %s251 = smul.addr %s250, 4
        %s252 = scalar_lea.vmem %s1, %s251
      $region32: #{senet_bottleneck_pallas.5} parent=27 // pred_fallthru
        _
      // Predicated region
      $region33: #{senet_bottleneck_pallas.5} parent=27 // pred_check
        %p253 = pneg %p105
      $region34: #{senet_bottleneck_pallas.5} parent=27 // pred_check_branch
        %255 = sbr.rel (%p253) target = $region36
      $region35: #{senet_bottleneck_pallas.5} parent=27 // pred_region
        %s256 = sadd.s32 %s21, 1
        %p257 = scmp.lt.s32.totalorder %s20, 1
        %s258 = scalar_select %p257, %s20, 1
        %p259 = scmp.lt.s32.totalorder %s256, 9
        %s260 = scalar_select %p259, %s256, 9
        %s261 = smul.addr %s260, 13
        %s262 = smul.addr %s258, 130
        %s263 = sadd.s32 %s261, %s262
        %s264 = smul.addr %s263, 4
        %s265 = scalar_lea.vmem %s2, %s264
        %s266 = sadd.s32 %s21, 1
      $region36: #{senet_bottleneck_pallas.5} parent=27 // pred_fallthru
        _
      // Predicated region
      $region37: #{senet_bottleneck_pallas.5} parent=27 // pred_check
        %p267 = pneg %p135
      $region38: #{senet_bottleneck_pallas.5} parent=27 // pred_check_branch
        %269 = sbr.rel (%p267) target = $region40
      $region39: #{senet_bottleneck_pallas.5} parent=27 // pred_region
        %s270 = sadd.s32 %s21, 2
        %p271 = scmp.lt.s32.totalorder %s20, 1
        %s272 = scalar_select %p271, %s20, 1
        %p273 = scmp.lt.s32.totalorder %s270, 9
        %s274 = scalar_select %p273, %s270, 9
        %s275 = smul.addr %s274, 13
        %s276 = smul.addr %s272, 130
        %s277 = sadd.s32 %s275, %s276
        %s278 = smul.addr %s277, 4
        %s279 = scalar_lea.vmem %s3, %s278
        %s280 = sadd.s32 %s21, 2
      $region40: #{senet_bottleneck_pallas.5} parent=27 // pred_fallthru
        _
    $region28: #{senet_bottleneck_pallas.5} parent=5 // pred_fallthru
      _
    %p281 = scmp.le.s32.totalorder 1, %s13
    %p282 = scmp.lt.s32.totalorder %s13, 17
    %p283 = pnand %p281, %p282
    %p284 = pneg %p283
    // Predicated region
    $region41: #{senet_bottleneck_pallas.5} parent=5 // pred_check
      _
    $region42: #{senet_bottleneck_pallas.5} parent=5 // pred_check_branch
      %286 = sbr.rel (%p283) target = $region44
    $region43: #{senet_bottleneck_pallas.5} parent=5 // pred_region
      %s287 = ssub.s32 %s13, 1
      %p288 = pneg %p53
      %p289 = pneg %p50
      %p290 = scmp.lt.s32.totalorder %s23, 1
      %s291 = scalar_select %p290, %s23, 1
      %p292 = scmp.lt.s32.totalorder %s24, 9
      %s293 = scalar_select %p292, %s24, 9
      %s294 = smul.addr %s293, 13
      %s295 = smul.addr %s291, 130
      %s296 = sadd.s32 %s294, %s295
      %s297 = smul.addr %s296, 4
      %s298 = scalar_lea.vmem %s1, %s297
      %p299 = pneg %p81
      %p300 = pneg %p78
      %s301 = sadd.s32 %s24, 1
      %p302 = scmp.lt.s32.totalorder %s23, 1
      %s303 = scalar_select %p302, %s23, 1
      %p304 = scmp.lt.s32.totalorder %s301, 9
      %s305 = scalar_select %p304, %s301, 9
      %s306 = smul.addr %s305, 13
      %s307 = smul.addr %s303, 130
      %s308 = sadd.s32 %s306, %s307
      %s309 = smul.addr %s308, 4
      %s310 = scalar_lea.vmem %s2, %s309
      %p311 = pneg %p111
      %p312 = pneg %p108
      %s313 = sadd.s32 %s24, 2
      %p314 = scmp.lt.s32.totalorder %s23, 1
      %s315 = scalar_select %p314, %s23, 1
      %p316 = scmp.lt.s32.totalorder %s313, 9
      %s317 = scalar_select %p316, %s313, 9
      %s318 = smul.addr %s317, 13
      %s319 = smul.addr %s315, 130
      %s320 = sadd.s32 %s318, %s319
      %s321 = smul.addr %s320, 4
      %s322 = scalar_lea.vmem %s3, %s321
      %p323 = pneg %p141
      %p324 = pneg %p138
      %p325 = pneg %p162
      %p326 = pneg %p159
      %p327 = pneg %p183
      %p328 = pneg %p180
      %p329 = pneg %p213
      %p330 = pneg %p210
      %s331 = smul.u32 8, %s25
      %p332 = scmp.lt.s32.totalorder %s23, 1
      %s333 = scalar_select %p332, %s23, 1
      %p334 = scmp.lt.s32.totalorder %s24, 7
      %s335 = scalar_select %p334, %s24, 7
      %p336 = scmp.lt.s32.totalorder %s331, 7
      %s337 = scalar_select %p336, %s331, 7
      %s338 = smul.addr %s335, 8
      %s339 = sadd.s32 %s337, %s338
      %s340 = smul.addr %s333, 64
      %s341 = sadd.s32 %s339, %s340
      %s342 = smul.addr %s341, 4
      %s343 = scalar_lea.vmem %s6, %s342
      %p344 = scmp.lt.s32.totalorder %s23, 1
      %s345 = scalar_select %p344, %s23, 1
      %p346 = scmp.lt.s32.totalorder %s24, 9
      %s347 = scalar_select %p346, %s24, 9
      %s348 = smul.addr %s347, 13
      %s349 = smul.addr %s345, 130
      %s350 = sadd.s32 %s348, %s349
      %s351 = smul.addr %s350, 4
      %s352 = scalar_lea.vmem %s1, %s351
      %s353 = sadd.s32 %s24, 1
      %p354 = scmp.lt.s32.totalorder %s23, 1
      %s355 = scalar_select %p354, %s23, 1
      %p356 = scmp.lt.s32.totalorder %s353, 9
      %s357 = scalar_select %p356, %s353, 9
      %s358 = smul.addr %s357, 13
      %s359 = smul.addr %s355, 130
      %s360 = sadd.s32 %s358, %s359
      %s361 = smul.addr %s360, 4
      %s362 = scalar_lea.vmem %s2, %s361
      %s363 = sadd.s32 %s24, 1
      %s364 = sadd.s32 %s24, 2
      %p365 = scmp.lt.s32.totalorder %s23, 1
      %s366 = scalar_select %p365, %s23, 1
      %p367 = scmp.lt.s32.totalorder %s364, 9
      %s368 = scalar_select %p367, %s364, 9
      %s369 = smul.addr %s368, 13
      %s370 = smul.addr %s366, 130
      %s371 = sadd.s32 %s369, %s370
      %s372 = smul.addr %s371, 4
      %s373 = scalar_lea.vmem %s3, %s372
      %s374 = sadd.s32 %s24, 2
      %s375 = smul.u32 8, %s25
      %p376 = scmp.lt.s32.totalorder %s23, 1
      %s377 = scalar_select %p376, %s23, 1
      %p378 = scmp.lt.s32.totalorder %s24, 7
      %s379 = scalar_select %p378, %s24, 7
      %p380 = scmp.lt.s32.totalorder %s375, 7
      %s381 = scalar_select %p380, %s375, 7
      %s382 = smul.addr %s379, 8
      %s383 = sadd.s32 %s381, %s382
      %s384 = smul.addr %s377, 64
      %s385 = sadd.s32 %s383, %s384
      %s386 = smul.addr %s385, 4
      %s387 = scalar_lea.vmem %s6, %s386
      %s388 = smul.u32 8, %s25
      %v392 = vlaneseq
      %v393 = vshrl.u32 %v392, 7
      %v394 = vadd.s32 %v393, 8
      %v395 = vadd.s32 %v393, 16
      %v396 = vadd.s32 %v393, 24
      %v397 = vadd.s32 %v393, 32
      %v398 = vadd.s32 %v393, 40
      %v399 = vadd.s32 %v393, 48
      %v400 = vadd.s32 %v393, 56
      %vm401 = vcmp.lt.s32.totalorder %v393, 0
      %v402 = vsub.s32 0, %v393
      %v403 = vsel %vm401, %v402, %v393
      %v404 = vshrl.u32 %v403, 3
      %v405 = vand.u32 %v403, 7
      %v406 = vsub.s32 0, %v405
      %v407 = vsel %vm401, %v406, %v405
      %vm408 = vcmp.lt.s32.totalorder %v394, 0
      %v409 = vsub.s32 0, %v394
      %v410 = vsel %vm408, %v409, %v394
      %v411 = vshrl.u32 %v410, 3
      %v412 = vand.u32 %v410, 7
      %v413 = vsub.s32 0, %v412
      %v414 = vsel %vm408, %v413, %v412
      %vm415 = vcmp.lt.s32.totalorder %v395, 0
      %v416 = vsub.s32 0, %v395
      %v417 = vsel %vm415, %v416, %v395
      %v418 = vshrl.u32 %v417, 3
      %v419 = vand.u32 %v417, 7
      %v420 = vsub.s32 0, %v419
      %v421 = vsel %vm415, %v420, %v419
      %vm422 = vcmp.lt.s32.totalorder %v396, 0
      %v423 = vsub.s32 0, %v396
      %v424 = vsel %vm422, %v423, %v396
      %v425 = vshrl.u32 %v424, 3
      %v426 = vand.u32 %v424, 7
      %v427 = vsub.s32 0, %v426
      %v428 = vsel %vm422, %v427, %v426
      %vm429 = vcmp.lt.s32.totalorder %v397, 0
      %v430 = vsub.s32 0, %v397
      %v431 = vsel %vm429, %v430, %v397
      %v432 = vshrl.u32 %v431, 3
      %v433 = vand.u32 %v431, 7
      %v434 = vsub.s32 0, %v433
      %v435 = vsel %vm429, %v434, %v433
      %vm436 = vcmp.lt.s32.totalorder %v398, 0
      %v437 = vsub.s32 0, %v398
      %v438 = vsel %vm436, %v437, %v398
      %v439 = vshrl.u32 %v438, 3
      %v440 = vand.u32 %v438, 7
      %v441 = vsub.s32 0, %v440
      %v442 = vsel %vm436, %v441, %v440
      %vm443 = vcmp.lt.s32.totalorder %v399, 0
      %v444 = vsub.s32 0, %v399
      %v445 = vsel %vm443, %v444, %v399
      %v446 = vshrl.u32 %v445, 3
      %v447 = vand.u32 %v445, 7
      %v448 = vsub.s32 0, %v447
      %v449 = vsel %vm443, %v448, %v447
      %vm450 = vcmp.lt.s32.totalorder %v400, 0
      %v451 = vsub.s32 0, %v400
      %v452 = vsel %vm450, %v451, %v400
      %v453 = vshrl.u32 %v452, 3
      %v454 = vand.u32 %v452, 7
      %v455 = vsub.s32 0, %v454
      %v456 = vsel %vm450, %v455, %v454
      %vm457 = vcmp.ne.s32.totalorder %v407, 0
      %vm458 = vcmp.ne.s32.totalorder %v414, 0
      %vm459 = vcmp.ne.s32.totalorder %v421, 0
      %vm460 = vcmp.ne.s32.totalorder %v428, 0
      %vm461 = vcmp.ne.s32.totalorder %v435, 0
      %vm462 = vcmp.ne.s32.totalorder %v442, 0
      %vm463 = vcmp.ne.s32.totalorder %v449, 0
      %vm464 = vcmp.ne.s32.totalorder %v456, 0
      %vm465 = vcmp.lt.s32.totalorder %v407, 0
      %vm466 = vcmp.lt.s32.totalorder %v414, 0
      %vm467 = vcmp.lt.s32.totalorder %v421, 0
      %vm468 = vcmp.lt.s32.totalorder %v428, 0
      %vm469 = vcmp.lt.s32.totalorder %v435, 0
      %vm470 = vcmp.lt.s32.totalorder %v442, 0
      %vm471 = vcmp.lt.s32.totalorder %v449, 0
      %vm472 = vcmp.lt.s32.totalorder %v456, 0
      %vm473 = vmand %vm465, %vm457
      %vm474 = vmand %vm466, %vm458
      %vm475 = vmand %vm467, %vm459
      %vm476 = vmand %vm468, %vm460
      %vm477 = vmand %vm469, %vm461
      %vm478 = vmand %vm470, %vm462
      %vm479 = vmand %vm471, %vm463
      %vm480 = vmand %vm472, %vm464
      %v481 = vadd.s32 %v407, 8
      %v482 = vadd.s32 %v414, 8
      %v483 = vadd.s32 %v421, 8
      %v484 = vadd.s32 %v428, 8
      %v485 = vadd.s32 %v435, 8
      %v486 = vadd.s32 %v442, 8
      %v487 = vadd.s32 %v449, 8
      %v488 = vadd.s32 %v456, 8
      %v489 = vsel %vm473, %v481, %v407
      %v490 = vsel %vm474, %v482, %v414
      %v491 = vsel %vm475, %v483, %v421
      %v492 = vsel %vm476, %v484, %v428
      %v493 = vsel %vm477, %v485, %v435
      %v494 = vsel %vm478, %v486, %v442
      %v495 = vsel %vm479, %v487, %v449
      %v496 = vsel %vm480, %v488, %v456
      %vm497 = vcmp.ne.s32.totalorder %v489, 0
      %vm498 = vcmp.ne.s32.totalorder %v490, 0
      %vm499 = vcmp.ne.s32.totalorder %v491, 0
      %vm500 = vcmp.ne.s32.totalorder %v492, 0
      %vm501 = vcmp.ne.s32.totalorder %v493, 0
      %vm502 = vcmp.ne.s32.totalorder %v494, 0
      %vm503 = vcmp.ne.s32.totalorder %v495, 0
      %vm504 = vcmp.ne.s32.totalorder %v496, 0
      %vm505 = vcmp.ne.s32.totalorder %v489, 7
      %vm506 = vcmp.ne.s32.totalorder %v490, 7
      %vm507 = vcmp.ne.s32.totalorder %v491, 7
      %vm508 = vcmp.ne.s32.totalorder %v492, 7
      %vm509 = vcmp.ne.s32.totalorder %v493, 7
      %vm510 = vcmp.ne.s32.totalorder %v494, 7
      %vm511 = vcmp.ne.s32.totalorder %v495, 7
      %vm512 = vcmp.ne.s32.totalorder %v496, 7
      %v513 = vld [vmem:[%s352] sm:$0x8]
      %v514 = vld [vmem:[%s352 + $0x4] sm:$0xf]
      %v515 = vld [vmem:[%s352 + $0x8] sm:$0xf]
      %v516 = vld [vmem:[%s352 + $0xc] sm:$0xf]
      %v517 = vld [vmem:[%s352 + $0x10] sm:$0xf]
      %v518 = vld [vmem:[%s352 + $0x14] sm:$0xf]
      %v519 = vld [vmem:[%s352 + $0x18] sm:$0xf]
      %v520 = vld [vmem:[%s352 + $0x1c] sm:$0xf]
      %v521 = vld [vmem:[%s352 + $0x20] sm:$0xf]
      %v522 = vsel %vm497, 1, 0
      %v523 = vsel %vm498, 1, 0
      %v524 = vsel %vm499, 1, 0
      %v525 = vsel %vm500, 1, 0
      %v526 = vsel %vm501, 1, 0
      %v527 = vsel %vm502, 1, 0
      %v528 = vsel %vm503, 1, 0
      %v529 = vsel %vm504, 1, 0
      %vm530 = vcmp.eq.s32.totalorder %v522, 1
      %vm531 = vcmp.eq.s32.totalorder %v523, 1
      %vm532 = vcmp.eq.s32.totalorder %v524, 1
      %vm533 = vcmp.eq.s32.totalorder %v525, 1
      %vm534 = vcmp.eq.s32.totalorder %v526, 1
      %vm535 = vcmp.eq.s32.totalorder %v527, 1
      %vm536 = vcmp.eq.s32.totalorder %v528, 1
      %vm537 = vcmp.eq.s32.totalorder %v529, 1
      %vm538 = vmpackc.low %vm530, %vm530
      %vm539 = vmpackc.low %vm531, %vm531
      %vm540 = vmpackc.low %vm532, %vm532
      %vm541 = vmpackc.low %vm533, %vm533
      %vm542 = vmpackc.low %vm534, %vm534
      %vm543 = vmpackc.low %vm535, %vm535
      %vm544 = vmpackc.low %vm536, %vm536
      %vm545 = vmpackc.low %vm537, %vm537
      %v546 = vsel %vm538, 65537, 0
      %v547 = vsel %vm539, 65537, 0
      %v548 = vsel %vm540, 65537, 0
      %v549 = vsel %vm541, 65537, 0
      %v550 = vsel %vm542, 65537, 0
      %v551 = vsel %vm543, 65537, 0
      %v552 = vsel %vm544, 65537, 0
      %v553 = vsel %vm545, 65537, 0
      %vm554 = vsmask.f32 3328
      %vm555 = vsmask.f32 7440
      %vm556 = vmor %vm554, %vm555
      %v558 = vshll.u32 %v546, 16
      %v560 = vrot.slane %v558, 5
      %v561 = vshrl.u32 %v546, 16
      %v563 = vrot.slane %v561, 4
      %v564 = vor.u32 %v563, %v560
      %v565 = vrot.slane %v564, 4
      %v567 = vshll.u32 %v547, 16
      %v569 = vrot.slane %v567, 5
      %v570 = vsel %vm556, %v565, %v569
      %v571 = vshrl.u32 %v547, 16
      %v573 = vrot.slane %v571, 4
      %v574 = vor.u32 %v573, %v569
      %v575 = vrot.slane %v574, 4
      %v577 = vshll.u32 %v548, 16
      %v579 = vrot.slane %v577, 5
      %v580 = vsel %vm556, %v575, %v579
      %v581 = vshrl.u32 %v548, 16
      %v583 = vrot.slane %v581, 4
      %v584 = vor.u32 %v583, %v579
      %v585 = vrot.slane %v584, 4
      %v587 = vshll.u32 %v549, 16
      %v589 = vrot.slane %v587, 5
      %v590 = vsel %vm556, %v585, %v589
      %v591 = vshrl.u32 %v549, 16
      %v593 = vrot.slane %v591, 4
      %v594 = vor.u32 %v593, %v589
      %v595 = vrot.slane %v594, 4
      %v597 = vshll.u32 %v550, 16
      %v599 = vrot.slane %v597, 5
      %v600 = vsel %vm556, %v595, %v599
      %v601 = vshrl.u32 %v550, 16
      %v603 = vrot.slane %v601, 4
      %v604 = vor.u32 %v603, %v599
      %v605 = vrot.slane %v604, 4
      %v607 = vshll.u32 %v551, 16
      %v609 = vrot.slane %v607, 5
      %v610 = vsel %vm556, %v605, %v609
      %v611 = vshrl.u32 %v551, 16
      %v613 = vrot.slane %v611, 4
      %v614 = vor.u32 %v613, %v609
      %v615 = vrot.slane %v614, 4
      %v617 = vshll.u32 %v552, 16
      %v619 = vrot.slane %v617, 5
      %v620 = vsel %vm556, %v615, %v619
      %v621 = vshrl.u32 %v552, 16
      %v623 = vrot.slane %v621, 4
      %v624 = vor.u32 %v623, %v619
      %v625 = vrot.slane %v624, 4
      %v627 = vshll.u32 %v553, 16
      %v629 = vrot.slane %v627, 5
      %v630 = vsel %vm556, %v625, %v629
      %v631 = vshrl.u32 %v553, 16
      %v633 = vrot.slane %v631, 4
      %v634 = vor.u32 %v633, %v629
      %v635 = vrot.slane %v634, 4
      %vm636 = vcmp.ne.s16.totalorder %v560, 0
      %vm637 = vcmp.ne.s16.totalorder %v570, 0
      %vm638 = vcmp.ne.s16.totalorder %v580, 0
      %vm639 = vcmp.ne.s16.totalorder %v590, 0
      %vm640 = vcmp.ne.s16.totalorder %v600, 0
      %vm641 = vcmp.ne.s16.totalorder %v610, 0
      %vm642 = vcmp.ne.s16.totalorder %v620, 0
      %vm643 = vcmp.ne.s16.totalorder %v630, 0
      %vm644 = vcmp.ne.s16.totalorder %v635, 0
      %v645 = vsel %vm636, %v513, 0
      %v646 = vsel %vm637, %v514, 0
      %v647 = vsel %vm638, %v515, 0
      %v648 = vsel %vm639, %v516, 0
      %v649 = vsel %vm640, %v517, 0
      %v650 = vsel %vm641, %v518, 0
      %v651 = vsel %vm642, %v519, 0
      %v652 = vsel %vm643, %v520, 0
      %v653 = vsel %vm644, %v521, 0
      %v654 = vld [vmem:[%s4] sm:$0xf]
      %v655 = vld [vmem:[%s4 + $0x4] sm:$0xf]
      %v656 = vld [vmem:[%s4 + $0x8] sm:$0xf]
      %v657 = vld [vmem:[%s4 + $0xc] sm:$0xf]
      %s658 = scalar_lea.vmem %s4, 16
      %v659 = vld [vmem:[%s658] sm:$0xf]
      %v660 = vld [vmem:[%s658 + $0x4] sm:$0xf]
      %v661 = vld [vmem:[%s658 + $0x8] sm:$0xf]
      %v662 = vld [vmem:[%s658 + $0xc] sm:$0xf]
      %v671 = vunpack.c.l.b16 %v514
      %v672 = vunpack.c.l.b16 %v515
      %v673 = vunpack.c.l.b16 %v516
      %v674 = vunpack.c.l.b16 %v517
      %v675 = vunpack.c.l.b16 %v518
      %v676 = vunpack.c.l.b16 %v519
      %v677 = vunpack.c.l.b16 %v520
      %v678 = vunpack.c.l.b16 %v521
      %v679 = vpack.c.b16 %v672, %v671
      %v680 = vpack.c.b16 %v674, %v673
      %v681 = vpack.c.b16 %v676, %v675
      %v682 = vpack.c.b16 %v678, %v677
      %v687 = vunpack.c.l.b16 %v659
      %v688 = vunpack.c.l.b16 %v660
      %v689 = vunpack.c.l.b16 %v661
      %v690 = vunpack.c.l.b16 %v662
      %v691 = vpack.c.b16 %v688, %v687
      %v692 = vpack.c.b16 %v690, %v689
      %vm695 = vcmask 261120
      %v697 = vsel %vm695, %v679, 0
      %v700 = vsel %vm695, %v680, 0
      %v703 = vsel %vm695, %v681, 0
      %v706 = vsel %vm695, %v682, 0
      %708 = vmatprep.subr.bf16.mxu0 0
      %709 = vmatpush1.bf16.msra.mxu0 0
      %710 = vmatprep.subr.bf16.mxu0 0
      %711 = vmatpush1.bf16.msra.mxu0 0
      %712 = vmatprep.subr.bf16.mxu0 0
      %713 = vmatpush1.bf16.msra.mxu0 0
      %714 = vmatprep.subr.bf16.mxu0 0
      %715 = vmatpush1.bf16.msra.mxu0 0
      %716 = vmatprep.subr.bf16.mxu0 0
      %717 = vmatpush1.bf16.msra.mxu0 0
      %718 = vmatprep.subr.bf16.mxu0 0
      %719 = vmatpush1.bf16.msra.mxu0 0
      %720 = vmatprep.subr.bf16.mxu0 0
      %721 = vmatpush1.bf16.msra.mxu0 %v692
      %722 = vmatprep.subr.bf16.mxu0 0
      %723 = vmatpush1.bf16.msra.mxu0 %v691
      %724 = vmatprep.subr.bf16.mxu0 0
      %725 = vmatpush2.bf16.msra.mxu0 0
      %726 = vmatprep.subr.bf16.mxu0 0
      %727 = vmatpush2.bf16.msra.mxu0 0
      %728 = vmatprep.subr.bf16.mxu0 0
      %729 = vmatpush2.bf16.msra.mxu0 0
      %730 = vmatprep.subr.bf16.mxu0 0
      %731 = vmatpush2.bf16.msra.mxu0 0
      %732 = vmatprep.subr.bf16.mxu0 0
      %733 = vmatpush2.bf16.msra.mxu0 0
      %734 = vmatprep.subr.bf16.mxu0 0
      %735 = vmatpush2.bf16.msra.mxu0 0
      %736 = vmatprep.subr.bf16.mxu0 0
      %737 = vmatpush2.bf16.msra.mxu0 0
      %738 = vmatprep.subr.bf16.mxu0 0
      %739 = vmatpush2.bf16.msra.mxu0 0
      %740 = vmatprep.mubr.bf16.mxu0 0
      %741 = vmatmul.mubr.bf16.gmra.mxu0 %v697
      %v742 = vpop.f32.mrf.mxu0
      %v743 = vadd.f32 0.0, %v742
      %v744 = vpop.f32.mrf.mxu0
      %v745 = vpop.f32.mrf.mxu0
      %v746 = vadd.f32 0.0, %v745
      %v747 = vpop.f32.mrf.mxu0
      %748 = vmatprep.mubr.bf16.mxu0 0
      %749 = vmatmul.mubr.bf16.gmra.mxu0 %v700
      %v750 = vpop.f32.mrf.mxu0
      %v751 = vadd.f32 0.0, %v750
      %v752 = vpop.f32.mrf.mxu0
      %v753 = vpop.f32.mrf.mxu0
      %v754 = vadd.f32 0.0, %v753
      %v755 = vpop.f32.mrf.mxu0
      %756 = vmatprep.mubr.bf16.mxu0 0
      %757 = vmatmul.mubr.bf16.gmra.mxu0 %v703
      %v758 = vpop.f32.mrf.mxu0
      %v759 = vadd.f32 0.0, %v758
      %v760 = vpop.f32.mrf.mxu0
      %v761 = vpop.f32.mrf.mxu0
      %v762 = vadd.f32 0.0, %v761
      %v763 = vpop.f32.mrf.mxu0
      %764 = vmatprep.mubr.bf16.mxu0 0
      %765 = vmatmul.mubr.bf16.gmra.mxu0 %v706
      %v766 = vpop.f32.mrf.mxu0
      %v767 = vadd.f32 0.0, %v766
      %v768 = vpop.f32.mrf.mxu0
      %v769 = vpop.f32.mrf.mxu0
      %v770 = vadd.f32 0.0, %v769
      %v771 = vpop.f32.mrf.mxu0
      %772 = vdwg.mxu0
      %v782 = vunpack.c.l.b16 %v645
      %v783 = vunpack.c.l.b16 %v646
      %v784 = vunpack.c.l.b16 %v647
      %v785 = vunpack.c.l.b16 %v648
      %v786 = vunpack.c.l.b16 %v649
      %v787 = vunpack.c.l.b16 %v650
      %v788 = vunpack.c.l.b16 %v651
      %v789 = vunpack.c.l.b16 %v652
      %v790 = vunpack.c.l.b16 %v653
      %v791 = vpack.c.b16 %v783, %v782
      %v792 = vpack.c.b16 %v785, %v784
      %v793 = vpack.c.b16 %v787, %v786
      %v794 = vpack.c.b16 %v789, %v788
      %v795 = vpack.c.b16 %v790, %v790
      %vm796 = vsmask.f32 4352
      %v798 = vshrl.u32 %v791, 16
      %v800 = vrot.slane %v798, 3
      %v801 = vshll.u32 %v791, 16
      %v803 = vrot.slane %v801, 4
      %v804 = vor.u32 %v800, %v803
      %v806 = vshrl.u32 %v792, 16
      %v808 = vrot.slane %v806, 3
      %v809 = vshll.u32 %v792, 16
      %v811 = vrot.slane %v809, 4
      %v812 = vor.u32 %v808, %v811
      %v813 = vsel %vm796, %v804, %v812
      %v815 = vshrl.u32 %v793, 16
      %v817 = vrot.slane %v815, 3
      %v818 = vshll.u32 %v793, 16
      %v820 = vrot.slane %v818, 4
      %v821 = vor.u32 %v817, %v820
      %v822 = vsel %vm796, %v812, %v821
      %v824 = vshrl.u32 %v794, 16
      %v826 = vrot.slane %v824, 3
      %v827 = vshll.u32 %v794, 16
      %v829 = vrot.slane %v827, 4
      %v830 = vor.u32 %v826, %v829
      %v831 = vsel %vm796, %v821, %v830
      %v833 = vshrl.u32 %v795, 16
      %v835 = vrot.slane %v833, 3
      %v836 = vshll.u32 %v795, 16
      %v838 = vrot.slane %v836, 4
      %v839 = vor.u32 %v835, %v838
      %v840 = vsel %vm796, %v830, %v839
      %v845 = vunpack.c.l.b16 %v654
      %v846 = vunpack.c.l.b16 %v655
      %v847 = vunpack.c.l.b16 %v656
      %v848 = vunpack.c.l.b16 %v657
      %v849 = vpack.c.b16 %v846, %v845
      %v850 = vpack.c.b16 %v848, %v847
      %v854 = vsel %vm695, %v813, 0
      %v857 = vsel %vm695, %v822, 0
      %v860 = vsel %vm695, %v831, 0
      %v863 = vsel %vm695, %v840, 0
      %865 = vmatprep.subr.bf16.mxu0 0
      %866 = vmatpush1.bf16.msra.mxu0 0
      %867 = vmatprep.subr.bf16.mxu0 0
      %868 = vmatpush1.bf16.msra.mxu0 0
      %869 = vmatprep.subr.bf16.mxu0 0
      %870 = vmatpush1.bf16.msra.mxu0 0
      %871 = vmatprep.subr.bf16.mxu0 0
      %872 = vmatpush1.bf16.msra.mxu0 0
      %873 = vmatprep.subr.bf16.mxu0 0
      %874 = vmatpush1.bf16.msra.mxu0 0
      %875 = vmatprep.subr.bf16.mxu0 0
      %876 = vmatpush1.bf16.msra.mxu0 0
      %877 = vmatprep.subr.bf16.mxu0 0
      %878 = vmatpush1.bf16.msra.mxu0 %v850
      %879 = vmatprep.subr.bf16.mxu0 0
      %880 = vmatpush1.bf16.msra.mxu0 %v849
      %881 = vmatprep.subr.bf16.mxu0 0
      %882 = vmatpush2.bf16.msra.mxu0 0
      %883 = vmatprep.subr.bf16.mxu0 0
      %884 = vmatpush2.bf16.msra.mxu0 0
      %885 = vmatprep.subr.bf16.mxu0 0
      %886 = vmatpush2.bf16.msra.mxu0 0
      %887 = vmatprep.subr.bf16.mxu0 0
      %888 = vmatpush2.bf16.msra.mxu0 0
      %889 = vmatprep.subr.bf16.mxu0 0
      %890 = vmatpush2.bf16.msra.mxu0 0
      %891 = vmatprep.subr.bf16.mxu0 0
      %892 = vmatpush2.bf16.msra.mxu0 0
      %893 = vmatprep.subr.bf16.mxu0 0
      %894 = vmatpush2.bf16.msra.mxu0 0
      %895 = vmatprep.subr.bf16.mxu0 0
      %896 = vmatpush2.bf16.msra.mxu0 0
      %897 = vmatprep.mubr.bf16.mxu0 0
      %898 = vmatmul.mubr.bf16.gmra.mxu0 %v854
      %v899 = vpop.f32.mrf.mxu0
      %v900 = vadd.f32 %v743, %v899
      %v901 = vpop.f32.mrf.mxu0
      %v902 = vpop.f32.mrf.mxu0
      %v903 = vadd.f32 %v746, %v902
      %v904 = vpop.f32.mrf.mxu0
      %905 = vmatprep.mubr.bf16.mxu0 0
      %906 = vmatmul.mubr.bf16.gmra.mxu0 %v857
      %v907 = vpop.f32.mrf.mxu0
      %v908 = vadd.f32 %v751, %v907
      %v909 = vpop.f32.mrf.mxu0
      %v910 = vpop.f32.mrf.mxu0
      %v911 = vadd.f32 %v754, %v910
      %v912 = vpop.f32.mrf.mxu0
      %913 = vmatprep.mubr.bf16.mxu0 0
      %914 = vmatmul.mubr.bf16.gmra.mxu0 %v860
      %v915 = vpop.f32.mrf.mxu0
      %v916 = vadd.f32 %v759, %v915
      %v917 = vpop.f32.mrf.mxu0
      %v918 = vpop.f32.mrf.mxu0
      %v919 = vadd.f32 %v762, %v918
      %v920 = vpop.f32.mrf.mxu0
      %921 = vmatprep.mubr.bf16.mxu0 0
      %922 = vmatmul.mubr.bf16.gmra.mxu0 %v863
      %v923 = vpop.f32.mrf.mxu0
      %v924 = vadd.f32 %v767, %v923
      %v925 = vpop.f32.mrf.mxu0
      %v926 = vpop.f32.mrf.mxu0
      %v927 = vadd.f32 %v770, %v926
      %v928 = vpop.f32.mrf.mxu0
      %929 = vdwg.mxu0
      %v930 = vld [vmem:[%s352 + $0x4] sm:$0xf]
      %v931 = vld [vmem:[%s352 + $0x8] sm:$0xf]
      %v932 = vld [vmem:[%s352 + $0xc] sm:$0xf]
      %v933 = vld [vmem:[%s352 + $0x10] sm:$0xf]
      %v934 = vld [vmem:[%s352 + $0x14] sm:$0xf]
      %v935 = vld [vmem:[%s352 + $0x18] sm:$0xf]
      %v936 = vld [vmem:[%s352 + $0x1c] sm:$0xf]
      %v937 = vld [vmem:[%s352 + $0x20] sm:$0xf]
      %v938 = vld [vmem:[%s352 + $0x24] sm:$0x1]
      %v939 = vsel %vm505, 1, 0
      %v940 = vsel %vm506, 1, 0
      %v941 = vsel %vm507, 1, 0
      %v942 = vsel %vm508, 1, 0
      %v943 = vsel %vm509, 1, 0
      %v944 = vsel %vm510, 1, 0
      %v945 = vsel %vm511, 1, 0
      %v946 = vsel %vm512, 1, 0
      %vm947 = vcmp.eq.s32.totalorder %v939, 1
      %vm948 = vcmp.eq.s32.totalorder %v940, 1
      %vm949 = vcmp.eq.s32.totalorder %v941, 1
      %vm950 = vcmp.eq.s32.totalorder %v942, 1
      %vm951 = vcmp.eq.s32.totalorder %v943, 1
      %vm952 = vcmp.eq.s32.totalorder %v944, 1
      %vm953 = vcmp.eq.s32.totalorder %v945, 1
      %vm954 = vcmp.eq.s32.totalorder %v946, 1
      %vm955 = vmpackc.low %vm947, %vm947
      %vm956 = vmpackc.low %vm948, %vm948
      %vm957 = vmpackc.low %vm949, %vm949
      %vm958 = vmpackc.low %vm950, %vm950
      %vm959 = vmpackc.low %vm951, %vm951
      %vm960 = vmpackc.low %vm952, %vm952
      %vm961 = vmpackc.low %vm953, %vm953
      %vm962 = vmpackc.low %vm954, %vm954
      %v963 = vsel %vm955, 65537, 0
      %v964 = vsel %vm956, 65537, 0
      %v965 = vsel %vm957, 65537, 0
      %v966 = vsel %vm958, 65537, 0
      %v967 = vsel %vm959, 65537, 0
      %v968 = vsel %vm960, 65537, 0
      %v969 = vsel %vm961, 65537, 0
      %v970 = vsel %vm962, 65537, 0
      %vm971 = vsmask.f32 256
      %vm972 = vsmask.f32 4368
      %vm973 = vmor %vm971, %vm972
      %v975 = vshrl.u32 %v963, 16
      %v977 = vrot.slane %v975, 7
      %v978 = vshll.u32 %v963, 16
      %v980 = vor.u32 %v977, %v978
      %v981 = vrot.slane %v977, 4
      %v983 = vshrl.u32 %v964, 16
      %v985 = vrot.slane %v983, 7
      %v986 = vshll.u32 %v964, 16
      %v988 = vor.u32 %v985, %v986
      %v989 = vsel %vm973, %v981, %v988
      %v990 = vrot.slane %v985, 4
      %v992 = vshrl.u32 %v965, 16
      %v994 = vrot.slane %v992, 7
      %v995 = vshll.u32 %v965, 16
      %v997 = vor.u32 %v994, %v995
      %v998 = vsel %vm973, %v990, %v997
      %v999 = vrot.slane %v994, 4
      %v1001 = vshrl.u32 %v966, 16
      %v1003 = vrot.slane %v1001, 7
      %v1004 = vshll.u32 %v966, 16
      %v1006 = vor.u32 %v1003, %v1004
      %v1007 = vsel %vm973, %v999, %v1006
      %v1008 = vrot.slane %v1003, 4
      %v1010 = vshrl.u32 %v967, 16
      %v1012 = vrot.slane %v1010, 7
      %v1013 = vshll.u32 %v967, 16
      %v1015 = vor.u32 %v1012, %v1013
      %v1016 = vsel %vm973, %v1008, %v1015
      %v1017 = vrot.slane %v1012, 4
      %v1019 = vshrl.u32 %v968, 16
      %v1021 = vrot.slane %v1019, 7
      %v1022 = vshll.u32 %v968, 16
      %v1024 = vor.u32 %v1021, %v1022
      %v1025 = vsel %vm973, %v1017, %v1024
      %v1026 = vrot.slane %v1021, 4
      %v1028 = vshrl.u32 %v969, 16
      %v1030 = vrot.slane %v1028, 7
      %v1031 = vshll.u32 %v969, 16
      %v1033 = vor.u32 %v1030, %v1031
      %v1034 = vsel %vm973, %v1026, %v1033
      %v1035 = vrot.slane %v1030, 4
      %v1037 = vshrl.u32 %v970, 16
      %v1039 = vrot.slane %v1037, 7
      %v1040 = vshll.u32 %v970, 16
      %v1042 = vor.u32 %v1039, %v1040
      %v1043 = vsel %vm973, %v1035, %v1042
      %v1044 = vrot.slane %v1039, 4
      %vm1045 = vcmp.ne.s16.totalorder %v980, 0
      %vm1046 = vcmp.ne.s16.totalorder %v989, 0
      %vm1047 = vcmp.ne.s16.totalorder %v998, 0
      %vm1048 = vcmp.ne.s16.totalorder %v1007, 0
      %vm1049 = vcmp.ne.s16.totalorder %v1016, 0
      %vm1050 = vcmp.ne.s16.totalorder %v1025, 0
      %vm1051 = vcmp.ne.s16.totalorder %v1034, 0
      %vm1052 = vcmp.ne.s16.totalorder %v1043, 0
      %vm1053 = vcmp.ne.s16.totalorder %v1044, 0
      %v1054 = vsel %vm1045, %v930, 0
      %v1055 = vsel %vm1046, %v931, 0
      %v1056 = vsel %vm1047, %v932, 0
      %v1057 = vsel %vm1048, %v933, 0
      %v1058 = vsel %vm1049, %v934, 0
      %v1059 = vsel %vm1050, %v935, 0
      %v1060 = vsel %vm1051, %v936, 0
      %v1061 = vsel %vm1052, %v937, 0
      %v1062 = vsel %vm1053, %v938, 0
      %s1063 = scalar_lea.vmem %s4, 32
      %v1064 = vld [vmem:[%s1063] sm:$0xf]
      %v1065 = vld [vmem:[%s1063 + $0x4] sm:$0xf]
      %v1066 = vld [vmem:[%s1063 + $0x8] sm:$0xf]
      %v1067 = vld [vmem:[%s1063 + $0xc] sm:$0xf]
      %v1077 = vunpack.c.l.b16 %v1054
      %v1078 = vunpack.c.l.b16 %v1055
      %v1079 = vunpack.c.l.b16 %v1056
      %v1080 = vunpack.c.l.b16 %v1057
      %v1081 = vunpack.c.l.b16 %v1058
      %v1082 = vunpack.c.l.b16 %v1059
      %v1083 = vunpack.c.l.b16 %v1060
      %v1084 = vunpack.c.l.b16 %v1061
      %v1085 = vunpack.c.l.b16 %v1062
      %v1086 = vpack.c.b16 %v1078, %v1077
      %v1087 = vpack.c.b16 %v1080, %v1079
      %v1088 = vpack.c.b16 %v1082, %v1081
      %v1089 = vpack.c.b16 %v1084, %v1083
      %v1090 = vpack.c.b16 %v1085, %v1085
      %vm1091 = vsmask.f32 7424
      %v1093 = vshrl.u32 %v1086, 16
      %v1095 = vshll.u32 %v1086, 16
      %v1097 = vrot.slane %v1095, 1
      %v1098 = vor.u32 %v1093, %v1097
      %v1100 = vshll.u32 %v1087, 16
      %v1102 = vrot.slane %v1100, 1
      %v1103 = vsel %vm1091, %v1098, %v1102
      %v1104 = vshrl.u32 %v1087, 16
      %v1106 = vor.u32 %v1104, %v1102
      %v1108 = vshll.u32 %v1088, 16
      %v1110 = vrot.slane %v1108, 1
      %v1111 = vsel %vm1091, %v1106, %v1110
      %v1112 = vshrl.u32 %v1088, 16
      %v1114 = vor.u32 %v1112, %v1110
      %v1116 = vshll.u32 %v1089, 16
      %v1118 = vrot.slane %v1116, 1
      %v1119 = vsel %vm1091, %v1114, %v1118
      %v1120 = vshrl.u32 %v1089, 16
      %v1122 = vor.u32 %v1120, %v1118
      %v1124 = vshll.u32 %v1090, 16
      %v1126 = vrot.slane %v1124, 1
      %v1127 = vsel %vm1091, %v1122, %v1126
      %v1132 = vunpack.c.l.b16 %v1064
      %v1133 = vunpack.c.l.b16 %v1065
      %v1134 = vunpack.c.l.b16 %v1066
      %v1135 = vunpack.c.l.b16 %v1067
      %v1136 = vpack.c.b16 %v1133, %v1132
      %v1137 = vpack.c.b16 %v1135, %v1134
      %v1141 = vsel %vm695, %v1103, 0
      %v1144 = vsel %vm695, %v1111, 0
      %v1147 = vsel %vm695, %v1119, 0
      %v1150 = vsel %vm695, %v1127, 0
      %1152 = vmatprep.subr.bf16.mxu0 0
      %1153 = vmatpush1.bf16.msra.mxu0 0
      %1154 = vmatprep.subr.bf16.mxu0 0
      %1155 = vmatpush1.bf16.msra.mxu0 0
      %1156 = vmatprep.subr.bf16.mxu0 0
      %1157 = vmatpush1.bf16.msra.mxu0 0
      %1158 = vmatprep.subr.bf16.mxu0 0
      %1159 = vmatpush1.bf16.msra.mxu0 0
      %1160 = vmatprep.subr.bf16.mxu0 0
      %1161 = vmatpush1.bf16.msra.mxu0 0
      %1162 = vmatprep.subr.bf16.mxu0 0
      %1163 = vmatpush1.bf16.msra.mxu0 0
      %1164 = vmatprep.subr.bf16.mxu0 0
      %1165 = vmatpush1.bf16.msra.mxu0 %v1137
      %1166 = vmatprep.subr.bf16.mxu0 0
      %1167 = vmatpush1.bf16.msra.mxu0 %v1136
      %1168 = vmatprep.subr.bf16.mxu0 0
      %1169 = vmatpush2.bf16.msra.mxu0 0
      %1170 = vmatprep.subr.bf16.mxu0 0
      %1171 = vmatpush2.bf16.msra.mxu0 0
      %1172 = vmatprep.subr.bf16.mxu0 0
      %1173 = vmatpush2.bf16.msra.mxu0 0
      %1174 = vmatprep.subr.bf16.mxu0 0
      %1175 = vmatpush2.bf16.msra.mxu0 0
      %1176 = vmatprep.subr.bf16.mxu0 0
      %1177 = vmatpush2.bf16.msra.mxu0 0
      %1178 = vmatprep.subr.bf16.mxu0 0
      %1179 = vmatpush2.bf16.msra.mxu0 0
      %1180 = vmatprep.subr.bf16.mxu0 0
      %1181 = vmatpush2.bf16.msra.mxu0 0
      %1182 = vmatprep.subr.bf16.mxu0 0
      %1183 = vmatpush2.bf16.msra.mxu0 0
      %1184 = vmatprep.mubr.bf16.mxu0 0
      %1185 = vmatmul.mubr.bf16.gmra.mxu0 %v1141
      %v1186 = vpop.f32.mrf.mxu0
      %v1187 = vadd.f32 0.0, %v1186
      %v1188 = vpop.f32.mrf.mxu0
      %v1189 = vpop.f32.mrf.mxu0
      %v1190 = vadd.f32 0.0, %v1189
      %v1191 = vpop.f32.mrf.mxu0
      %1192 = vmatprep.mubr.bf16.mxu0 0
      %1193 = vmatmul.mubr.bf16.gmra.mxu0 %v1144
      %v1194 = vpop.f32.mrf.mxu0
      %v1195 = vadd.f32 0.0, %v1194
      %v1196 = vpop.f32.mrf.mxu0
      %v1197 = vpop.f32.mrf.mxu0
      %v1198 = vadd.f32 0.0, %v1197
      %v1199 = vpop.f32.mrf.mxu0
      %1200 = vmatprep.mubr.bf16.mxu0 0
      %1201 = vmatmul.mubr.bf16.gmra.mxu0 %v1147
      %v1202 = vpop.f32.mrf.mxu0
      %v1203 = vadd.f32 0.0, %v1202
      %v1204 = vpop.f32.mrf.mxu0
      %v1205 = vpop.f32.mrf.mxu0
      %v1206 = vadd.f32 0.0, %v1205
      %v1207 = vpop.f32.mrf.mxu0
      %1208 = vmatprep.mubr.bf16.mxu0 0
      %1209 = vmatmul.mubr.bf16.gmra.mxu0 %v1150
      %v1210 = vpop.f32.mrf.mxu0
      %v1211 = vadd.f32 0.0, %v1210
      %v1212 = vpop.f32.mrf.mxu0
      %v1213 = vpop.f32.mrf.mxu0
      %v1214 = vadd.f32 0.0, %v1213
      %v1215 = vpop.f32.mrf.mxu0
      %1216 = vdwg.mxu0
      %v1217 = vadd.f32 %v900, %v1187
      %v1218 = vadd.f32 %v903, %v1190
      %v1219 = vadd.f32 %v908, %v1195
      %v1220 = vadd.f32 %v911, %v1198
      %v1221 = vadd.f32 %v916, %v1203
      %v1222 = vadd.f32 %v919, %v1206
      %v1223 = vadd.f32 %v924, %v1211
      %v1224 = vadd.f32 %v927, %v1214
      %v1225 = vld [vmem:[%s352 + $0x4] sm:$0x8]
      %v1226 = vld [vmem:[%s352 + $0x24] sm:$0xf]
      %v1227 = vsel %vm636, %v1225, 0
      %v1228 = vsel %vm637, %v931, 0
      %v1229 = vsel %vm638, %v932, 0
      %v1230 = vsel %vm639, %v933, 0
      %v1231 = vsel %vm640, %v934, 0
      %v1232 = vsel %vm641, %v935, 0
      %v1233 = vsel %vm642, %v936, 0
      %v1234 = vsel %vm643, %v937, 0
      %v1235 = vsel %vm644, %v1226, 0
      %s1236 = scalar_lea.vmem %s4, 48
      %v1237 = vld [vmem:[%s1236] sm:$0xf]
      %v1238 = vld [vmem:[%s1236 + $0x4] sm:$0xf]
      %v1239 = vld [vmem:[%s1236 + $0x8] sm:$0xf]
      %v1240 = vld [vmem:[%s1236 + $0xc] sm:$0xf]
      %v1250 = vunpack.c.l.b16 %v1227
      %v1251 = vunpack.c.l.b16 %v1228
      %v1252 = vunpack.c.l.b16 %v1229
      %v1253 = vunpack.c.l.b16 %v1230
      %v1254 = vunpack.c.l.b16 %v1231
      %v1255 = vunpack.c.l.b16 %v1232
      %v1256 = vunpack.c.l.b16 %v1233
      %v1257 = vunpack.c.l.b16 %v1234
      %v1258 = vunpack.c.l.b16 %v1235
      %v1259 = vpack.c.b16 %v1251, %v1250
      %v1260 = vpack.c.b16 %v1253, %v1252
      %v1261 = vpack.c.b16 %v1255, %v1254
      %v1262 = vpack.c.b16 %v1257, %v1256
      %v1263 = vpack.c.b16 %v1258, %v1258
      %v1265 = vshrl.u32 %v1259, 16
      %v1267 = vrot.slane %v1265, 3
      %v1268 = vshll.u32 %v1259, 16
      %v1270 = vrot.slane %v1268, 4
      %v1271 = vor.u32 %v1267, %v1270
      %v1273 = vshrl.u32 %v1260, 16
      %v1275 = vrot.slane %v1273, 3
      %v1276 = vshll.u32 %v1260, 16
      %v1278 = vrot.slane %v1276, 4
      %v1279 = vor.u32 %v1275, %v1278
      %v1280 = vsel %vm796, %v1271, %v1279
      %v1282 = vshrl.u32 %v1261, 16
      %v1284 = vrot.slane %v1282, 3
      %v1285 = vshll.u32 %v1261, 16
      %v1287 = vrot.slane %v1285, 4
      %v1288 = vor.u32 %v1284, %v1287
      %v1289 = vsel %vm796, %v1279, %v1288
      %v1291 = vshrl.u32 %v1262, 16
      %v1293 = vrot.slane %v1291, 3
      %v1294 = vshll.u32 %v1262, 16
      %v1296 = vrot.slane %v1294, 4
      %v1297 = vor.u32 %v1293, %v1296
      %v1298 = vsel %vm796, %v1288, %v1297
      %v1300 = vshrl.u32 %v1263, 16
      %v1302 = vrot.slane %v1300, 3
      %v1303 = vshll.u32 %v1263, 16
      %v1305 = vrot.slane %v1303, 4
      %v1306 = vor.u32 %v1302, %v1305
      %v1307 = vsel %vm796, %v1297, %v1306
      %v1312 = vunpack.c.l.b16 %v1237
      %v1313 = vunpack.c.l.b16 %v1238
      %v1314 = vunpack.c.l.b16 %v1239
      %v1315 = vunpack.c.l.b16 %v1240
      %v1316 = vpack.c.b16 %v1313, %v1312
      %v1317 = vpack.c.b16 %v1315, %v1314
      %v1321 = vsel %vm695, %v1280, 0
      %v1324 = vsel %vm695, %v1289, 0
      %v1327 = vsel %vm695, %v1298, 0
      %v1330 = vsel %vm695, %v1307, 0
      %1332 = vmatprep.subr.bf16.mxu0 0
      %1333 = vmatpush1.bf16.msra.mxu0 0
      %1334 = vmatprep.subr.bf16.mxu0 0
      %1335 = vmatpush1.bf16.msra.mxu0 0
      %1336 = vmatprep.subr.bf16.mxu0 0
      %1337 = vmatpush1.bf16.msra.mxu0 0
      %1338 = vmatprep.subr.bf16.mxu0 0
      %1339 = vmatpush1.bf16.msra.mxu0 0
      %1340 = vmatprep.subr.bf16.mxu0 0
      %1341 = vmatpush1.bf16.msra.mxu0 0
      %1342 = vmatprep.subr.bf16.mxu0 0
      %1343 = vmatpush1.bf16.msra.mxu0 0
      %1344 = vmatprep.subr.bf16.mxu0 0
      %1345 = vmatpush1.bf16.msra.mxu0 %v1317
      %1346 = vmatprep.subr.bf16.mxu0 0
      %1347 = vmatpush1.bf16.msra.mxu0 %v1316
      %1348 = vmatprep.subr.bf16.mxu0 0
      %1349 = vmatpush2.bf16.msra.mxu0 0
      %1350 = vmatprep.subr.bf16.mxu0 0
      %1351 = vmatpush2.bf16.msra.mxu0 0
      %1352 = vmatprep.subr.bf16.mxu0 0
      %1353 = vmatpush2.bf16.msra.mxu0 0
      %1354 = vmatprep.subr.bf16.mxu0 0
      %1355 = vmatpush2.bf16.msra.mxu0 0
      %1356 = vmatprep.subr.bf16.mxu0 0
      %1357 = vmatpush2.bf16.msra.mxu0 0
      %1358 = vmatprep.subr.bf16.mxu0 0
      %1359 = vmatpush2.bf16.msra.mxu0 0
      %1360 = vmatprep.subr.bf16.mxu0 0
      %1361 = vmatpush2.bf16.msra.mxu0 0
      %1362 = vmatprep.subr.bf16.mxu0 0
      %1363 = vmatpush2.bf16.msra.mxu0 0
      %1364 = vmatprep.mubr.bf16.mxu0 0
      %1365 = vmatmul.mubr.bf16.gmra.mxu0 %v1321
      %v1366 = vpop.f32.mrf.mxu0
      %v1367 = vadd.f32 0.0, %v1366
      %v1368 = vpop.f32.mrf.mxu0
      %v1369 = vpop.f32.mrf.mxu0
      %v1370 = vadd.f32 0.0, %v1369
      %v1371 = vpop.f32.mrf.mxu0
      %1372 = vmatprep.mubr.bf16.mxu0 0
      %1373 = vmatmul.mubr.bf16.gmra.mxu0 %v1324
      %v1374 = vpop.f32.mrf.mxu0
      %v1375 = vadd.f32 0.0, %v1374
      %v1376 = vpop.f32.mrf.mxu0
      %v1377 = vpop.f32.mrf.mxu0
      %v1378 = vadd.f32 0.0, %v1377
      %v1379 = vpop.f32.mrf.mxu0
      %1380 = vmatprep.mubr.bf16.mxu0 0
      %1381 = vmatmul.mubr.bf16.gmra.mxu0 %v1327
      %v1382 = vpop.f32.mrf.mxu0
      %v1383 = vadd.f32 0.0, %v1382
      %v1384 = vpop.f32.mrf.mxu0
      %v1385 = vpop.f32.mrf.mxu0
      %v1386 = vadd.f32 0.0, %v1385
      %v1387 = vpop.f32.mrf.mxu0
      %1388 = vmatprep.mubr.bf16.mxu0 0
      %1389 = vmatmul.mubr.bf16.gmra.mxu0 %v1330
      %v1390 = vpop.f32.mrf.mxu0
      %v1391 = vadd.f32 0.0, %v1390
      %v1392 = vpop.f32.mrf.mxu0
      %v1393 = vpop.f32.mrf.mxu0
      %v1394 = vadd.f32 0.0, %v1393
      %v1395 = vpop.f32.mrf.mxu0
      %1396 = vdwg.mxu0
      %v1397 = vadd.f32 %v1217, %v1367
      %v1398 = vadd.f32 %v1218, %v1370
      %v1399 = vadd.f32 %v1219, %v1375
      %v1400 = vadd.f32 %v1220, %v1378
      %v1401 = vadd.f32 %v1221, %v1383
      %v1402 = vadd.f32 %v1222, %v1386
      %v1403 = vadd.f32 %v1223, %v1391
      %v1404 = vadd.f32 %v1224, %v1394
      %s1405 = scalar_lea.vmem %s4, 64
      %v1406 = vld [vmem:[%s1405] sm:$0xf]
      %v1407 = vld [vmem:[%s1405 + $0x4] sm:$0xf]
      %v1408 = vld [vmem:[%s1405 + $0x8] sm:$0xf]
      %v1409 = vld [vmem:[%s1405 + $0xc] sm:$0xf]
      %v1418 = vunpack.c.l.b16 %v931
      %v1419 = vunpack.c.l.b16 %v932
      %v1420 = vunpack.c.l.b16 %v933
      %v1421 = vunpack.c.l.b16 %v934
      %v1422 = vunpack.c.l.b16 %v935
      %v1423 = vunpack.c.l.b16 %v936
      %v1424 = vunpack.c.l.b16 %v937
      %v1425 = vunpack.c.l.b16 %v1226
      %v1426 = vpack.c.b16 %v1419, %v1418
      %v1427 = vpack.c.b16 %v1421, %v1420
      %v1428 = vpack.c.b16 %v1423, %v1422
      %v1429 = vpack.c.b16 %v1425, %v1424
      %v1434 = vunpack.c.l.b16 %v1406
      %v1435 = vunpack.c.l.b16 %v1407
      %v1436 = vunpack.c.l.b16 %v1408
      %v1437 = vunpack.c.l.b16 %v1409
      %v1438 = vpack.c.b16 %v1435, %v1434
      %v1439 = vpack.c.b16 %v1437, %v1436
      %v1443 = vsel %vm695, %v1426, 0
      %v1446 = vsel %vm695, %v1427, 0
      %v1449 = vsel %vm695, %v1428, 0
      %v1452 = vsel %vm695, %v1429, 0
      %1454 = vmatprep.subr.bf16.mxu0 0
      %1455 = vmatpush1.bf16.msra.mxu0 0
      %1456 = vmatprep.subr.bf16.mxu0 0
      %1457 = vmatpush1.bf16.msra.mxu0 0
      %1458 = vmatprep.subr.bf16.mxu0 0
      %1459 = vmatpush1.bf16.msra.mxu0 0
      %1460 = vmatprep.subr.bf16.mxu0 0
      %1461 = vmatpush1.bf16.msra.mxu0 0
      %1462 = vmatprep.subr.bf16.mxu0 0
      %1463 = vmatpush1.bf16.msra.mxu0 0
      %1464 = vmatprep.subr.bf16.mxu0 0
      %1465 = vmatpush1.bf16.msra.mxu0 0
      %1466 = vmatprep.subr.bf16.mxu0 0
      %1467 = vmatpush1.bf16.msra.mxu0 %v1439
      %1468 = vmatprep.subr.bf16.mxu0 0
      %1469 = vmatpush1.bf16.msra.mxu0 %v1438
      %1470 = vmatprep.subr.bf16.mxu0 0
      %1471 = vmatpush2.bf16.msra.mxu0 0
      %1472 = vmatprep.subr.bf16.mxu0 0
      %1473 = vmatpush2.bf16.msra.mxu0 0
      %1474 = vmatprep.subr.bf16.mxu0 0
      %1475 = vmatpush2.bf16.msra.mxu0 0
      %1476 = vmatprep.subr.bf16.mxu0 0
      %1477 = vmatpush2.bf16.msra.mxu0 0
      %1478 = vmatprep.subr.bf16.mxu0 0
      %1479 = vmatpush2.bf16.msra.mxu0 0
      %1480 = vmatprep.subr.bf16.mxu0 0
      %1481 = vmatpush2.bf16.msra.mxu0 0
      %1482 = vmatprep.subr.bf16.mxu0 0
      %1483 = vmatpush2.bf16.msra.mxu0 0
      %1484 = vmatprep.subr.bf16.mxu0 0
      %1485 = vmatpush2.bf16.msra.mxu0 0
      %1486 = vmatprep.mubr.bf16.mxu0 0
      %1487 = vmatmul.mubr.bf16.gmra.mxu0 %v1443
      %v1488 = vpop.f32.mrf.mxu0
      %v1489 = vadd.f32 0.0, %v1488
      %v1490 = vpop.f32.mrf.mxu0
      %v1491 = vpop.f32.mrf.mxu0
      %v1492 = vadd.f32 0.0, %v1491
      %v1493 = vpop.f32.mrf.mxu0
      %1494 = vmatprep.mubr.bf16.mxu0 0
      %1495 = vmatmul.mubr.bf16.gmra.mxu0 %v1446
      %v1496 = vpop.f32.mrf.mxu0
      %v1497 = vadd.f32 0.0, %v1496
      %v1498 = vpop.f32.mrf.mxu0
      %v1499 = vpop.f32.mrf.mxu0
      %v1500 = vadd.f32 0.0, %v1499
      %v1501 = vpop.f32.mrf.mxu0
      %1502 = vmatprep.mubr.bf16.mxu0 0
      %1503 = vmatmul.mubr.bf16.gmra.mxu0 %v1449
      %v1504 = vpop.f32.mrf.mxu0
      %v1505 = vadd.f32 0.0, %v1504
      %v1506 = vpop.f32.mrf.mxu0
      %v1507 = vpop.f32.mrf.mxu0
      %v1508 = vadd.f32 0.0, %v1507
      %v1509 = vpop.f32.mrf.mxu0
      %1510 = vmatprep.mubr.bf16.mxu0 0
      %1511 = vmatmul.mubr.bf16.gmra.mxu0 %v1452
      %v1512 = vpop.f32.mrf.mxu0
      %v1513 = vadd.f32 0.0, %v1512
      %v1514 = vpop.f32.mrf.mxu0
      %v1515 = vpop.f32.mrf.mxu0
      %v1516 = vadd.f32 0.0, %v1515
      %v1517 = vpop.f32.mrf.mxu0
      %1518 = vdwg.mxu0
      %v1519 = vadd.f32 %v1397, %v1489
      %v1520 = vadd.f32 %v1398, %v1492
      %v1521 = vadd.f32 %v1399, %v1497
      %v1522 = vadd.f32 %v1400, %v1500
      %v1523 = vadd.f32 %v1401, %v1505
      %v1524 = vadd.f32 %v1402, %v1508
      %v1525 = vadd.f32 %v1403, %v1513
      %v1526 = vadd.f32 %v1404, %v1516
      %v1527 = vld [vmem:[%s352 + $0x8] sm:$0xf]
      %v1528 = vld [vmem:[%s352 + $0xc] sm:$0xf]
      %v1529 = vld [vmem:[%s352 + $0x10] sm:$0xf]
      %v1530 = vld [vmem:[%s352 + $0x14] sm:$0xf]
      %v1531 = vld [vmem:[%s352 + $0x18] sm:$0xf]
      %v1532 = vld [vmem:[%s352 + $0x1c] sm:$0xf]
      %v1533 = vld [vmem:[%s352 + $0x20] sm:$0xf]
      %v1534 = vld [vmem:[%s352 + $0x24] sm:$0xf]
      %v1535 = vld [vmem:[%s352 + $0x28] sm:$0x1]
      %v1536 = vsel %vm1045, %v1527, 0
      %v1537 = vsel %vm1046, %v1528, 0
      %v1538 = vsel %vm1047, %v1529, 0
      %v1539 = vsel %vm1048, %v1530, 0
      %v1540 = vsel %vm1049, %v1531, 0
      %v1541 = vsel %vm1050, %v1532, 0
      %v1542 = vsel %vm1051, %v1533, 0
      %v1543 = vsel %vm1052, %v1534, 0
      %v1544 = vsel %vm1053, %v1535, 0
      %s1545 = scalar_lea.vmem %s4, 80
      %v1546 = vld [vmem:[%s1545] sm:$0xf]
      %v1547 = vld [vmem:[%s1545 + $0x4] sm:$0xf]
      %v1548 = vld [vmem:[%s1545 + $0x8] sm:$0xf]
      %v1549 = vld [vmem:[%s1545 + $0xc] sm:$0xf]
      %v1559 = vunpack.c.l.b16 %v1536
      %v1560 = vunpack.c.l.b16 %v1537
      %v1561 = vunpack.c.l.b16 %v1538
      %v1562 = vunpack.c.l.b16 %v1539
      %v1563 = vunpack.c.l.b16 %v1540
      %v1564 = vunpack.c.l.b16 %v1541
      %v1565 = vunpack.c.l.b16 %v1542
      %v1566 = vunpack.c.l.b16 %v1543
      %v1567 = vunpack.c.l.b16 %v1544
      %v1568 = vpack.c.b16 %v1560, %v1559
      %v1569 = vpack.c.b16 %v1562, %v1561
      %v1570 = vpack.c.b16 %v1564, %v1563
      %v1571 = vpack.c.b16 %v1566, %v1565
      %v1572 = vpack.c.b16 %v1567, %v1567
      %v1574 = vshrl.u32 %v1568, 16
      %v1576 = vshll.u32 %v1568, 16
      %v1578 = vrot.slane %v1576, 1
      %v1579 = vor.u32 %v1574, %v1578
      %v1581 = vshll.u32 %v1569, 16
      %v1583 = vrot.slane %v1581, 1
      %v1584 = vsel %vm1091, %v1579, %v1583
      %v1585 = vshrl.u32 %v1569, 16
      %v1587 = vor.u32 %v1585, %v1583
      %v1589 = vshll.u32 %v1570, 16
      %v1591 = vrot.slane %v1589, 1
      %v1592 = vsel %vm1091, %v1587, %v1591
      %v1593 = vshrl.u32 %v1570, 16
      %v1595 = vor.u32 %v1593, %v1591
      %v1597 = vshll.u32 %v1571, 16
      %v1599 = vrot.slane %v1597, 1
      %v1600 = vsel %vm1091, %v1595, %v1599
      %v1601 = vshrl.u32 %v1571, 16
      %v1603 = vor.u32 %v1601, %v1599
      %v1605 = vshll.u32 %v1572, 16
      %v1607 = vrot.slane %v1605, 1
      %v1608 = vsel %vm1091, %v1603, %v1607
      %v1613 = vunpack.c.l.b16 %v1546
      %v1614 = vunpack.c.l.b16 %v1547
      %v1615 = vunpack.c.l.b16 %v1548
      %v1616 = vunpack.c.l.b16 %v1549
      %v1617 = vpack.c.b16 %v1614, %v1613
      %v1618 = vpack.c.b16 %v1616, %v1615
      %v1622 = vsel %vm695, %v1584, 0
      %v1625 = vsel %vm695, %v1592, 0
      %v1628 = vsel %vm695, %v1600, 0
      %v1631 = vsel %vm695, %v1608, 0
      %1633 = vmatprep.subr.bf16.mxu0 0
      %1634 = vmatpush1.bf16.msra.mxu0 0
      %1635 = vmatprep.subr.bf16.mxu0 0
      %1636 = vmatpush1.bf16.msra.mxu0 0
      %1637 = vmatprep.subr.bf16.mxu0 0
      %1638 = vmatpush1.bf16.msra.mxu0 0
      %1639 = vmatprep.subr.bf16.mxu0 0
      %1640 = vmatpush1.bf16.msra.mxu0 0
      %1641 = vmatprep.subr.bf16.mxu0 0
      %1642 = vmatpush1.bf16.msra.mxu0 0
      %1643 = vmatprep.subr.bf16.mxu0 0
      %1644 = vmatpush1.bf16.msra.mxu0 0
      %1645 = vmatprep.subr.bf16.mxu0 0
      %1646 = vmatpush1.bf16.msra.mxu0 %v1618
      %1647 = vmatprep.subr.bf16.mxu0 0
      %1648 = vmatpush1.bf16.msra.mxu0 %v1617
      %1649 = vmatprep.subr.bf16.mxu0 0
      %1650 = vmatpush2.bf16.msra.mxu0 0
      %1651 = vmatprep.subr.bf16.mxu0 0
      %1652 = vmatpush2.bf16.msra.mxu0 0
      %1653 = vmatprep.subr.bf16.mxu0 0
      %1654 = vmatpush2.bf16.msra.mxu0 0
      %1655 = vmatprep.subr.bf16.mxu0 0
      %1656 = vmatpush2.bf16.msra.mxu0 0
      %1657 = vmatprep.subr.bf16.mxu0 0
      %1658 = vmatpush2.bf16.msra.mxu0 0
      %1659 = vmatprep.subr.bf16.mxu0 0
      %1660 = vmatpush2.bf16.msra.mxu0 0
      %1661 = vmatprep.subr.bf16.mxu0 0
      %1662 = vmatpush2.bf16.msra.mxu0 0
      %1663 = vmatprep.subr.bf16.mxu0 0
      %1664 = vmatpush2.bf16.msra.mxu0 0
      %1665 = vmatprep.mubr.bf16.mxu0 0
      %1666 = vmatmul.mubr.bf16.gmra.mxu0 %v1622
      %v1667 = vpop.f32.mrf.mxu0
      %v1668 = vadd.f32 0.0, %v1667
      %v1669 = vpop.f32.mrf.mxu0
      %v1670 = vpop.f32.mrf.mxu0
      %v1671 = vadd.f32 0.0, %v1670
      %v1672 = vpop.f32.mrf.mxu0
      %1673 = vmatprep.mubr.bf16.mxu0 0
      %1674 = vmatmul.mubr.bf16.gmra.mxu0 %v1625
      %v1675 = vpop.f32.mrf.mxu0
      %v1676 = vadd.f32 0.0, %v1675
      %v1677 = vpop.f32.mrf.mxu0
      %v1678 = vpop.f32.mrf.mxu0
      %v1679 = vadd.f32 0.0, %v1678
      %v1680 = vpop.f32.mrf.mxu0
      %1681 = vmatprep.mubr.bf16.mxu0 0
      %1682 = vmatmul.mubr.bf16.gmra.mxu0 %v1628
      %v1683 = vpop.f32.mrf.mxu0
      %v1684 = vadd.f32 0.0, %v1683
      %v1685 = vpop.f32.mrf.mxu0
      %v1686 = vpop.f32.mrf.mxu0
      %v1687 = vadd.f32 0.0, %v1686
      %v1688 = vpop.f32.mrf.mxu0
      %1689 = vmatprep.mubr.bf16.mxu0 0
      %1690 = vmatmul.mubr.bf16.gmra.mxu0 %v1631
      %v1691 = vpop.f32.mrf.mxu0
      %v1692 = vadd.f32 0.0, %v1691
      %v1693 = vpop.f32.mrf.mxu0
      %v1694 = vpop.f32.mrf.mxu0
      %v1695 = vadd.f32 0.0, %v1694
      %v1696 = vpop.f32.mrf.mxu0
      %1697 = vdwg.mxu0
      %v1698 = vadd.f32 %v1519, %v1668
      %v1699 = vadd.f32 %v1520, %v1671
      %v1700 = vadd.f32 %v1521, %v1676
      %v1701 = vadd.f32 %v1522, %v1679
      %v1702 = vadd.f32 %v1523, %v1684
      %v1703 = vadd.f32 %v1524, %v1687
      %v1704 = vadd.f32 %v1525, %v1692
      %v1705 = vadd.f32 %v1526, %v1695
      %v1706 = vld [vmem:[%s352 + $0x8] sm:$0x8]
      %v1707 = vld [vmem:[%s352 + $0x28] sm:$0xf]
      %v1708 = vsel %vm636, %v1706, 0
      %v1709 = vsel %vm637, %v1528, 0
      %v1710 = vsel %vm638, %v1529, 0
      %v1711 = vsel %vm639, %v1530, 0
      %v1712 = vsel %vm640, %v1531, 0
      %v1713 = vsel %vm641, %v1532, 0
      %v1714 = vsel %vm642, %v1533, 0
      %v1715 = vsel %vm643, %v1534, 0
      %v1716 = vsel %vm644, %v1707, 0
      %s1717 = scalar_lea.vmem %s4, 96
      %v1718 = vld [vmem:[%s1717] sm:$0xf]
      %v1719 = vld [vmem:[%s1717 + $0x4] sm:$0xf]
      %v1720 = vld [vmem:[%s1717 + $0x8] sm:$0xf]
      %v1721 = vld [vmem:[%s1717 + $0xc] sm:$0xf]
      %v1731 = vunpack.c.l.b16 %v1708
      %v1732 = vunpack.c.l.b16 %v1709
      %v1733 = vunpack.c.l.b16 %v1710
      %v1734 = vunpack.c.l.b16 %v1711
      %v1735 = vunpack.c.l.b16 %v1712
      %v1736 = vunpack.c.l.b16 %v1713
      %v1737 = vunpack.c.l.b16 %v1714
      %v1738 = vunpack.c.l.b16 %v1715
      %v1739 = vunpack.c.l.b16 %v1716
      %v1740 = vpack.c.b16 %v1732, %v1731
      %v1741 = vpack.c.b16 %v1734, %v1733
      %v1742 = vpack.c.b16 %v1736, %v1735
      %v1743 = vpack.c.b16 %v1738, %v1737
      %v1744 = vpack.c.b16 %v1739, %v1739
      %v1746 = vshrl.u32 %v1740, 16
      %v1748 = vrot.slane %v1746, 3
      %v1749 = vshll.u32 %v1740, 16
      %v1751 = vrot.slane %v1749, 4
      %v1752 = vor.u32 %v1748, %v1751
      %v1754 = vshrl.u32 %v1741, 16
      %v1756 = vrot.slane %v1754, 3
      %v1757 = vshll.u32 %v1741, 16
      %v1759 = vrot.slane %v1757, 4
      %v1760 = vor.u32 %v1756, %v1759
      %v1761 = vsel %vm796, %v1752, %v1760
      %v1763 = vshrl.u32 %v1742, 16
      %v1765 = vrot.slane %v1763, 3
      %v1766 = vshll.u32 %v1742, 16
      %v1768 = vrot.slane %v1766, 4
      %v1769 = vor.u32 %v1765, %v1768
      %v1770 = vsel %vm796, %v1760, %v1769
      %v1772 = vshrl.u32 %v1743, 16
      %v1774 = vrot.slane %v1772, 3
      %v1775 = vshll.u32 %v1743, 16
      %v1777 = vrot.slane %v1775, 4
      %v1778 = vor.u32 %v1774, %v1777
      %v1779 = vsel %vm796, %v1769, %v1778
      %v1781 = vshrl.u32 %v1744, 16
      %v1783 = vrot.slane %v1781, 3
      %v1784 = vshll.u32 %v1744, 16
      %v1786 = vrot.slane %v1784, 4
      %v1787 = vor.u32 %v1783, %v1786
      %v1788 = vsel %vm796, %v1778, %v1787
      %v1793 = vunpack.c.l.b16 %v1718
      %v1794 = vunpack.c.l.b16 %v1719
      %v1795 = vunpack.c.l.b16 %v1720
      %v1796 = vunpack.c.l.b16 %v1721
      %v1797 = vpack.c.b16 %v1794, %v1793
      %v1798 = vpack.c.b16 %v1796, %v1795
      %v1802 = vsel %vm695, %v1761, 0
      %v1805 = vsel %vm695, %v1770, 0
      %v1808 = vsel %vm695, %v1779, 0
      %v1811 = vsel %vm695, %v1788, 0
      %1813 = vmatprep.subr.bf16.mxu0 0
      %1814 = vmatpush1.bf16.msra.mxu0 0
      %1815 = vmatprep.subr.bf16.mxu0 0
      %1816 = vmatpush1.bf16.msra.mxu0 0
      %1817 = vmatprep.subr.bf16.mxu0 0
      %1818 = vmatpush1.bf16.msra.mxu0 0
      %1819 = vmatprep.subr.bf16.mxu0 0
      %1820 = vmatpush1.bf16.msra.mxu0 0
      %1821 = vmatprep.subr.bf16.mxu0 0
      %1822 = vmatpush1.bf16.msra.mxu0 0
      %1823 = vmatprep.subr.bf16.mxu0 0
      %1824 = vmatpush1.bf16.msra.mxu0 0
      %1825 = vmatprep.subr.bf16.mxu0 0
      %1826 = vmatpush1.bf16.msra.mxu0 %v1798
      %1827 = vmatprep.subr.bf16.mxu0 0
      %1828 = vmatpush1.bf16.msra.mxu0 %v1797
      %1829 = vmatprep.subr.bf16.mxu0 0
      %1830 = vmatpush2.bf16.msra.mxu0 0
      %1831 = vmatprep.subr.bf16.mxu0 0
      %1832 = vmatpush2.bf16.msra.mxu0 0
      %1833 = vmatprep.subr.bf16.mxu0 0
      %1834 = vmatpush2.bf16.msra.mxu0 0
      %1835 = vmatprep.subr.bf16.mxu0 0
      %1836 = vmatpush2.bf16.msra.mxu0 0
      %1837 = vmatprep.subr.bf16.mxu0 0
      %1838 = vmatpush2.bf16.msra.mxu0 0
      %1839 = vmatprep.subr.bf16.mxu0 0
      %1840 = vmatpush2.bf16.msra.mxu0 0
      %1841 = vmatprep.subr.bf16.mxu0 0
      %1842 = vmatpush2.bf16.msra.mxu0 0
      %1843 = vmatprep.subr.bf16.mxu0 0
      %1844 = vmatpush2.bf16.msra.mxu0 0
      %1845 = vmatprep.mubr.bf16.mxu0 0
      %1846 = vmatmul.mubr.bf16.gmra.mxu0 %v1802
      %v1847 = vpop.f32.mrf.mxu0
      %v1848 = vadd.f32 0.0, %v1847
      %v1849 = vpop.f32.mrf.mxu0
      %v1850 = vpop.f32.mrf.mxu0
      %v1851 = vadd.f32 0.0, %v1850
      %v1852 = vpop.f32.mrf.mxu0
      %1853 = vmatprep.mubr.bf16.mxu0 0
      %1854 = vmatmul.mubr.bf16.gmra.mxu0 %v1805
      %v1855 = vpop.f32.mrf.mxu0
      %v1856 = vadd.f32 0.0, %v1855
      %v1857 = vpop.f32.mrf.mxu0
      %v1858 = vpop.f32.mrf.mxu0
      %v1859 = vadd.f32 0.0, %v1858
      %v1860 = vpop.f32.mrf.mxu0
      %1861 = vmatprep.mubr.bf16.mxu0 0
      %1862 = vmatmul.mubr.bf16.gmra.mxu0 %v1808
      %v1863 = vpop.f32.mrf.mxu0
      %v1864 = vadd.f32 0.0, %v1863
      %v1865 = vpop.f32.mrf.mxu0
      %v1866 = vpop.f32.mrf.mxu0
      %v1867 = vadd.f32 0.0, %v1866
      %v1868 = vpop.f32.mrf.mxu0
      %1869 = vmatprep.mubr.bf16.mxu0 0
      %1870 = vmatmul.mubr.bf16.gmra.mxu0 %v1811
      %v1871 = vpop.f32.mrf.mxu0
      %v1872 = vadd.f32 0.0, %v1871
      %v1873 = vpop.f32.mrf.mxu0
      %v1874 = vpop.f32.mrf.mxu0
      %v1875 = vadd.f32 0.0, %v1874
      %v1876 = vpop.f32.mrf.mxu0
      %1877 = vdwg.mxu0
      %v1878 = vadd.f32 %v1698, %v1848
      %v1879 = vadd.f32 %v1699, %v1851
      %v1880 = vadd.f32 %v1700, %v1856
      %v1881 = vadd.f32 %v1701, %v1859
      %v1882 = vadd.f32 %v1702, %v1864
      %v1883 = vadd.f32 %v1703, %v1867
      %v1884 = vadd.f32 %v1704, %v1872
      %v1885 = vadd.f32 %v1705, %v1875
      %s1886 = scalar_lea.vmem %s4, 112
      %v1887 = vld [vmem:[%s1886] sm:$0xf]
      %v1888 = vld [vmem:[%s1886 + $0x4] sm:$0xf]
      %v1889 = vld [vmem:[%s1886 + $0x8] sm:$0xf]
      %v1890 = vld [vmem:[%s1886 + $0xc] sm:$0xf]
      %v1899 = vunpack.c.l.b16 %v1528
      %v1900 = vunpack.c.l.b16 %v1529
      %v1901 = vunpack.c.l.b16 %v1530
      %v1902 = vunpack.c.l.b16 %v1531
      %v1903 = vunpack.c.l.b16 %v1532
      %v1904 = vunpack.c.l.b16 %v1533
      %v1905 = vunpack.c.l.b16 %v1534
      %v1906 = vunpack.c.l.b16 %v1707
      %v1907 = vpack.c.b16 %v1900, %v1899
      %v1908 = vpack.c.b16 %v1902, %v1901
      %v1909 = vpack.c.b16 %v1904, %v1903
      %v1910 = vpack.c.b16 %v1906, %v1905
      %v1915 = vunpack.c.l.b16 %v1887
      %v1916 = vunpack.c.l.b16 %v1888
      %v1917 = vunpack.c.l.b16 %v1889
      %v1918 = vunpack.c.l.b16 %v1890
      %v1919 = vpack.c.b16 %v1916, %v1915
      %v1920 = vpack.c.b16 %v1918, %v1917
      %v1924 = vsel %vm695, %v1907, 0
      %v1927 = vsel %vm695, %v1908, 0
      %v1930 = vsel %vm695, %v1909, 0
      %v1933 = vsel %vm695, %v1910, 0
      %1935 = vmatprep.subr.bf16.mxu0 0
      %1936 = vmatpush1.bf16.msra.mxu0 0
      %1937 = vmatprep.subr.bf16.mxu0 0
      %1938 = vmatpush1.bf16.msra.mxu0 0
      %1939 = vmatprep.subr.bf16.mxu0 0
      %1940 = vmatpush1.bf16.msra.mxu0 0
      %1941 = vmatprep.subr.bf16.mxu0 0
      %1942 = vmatpush1.bf16.msra.mxu0 0
      %1943 = vmatprep.subr.bf16.mxu0 0
      %1944 = vmatpush1.bf16.msra.mxu0 0
      %1945 = vmatprep.subr.bf16.mxu0 0
      %1946 = vmatpush1.bf16.msra.mxu0 0
      %1947 = vmatprep.subr.bf16.mxu0 0
      %1948 = vmatpush1.bf16.msra.mxu0 %v1920
      %1949 = vmatprep.subr.bf16.mxu0 0
      %1950 = vmatpush1.bf16.msra.mxu0 %v1919
      %1951 = vmatprep.subr.bf16.mxu0 0
      %1952 = vmatpush2.bf16.msra.mxu0 0
      %1953 = vmatprep.subr.bf16.mxu0 0
      %1954 = vmatpush2.bf16.msra.mxu0 0
      %1955 = vmatprep.subr.bf16.mxu0 0
      %1956 = vmatpush2.bf16.msra.mxu0 0
      %1957 = vmatprep.subr.bf16.mxu0 0
      %1958 = vmatpush2.bf16.msra.mxu0 0
      %1959 = vmatprep.subr.bf16.mxu0 0
      %1960 = vmatpush2.bf16.msra.mxu0 0
      %1961 = vmatprep.subr.bf16.mxu0 0
      %1962 = vmatpush2.bf16.msra.mxu0 0
      %1963 = vmatprep.subr.bf16.mxu0 0
      %1964 = vmatpush2.bf16.msra.mxu0 0
      %1965 = vmatprep.subr.bf16.mxu0 0
      %1966 = vmatpush2.bf16.msra.mxu0 0
      %1967 = vmatprep.mubr.bf16.mxu0 0
      %1968 = vmatmul.mubr.bf16.gmra.mxu0 %v1924
      %v1969 = vpop.f32.mrf.mxu0
      %v1970 = vadd.f32 0.0, %v1969
      %v1971 = vpop.f32.mrf.mxu0
      %v1972 = vpop.f32.mrf.mxu0
      %v1973 = vadd.f32 0.0, %v1972
      %v1974 = vpop.f32.mrf.mxu0
      %1975 = vmatprep.mubr.bf16.mxu0 0
      %1976 = vmatmul.mubr.bf16.gmra.mxu0 %v1927
      %v1977 = vpop.f32.mrf.mxu0
      %v1978 = vadd.f32 0.0, %v1977
      %v1979 = vpop.f32.mrf.mxu0
      %v1980 = vpop.f32.mrf.mxu0
      %v1981 = vadd.f32 0.0, %v1980
      %v1982 = vpop.f32.mrf.mxu0
      %1983 = vmatprep.mubr.bf16.mxu0 0
      %1984 = vmatmul.mubr.bf16.gmra.mxu0 %v1930
      %v1985 = vpop.f32.mrf.mxu0
      %v1986 = vadd.f32 0.0, %v1985
      %v1987 = vpop.f32.mrf.mxu0
      %v1988 = vpop.f32.mrf.mxu0
      %v1989 = vadd.f32 0.0, %v1988
      %v1990 = vpop.f32.mrf.mxu0
      %1991 = vmatprep.mubr.bf16.mxu0 0
      %1992 = vmatmul.mubr.bf16.gmra.mxu0 %v1933
      %v1993 = vpop.f32.mrf.mxu0
      %v1994 = vadd.f32 0.0, %v1993
      %v1995 = vpop.f32.mrf.mxu0
      %v1996 = vpop.f32.mrf.mxu0
      %v1997 = vadd.f32 0.0, %v1996
      %v1998 = vpop.f32.mrf.mxu0
      %1999 = vdwg.mxu0
      %v2000 = vadd.f32 %v1878, %v1970
      %v2001 = vadd.f32 %v1879, %v1973
      %v2002 = vadd.f32 %v1880, %v1978
      %v2003 = vadd.f32 %v1881, %v1981
      %v2004 = vadd.f32 %v1882, %v1986
      %v2005 = vadd.f32 %v1883, %v1989
      %v2006 = vadd.f32 %v1884, %v1994
      %v2007 = vadd.f32 %v1885, %v1997
      %v2008 = vld [vmem:[%s352 + $0xc] sm:$0xf]
      %v2009 = vld [vmem:[%s352 + $0x10] sm:$0xf]
      %v2010 = vld [vmem:[%s352 + $0x14] sm:$0xf]
      %v2011 = vld [vmem:[%s352 + $0x18] sm:$0xf]
      %v2012 = vld [vmem:[%s352 + $0x1c] sm:$0xf]
      %v2013 = vld [vmem:[%s352 + $0x20] sm:$0xf]
      %v2014 = vld [vmem:[%s352 + $0x24] sm:$0xf]
      %v2015 = vld [vmem:[%s352 + $0x28] sm:$0xf]
      %v2016 = vld [vmem:[%s352 + $0x2c] sm:$0x1]
      %v2017 = vsel %vm1045, %v2008, 0
      %v2018 = vsel %vm1046, %v2009, 0
      %v2019 = vsel %vm1047, %v2010, 0
      %v2020 = vsel %vm1048, %v2011, 0
      %v2021 = vsel %vm1049, %v2012, 0
      %v2022 = vsel %vm1050, %v2013, 0
      %v2023 = vsel %vm1051, %v2014, 0
      %v2024 = vsel %vm1052, %v2015, 0
      %v2025 = vsel %vm1053, %v2016, 0
      %s2026 = scalar_lea.vmem %s4, 128
      %v2027 = vld [vmem:[%s2026] sm:$0xf]
      %v2028 = vld [vmem:[%s2026 + $0x4] sm:$0xf]
      %v2029 = vld [vmem:[%s2026 + $0x8] sm:$0xf]
      %v2030 = vld [vmem:[%s2026 + $0xc] sm:$0xf]
      %v2040 = vunpack.c.l.b16 %v2017
      %v2041 = vunpack.c.l.b16 %v2018
      %v2042 = vunpack.c.l.b16 %v2019
      %v2043 = vunpack.c.l.b16 %v2020
      %v2044 = vunpack.c.l.b16 %v2021
      %v2045 = vunpack.c.l.b16 %v2022
      %v2046 = vunpack.c.l.b16 %v2023
      %v2047 = vunpack.c.l.b16 %v2024
      %v2048 = vunpack.c.l.b16 %v2025
      %v2049 = vpack.c.b16 %v2041, %v2040
      %v2050 = vpack.c.b16 %v2043, %v2042
      %v2051 = vpack.c.b16 %v2045, %v2044
      %v2052 = vpack.c.b16 %v2047, %v2046
      %v2053 = vpack.c.b16 %v2048, %v2048
      %v2055 = vshrl.u32 %v2049, 16
      %v2057 = vshll.u32 %v2049, 16
      %v2059 = vrot.slane %v2057, 1
      %v2060 = vor.u32 %v2055, %v2059
      %v2062 = vshll.u32 %v2050, 16
      %v2064 = vrot.slane %v2062, 1
      %v2065 = vsel %vm1091, %v2060, %v2064
      %v2066 = vshrl.u32 %v2050, 16
      %v2068 = vor.u32 %v2066, %v2064
      %v2070 = vshll.u32 %v2051, 16
      %v2072 = vrot.slane %v2070, 1
      %v2073 = vsel %vm1091, %v2068, %v2072
      %v2074 = vshrl.u32 %v2051, 16
      %v2076 = vor.u32 %v2074, %v2072
      %v2078 = vshll.u32 %v2052, 16
      %v2080 = vrot.slane %v2078, 1
      %v2081 = vsel %vm1091, %v2076, %v2080
      %v2082 = vshrl.u32 %v2052, 16
      %v2084 = vor.u32 %v2082, %v2080
      %v2086 = vshll.u32 %v2053, 16
      %v2088 = vrot.slane %v2086, 1
      %v2089 = vsel %vm1091, %v2084, %v2088
      %v2094 = vunpack.c.l.b16 %v2027
      %v2095 = vunpack.c.l.b16 %v2028
      %v2096 = vunpack.c.l.b16 %v2029
      %v2097 = vunpack.c.l.b16 %v2030
      %v2098 = vpack.c.b16 %v2095, %v2094
      %v2099 = vpack.c.b16 %v2097, %v2096
      %v2103 = vsel %vm695, %v2065, 0
      %v2106 = vsel %vm695, %v2073, 0
      %v2109 = vsel %vm695, %v2081, 0
      %v2112 = vsel %vm695, %v2089, 0
      %2114 = vmatprep.subr.bf16.mxu0 0
      %2115 = vmatpush1.bf16.msra.mxu0 0
      %2116 = vmatprep.subr.bf16.mxu0 0
      %2117 = vmatpush1.bf16.msra.mxu0 0
      %2118 = vmatprep.subr.bf16.mxu0 0
      %2119 = vmatpush1.bf16.msra.mxu0 0
      %2120 = vmatprep.subr.bf16.mxu0 0
      %2121 = vmatpush1.bf16.msra.mxu0 0
      %2122 = vmatprep.subr.bf16.mxu0 0
      %2123 = vmatpush1.bf16.msra.mxu0 0
      %2124 = vmatprep.subr.bf16.mxu0 0
      %2125 = vmatpush1.bf16.msra.mxu0 0
      %2126 = vmatprep.subr.bf16.mxu0 0
      %2127 = vmatpush1.bf16.msra.mxu0 %v2099
      %2128 = vmatprep.subr.bf16.mxu0 0
      %2129 = vmatpush1.bf16.msra.mxu0 %v2098
      %2130 = vmatprep.subr.bf16.mxu0 0
      %2131 = vmatpush2.bf16.msra.mxu0 0
      %2132 = vmatprep.subr.bf16.mxu0 0
      %2133 = vmatpush2.bf16.msra.mxu0 0
      %2134 = vmatprep.subr.bf16.mxu0 0
      %2135 = vmatpush2.bf16.msra.mxu0 0
      %2136 = vmatprep.subr.bf16.mxu0 0
      %2137 = vmatpush2.bf16.msra.mxu0 0
      %2138 = vmatprep.subr.bf16.mxu0 0
      %2139 = vmatpush2.bf16.msra.mxu0 0
      %2140 = vmatprep.subr.bf16.mxu0 0
      %2141 = vmatpush2.bf16.msra.mxu0 0
      %2142 = vmatprep.subr.bf16.mxu0 0
      %2143 = vmatpush2.bf16.msra.mxu0 0
      %2144 = vmatprep.subr.bf16.mxu0 0
      %2145 = vmatpush2.bf16.msra.mxu0 0
      %2146 = vmatprep.mubr.bf16.mxu0 0
      %2147 = vmatmul.mubr.bf16.gmra.mxu0 %v2103
      %v2148 = vpop.f32.mrf.mxu0
      %v2149 = vadd.f32 0.0, %v2148
      %v2150 = vpop.f32.mrf.mxu0
      %v2151 = vpop.f32.mrf.mxu0
      %v2152 = vadd.f32 0.0, %v2151
      %v2153 = vpop.f32.mrf.mxu0
      %2154 = vmatprep.mubr.bf16.mxu0 0
      %2155 = vmatmul.mubr.bf16.gmra.mxu0 %v2106
      %v2156 = vpop.f32.mrf.mxu0
      %v2157 = vadd.f32 0.0, %v2156
      %v2158 = vpop.f32.mrf.mxu0
      %v2159 = vpop.f32.mrf.mxu0
      %v2160 = vadd.f32 0.0, %v2159
      %v2161 = vpop.f32.mrf.mxu0
      %2162 = vmatprep.mubr.bf16.mxu0 0
      %2163 = vmatmul.mubr.bf16.gmra.mxu0 %v2109
      %v2164 = vpop.f32.mrf.mxu0
      %v2165 = vadd.f32 0.0, %v2164
      %v2166 = vpop.f32.mrf.mxu0
      %v2167 = vpop.f32.mrf.mxu0
      %v2168 = vadd.f32 0.0, %v2167
      %v2169 = vpop.f32.mrf.mxu0
      %2170 = vmatprep.mubr.bf16.mxu0 0
      %2171 = vmatmul.mubr.bf16.gmra.mxu0 %v2112
      %v2172 = vpop.f32.mrf.mxu0
      %v2173 = vadd.f32 0.0, %v2172
      %v2174 = vpop.f32.mrf.mxu0
      %v2175 = vpop.f32.mrf.mxu0
      %v2176 = vadd.f32 0.0, %v2175
      %v2177 = vpop.f32.mrf.mxu0
      %2178 = vdwg.mxu0
      %v2179 = vadd.f32 %v2000, %v2149
      %v2180 = vadd.f32 %v2001, %v2152
      %v2181 = vadd.f32 %v2002, %v2157
      %v2182 = vadd.f32 %v2003, %v2160
      %v2183 = vadd.f32 %v2004, %v2165
      %v2184 = vadd.f32 %v2005, %v2168
      %v2185 = vadd.f32 %v2006, %v2173
      %v2186 = vadd.f32 %v2007, %v2176
      %v2187 = vld [vmem:[%s362] sm:$0x8]
      %v2188 = vld [vmem:[%s362 + $0x4] sm:$0xf]
      %v2189 = vld [vmem:[%s362 + $0x8] sm:$0xf]
      %v2190 = vld [vmem:[%s362 + $0xc] sm:$0xf]
      %v2191 = vld [vmem:[%s362 + $0x10] sm:$0xf]
      %v2192 = vld [vmem:[%s362 + $0x14] sm:$0xf]
      %v2193 = vld [vmem:[%s362 + $0x18] sm:$0xf]
      %v2194 = vld [vmem:[%s362 + $0x1c] sm:$0xf]
      %v2195 = vld [vmem:[%s362 + $0x20] sm:$0xf]
      %v2196 = vsel %vm636, %v2187, 0
      %v2197 = vsel %vm637, %v2188, 0
      %v2198 = vsel %vm638, %v2189, 0
      %v2199 = vsel %vm639, %v2190, 0
      %v2200 = vsel %vm640, %v2191, 0
      %v2201 = vsel %vm641, %v2192, 0
      %v2202 = vsel %vm642, %v2193, 0
      %v2203 = vsel %vm643, %v2194, 0
      %v2204 = vsel %vm644, %v2195, 0
      %s2205 = scalar_lea.vmem %s4, 144
      %v2206 = vld [vmem:[%s2205] sm:$0xf]
      %v2207 = vld [vmem:[%s2205 + $0x4] sm:$0xf]
      %v2208 = vld [vmem:[%s2205 + $0x8] sm:$0xf]
      %v2209 = vld [vmem:[%s2205 + $0xc] sm:$0xf]
      %v2219 = vunpack.c.l.b16 %v2196
      %v2220 = vunpack.c.l.b16 %v2197
      %v2221 = vunpack.c.l.b16 %v2198
      %v2222 = vunpack.c.l.b16 %v2199
      %v2223 = vunpack.c.l.b16 %v2200
      %v2224 = vunpack.c.l.b16 %v2201
      %v2225 = vunpack.c.l.b16 %v2202
      %v2226 = vunpack.c.l.b16 %v2203
      %v2227 = vunpack.c.l.b16 %v2204
      %v2228 = vpack.c.b16 %v2220, %v2219
      %v2229 = vpack.c.b16 %v2222, %v2221
      %v2230 = vpack.c.b16 %v2224, %v2223
      %v2231 = vpack.c.b16 %v2226, %v2225
      %v2232 = vpack.c.b16 %v2227, %v2227
      %v2234 = vshrl.u32 %v2228, 16
      %v2236 = vrot.slane %v2234, 3
      %v2237 = vshll.u32 %v2228, 16
      %v2239 = vrot.slane %v2237, 4
      %v2240 = vor.u32 %v2236, %v2239
      %v2242 = vshrl.u32 %v2229, 16
      %v2244 = vrot.slane %v2242, 3
      %v2245 = vshll.u32 %v2229, 16
      %v2247 = vrot.slane %v2245, 4
      %v2248 = vor.u32 %v2244, %v2247
      %v2249 = vsel %vm796, %v2240, %v2248
      %v2251 = vshrl.u32 %v2230, 16
      %v2253 = vrot.slane %v2251, 3
      %v2254 = vshll.u32 %v2230, 16
      %v2256 = vrot.slane %v2254, 4
      %v2257 = vor.u32 %v2253, %v2256
      %v2258 = vsel %vm796, %v2248, %v2257
      %v2260 = vshrl.u32 %v2231, 16
      %v2262 = vrot.slane %v2260, 3
      %v2263 = vshll.u32 %v2231, 16
      %v2265 = vrot.slane %v2263, 4
      %v2266 = vor.u32 %v2262, %v2265
      %v2267 = vsel %vm796, %v2257, %v2266
      %v2269 = vshrl.u32 %v2232, 16
      %v2271 = vrot.slane %v2269, 3
      %v2272 = vshll.u32 %v2232, 16
      %v2274 = vrot.slane %v2272, 4
      %v2275 = vor.u32 %v2271, %v2274
      %v2276 = vsel %vm796, %v2266, %v2275
      %v2281 = vunpack.c.l.b16 %v2206
      %v2282 = vunpack.c.l.b16 %v2207
      %v2283 = vunpack.c.l.b16 %v2208
      %v2284 = vunpack.c.l.b16 %v2209
      %v2285 = vpack.c.b16 %v2282, %v2281
      %v2286 = vpack.c.b16 %v2284, %v2283
      %v2290 = vsel %vm695, %v2249, 0
      %v2293 = vsel %vm695, %v2258, 0
      %v2296 = vsel %vm695, %v2267, 0
      %v2299 = vsel %vm695, %v2276, 0
      %2301 = vmatprep.subr.bf16.mxu0 0
      %2302 = vmatpush1.bf16.msra.mxu0 0
      %2303 = vmatprep.subr.bf16.mxu0 0
      %2304 = vmatpush1.bf16.msra.mxu0 0
      %2305 = vmatprep.subr.bf16.mxu0 0
      %2306 = vmatpush1.bf16.msra.mxu0 0
      %2307 = vmatprep.subr.bf16.mxu0 0
      %2308 = vmatpush1.bf16.msra.mxu0 0
      %2309 = vmatprep.subr.bf16.mxu0 0
      %2310 = vmatpush1.bf16.msra.mxu0 0
      %2311 = vmatprep.subr.bf16.mxu0 0
      %2312 = vmatpush1.bf16.msra.mxu0 0
      %2313 = vmatprep.subr.bf16.mxu0 0
      %2314 = vmatpush1.bf16.msra.mxu0 %v2286
      %2315 = vmatprep.subr.bf16.mxu0 0
      %2316 = vmatpush1.bf16.msra.mxu0 %v2285
      %2317 = vmatprep.subr.bf16.mxu0 0
      %2318 = vmatpush2.bf16.msra.mxu0 0
      %2319 = vmatprep.subr.bf16.mxu0 0
      %2320 = vmatpush2.bf16.msra.mxu0 0
      %2321 = vmatprep.subr.bf16.mxu0 0
      %2322 = vmatpush2.bf16.msra.mxu0 0
      %2323 = vmatprep.subr.bf16.mxu0 0
      %2324 = vmatpush2.bf16.msra.mxu0 0
      %2325 = vmatprep.subr.bf16.mxu0 0
      %2326 = vmatpush2.bf16.msra.mxu0 0
      %2327 = vmatprep.subr.bf16.mxu0 0
      %2328 = vmatpush2.bf16.msra.mxu0 0
      %2329 = vmatprep.subr.bf16.mxu0 0
      %2330 = vmatpush2.bf16.msra.mxu0 0
      %2331 = vmatprep.subr.bf16.mxu0 0
      %2332 = vmatpush2.bf16.msra.mxu0 0
      %2333 = vmatprep.mubr.bf16.mxu0 0
      %2334 = vmatmul.mubr.bf16.gmra.mxu0 %v2290
      %v2335 = vpop.f32.mrf.mxu0
      %v2336 = vadd.f32 0.0, %v2335
      %v2337 = vpop.f32.mrf.mxu0
      %v2338 = vpop.f32.mrf.mxu0
      %v2339 = vadd.f32 0.0, %v2338
      %v2340 = vpop.f32.mrf.mxu0
      %2341 = vmatprep.mubr.bf16.mxu0 0
      %2342 = vmatmul.mubr.bf16.gmra.mxu0 %v2293
      %v2343 = vpop.f32.mrf.mxu0
      %v2344 = vadd.f32 0.0, %v2343
      %v2345 = vpop.f32.mrf.mxu0
      %v2346 = vpop.f32.mrf.mxu0
      %v2347 = vadd.f32 0.0, %v2346
      %v2348 = vpop.f32.mrf.mxu0
      %2349 = vmatprep.mubr.bf16.mxu0 0
      %2350 = vmatmul.mubr.bf16.gmra.mxu0 %v2296
      %v2351 = vpop.f32.mrf.mxu0
      %v2352 = vadd.f32 0.0, %v2351
      %v2353 = vpop.f32.mrf.mxu0
      %v2354 = vpop.f32.mrf.mxu0
      %v2355 = vadd.f32 0.0, %v2354
      %v2356 = vpop.f32.mrf.mxu0
      %2357 = vmatprep.mubr.bf16.mxu0 0
      %2358 = vmatmul.mubr.bf16.gmra.mxu0 %v2299
      %v2359 = vpop.f32.mrf.mxu0
      %v2360 = vadd.f32 0.0, %v2359
      %v2361 = vpop.f32.mrf.mxu0
      %v2362 = vpop.f32.mrf.mxu0
      %v2363 = vadd.f32 0.0, %v2362
      %v2364 = vpop.f32.mrf.mxu0
      %2365 = vdwg.mxu0
      %v2366 = vadd.f32 %v2179, %v2336
      %v2367 = vadd.f32 %v2180, %v2339
      %v2368 = vadd.f32 %v2181, %v2344
      %v2369 = vadd.f32 %v2182, %v2347
      %v2370 = vadd.f32 %v2183, %v2352
      %v2371 = vadd.f32 %v2184, %v2355
      %v2372 = vadd.f32 %v2185, %v2360
      %v2373 = vadd.f32 %v2186, %v2363
      %s2374 = scalar_lea.vmem %s4, 160
      %v2375 = vld [vmem:[%s2374] sm:$0xf]
      %v2376 = vld [vmem:[%s2374 + $0x4] sm:$0xf]
      %v2377 = vld [vmem:[%s2374 + $0x8] sm:$0xf]
      %v2378 = vld [vmem:[%s2374 + $0xc] sm:$0xf]
      %v2387 = vunpack.c.l.b16 %v2188
      %v2388 = vunpack.c.l.b16 %v2189
      %v2389 = vunpack.c.l.b16 %v2190
      %v2390 = vunpack.c.l.b16 %v2191
      %v2391 = vunpack.c.l.b16 %v2192
      %v2392 = vunpack.c.l.b16 %v2193
      %v2393 = vunpack.c.l.b16 %v2194
      %v2394 = vunpack.c.l.b16 %v2195
      %v2395 = vpack.c.b16 %v2388, %v2387
      %v2396 = vpack.c.b16 %v2390, %v2389
      %v2397 = vpack.c.b16 %v2392, %v2391
      %v2398 = vpack.c.b16 %v2394, %v2393
      %v2403 = vunpack.c.l.b16 %v2375
      %v2404 = vunpack.c.l.b16 %v2376
      %v2405 = vunpack.c.l.b16 %v2377
      %v2406 = vunpack.c.l.b16 %v2378
      %v2407 = vpack.c.b16 %v2404, %v2403
      %v2408 = vpack.c.b16 %v2406, %v2405
      %v2412 = vsel %vm695, %v2395, 0
      %v2415 = vsel %vm695, %v2396, 0
      %v2418 = vsel %vm695, %v2397, 0
      %v2421 = vsel %vm695, %v2398, 0
      %2423 = vmatprep.subr.bf16.mxu0 0
      %2424 = vmatpush1.bf16.msra.mxu0 0
      %2425 = vmatprep.subr.bf16.mxu0 0
      %2426 = vmatpush1.bf16.msra.mxu0 0
      %2427 = vmatprep.subr.bf16.mxu0 0
      %2428 = vmatpush1.bf16.msra.mxu0 0
      %2429 = vmatprep.subr.bf16.mxu0 0
      %2430 = vmatpush1.bf16.msra.mxu0 0
      %2431 = vmatprep.subr.bf16.mxu0 0
      %2432 = vmatpush1.bf16.msra.mxu0 0
      %2433 = vmatprep.subr.bf16.mxu0 0
      %2434 = vmatpush1.bf16.msra.mxu0 0
      %2435 = vmatprep.subr.bf16.mxu0 0
      %2436 = vmatpush1.bf16.msra.mxu0 %v2408
      %2437 = vmatprep.subr.bf16.mxu0 0
      %2438 = vmatpush1.bf16.msra.mxu0 %v2407
      %2439 = vmatprep.subr.bf16.mxu0 0
      %2440 = vmatpush2.bf16.msra.mxu0 0
      %2441 = vmatprep.subr.bf16.mxu0 0
      %2442 = vmatpush2.bf16.msra.mxu0 0
      %2443 = vmatprep.subr.bf16.mxu0 0
      %2444 = vmatpush2.bf16.msra.mxu0 0
      %2445 = vmatprep.subr.bf16.mxu0 0
      %2446 = vmatpush2.bf16.msra.mxu0 0
      %2447 = vmatprep.subr.bf16.mxu0 0
      %2448 = vmatpush2.bf16.msra.mxu0 0
      %2449 = vmatprep.subr.bf16.mxu0 0
      %2450 = vmatpush2.bf16.msra.mxu0 0
      %2451 = vmatprep.subr.bf16.mxu0 0
      %2452 = vmatpush2.bf16.msra.mxu0 0
      %2453 = vmatprep.subr.bf16.mxu0 0
      %2454 = vmatpush2.bf16.msra.mxu0 0
      %2455 = vmatprep.mubr.bf16.mxu0 0
      %2456 = vmatmul.mubr.bf16.gmra.mxu0 %v2412
      %v2457 = vpop.f32.mrf.mxu0
      %v2458 = vadd.f32 0.0, %v2457
      %v2459 = vpop.f32.mrf.mxu0
      %v2460 = vpop.f32.mrf.mxu0
      %v2461 = vadd.f32 0.0, %v2460
      %v2462 = vpop.f32.mrf.mxu0
      %2463 = vmatprep.mubr.bf16.mxu0 0
      %2464 = vmatmul.mubr.bf16.gmra.mxu0 %v2415
      %v2465 = vpop.f32.mrf.mxu0
      %v2466 = vadd.f32 0.0, %v2465
      %v2467 = vpop.f32.mrf.mxu0
      %v2468 = vpop.f32.mrf.mxu0
      %v2469 = vadd.f32 0.0, %v2468
      %v2470 = vpop.f32.mrf.mxu0
      %2471 = vmatprep.mubr.bf16.mxu0 0
      %2472 = vmatmul.mubr.bf16.gmra.mxu0 %v2418
      %v2473 = vpop.f32.mrf.mxu0
      %v2474 = vadd.f32 0.0, %v2473
      %v2475 = vpop.f32.mrf.mxu0
      %v2476 = vpop.f32.mrf.mxu0
      %v2477 = vadd.f32 0.0, %v2476
      %v2478 = vpop.f32.mrf.mxu0
      %2479 = vmatprep.mubr.bf16.mxu0 0
      %2480 = vmatmul.mubr.bf16.gmra.mxu0 %v2421
      %v2481 = vpop.f32.mrf.mxu0
      %v2482 = vadd.f32 0.0, %v2481
      %v2483 = vpop.f32.mrf.mxu0
      %v2484 = vpop.f32.mrf.mxu0
      %v2485 = vadd.f32 0.0, %v2484
      %v2486 = vpop.f32.mrf.mxu0
      %2487 = vdwg.mxu0
      %v2488 = vadd.f32 %v2366, %v2458
      %v2489 = vadd.f32 %v2367, %v2461
      %v2490 = vadd.f32 %v2368, %v2466
      %v2491 = vadd.f32 %v2369, %v2469
      %v2492 = vadd.f32 %v2370, %v2474
      %v2493 = vadd.f32 %v2371, %v2477
      %v2494 = vadd.f32 %v2372, %v2482
      %v2495 = vadd.f32 %v2373, %v2485
      %v2496 = vld [vmem:[%s362 + $0x4] sm:$0xf]
      %v2497 = vld [vmem:[%s362 + $0x8] sm:$0xf]
      %v2498 = vld [vmem:[%s362 + $0xc] sm:$0xf]
      %v2499 = vld [vmem:[%s362 + $0x10] sm:$0xf]
      %v2500 = vld [vmem:[%s362 + $0x14] sm:$0xf]
      %v2501 = vld [vmem:[%s362 + $0x18] sm:$0xf]
      %v2502 = vld [vmem:[%s362 + $0x1c] sm:$0xf]
      %v2503 = vld [vmem:[%s362 + $0x20] sm:$0xf]
      %v2504 = vld [vmem:[%s362 + $0x24] sm:$0x1]
      %v2505 = vsel %vm1045, %v2496, 0
      %v2506 = vsel %vm1046, %v2497, 0
      %v2507 = vsel %vm1047, %v2498, 0
      %v2508 = vsel %vm1048, %v2499, 0
      %v2509 = vsel %vm1049, %v2500, 0
      %v2510 = vsel %vm1050, %v2501, 0
      %v2511 = vsel %vm1051, %v2502, 0
      %v2512 = vsel %vm1052, %v2503, 0
      %v2513 = vsel %vm1053, %v2504, 0
      %s2514 = scalar_lea.vmem %s4, 176
      %v2515 = vld [vmem:[%s2514] sm:$0xf]
      %v2516 = vld [vmem:[%s2514 + $0x4] sm:$0xf]
      %v2517 = vld [vmem:[%s2514 + $0x8] sm:$0xf]
      %v2518 = vld [vmem:[%s2514 + $0xc] sm:$0xf]
      %v2528 = vunpack.c.l.b16 %v2505
      %v2529 = vunpack.c.l.b16 %v2506
      %v2530 = vunpack.c.l.b16 %v2507
      %v2531 = vunpack.c.l.b16 %v2508
      %v2532 = vunpack.c.l.b16 %v2509
      %v2533 = vunpack.c.l.b16 %v2510
      %v2534 = vunpack.c.l.b16 %v2511
      %v2535 = vunpack.c.l.b16 %v2512
      %v2536 = vunpack.c.l.b16 %v2513
      %v2537 = vpack.c.b16 %v2529, %v2528
      %v2538 = vpack.c.b16 %v2531, %v2530
      %v2539 = vpack.c.b16 %v2533, %v2532
      %v2540 = vpack.c.b16 %v2535, %v2534
      %v2541 = vpack.c.b16 %v2536, %v2536
      %v2543 = vshrl.u32 %v2537, 16
      %v2545 = vshll.u32 %v2537, 16
      %v2547 = vrot.slane %v2545, 1
      %v2548 = vor.u32 %v2543, %v2547
      %v2550 = vshll.u32 %v2538, 16
      %v2552 = vrot.slane %v2550, 1
      %v2553 = vsel %vm1091, %v2548, %v2552
      %v2554 = vshrl.u32 %v2538, 16
      %v2556 = vor.u32 %v2554, %v2552
      %v2558 = vshll.u32 %v2539, 16
      %v2560 = vrot.slane %v2558, 1
      %v2561 = vsel %vm1091, %v2556, %v2560
      %v2562 = vshrl.u32 %v2539, 16
      %v2564 = vor.u32 %v2562, %v2560
      %v2566 = vshll.u32 %v2540, 16
      %v2568 = vrot.slane %v2566, 1
      %v2569 = vsel %vm1091, %v2564, %v2568
      %v2570 = vshrl.u32 %v2540, 16
      %v2572 = vor.u32 %v2570, %v2568
      %v2574 = vshll.u32 %v2541, 16
      %v2576 = vrot.slane %v2574, 1
      %v2577 = vsel %vm1091, %v2572, %v2576
      %v2582 = vunpack.c.l.b16 %v2515
      %v2583 = vunpack.c.l.b16 %v2516
      %v2584 = vunpack.c.l.b16 %v2517
      %v2585 = vunpack.c.l.b16 %v2518
      %v2586 = vpack.c.b16 %v2583, %v2582
      %v2587 = vpack.c.b16 %v2585, %v2584
      %v2591 = vsel %vm695, %v2553, 0
      %v2594 = vsel %vm695, %v2561, 0
      %v2597 = vsel %vm695, %v2569, 0
      %v2600 = vsel %vm695, %v2577, 0
      %2602 = vmatprep.subr.bf16.mxu0 0
      %2603 = vmatpush1.bf16.msra.mxu0 0
      %2604 = vmatprep.subr.bf16.mxu0 0
      %2605 = vmatpush1.bf16.msra.mxu0 0
      %2606 = vmatprep.subr.bf16.mxu0 0
      %2607 = vmatpush1.bf16.msra.mxu0 0
      %2608 = vmatprep.subr.bf16.mxu0 0
      %2609 = vmatpush1.bf16.msra.mxu0 0
      %2610 = vmatprep.subr.bf16.mxu0 0
      %2611 = vmatpush1.bf16.msra.mxu0 0
      %2612 = vmatprep.subr.bf16.mxu0 0
      %2613 = vmatpush1.bf16.msra.mxu0 0
      %2614 = vmatprep.subr.bf16.mxu0 0
      %2615 = vmatpush1.bf16.msra.mxu0 %v2587
      %2616 = vmatprep.subr.bf16.mxu0 0
      %2617 = vmatpush1.bf16.msra.mxu0 %v2586
      %2618 = vmatprep.subr.bf16.mxu0 0
      %2619 = vmatpush2.bf16.msra.mxu0 0
      %2620 = vmatprep.subr.bf16.mxu0 0
      %2621 = vmatpush2.bf16.msra.mxu0 0
      %2622 = vmatprep.subr.bf16.mxu0 0
      %2623 = vmatpush2.bf16.msra.mxu0 0
      %2624 = vmatprep.subr.bf16.mxu0 0
      %2625 = vmatpush2.bf16.msra.mxu0 0
      %2626 = vmatprep.subr.bf16.mxu0 0
      %2627 = vmatpush2.bf16.msra.mxu0 0
      %2628 = vmatprep.subr.bf16.mxu0 0
      %2629 = vmatpush2.bf16.msra.mxu0 0
      %2630 = vmatprep.subr.bf16.mxu0 0
      %2631 = vmatpush2.bf16.msra.mxu0 0
      %2632 = vmatprep.subr.bf16.mxu0 0
      %2633 = vmatpush2.bf16.msra.mxu0 0
      %2634 = vmatprep.mubr.bf16.mxu0 0
      %2635 = vmatmul.mubr.bf16.gmra.mxu0 %v2591
      %v2636 = vpop.f32.mrf.mxu0
      %v2637 = vadd.f32 0.0, %v2636
      %v2638 = vpop.f32.mrf.mxu0
      %v2639 = vpop.f32.mrf.mxu0
      %v2640 = vadd.f32 0.0, %v2639
      %v2641 = vpop.f32.mrf.mxu0
      %2642 = vmatprep.mubr.bf16.mxu0 0
      %2643 = vmatmul.mubr.bf16.gmra.mxu0 %v2594
      %v2644 = vpop.f32.mrf.mxu0
      %v2645 = vadd.f32 0.0, %v2644
      %v2646 = vpop.f32.mrf.mxu0
      %v2647 = vpop.f32.mrf.mxu0
      %v2648 = vadd.f32 0.0, %v2647
      %v2649 = vpop.f32.mrf.mxu0
      %2650 = vmatprep.mubr.bf16.mxu0 0
      %2651 = vmatmul.mubr.bf16.gmra.mxu0 %v2597
      %v2652 = vpop.f32.mrf.mxu0
      %v2653 = vadd.f32 0.0, %v2652
      %v2654 = vpop.f32.mrf.mxu0
      %v2655 = vpop.f32.mrf.mxu0
      %v2656 = vadd.f32 0.0, %v2655
      %v2657 = vpop.f32.mrf.mxu0
      %2658 = vmatprep.mubr.bf16.mxu0 0
      %2659 = vmatmul.mubr.bf16.gmra.mxu0 %v2600
      %v2660 = vpop.f32.mrf.mxu0
      %v2661 = vadd.f32 0.0, %v2660
      %v2662 = vpop.f32.mrf.mxu0
      %v2663 = vpop.f32.mrf.mxu0
      %v2664 = vadd.f32 0.0, %v2663
      %v2665 = vpop.f32.mrf.mxu0
      %2666 = vdwg.mxu0
      %v2667 = vadd.f32 %v2488, %v2637
      %v2668 = vadd.f32 %v2489, %v2640
      %v2669 = vadd.f32 %v2490, %v2645
      %v2670 = vadd.f32 %v2491, %v2648
      %v2671 = vadd.f32 %v2492, %v2653
      %v2672 = vadd.f32 %v2493, %v2656
      %v2673 = vadd.f32 %v2494, %v2661
      %v2674 = vadd.f32 %v2495, %v2664
      %v2675 = vld [vmem:[%s362 + $0x4] sm:$0x8]
      %v2676 = vld [vmem:[%s362 + $0x24] sm:$0xf]
      %v2677 = vsel %vm636, %v2675, 0
      %v2678 = vsel %vm637, %v2497, 0
      %v2679 = vsel %vm638, %v2498, 0
      %v2680 = vsel %vm639, %v2499, 0
      %v2681 = vsel %vm640, %v2500, 0
      %v2682 = vsel %vm641, %v2501, 0
      %v2683 = vsel %vm642, %v2502, 0
      %v2684 = vsel %vm643, %v2503, 0
      %v2685 = vsel %vm644, %v2676, 0
      %s2686 = scalar_lea.vmem %s4, 192
      %v2687 = vld [vmem:[%s2686] sm:$0xf]
      %v2688 = vld [vmem:[%s2686 + $0x4] sm:$0xf]
      %v2689 = vld [vmem:[%s2686 + $0x8] sm:$0xf]
      %v2690 = vld [vmem:[%s2686 + $0xc] sm:$0xf]
      %v2700 = vunpack.c.l.b16 %v2677
      %v2701 = vunpack.c.l.b16 %v2678
      %v2702 = vunpack.c.l.b16 %v2679
      %v2703 = vunpack.c.l.b16 %v2680
      %v2704 = vunpack.c.l.b16 %v2681
      %v2705 = vunpack.c.l.b16 %v2682
      %v2706 = vunpack.c.l.b16 %v2683
      %v2707 = vunpack.c.l.b16 %v2684
      %v2708 = vunpack.c.l.b16 %v2685
      %v2709 = vpack.c.b16 %v2701, %v2700
      %v2710 = vpack.c.b16 %v2703, %v2702
      %v2711 = vpack.c.b16 %v2705, %v2704
      %v2712 = vpack.c.b16 %v2707, %v2706
      %v2713 = vpack.c.b16 %v2708, %v2708
      %v2715 = vshrl.u32 %v2709, 16
      %v2717 = vrot.slane %v2715, 3
      %v2718 = vshll.u32 %v2709, 16
      %v2720 = vrot.slane %v2718, 4
      %v2721 = vor.u32 %v2717, %v2720
      %v2723 = vshrl.u32 %v2710, 16
      %v2725 = vrot.slane %v2723, 3
      %v2726 = vshll.u32 %v2710, 16
      %v2728 = vrot.slane %v2726, 4
      %v2729 = vor.u32 %v2725, %v2728
      %v2730 = vsel %vm796, %v2721, %v2729
      %v2732 = vshrl.u32 %v2711, 16
      %v2734 = vrot.slane %v2732, 3
      %v2735 = vshll.u32 %v2711, 16
      %v2737 = vrot.slane %v2735, 4
      %v2738 = vor.u32 %v2734, %v2737
      %v2739 = vsel %vm796, %v2729, %v2738
      %v2741 = vshrl.u32 %v2712, 16
      %v2743 = vrot.slane %v2741, 3
      %v2744 = vshll.u32 %v2712, 16
      %v2746 = vrot.slane %v2744, 4
      %v2747 = vor.u32 %v2743, %v2746
      %v2748 = vsel %vm796, %v2738, %v2747
      %v2750 = vshrl.u32 %v2713, 16
      %v2752 = vrot.slane %v2750, 3
      %v2753 = vshll.u32 %v2713, 16
      %v2755 = vrot.slane %v2753, 4
      %v2756 = vor.u32 %v2752, %v2755
      %v2757 = vsel %vm796, %v2747, %v2756
      %v2762 = vunpack.c.l.b16 %v2687
      %v2763 = vunpack.c.l.b16 %v2688
      %v2764 = vunpack.c.l.b16 %v2689
      %v2765 = vunpack.c.l.b16 %v2690
      %v2766 = vpack.c.b16 %v2763, %v2762
      %v2767 = vpack.c.b16 %v2765, %v2764
      %v2771 = vsel %vm695, %v2730, 0
      %v2774 = vsel %vm695, %v2739, 0
      %v2777 = vsel %vm695, %v2748, 0
      %v2780 = vsel %vm695, %v2757, 0
      %2782 = vmatprep.subr.bf16.mxu0 0
      %2783 = vmatpush1.bf16.msra.mxu0 0
      %2784 = vmatprep.subr.bf16.mxu0 0
      %2785 = vmatpush1.bf16.msra.mxu0 0
      %2786 = vmatprep.subr.bf16.mxu0 0
      %2787 = vmatpush1.bf16.msra.mxu0 0
      %2788 = vmatprep.subr.bf16.mxu0 0
      %2789 = vmatpush1.bf16.msra.mxu0 0
      %2790 = vmatprep.subr.bf16.mxu0 0
      %2791 = vmatpush1.bf16.msra.mxu0 0
      %2792 = vmatprep.subr.bf16.mxu0 0
      %2793 = vmatpush1.bf16.msra.mxu0 0
      %2794 = vmatprep.subr.bf16.mxu0 0
      %2795 = vmatpush1.bf16.msra.mxu0 %v2767
      %2796 = vmatprep.subr.bf16.mxu0 0
      %2797 = vmatpush1.bf16.msra.mxu0 %v2766
      %2798 = vmatprep.subr.bf16.mxu0 0
      %2799 = vmatpush2.bf16.msra.mxu0 0
      %2800 = vmatprep.subr.bf16.mxu0 0
      %2801 = vmatpush2.bf16.msra.mxu0 0
      %2802 = vmatprep.subr.bf16.mxu0 0
      %2803 = vmatpush2.bf16.msra.mxu0 0
      %2804 = vmatprep.subr.bf16.mxu0 0
      %2805 = vmatpush2.bf16.msra.mxu0 0
      %2806 = vmatprep.subr.bf16.mxu0 0
      %2807 = vmatpush2.bf16.msra.mxu0 0
      %2808 = vmatprep.subr.bf16.mxu0 0
      %2809 = vmatpush2.bf16.msra.mxu0 0
      %2810 = vmatprep.subr.bf16.mxu0 0
      %2811 = vmatpush2.bf16.msra.mxu0 0
      %2812 = vmatprep.subr.bf16.mxu0 0
      %2813 = vmatpush2.bf16.msra.mxu0 0
      %2814 = vmatprep.mubr.bf16.mxu0 0
      %2815 = vmatmul.mubr.bf16.gmra.mxu0 %v2771
      %v2816 = vpop.f32.mrf.mxu0
      %v2817 = vadd.f32 0.0, %v2816
      %v2818 = vpop.f32.mrf.mxu0
      %v2819 = vpop.f32.mrf.mxu0
      %v2820 = vadd.f32 0.0, %v2819
      %v2821 = vpop.f32.mrf.mxu0
      %2822 = vmatprep.mubr.bf16.mxu0 0
      %2823 = vmatmul.mubr.bf16.gmra.mxu0 %v2774
      %v2824 = vpop.f32.mrf.mxu0
      %v2825 = vadd.f32 0.0, %v2824
      %v2826 = vpop.f32.mrf.mxu0
      %v2827 = vpop.f32.mrf.mxu0
      %v2828 = vadd.f32 0.0, %v2827
      %v2829 = vpop.f32.mrf.mxu0
      %2830 = vmatprep.mubr.bf16.mxu0 0
      %2831 = vmatmul.mubr.bf16.gmra.mxu0 %v2777
      %v2832 = vpop.f32.mrf.mxu0
      %v2833 = vadd.f32 0.0, %v2832
      %v2834 = vpop.f32.mrf.mxu0
      %v2835 = vpop.f32.mrf.mxu0
      %v2836 = vadd.f32 0.0, %v2835
      %v2837 = vpop.f32.mrf.mxu0
      %2838 = vmatprep.mubr.bf16.mxu0 0
      %2839 = vmatmul.mubr.bf16.gmra.mxu0 %v2780
      %v2840 = vpop.f32.mrf.mxu0
      %v2841 = vadd.f32 0.0, %v2840
      %v2842 = vpop.f32.mrf.mxu0
      %v2843 = vpop.f32.mrf.mxu0
      %v2844 = vadd.f32 0.0, %v2843
      %v2845 = vpop.f32.mrf.mxu0
      %2846 = vdwg.mxu0
      %v2847 = vadd.f32 %v2667, %v2817
      %v2848 = vadd.f32 %v2668, %v2820
      %v2849 = vadd.f32 %v2669, %v2825
      %v2850 = vadd.f32 %v2670, %v2828
      %v2851 = vadd.f32 %v2671, %v2833
      %v2852 = vadd.f32 %v2672, %v2836
      %v2853 = vadd.f32 %v2673, %v2841
      %v2854 = vadd.f32 %v2674, %v2844
      %s2855 = scalar_lea.vmem %s4, 208
      %v2856 = vld [vmem:[%s2855] sm:$0xf]
      %v2857 = vld [vmem:[%s2855 + $0x4] sm:$0xf]
      %v2858 = vld [vmem:[%s2855 + $0x8] sm:$0xf]
      %v2859 = vld [vmem:[%s2855 + $0xc] sm:$0xf]
      %v2868 = vunpack.c.l.b16 %v2497
      %v2869 = vunpack.c.l.b16 %v2498
      %v2870 = vunpack.c.l.b16 %v2499
      %v2871 = vunpack.c.l.b16 %v2500
      %v2872 = vunpack.c.l.b16 %v2501
      %v2873 = vunpack.c.l.b16 %v2502
      %v2874 = vunpack.c.l.b16 %v2503
      %v2875 = vunpack.c.l.b16 %v2676
      %v2876 = vpack.c.b16 %v2869, %v2868
      %v2877 = vpack.c.b16 %v2871, %v2870
      %v2878 = vpack.c.b16 %v2873, %v2872
      %v2879 = vpack.c.b16 %v2875, %v2874
      %v2884 = vunpack.c.l.b16 %v2856
      %v2885 = vunpack.c.l.b16 %v2857
      %v2886 = vunpack.c.l.b16 %v2858
      %v2887 = vunpack.c.l.b16 %v2859
      %v2888 = vpack.c.b16 %v2885, %v2884
      %v2889 = vpack.c.b16 %v2887, %v2886
      %v2893 = vsel %vm695, %v2876, 0
      %v2896 = vsel %vm695, %v2877, 0
      %v2899 = vsel %vm695, %v2878, 0
      %v2902 = vsel %vm695, %v2879, 0
      %2904 = vmatprep.subr.bf16.mxu0 0
      %2905 = vmatpush1.bf16.msra.mxu0 0
      %2906 = vmatprep.subr.bf16.mxu0 0
      %2907 = vmatpush1.bf16.msra.mxu0 0
      %2908 = vmatprep.subr.bf16.mxu0 0
      %2909 = vmatpush1.bf16.msra.mxu0 0
      %2910 = vmatprep.subr.bf16.mxu0 0
      %2911 = vmatpush1.bf16.msra.mxu0 0
      %2912 = vmatprep.subr.bf16.mxu0 0
      %2913 = vmatpush1.bf16.msra.mxu0 0
      %2914 = vmatprep.subr.bf16.mxu0 0
      %2915 = vmatpush1.bf16.msra.mxu0 0
      %2916 = vmatprep.subr.bf16.mxu0 0
      %2917 = vmatpush1.bf16.msra.mxu0 %v2889
      %2918 = vmatprep.subr.bf16.mxu0 0
      %2919 = vmatpush1.bf16.msra.mxu0 %v2888
      %2920 = vmatprep.subr.bf16.mxu0 0
      %2921 = vmatpush2.bf16.msra.mxu0 0
      %2922 = vmatprep.subr.bf16.mxu0 0
      %2923 = vmatpush2.bf16.msra.mxu0 0
      %2924 = vmatprep.subr.bf16.mxu0 0
      %2925 = vmatpush2.bf16.msra.mxu0 0
      %2926 = vmatprep.subr.bf16.mxu0 0
      %2927 = vmatpush2.bf16.msra.mxu0 0
      %2928 = vmatprep.subr.bf16.mxu0 0
      %2929 = vmatpush2.bf16.msra.mxu0 0
      %2930 = vmatprep.subr.bf16.mxu0 0
      %2931 = vmatpush2.bf16.msra.mxu0 0
      %2932 = vmatprep.subr.bf16.mxu0 0
      %2933 = vmatpush2.bf16.msra.mxu0 0
      %2934 = vmatprep.subr.bf16.mxu0 0
      %2935 = vmatpush2.bf16.msra.mxu0 0
      %2936 = vmatprep.mubr.bf16.mxu0 0
      %2937 = vmatmul.mubr.bf16.gmra.mxu0 %v2893
      %v2938 = vpop.f32.mrf.mxu0
      %v2939 = vadd.f32 0.0, %v2938
      %v2940 = vpop.f32.mrf.mxu0
      %v2941 = vpop.f32.mrf.mxu0
      %v2942 = vadd.f32 0.0, %v2941
      %v2943 = vpop.f32.mrf.mxu0
      %2944 = vmatprep.mubr.bf16.mxu0 0
      %2945 = vmatmul.mubr.bf16.gmra.mxu0 %v2896
      %v2946 = vpop.f32.mrf.mxu0
      %v2947 = vadd.f32 0.0, %v2946
      %v2948 = vpop.f32.mrf.mxu0
      %v2949 = vpop.f32.mrf.mxu0
      %v2950 = vadd.f32 0.0, %v2949
      %v2951 = vpop.f32.mrf.mxu0
      %2952 = vmatprep.mubr.bf16.mxu0 0
      %2953 = vmatmul.mubr.bf16.gmra.mxu0 %v2899
      %v2954 = vpop.f32.mrf.mxu0
      %v2955 = vadd.f32 0.0, %v2954
      %v2956 = vpop.f32.mrf.mxu0
      %v2957 = vpop.f32.mrf.mxu0
      %v2958 = vadd.f32 0.0, %v2957
      %v2959 = vpop.f32.mrf.mxu0
      %2960 = vmatprep.mubr.bf16.mxu0 0
      %2961 = vmatmul.mubr.bf16.gmra.mxu0 %v2902
      %v2962 = vpop.f32.mrf.mxu0
      %v2963 = vadd.f32 0.0, %v2962
      %v2964 = vpop.f32.mrf.mxu0
      %v2965 = vpop.f32.mrf.mxu0
      %v2966 = vadd.f32 0.0, %v2965
      %v2967 = vpop.f32.mrf.mxu0
      %2968 = vdwg.mxu0
      %v2969 = vadd.f32 %v2847, %v2939
      %v2970 = vadd.f32 %v2848, %v2942
      %v2971 = vadd.f32 %v2849, %v2947
      %v2972 = vadd.f32 %v2850, %v2950
      %v2973 = vadd.f32 %v2851, %v2955
      %v2974 = vadd.f32 %v2852, %v2958
      %v2975 = vadd.f32 %v2853, %v2963
      %v2976 = vadd.f32 %v2854, %v2966
      %v2977 = vld [vmem:[%s362 + $0x8] sm:$0xf]
      %v2978 = vld [vmem:[%s362 + $0xc] sm:$0xf]
      %v2979 = vld [vmem:[%s362 + $0x10] sm:$0xf]
      %v2980 = vld [vmem:[%s362 + $0x14] sm:$0xf]
      %v2981 = vld [vmem:[%s362 + $0x18] sm:$0xf]
      %v2982 = vld [vmem:[%s362 + $0x1c] sm:$0xf]
      %v2983 = vld [vmem:[%s362 + $0x20] sm:$0xf]
      %v2984 = vld [vmem:[%s362 + $0x24] sm:$0xf]
      %v2985 = vld [vmem:[%s362 + $0x28] sm:$0x1]
      %v2986 = vsel %vm1045, %v2977, 0
      %v2987 = vsel %vm1046, %v2978, 0
      %v2988 = vsel %vm1047, %v2979, 0
      %v2989 = vsel %vm1048, %v2980, 0
      %v2990 = vsel %vm1049, %v2981, 0
      %v2991 = vsel %vm1050, %v2982, 0
      %v2992 = vsel %vm1051, %v2983, 0
      %v2993 = vsel %vm1052, %v2984, 0
      %v2994 = vsel %vm1053, %v2985, 0
      %s2995 = scalar_lea.vmem %s4, 224
      %v2996 = vld [vmem:[%s2995] sm:$0xf]
      %v2997 = vld [vmem:[%s2995 + $0x4] sm:$0xf]
      %v2998 = vld [vmem:[%s2995 + $0x8] sm:$0xf]
      %v2999 = vld [vmem:[%s2995 + $0xc] sm:$0xf]
      %v3009 = vunpack.c.l.b16 %v2986
      %v3010 = vunpack.c.l.b16 %v2987
      %v3011 = vunpack.c.l.b16 %v2988
      %v3012 = vunpack.c.l.b16 %v2989
      %v3013 = vunpack.c.l.b16 %v2990
      %v3014 = vunpack.c.l.b16 %v2991
      %v3015 = vunpack.c.l.b16 %v2992
      %v3016 = vunpack.c.l.b16 %v2993
      %v3017 = vunpack.c.l.b16 %v2994
      %v3018 = vpack.c.b16 %v3010, %v3009
      %v3019 = vpack.c.b16 %v3012, %v3011
      %v3020 = vpack.c.b16 %v3014, %v3013
      %v3021 = vpack.c.b16 %v3016, %v3015
      %v3022 = vpack.c.b16 %v3017, %v3017
      %v3024 = vshrl.u32 %v3018, 16
      %v3026 = vshll.u32 %v3018, 16
      %v3028 = vrot.slane %v3026, 1
      %v3029 = vor.u32 %v3024, %v3028
      %v3031 = vshll.u32 %v3019, 16
      %v3033 = vrot.slane %v3031, 1
      %v3034 = vsel %vm1091, %v3029, %v3033
      %v3035 = vshrl.u32 %v3019, 16
      %v3037 = vor.u32 %v3035, %v3033
      %v3039 = vshll.u32 %v3020, 16
      %v3041 = vrot.slane %v3039, 1
      %v3042 = vsel %vm1091, %v3037, %v3041
      %v3043 = vshrl.u32 %v3020, 16
      %v3045 = vor.u32 %v3043, %v3041
      %v3047 = vshll.u32 %v3021, 16
      %v3049 = vrot.slane %v3047, 1
      %v3050 = vsel %vm1091, %v3045, %v3049
      %v3051 = vshrl.u32 %v3021, 16
      %v3053 = vor.u32 %v3051, %v3049
      %v3055 = vshll.u32 %v3022, 16
      %v3057 = vrot.slane %v3055, 1
      %v3058 = vsel %vm1091, %v3053, %v3057
      %v3063 = vunpack.c.l.b16 %v2996
      %v3064 = vunpack.c.l.b16 %v2997
      %v3065 = vunpack.c.l.b16 %v2998
      %v3066 = vunpack.c.l.b16 %v2999
      %v3067 = vpack.c.b16 %v3064, %v3063
      %v3068 = vpack.c.b16 %v3066, %v3065
      %v3072 = vsel %vm695, %v3034, 0
      %v3075 = vsel %vm695, %v3042, 0
      %v3078 = vsel %vm695, %v3050, 0
      %v3081 = vsel %vm695, %v3058, 0
      %3083 = vmatprep.subr.bf16.mxu0 0
      %3084 = vmatpush1.bf16.msra.mxu0 0
      %3085 = vmatprep.subr.bf16.mxu0 0
      %3086 = vmatpush1.bf16.msra.mxu0 0
      %3087 = vmatprep.subr.bf16.mxu0 0
      %3088 = vmatpush1.bf16.msra.mxu0 0
      %3089 = vmatprep.subr.bf16.mxu0 0
      %3090 = vmatpush1.bf16.msra.mxu0 0
      %3091 = vmatprep.subr.bf16.mxu0 0
      %3092 = vmatpush1.bf16.msra.mxu0 0
      %3093 = vmatprep.subr.bf16.mxu0 0
      %3094 = vmatpush1.bf16.msra.mxu0 0
      %3095 = vmatprep.subr.bf16.mxu0 0
      %3096 = vmatpush1.bf16.msra.mxu0 %v3068
      %3097 = vmatprep.subr.bf16.mxu0 0
      %3098 = vmatpush1.bf16.msra.mxu0 %v3067
      %3099 = vmatprep.subr.bf16.mxu0 0
      %3100 = vmatpush2.bf16.msra.mxu0 0
      %3101 = vmatprep.subr.bf16.mxu0 0
      %3102 = vmatpush2.bf16.msra.mxu0 0
      %3103 = vmatprep.subr.bf16.mxu0 0
      %3104 = vmatpush2.bf16.msra.mxu0 0
      %3105 = vmatprep.subr.bf16.mxu0 0
      %3106 = vmatpush2.bf16.msra.mxu0 0
      %3107 = vmatprep.subr.bf16.mxu0 0
      %3108 = vmatpush2.bf16.msra.mxu0 0
      %3109 = vmatprep.subr.bf16.mxu0 0
      %3110 = vmatpush2.bf16.msra.mxu0 0
      %3111 = vmatprep.subr.bf16.mxu0 0
      %3112 = vmatpush2.bf16.msra.mxu0 0
      %3113 = vmatprep.subr.bf16.mxu0 0
      %3114 = vmatpush2.bf16.msra.mxu0 0
      %3115 = vmatprep.mubr.bf16.mxu0 0
      %3116 = vmatmul.mubr.bf16.gmra.mxu0 %v3072
      %v3117 = vpop.f32.mrf.mxu0
      %v3118 = vadd.f32 0.0, %v3117
      %v3119 = vpop.f32.mrf.mxu0
      %v3120 = vpop.f32.mrf.mxu0
      %v3121 = vadd.f32 0.0, %v3120
      %v3122 = vpop.f32.mrf.mxu0
      %3123 = vmatprep.mubr.bf16.mxu0 0
      %3124 = vmatmul.mubr.bf16.gmra.mxu0 %v3075
      %v3125 = vpop.f32.mrf.mxu0
      %v3126 = vadd.f32 0.0, %v3125
      %v3127 = vpop.f32.mrf.mxu0
      %v3128 = vpop.f32.mrf.mxu0
      %v3129 = vadd.f32 0.0, %v3128
      %v3130 = vpop.f32.mrf.mxu0
      %3131 = vmatprep.mubr.bf16.mxu0 0
      %3132 = vmatmul.mubr.bf16.gmra.mxu0 %v3078
      %v3133 = vpop.f32.mrf.mxu0
      %v3134 = vadd.f32 0.0, %v3133
      %v3135 = vpop.f32.mrf.mxu0
      %v3136 = vpop.f32.mrf.mxu0
      %v3137 = vadd.f32 0.0, %v3136
      %v3138 = vpop.f32.mrf.mxu0
      %3139 = vmatprep.mubr.bf16.mxu0 0
      %3140 = vmatmul.mubr.bf16.gmra.mxu0 %v3081
      %v3141 = vpop.f32.mrf.mxu0
      %v3142 = vadd.f32 0.0, %v3141
      %v3143 = vpop.f32.mrf.mxu0
      %v3144 = vpop.f32.mrf.mxu0
      %v3145 = vadd.f32 0.0, %v3144
      %v3146 = vpop.f32.mrf.mxu0
      %3147 = vdwg.mxu0
      %v3148 = vadd.f32 %v2969, %v3118
      %v3149 = vadd.f32 %v2970, %v3121
      %v3150 = vadd.f32 %v2971, %v3126
      %v3151 = vadd.f32 %v2972, %v3129
      %v3152 = vadd.f32 %v2973, %v3134
      %v3153 = vadd.f32 %v2974, %v3137
      %v3154 = vadd.f32 %v2975, %v3142
      %v3155 = vadd.f32 %v2976, %v3145
      %v3156 = vld [vmem:[%s362 + $0x8] sm:$0x8]
      %v3157 = vld [vmem:[%s362 + $0x28] sm:$0xf]
      %v3158 = vsel %vm636, %v3156, 0
      %v3159 = vsel %vm637, %v2978, 0
      %v3160 = vsel %vm638, %v2979, 0
      %v3161 = vsel %vm639, %v2980, 0
      %v3162 = vsel %vm640, %v2981, 0
      %v3163 = vsel %vm641, %v2982, 0
      %v3164 = vsel %vm642, %v2983, 0
      %v3165 = vsel %vm643, %v2984, 0
      %v3166 = vsel %vm644, %v3157, 0
      %s3167 = scalar_lea.vmem %s4, 240
      %v3168 = vld [vmem:[%s3167] sm:$0xf]
      %v3169 = vld [vmem:[%s3167 + $0x4] sm:$0xf]
      %v3170 = vld [vmem:[%s3167 + $0x8] sm:$0xf]
      %v3171 = vld [vmem:[%s3167 + $0xc] sm:$0xf]
      %v3181 = vunpack.c.l.b16 %v3158
      %v3182 = vunpack.c.l.b16 %v3159
      %v3183 = vunpack.c.l.b16 %v3160
      %v3184 = vunpack.c.l.b16 %v3161
      %v3185 = vunpack.c.l.b16 %v3162
      %v3186 = vunpack.c.l.b16 %v3163
      %v3187 = vunpack.c.l.b16 %v3164
      %v3188 = vunpack.c.l.b16 %v3165
      %v3189 = vunpack.c.l.b16 %v3166
      %v3190 = vpack.c.b16 %v3182, %v3181
      %v3191 = vpack.c.b16 %v3184, %v3183
      %v3192 = vpack.c.b16 %v3186, %v3185
      %v3193 = vpack.c.b16 %v3188, %v3187
      %v3194 = vpack.c.b16 %v3189, %v3189
      %v3196 = vshrl.u32 %v3190, 16
      %v3198 = vrot.slane %v3196, 3
      %v3199 = vshll.u32 %v3190, 16
      %v3201 = vrot.slane %v3199, 4
      %v3202 = vor.u32 %v3198, %v3201
      %v3204 = vshrl.u32 %v3191, 16
      %v3206 = vrot.slane %v3204, 3
      %v3207 = vshll.u32 %v3191, 16
      %v3209 = vrot.slane %v3207, 4
      %v3210 = vor.u32 %v3206, %v3209
      %v3211 = vsel %vm796, %v3202, %v3210
      %v3213 = vshrl.u32 %v3192, 16
      %v3215 = vrot.slane %v3213, 3
      %v3216 = vshll.u32 %v3192, 16
      %v3218 = vrot.slane %v3216, 4
      %v3219 = vor.u32 %v3215, %v3218
      %v3220 = vsel %vm796, %v3210, %v3219
      %v3222 = vshrl.u32 %v3193, 16
      %v3224 = vrot.slane %v3222, 3
      %v3225 = vshll.u32 %v3193, 16
      %v3227 = vrot.slane %v3225, 4
      %v3228 = vor.u32 %v3224, %v3227
      %v3229 = vsel %vm796, %v3219, %v3228
      %v3231 = vshrl.u32 %v3194, 16
      %v3233 = vrot.slane %v3231, 3
      %v3234 = vshll.u32 %v3194, 16
      %v3236 = vrot.slane %v3234, 4
      %v3237 = vor.u32 %v3233, %v3236
      %v3238 = vsel %vm796, %v3228, %v3237
      %v3243 = vunpack.c.l.b16 %v3168
      %v3244 = vunpack.c.l.b16 %v3169
      %v3245 = vunpack.c.l.b16 %v3170
      %v3246 = vunpack.c.l.b16 %v3171
      %v3247 = vpack.c.b16 %v3244, %v3243
      %v3248 = vpack.c.b16 %v3246, %v3245
      %v3252 = vsel %vm695, %v3211, 0
      %v3255 = vsel %vm695, %v3220, 0
      %v3258 = vsel %vm695, %v3229, 0
      %v3261 = vsel %vm695, %v3238, 0
      %3263 = vmatprep.subr.bf16.mxu0 0
      %3264 = vmatpush1.bf16.msra.mxu0 0
      %3265 = vmatprep.subr.bf16.mxu0 0
      %3266 = vmatpush1.bf16.msra.mxu0 0
      %3267 = vmatprep.subr.bf16.mxu0 0
      %3268 = vmatpush1.bf16.msra.mxu0 0
      %3269 = vmatprep.subr.bf16.mxu0 0
      %3270 = vmatpush1.bf16.msra.mxu0 0
      %3271 = vmatprep.subr.bf16.mxu0 0
      %3272 = vmatpush1.bf16.msra.mxu0 0
      %3273 = vmatprep.subr.bf16.mxu0 0
      %3274 = vmatpush1.bf16.msra.mxu0 0
      %3275 = vmatprep.subr.bf16.mxu0 0
      %3276 = vmatpush1.bf16.msra.mxu0 %v3248
      %3277 = vmatprep.subr.bf16.mxu0 0
      %3278 = vmatpush1.bf16.msra.mxu0 %v3247
      %3279 = vmatprep.subr.bf16.mxu0 0
      %3280 = vmatpush2.bf16.msra.mxu0 0
      %3281 = vmatprep.subr.bf16.mxu0 0
      %3282 = vmatpush2.bf16.msra.mxu0 0
      %3283 = vmatprep.subr.bf16.mxu0 0
      %3284 = vmatpush2.bf16.msra.mxu0 0
      %3285 = vmatprep.subr.bf16.mxu0 0
      %3286 = vmatpush2.bf16.msra.mxu0 0
      %3287 = vmatprep.subr.bf16.mxu0 0
      %3288 = vmatpush2.bf16.msra.mxu0 0
      %3289 = vmatprep.subr.bf16.mxu0 0
      %3290 = vmatpush2.bf16.msra.mxu0 0
      %3291 = vmatprep.subr.bf16.mxu0 0
      %3292 = vmatpush2.bf16.msra.mxu0 0
      %3293 = vmatprep.subr.bf16.mxu0 0
      %3294 = vmatpush2.bf16.msra.mxu0 0
      %3295 = vmatprep.mubr.bf16.mxu0 0
      %3296 = vmatmul.mubr.bf16.gmra.mxu0 %v3252
      %v3297 = vpop.f32.mrf.mxu0
      %v3298 = vadd.f32 0.0, %v3297
      %v3299 = vpop.f32.mrf.mxu0
      %v3300 = vpop.f32.mrf.mxu0
      %v3301 = vadd.f32 0.0, %v3300
      %v3302 = vpop.f32.mrf.mxu0
      %3303 = vmatprep.mubr.bf16.mxu0 0
      %3304 = vmatmul.mubr.bf16.gmra.mxu0 %v3255
      %v3305 = vpop.f32.mrf.mxu0
      %v3306 = vadd.f32 0.0, %v3305
      %v3307 = vpop.f32.mrf.mxu0
      %v3308 = vpop.f32.mrf.mxu0
      %v3309 = vadd.f32 0.0, %v3308
      %v3310 = vpop.f32.mrf.mxu0
      %3311 = vmatprep.mubr.bf16.mxu0 0
      %3312 = vmatmul.mubr.bf16.gmra.mxu0 %v3258
      %v3313 = vpop.f32.mrf.mxu0
      %v3314 = vadd.f32 0.0, %v3313
      %v3315 = vpop.f32.mrf.mxu0
      %v3316 = vpop.f32.mrf.mxu0
      %v3317 = vadd.f32 0.0, %v3316
      %v3318 = vpop.f32.mrf.mxu0
      %3319 = vmatprep.mubr.bf16.mxu0 0
      %3320 = vmatmul.mubr.bf16.gmra.mxu0 %v3261
      %v3321 = vpop.f32.mrf.mxu0
      %v3322 = vadd.f32 0.0, %v3321
      %v3323 = vpop.f32.mrf.mxu0
      %v3324 = vpop.f32.mrf.mxu0
      %v3325 = vadd.f32 0.0, %v3324
      %v3326 = vpop.f32.mrf.mxu0
      %3327 = vdwg.mxu0
      %v3328 = vadd.f32 %v3148, %v3298
      %v3329 = vadd.f32 %v3149, %v3301
      %v3330 = vadd.f32 %v3150, %v3306
      %v3331 = vadd.f32 %v3151, %v3309
      %v3332 = vadd.f32 %v3152, %v3314
      %v3333 = vadd.f32 %v3153, %v3317
      %v3334 = vadd.f32 %v3154, %v3322
      %v3335 = vadd.f32 %v3155, %v3325
      %s3336 = scalar_lea.vmem %s4, 256
      %v3337 = vld [vmem:[%s3336] sm:$0xf]
      %v3338 = vld [vmem:[%s3336 + $0x4] sm:$0xf]
      %v3339 = vld [vmem:[%s3336 + $0x8] sm:$0xf]
      %v3340 = vld [vmem:[%s3336 + $0xc] sm:$0xf]
      %v3349 = vunpack.c.l.b16 %v2978
      %v3350 = vunpack.c.l.b16 %v2979
      %v3351 = vunpack.c.l.b16 %v2980
      %v3352 = vunpack.c.l.b16 %v2981
      %v3353 = vunpack.c.l.b16 %v2982
      %v3354 = vunpack.c.l.b16 %v2983
      %v3355 = vunpack.c.l.b16 %v2984
      %v3356 = vunpack.c.l.b16 %v3157
      %v3357 = vpack.c.b16 %v3350, %v3349
      %v3358 = vpack.c.b16 %v3352, %v3351
      %v3359 = vpack.c.b16 %v3354, %v3353
      %v3360 = vpack.c.b16 %v3356, %v3355
      %v3365 = vunpack.c.l.b16 %v3337
      %v3366 = vunpack.c.l.b16 %v3338
      %v3367 = vunpack.c.l.b16 %v3339
      %v3368 = vunpack.c.l.b16 %v3340
      %v3369 = vpack.c.b16 %v3366, %v3365
      %v3370 = vpack.c.b16 %v3368, %v3367
      %v3374 = vsel %vm695, %v3357, 0
      %v3377 = vsel %vm695, %v3358, 0
      %v3380 = vsel %vm695, %v3359, 0
      %v3383 = vsel %vm695, %v3360, 0
      %3385 = vmatprep.subr.bf16.mxu0 0
      %3386 = vmatpush1.bf16.msra.mxu0 0
      %3387 = vmatprep.subr.bf16.mxu0 0
      %3388 = vmatpush1.bf16.msra.mxu0 0
      %3389 = vmatprep.subr.bf16.mxu0 0
      %3390 = vmatpush1.bf16.msra.mxu0 0
      %3391 = vmatprep.subr.bf16.mxu0 0
      %3392 = vmatpush1.bf16.msra.mxu0 0
      %3393 = vmatprep.subr.bf16.mxu0 0
      %3394 = vmatpush1.bf16.msra.mxu0 0
      %3395 = vmatprep.subr.bf16.mxu0 0
      %3396 = vmatpush1.bf16.msra.mxu0 0
      %3397 = vmatprep.subr.bf16.mxu0 0
      %3398 = vmatpush1.bf16.msra.mxu0 %v3370
      %3399 = vmatprep.subr.bf16.mxu0 0
      %3400 = vmatpush1.bf16.msra.mxu0 %v3369
      %3401 = vmatprep.subr.bf16.mxu0 0
      %3402 = vmatpush2.bf16.msra.mxu0 0
      %3403 = vmatprep.subr.bf16.mxu0 0
      %3404 = vmatpush2.bf16.msra.mxu0 0
      %3405 = vmatprep.subr.bf16.mxu0 0
      %3406 = vmatpush2.bf16.msra.mxu0 0
      %3407 = vmatprep.subr.bf16.mxu0 0
      %3408 = vmatpush2.bf16.msra.mxu0 0
      %3409 = vmatprep.subr.bf16.mxu0 0
      %3410 = vmatpush2.bf16.msra.mxu0 0
      %3411 = vmatprep.subr.bf16.mxu0 0
      %3412 = vmatpush2.bf16.msra.mxu0 0
      %3413 = vmatprep.subr.bf16.mxu0 0
      %3414 = vmatpush2.bf16.msra.mxu0 0
      %3415 = vmatprep.subr.bf16.mxu0 0
      %3416 = vmatpush2.bf16.msra.mxu0 0
      %3417 = vmatprep.mubr.bf16.mxu0 0
      %3418 = vmatmul.mubr.bf16.gmra.mxu0 %v3374
      %v3419 = vpop.f32.mrf.mxu0
      %v3420 = vadd.f32 0.0, %v3419
      %v3421 = vpop.f32.mrf.mxu0
      %v3422 = vpop.f32.mrf.mxu0
      %v3423 = vadd.f32 0.0, %v3422
      %v3424 = vpop.f32.mrf.mxu0
      %3425 = vmatprep.mubr.bf16.mxu0 0
      %3426 = vmatmul.mubr.bf16.gmra.mxu0 %v3377
      %v3427 = vpop.f32.mrf.mxu0
      %v3428 = vadd.f32 0.0, %v3427
      %v3429 = vpop.f32.mrf.mxu0
      %v3430 = vpop.f32.mrf.mxu0
      %v3431 = vadd.f32 0.0, %v3430
      %v3432 = vpop.f32.mrf.mxu0
      %3433 = vmatprep.mubr.bf16.mxu0 0
      %3434 = vmatmul.mubr.bf16.gmra.mxu0 %v3380
      %v3435 = vpop.f32.mrf.mxu0
      %v3436 = vadd.f32 0.0, %v3435
      %v3437 = vpop.f32.mrf.mxu0
      %v3438 = vpop.f32.mrf.mxu0
      %v3439 = vadd.f32 0.0, %v3438
      %v3440 = vpop.f32.mrf.mxu0
      %3441 = vmatprep.mubr.bf16.mxu0 0
      %3442 = vmatmul.mubr.bf16.gmra.mxu0 %v3383
      %v3443 = vpop.f32.mrf.mxu0
      %v3444 = vadd.f32 0.0, %v3443
      %v3445 = vpop.f32.mrf.mxu0
      %v3446 = vpop.f32.mrf.mxu0
      %v3447 = vadd.f32 0.0, %v3446
      %v3448 = vpop.f32.mrf.mxu0
      %3449 = vdwg.mxu0
      %v3450 = vadd.f32 %v3328, %v3420
      %v3451 = vadd.f32 %v3329, %v3423
      %v3452 = vadd.f32 %v3330, %v3428
      %v3453 = vadd.f32 %v3331, %v3431
      %v3454 = vadd.f32 %v3332, %v3436
      %v3455 = vadd.f32 %v3333, %v3439
      %v3456 = vadd.f32 %v3334, %v3444
      %v3457 = vadd.f32 %v3335, %v3447
      %v3458 = vld [vmem:[%s362 + $0xc] sm:$0xf]
      %v3459 = vld [vmem:[%s362 + $0x10] sm:$0xf]
      %v3460 = vld [vmem:[%s362 + $0x14] sm:$0xf]
      %v3461 = vld [vmem:[%s362 + $0x18] sm:$0xf]
      %v3462 = vld [vmem:[%s362 + $0x1c] sm:$0xf]
      %v3463 = vld [vmem:[%s362 + $0x20] sm:$0xf]
      %v3464 = vld [vmem:[%s362 + $0x24] sm:$0xf]
      %v3465 = vld [vmem:[%s362 + $0x28] sm:$0xf]
      %v3466 = vld [vmem:[%s362 + $0x2c] sm:$0x1]
      %v3467 = vsel %vm1045, %v3458, 0
      %v3468 = vsel %vm1046, %v3459, 0
      %v3469 = vsel %vm1047, %v3460, 0
      %v3470 = vsel %vm1048, %v3461, 0
      %v3471 = vsel %vm1049, %v3462, 0
      %v3472 = vsel %vm1050, %v3463, 0
      %v3473 = vsel %vm1051, %v3464, 0
      %v3474 = vsel %vm1052, %v3465, 0
      %v3475 = vsel %vm1053, %v3466, 0
      %s3476 = scalar_lea.vmem %s4, 272
      %v3477 = vld [vmem:[%s3476] sm:$0xf]
      %v3478 = vld [vmem:[%s3476 + $0x4] sm:$0xf]
      %v3479 = vld [vmem:[%s3476 + $0x8] sm:$0xf]
      %v3480 = vld [vmem:[%s3476 + $0xc] sm:$0xf]
      %v3490 = vunpack.c.l.b16 %v3467
      %v3491 = vunpack.c.l.b16 %v3468
      %v3492 = vunpack.c.l.b16 %v3469
      %v3493 = vunpack.c.l.b16 %v3470
      %v3494 = vunpack.c.l.b16 %v3471
      %v3495 = vunpack.c.l.b16 %v3472
      %v3496 = vunpack.c.l.b16 %v3473
      %v3497 = vunpack.c.l.b16 %v3474
      %v3498 = vunpack.c.l.b16 %v3475
      %v3499 = vpack.c.b16 %v3491, %v3490
      %v3500 = vpack.c.b16 %v3493, %v3492
      %v3501 = vpack.c.b16 %v3495, %v3494
      %v3502 = vpack.c.b16 %v3497, %v3496
      %v3503 = vpack.c.b16 %v3498, %v3498
      %v3505 = vshrl.u32 %v3499, 16
      %v3507 = vshll.u32 %v3499, 16
      %v3509 = vrot.slane %v3507, 1
      %v3510 = vor.u32 %v3505, %v3509
      %v3512 = vshll.u32 %v3500, 16
      %v3514 = vrot.slane %v3512, 1
      %v3515 = vsel %vm1091, %v3510, %v3514
      %v3516 = vshrl.u32 %v3500, 16
      %v3518 = vor.u32 %v3516, %v3514
      %v3520 = vshll.u32 %v3501, 16
      %v3522 = vrot.slane %v3520, 1
      %v3523 = vsel %vm1091, %v3518, %v3522
      %v3524 = vshrl.u32 %v3501, 16
      %v3526 = vor.u32 %v3524, %v3522
      %v3528 = vshll.u32 %v3502, 16
      %v3530 = vrot.slane %v3528, 1
      %v3531 = vsel %vm1091, %v3526, %v3530
      %v3532 = vshrl.u32 %v3502, 16
      %v3534 = vor.u32 %v3532, %v3530
      %v3536 = vshll.u32 %v3503, 16
      %v3538 = vrot.slane %v3536, 1
      %v3539 = vsel %vm1091, %v3534, %v3538
      %v3544 = vunpack.c.l.b16 %v3477
      %v3545 = vunpack.c.l.b16 %v3478
      %v3546 = vunpack.c.l.b16 %v3479
      %v3547 = vunpack.c.l.b16 %v3480
      %v3548 = vpack.c.b16 %v3545, %v3544
      %v3549 = vpack.c.b16 %v3547, %v3546
      %v3553 = vsel %vm695, %v3515, 0
      %v3556 = vsel %vm695, %v3523, 0
      %v3559 = vsel %vm695, %v3531, 0
      %v3562 = vsel %vm695, %v3539, 0
      %3564 = vmatprep.subr.bf16.mxu0 0
      %3565 = vmatpush1.bf16.msra.mxu0 0
      %3566 = vmatprep.subr.bf16.mxu0 0
      %3567 = vmatpush1.bf16.msra.mxu0 0
      %3568 = vmatprep.subr.bf16.mxu0 0
      %3569 = vmatpush1.bf16.msra.mxu0 0
      %3570 = vmatprep.subr.bf16.mxu0 0
      %3571 = vmatpush1.bf16.msra.mxu0 0
      %3572 = vmatprep.subr.bf16.mxu0 0
      %3573 = vmatpush1.bf16.msra.mxu0 0
      %3574 = vmatprep.subr.bf16.mxu0 0
      %3575 = vmatpush1.bf16.msra.mxu0 0
      %3576 = vmatprep.subr.bf16.mxu0 0
      %3577 = vmatpush1.bf16.msra.mxu0 %v3549
      %3578 = vmatprep.subr.bf16.mxu0 0
      %3579 = vmatpush1.bf16.msra.mxu0 %v3548
      %3580 = vmatprep.subr.bf16.mxu0 0
      %3581 = vmatpush2.bf16.msra.mxu0 0
      %3582 = vmatprep.subr.bf16.mxu0 0
      %3583 = vmatpush2.bf16.msra.mxu0 0
      %3584 = vmatprep.subr.bf16.mxu0 0
      %3585 = vmatpush2.bf16.msra.mxu0 0
      %3586 = vmatprep.subr.bf16.mxu0 0
      %3587 = vmatpush2.bf16.msra.mxu0 0
      %3588 = vmatprep.subr.bf16.mxu0 0
      %3589 = vmatpush2.bf16.msra.mxu0 0
      %3590 = vmatprep.subr.bf16.mxu0 0
      %3591 = vmatpush2.bf16.msra.mxu0 0
      %3592 = vmatprep.subr.bf16.mxu0 0
      %3593 = vmatpush2.bf16.msra.mxu0 0
      %3594 = vmatprep.subr.bf16.mxu0 0
      %3595 = vmatpush2.bf16.msra.mxu0 0
      %3596 = vmatprep.mubr.bf16.mxu0 0
      %3597 = vmatmul.mubr.bf16.gmra.mxu0 %v3553
      %v3598 = vpop.f32.mrf.mxu0
      %v3599 = vadd.f32 0.0, %v3598
      %v3600 = vpop.f32.mrf.mxu0
      %v3601 = vpop.f32.mrf.mxu0
      %v3602 = vadd.f32 0.0, %v3601
      %v3603 = vpop.f32.mrf.mxu0
      %3604 = vmatprep.mubr.bf16.mxu0 0
      %3605 = vmatmul.mubr.bf16.gmra.mxu0 %v3556
      %v3606 = vpop.f32.mrf.mxu0
      %v3607 = vadd.f32 0.0, %v3606
      %v3608 = vpop.f32.mrf.mxu0
      %v3609 = vpop.f32.mrf.mxu0
      %v3610 = vadd.f32 0.0, %v3609
      %v3611 = vpop.f32.mrf.mxu0
      %3612 = vmatprep.mubr.bf16.mxu0 0
      %3613 = vmatmul.mubr.bf16.gmra.mxu0 %v3559
      %v3614 = vpop.f32.mrf.mxu0
      %v3615 = vadd.f32 0.0, %v3614
      %v3616 = vpop.f32.mrf.mxu0
      %v3617 = vpop.f32.mrf.mxu0
      %v3618 = vadd.f32 0.0, %v3617
      %v3619 = vpop.f32.mrf.mxu0
      %3620 = vmatprep.mubr.bf16.mxu0 0
      %3621 = vmatmul.mubr.bf16.gmra.mxu0 %v3562
      %v3622 = vpop.f32.mrf.mxu0
      %v3623 = vadd.f32 0.0, %v3622
      %v3624 = vpop.f32.mrf.mxu0
      %v3625 = vpop.f32.mrf.mxu0
      %v3626 = vadd.f32 0.0, %v3625
      %v3627 = vpop.f32.mrf.mxu0
      %3628 = vdwg.mxu0
      %v3629 = vadd.f32 %v3450, %v3599
      %v3630 = vadd.f32 %v3451, %v3602
      %v3631 = vadd.f32 %v3452, %v3607
      %v3632 = vadd.f32 %v3453, %v3610
      %v3633 = vadd.f32 %v3454, %v3615
      %v3634 = vadd.f32 %v3455, %v3618
      %v3635 = vadd.f32 %v3456, %v3623
      %v3636 = vadd.f32 %v3457, %v3626
      %v3637 = vld [vmem:[%s373] sm:$0x8]
      %v3638 = vld [vmem:[%s373 + $0x4] sm:$0xf]
      %v3639 = vld [vmem:[%s373 + $0x8] sm:$0xf]
      %v3640 = vld [vmem:[%s373 + $0xc] sm:$0xf]
      %v3641 = vld [vmem:[%s373 + $0x10] sm:$0xf]
      %v3642 = vld [vmem:[%s373 + $0x14] sm:$0xf]
      %v3643 = vld [vmem:[%s373 + $0x18] sm:$0xf]
      %v3644 = vld [vmem:[%s373 + $0x1c] sm:$0xf]
      %v3645 = vld [vmem:[%s373 + $0x20] sm:$0xf]
      %v3646 = vsel %vm636, %v3637, 0
      %v3647 = vsel %vm637, %v3638, 0
      %v3648 = vsel %vm638, %v3639, 0
      %v3649 = vsel %vm639, %v3640, 0
      %v3650 = vsel %vm640, %v3641, 0
      %v3651 = vsel %vm641, %v3642, 0
      %v3652 = vsel %vm642, %v3643, 0
      %v3653 = vsel %vm643, %v3644, 0
      %v3654 = vsel %vm644, %v3645, 0
      %s3655 = scalar_lea.vmem %s4, 288
      %v3656 = vld [vmem:[%s3655] sm:$0xf]
      %v3657 = vld [vmem:[%s3655 + $0x4] sm:$0xf]
      %v3658 = vld [vmem:[%s3655 + $0x8] sm:$0xf]
      %v3659 = vld [vmem:[%s3655 + $0xc] sm:$0xf]
      %v3669 = vunpack.c.l.b16 %v3646
      %v3670 = vunpack.c.l.b16 %v3647
      %v3671 = vunpack.c.l.b16 %v3648
      %v3672 = vunpack.c.l.b16 %v3649
      %v3673 = vunpack.c.l.b16 %v3650
      %v3674 = vunpack.c.l.b16 %v3651
      %v3675 = vunpack.c.l.b16 %v3652
      %v3676 = vunpack.c.l.b16 %v3653
      %v3677 = vunpack.c.l.b16 %v3654
      %v3678 = vpack.c.b16 %v3670, %v3669
      %v3679 = vpack.c.b16 %v3672, %v3671
      %v3680 = vpack.c.b16 %v3674, %v3673
      %v3681 = vpack.c.b16 %v3676, %v3675
      %v3682 = vpack.c.b16 %v3677, %v3677
      %v3684 = vshrl.u32 %v3678, 16
      %v3686 = vrot.slane %v3684, 3
      %v3687 = vshll.u32 %v3678, 16
      %v3689 = vrot.slane %v3687, 4
      %v3690 = vor.u32 %v3686, %v3689
      %v3692 = vshrl.u32 %v3679, 16
      %v3694 = vrot.slane %v3692, 3
      %v3695 = vshll.u32 %v3679, 16
      %v3697 = vrot.slane %v3695, 4
      %v3698 = vor.u32 %v3694, %v3697
      %v3699 = vsel %vm796, %v3690, %v3698
      %v3701 = vshrl.u32 %v3680, 16
      %v3703 = vrot.slane %v3701, 3
      %v3704 = vshll.u32 %v3680, 16
      %v3706 = vrot.slane %v3704, 4
      %v3707 = vor.u32 %v3703, %v3706
      %v3708 = vsel %vm796, %v3698, %v3707
      %v3710 = vshrl.u32 %v3681, 16
      %v3712 = vrot.slane %v3710, 3
      %v3713 = vshll.u32 %v3681, 16
      %v3715 = vrot.slane %v3713, 4
      %v3716 = vor.u32 %v3712, %v3715
      %v3717 = vsel %vm796, %v3707, %v3716
      %v3719 = vshrl.u32 %v3682, 16
      %v3721 = vrot.slane %v3719, 3
      %v3722 = vshll.u32 %v3682, 16
      %v3724 = vrot.slane %v3722, 4
      %v3725 = vor.u32 %v3721, %v3724
      %v3726 = vsel %vm796, %v3716, %v3725
      %v3731 = vunpack.c.l.b16 %v3656
      %v3732 = vunpack.c.l.b16 %v3657
      %v3733 = vunpack.c.l.b16 %v3658
      %v3734 = vunpack.c.l.b16 %v3659
      %v3735 = vpack.c.b16 %v3732, %v3731
      %v3736 = vpack.c.b16 %v3734, %v3733
      %v3740 = vsel %vm695, %v3699, 0
      %v3743 = vsel %vm695, %v3708, 0
      %v3746 = vsel %vm695, %v3717, 0
      %v3749 = vsel %vm695, %v3726, 0
      %3751 = vmatprep.subr.bf16.mxu0 0
      %3752 = vmatpush1.bf16.msra.mxu0 0
      %3753 = vmatprep.subr.bf16.mxu0 0
      %3754 = vmatpush1.bf16.msra.mxu0 0
      %3755 = vmatprep.subr.bf16.mxu0 0
      %3756 = vmatpush1.bf16.msra.mxu0 0
      %3757 = vmatprep.subr.bf16.mxu0 0
      %3758 = vmatpush1.bf16.msra.mxu0 0
      %3759 = vmatprep.subr.bf16.mxu0 0
      %3760 = vmatpush1.bf16.msra.mxu0 0
      %3761 = vmatprep.subr.bf16.mxu0 0
      %3762 = vmatpush1.bf16.msra.mxu0 0
      %3763 = vmatprep.subr.bf16.mxu0 0
      %3764 = vmatpush1.bf16.msra.mxu0 %v3736
      %3765 = vmatprep.subr.bf16.mxu0 0
      %3766 = vmatpush1.bf16.msra.mxu0 %v3735
      %3767 = vmatprep.subr.bf16.mxu0 0
      %3768 = vmatpush2.bf16.msra.mxu0 0
      %3769 = vmatprep.subr.bf16.mxu0 0
      %3770 = vmatpush2.bf16.msra.mxu0 0
      %3771 = vmatprep.subr.bf16.mxu0 0
      %3772 = vmatpush2.bf16.msra.mxu0 0
      %3773 = vmatprep.subr.bf16.mxu0 0
      %3774 = vmatpush2.bf16.msra.mxu0 0
      %3775 = vmatprep.subr.bf16.mxu0 0
      %3776 = vmatpush2.bf16.msra.mxu0 0
      %3777 = vmatprep.subr.bf16.mxu0 0
      %3778 = vmatpush2.bf16.msra.mxu0 0
      %3779 = vmatprep.subr.bf16.mxu0 0
      %3780 = vmatpush2.bf16.msra.mxu0 0
      %3781 = vmatprep.subr.bf16.mxu0 0
      %3782 = vmatpush2.bf16.msra.mxu0 0
      %3783 = vmatprep.mubr.bf16.mxu0 0
      %3784 = vmatmul.mubr.bf16.gmra.mxu0 %v3740
      %v3785 = vpop.f32.mrf.mxu0
      %v3786 = vadd.f32 0.0, %v3785
      %v3787 = vpop.f32.mrf.mxu0
      %v3788 = vpop.f32.mrf.mxu0
      %v3789 = vadd.f32 0.0, %v3788
      %v3790 = vpop.f32.mrf.mxu0
      %3791 = vmatprep.mubr.bf16.mxu0 0
      %3792 = vmatmul.mubr.bf16.gmra.mxu0 %v3743
      %v3793 = vpop.f32.mrf.mxu0
      %v3794 = vadd.f32 0.0, %v3793
      %v3795 = vpop.f32.mrf.mxu0
      %v3796 = vpop.f32.mrf.mxu0
      %v3797 = vadd.f32 0.0, %v3796
      %v3798 = vpop.f32.mrf.mxu0
      %3799 = vmatprep.mubr.bf16.mxu0 0
      %3800 = vmatmul.mubr.bf16.gmra.mxu0 %v3746
      %v3801 = vpop.f32.mrf.mxu0
      %v3802 = vadd.f32 0.0, %v3801
      %v3803 = vpop.f32.mrf.mxu0
      %v3804 = vpop.f32.mrf.mxu0
      %v3805 = vadd.f32 0.0, %v3804
      %v3806 = vpop.f32.mrf.mxu0
      %3807 = vmatprep.mubr.bf16.mxu0 0
      %3808 = vmatmul.mubr.bf16.gmra.mxu0 %v3749
      %v3809 = vpop.f32.mrf.mxu0
      %v3810 = vadd.f32 0.0, %v3809
      %v3811 = vpop.f32.mrf.mxu0
      %v3812 = vpop.f32.mrf.mxu0
      %v3813 = vadd.f32 0.0, %v3812
      %v3814 = vpop.f32.mrf.mxu0
      %3815 = vdwg.mxu0
      %v3816 = vadd.f32 %v3629, %v3786
      %v3817 = vadd.f32 %v3630, %v3789
      %v3818 = vadd.f32 %v3631, %v3794
      %v3819 = vadd.f32 %v3632, %v3797
      %v3820 = vadd.f32 %v3633, %v3802
      %v3821 = vadd.f32 %v3634, %v3805
      %v3822 = vadd.f32 %v3635, %v3810
      %v3823 = vadd.f32 %v3636, %v3813
      %s3824 = scalar_lea.vmem %s4, 304
      %v3825 = vld [vmem:[%s3824] sm:$0xf]
      %v3826 = vld [vmem:[%s3824 + $0x4] sm:$0xf]
      %v3827 = vld [vmem:[%s3824 + $0x8] sm:$0xf]
      %v3828 = vld [vmem:[%s3824 + $0xc] sm:$0xf]
      %v3837 = vunpack.c.l.b16 %v3638
      %v3838 = vunpack.c.l.b16 %v3639
      %v3839 = vunpack.c.l.b16 %v3640
      %v3840 = vunpack.c.l.b16 %v3641
      %v3841 = vunpack.c.l.b16 %v3642
      %v3842 = vunpack.c.l.b16 %v3643
      %v3843 = vunpack.c.l.b16 %v3644
      %v3844 = vunpack.c.l.b16 %v3645
      %v3845 = vpack.c.b16 %v3838, %v3837
      %v3846 = vpack.c.b16 %v3840, %v3839
      %v3847 = vpack.c.b16 %v3842, %v3841
      %v3848 = vpack.c.b16 %v3844, %v3843
      %v3853 = vunpack.c.l.b16 %v3825
      %v3854 = vunpack.c.l.b16 %v3826
      %v3855 = vunpack.c.l.b16 %v3827
      %v3856 = vunpack.c.l.b16 %v3828
      %v3857 = vpack.c.b16 %v3854, %v3853
      %v3858 = vpack.c.b16 %v3856, %v3855
      %v3862 = vsel %vm695, %v3845, 0
      %v3865 = vsel %vm695, %v3846, 0
      %v3868 = vsel %vm695, %v3847, 0
      %v3871 = vsel %vm695, %v3848, 0
      %3873 = vmatprep.subr.bf16.mxu0 0
      %3874 = vmatpush1.bf16.msra.mxu0 0
      %3875 = vmatprep.subr.bf16.mxu0 0
      %3876 = vmatpush1.bf16.msra.mxu0 0
      %3877 = vmatprep.subr.bf16.mxu0 0
      %3878 = vmatpush1.bf16.msra.mxu0 0
      %3879 = vmatprep.subr.bf16.mxu0 0
      %3880 = vmatpush1.bf16.msra.mxu0 0
      %3881 = vmatprep.subr.bf16.mxu0 0
      %3882 = vmatpush1.bf16.msra.mxu0 0
      %3883 = vmatprep.subr.bf16.mxu0 0
      %3884 = vmatpush1.bf16.msra.mxu0 0
      %3885 = vmatprep.subr.bf16.mxu0 0
      %3886 = vmatpush1.bf16.msra.mxu0 %v3858
      %3887 = vmatprep.subr.bf16.mxu0 0
      %3888 = vmatpush1.bf16.msra.mxu0 %v3857
      %3889 = vmatprep.subr.bf16.mxu0 0
      %3890 = vmatpush2.bf16.msra.mxu0 0
      %3891 = vmatprep.subr.bf16.mxu0 0
      %3892 = vmatpush2.bf16.msra.mxu0 0
      %3893 = vmatprep.subr.bf16.mxu0 0
      %3894 = vmatpush2.bf16.msra.mxu0 0
      %3895 = vmatprep.subr.bf16.mxu0 0
      %3896 = vmatpush2.bf16.msra.mxu0 0
      %3897 = vmatprep.subr.bf16.mxu0 0
      %3898 = vmatpush2.bf16.msra.mxu0 0
      %3899 = vmatprep.subr.bf16.mxu0 0
      %3900 = vmatpush2.bf16.msra.mxu0 0
      %3901 = vmatprep.subr.bf16.mxu0 0
      %3902 = vmatpush2.bf16.msra.mxu0 0
      %3903 = vmatprep.subr.bf16.mxu0 0
      %3904 = vmatpush2.bf16.msra.mxu0 0
      %3905 = vmatprep.mubr.bf16.mxu0 0
      %3906 = vmatmul.mubr.bf16.gmra.mxu0 %v3862
      %v3907 = vpop.f32.mrf.mxu0
      %v3908 = vadd.f32 0.0, %v3907
      %v3909 = vpop.f32.mrf.mxu0
      %v3910 = vpop.f32.mrf.mxu0
      %v3911 = vadd.f32 0.0, %v3910
      %v3912 = vpop.f32.mrf.mxu0
      %3913 = vmatprep.mubr.bf16.mxu0 0
      %3914 = vmatmul.mubr.bf16.gmra.mxu0 %v3865
      %v3915 = vpop.f32.mrf.mxu0
      %v3916 = vadd.f32 0.0, %v3915
      %v3917 = vpop.f32.mrf.mxu0
      %v3918 = vpop.f32.mrf.mxu0
      %v3919 = vadd.f32 0.0, %v3918
      %v3920 = vpop.f32.mrf.mxu0
      %3921 = vmatprep.mubr.bf16.mxu0 0
      %3922 = vmatmul.mubr.bf16.gmra.mxu0 %v3868
      %v3923 = vpop.f32.mrf.mxu0
      %v3924 = vadd.f32 0.0, %v3923
      %v3925 = vpop.f32.mrf.mxu0
      %v3926 = vpop.f32.mrf.mxu0
      %v3927 = vadd.f32 0.0, %v3926
      %v3928 = vpop.f32.mrf.mxu0
      %3929 = vmatprep.mubr.bf16.mxu0 0
      %3930 = vmatmul.mubr.bf16.gmra.mxu0 %v3871
      %v3931 = vpop.f32.mrf.mxu0
      %v3932 = vadd.f32 0.0, %v3931
      %v3933 = vpop.f32.mrf.mxu0
      %v3934 = vpop.f32.mrf.mxu0
      %v3935 = vadd.f32 0.0, %v3934
      %v3936 = vpop.f32.mrf.mxu0
      %3937 = vdwg.mxu0
      %v3938 = vadd.f32 %v3816, %v3908
      %v3939 = vadd.f32 %v3817, %v3911
      %v3940 = vadd.f32 %v3818, %v3916
      %v3941 = vadd.f32 %v3819, %v3919
      %v3942 = vadd.f32 %v3820, %v3924
      %v3943 = vadd.f32 %v3821, %v3927
      %v3944 = vadd.f32 %v3822, %v3932
      %v3945 = vadd.f32 %v3823, %v3935
      %v3946 = vld [vmem:[%s373 + $0x4] sm:$0xf]
      %v3947 = vld [vmem:[%s373 + $0x8] sm:$0xf]
      %v3948 = vld [vmem:[%s373 + $0xc] sm:$0xf]
      %v3949 = vld [vmem:[%s373 + $0x10] sm:$0xf]
      %v3950 = vld [vmem:[%s373 + $0x14] sm:$0xf]
      %v3951 = vld [vmem:[%s373 + $0x18] sm:$0xf]
      %v3952 = vld [vmem:[%s373 + $0x1c] sm:$0xf]
      %v3953 = vld [vmem:[%s373 + $0x20] sm:$0xf]
      %v3954 = vld [vmem:[%s373 + $0x24] sm:$0x1]
      %v3955 = vsel %vm1045, %v3946, 0
      %v3956 = vsel %vm1046, %v3947, 0
      %v3957 = vsel %vm1047, %v3948, 0
      %v3958 = vsel %vm1048, %v3949, 0
      %v3959 = vsel %vm1049, %v3950, 0
      %v3960 = vsel %vm1050, %v3951, 0
      %v3961 = vsel %vm1051, %v3952, 0
      %v3962 = vsel %vm1052, %v3953, 0
      %v3963 = vsel %vm1053, %v3954, 0
      %s3964 = scalar_lea.vmem %s4, 320
      %v3965 = vld [vmem:[%s3964] sm:$0xf]
      %v3966 = vld [vmem:[%s3964 + $0x4] sm:$0xf]
      %v3967 = vld [vmem:[%s3964 + $0x8] sm:$0xf]
      %v3968 = vld [vmem:[%s3964 + $0xc] sm:$0xf]
      %v3978 = vunpack.c.l.b16 %v3955
      %v3979 = vunpack.c.l.b16 %v3956
      %v3980 = vunpack.c.l.b16 %v3957
      %v3981 = vunpack.c.l.b16 %v3958
      %v3982 = vunpack.c.l.b16 %v3959
      %v3983 = vunpack.c.l.b16 %v3960
      %v3984 = vunpack.c.l.b16 %v3961
      %v3985 = vunpack.c.l.b16 %v3962
      %v3986 = vunpack.c.l.b16 %v3963
      %v3987 = vpack.c.b16 %v3979, %v3978
      %v3988 = vpack.c.b16 %v3981, %v3980
      %v3989 = vpack.c.b16 %v3983, %v3982
      %v3990 = vpack.c.b16 %v3985, %v3984
      %v3991 = vpack.c.b16 %v3986, %v3986
      %v3993 = vshrl.u32 %v3987, 16
      %v3995 = vshll.u32 %v3987, 16
      %v3997 = vrot.slane %v3995, 1
      %v3998 = vor.u32 %v3993, %v3997
      %v4000 = vshll.u32 %v3988, 16
      %v4002 = vrot.slane %v4000, 1
      %v4003 = vsel %vm1091, %v3998, %v4002
      %v4004 = vshrl.u32 %v3988, 16
      %v4006 = vor.u32 %v4004, %v4002
      %v4008 = vshll.u32 %v3989, 16
      %v4010 = vrot.slane %v4008, 1
      %v4011 = vsel %vm1091, %v4006, %v4010
      %v4012 = vshrl.u32 %v3989, 16
      %v4014 = vor.u32 %v4012, %v4010
      %v4016 = vshll.u32 %v3990, 16
      %v4018 = vrot.slane %v4016, 1
      %v4019 = vsel %vm1091, %v4014, %v4018
      %v4020 = vshrl.u32 %v3990, 16
      %v4022 = vor.u32 %v4020, %v4018
      %v4024 = vshll.u32 %v3991, 16
      %v4026 = vrot.slane %v4024, 1
      %v4027 = vsel %vm1091, %v4022, %v4026
      %v4032 = vunpack.c.l.b16 %v3965
      %v4033 = vunpack.c.l.b16 %v3966
      %v4034 = vunpack.c.l.b16 %v3967
      %v4035 = vunpack.c.l.b16 %v3968
      %v4036 = vpack.c.b16 %v4033, %v4032
      %v4037 = vpack.c.b16 %v4035, %v4034
      %v4041 = vsel %vm695, %v4003, 0
      %v4044 = vsel %vm695, %v4011, 0
      %v4047 = vsel %vm695, %v4019, 0
      %v4050 = vsel %vm695, %v4027, 0
      %4052 = vmatprep.subr.bf16.mxu0 0
      %4053 = vmatpush1.bf16.msra.mxu0 0
      %4054 = vmatprep.subr.bf16.mxu0 0
      %4055 = vmatpush1.bf16.msra.mxu0 0
      %4056 = vmatprep.subr.bf16.mxu0 0
      %4057 = vmatpush1.bf16.msra.mxu0 0
      %4058 = vmatprep.subr.bf16.mxu0 0
      %4059 = vmatpush1.bf16.msra.mxu0 0
      %4060 = vmatprep.subr.bf16.mxu0 0
      %4061 = vmatpush1.bf16.msra.mxu0 0
      %4062 = vmatprep.subr.bf16.mxu0 0
      %4063 = vmatpush1.bf16.msra.mxu0 0
      %4064 = vmatprep.subr.bf16.mxu0 0
      %4065 = vmatpush1.bf16.msra.mxu0 %v4037
      %4066 = vmatprep.subr.bf16.mxu0 0
      %4067 = vmatpush1.bf16.msra.mxu0 %v4036
      %4068 = vmatprep.subr.bf16.mxu0 0
      %4069 = vmatpush2.bf16.msra.mxu0 0
      %4070 = vmatprep.subr.bf16.mxu0 0
      %4071 = vmatpush2.bf16.msra.mxu0 0
      %4072 = vmatprep.subr.bf16.mxu0 0
      %4073 = vmatpush2.bf16.msra.mxu0 0
      %4074 = vmatprep.subr.bf16.mxu0 0
      %4075 = vmatpush2.bf16.msra.mxu0 0
      %4076 = vmatprep.subr.bf16.mxu0 0
      %4077 = vmatpush2.bf16.msra.mxu0 0
      %4078 = vmatprep.subr.bf16.mxu0 0
      %4079 = vmatpush2.bf16.msra.mxu0 0
      %4080 = vmatprep.subr.bf16.mxu0 0
      %4081 = vmatpush2.bf16.msra.mxu0 0
      %4082 = vmatprep.subr.bf16.mxu0 0
      %4083 = vmatpush2.bf16.msra.mxu0 0
      %4084 = vmatprep.mubr.bf16.mxu0 0
      %4085 = vmatmul.mubr.bf16.gmra.mxu0 %v4041
      %v4086 = vpop.f32.mrf.mxu0
      %v4087 = vadd.f32 0.0, %v4086
      %v4088 = vpop.f32.mrf.mxu0
      %v4089 = vpop.f32.mrf.mxu0
      %v4090 = vadd.f32 0.0, %v4089
      %v4091 = vpop.f32.mrf.mxu0
      %4092 = vmatprep.mubr.bf16.mxu0 0
      %4093 = vmatmul.mubr.bf16.gmra.mxu0 %v4044
      %v4094 = vpop.f32.mrf.mxu0
      %v4095 = vadd.f32 0.0, %v4094
      %v4096 = vpop.f32.mrf.mxu0
      %v4097 = vpop.f32.mrf.mxu0
      %v4098 = vadd.f32 0.0, %v4097
      %v4099 = vpop.f32.mrf.mxu0
      %4100 = vmatprep.mubr.bf16.mxu0 0
      %4101 = vmatmul.mubr.bf16.gmra.mxu0 %v4047
      %v4102 = vpop.f32.mrf.mxu0
      %v4103 = vadd.f32 0.0, %v4102
      %v4104 = vpop.f32.mrf.mxu0
      %v4105 = vpop.f32.mrf.mxu0
      %v4106 = vadd.f32 0.0, %v4105
      %v4107 = vpop.f32.mrf.mxu0
      %4108 = vmatprep.mubr.bf16.mxu0 0
      %4109 = vmatmul.mubr.bf16.gmra.mxu0 %v4050
      %v4110 = vpop.f32.mrf.mxu0
      %v4111 = vadd.f32 0.0, %v4110
      %v4112 = vpop.f32.mrf.mxu0
      %v4113 = vpop.f32.mrf.mxu0
      %v4114 = vadd.f32 0.0, %v4113
      %v4115 = vpop.f32.mrf.mxu0
      %4116 = vdwg.mxu0
      %v4117 = vadd.f32 %v3938, %v4087
      %v4118 = vadd.f32 %v3939, %v4090
      %v4119 = vadd.f32 %v3940, %v4095
      %v4120 = vadd.f32 %v3941, %v4098
      %v4121 = vadd.f32 %v3942, %v4103
      %v4122 = vadd.f32 %v3943, %v4106
      %v4123 = vadd.f32 %v3944, %v4111
      %v4124 = vadd.f32 %v3945, %v4114
      %v4125 = vld [vmem:[%s373 + $0x4] sm:$0x8]
      %v4126 = vld [vmem:[%s373 + $0x24] sm:$0xf]
      %v4127 = vsel %vm636, %v4125, 0
      %v4128 = vsel %vm637, %v3947, 0
      %v4129 = vsel %vm638, %v3948, 0
      %v4130 = vsel %vm639, %v3949, 0
      %v4131 = vsel %vm640, %v3950, 0
      %v4132 = vsel %vm641, %v3951, 0
      %v4133 = vsel %vm642, %v3952, 0
      %v4134 = vsel %vm643, %v3953, 0
      %v4135 = vsel %vm644, %v4126, 0
      %s4136 = scalar_lea.vmem %s4, 336
      %v4137 = vld [vmem:[%s4136] sm:$0xf]
      %v4138 = vld [vmem:[%s4136 + $0x4] sm:$0xf]
      %v4139 = vld [vmem:[%s4136 + $0x8] sm:$0xf]
      %v4140 = vld [vmem:[%s4136 + $0xc] sm:$0xf]
      %v4150 = vunpack.c.l.b16 %v4127
      %v4151 = vunpack.c.l.b16 %v4128
      %v4152 = vunpack.c.l.b16 %v4129
      %v4153 = vunpack.c.l.b16 %v4130
      %v4154 = vunpack.c.l.b16 %v4131
      %v4155 = vunpack.c.l.b16 %v4132
      %v4156 = vunpack.c.l.b16 %v4133
      %v4157 = vunpack.c.l.b16 %v4134
      %v4158 = vunpack.c.l.b16 %v4135
      %v4159 = vpack.c.b16 %v4151, %v4150
      %v4160 = vpack.c.b16 %v4153, %v4152
      %v4161 = vpack.c.b16 %v4155, %v4154
      %v4162 = vpack.c.b16 %v4157, %v4156
      %v4163 = vpack.c.b16 %v4158, %v4158
      %v4165 = vshrl.u32 %v4159, 16
      %v4167 = vrot.slane %v4165, 3
      %v4168 = vshll.u32 %v4159, 16
      %v4170 = vrot.slane %v4168, 4
      %v4171 = vor.u32 %v4167, %v4170
      %v4173 = vshrl.u32 %v4160, 16
      %v4175 = vrot.slane %v4173, 3
      %v4176 = vshll.u32 %v4160, 16
      %v4178 = vrot.slane %v4176, 4
      %v4179 = vor.u32 %v4175, %v4178
      %v4180 = vsel %vm796, %v4171, %v4179
      %v4182 = vshrl.u32 %v4161, 16
      %v4184 = vrot.slane %v4182, 3
      %v4185 = vshll.u32 %v4161, 16
      %v4187 = vrot.slane %v4185, 4
      %v4188 = vor.u32 %v4184, %v4187
      %v4189 = vsel %vm796, %v4179, %v4188
      %v4191 = vshrl.u32 %v4162, 16
      %v4193 = vrot.slane %v4191, 3
      %v4194 = vshll.u32 %v4162, 16
      %v4196 = vrot.slane %v4194, 4
      %v4197 = vor.u32 %v4193, %v4196
      %v4198 = vsel %vm796, %v4188, %v4197
      %v4200 = vshrl.u32 %v4163, 16
      %v4202 = vrot.slane %v4200, 3
      %v4203 = vshll.u32 %v4163, 16
      %v4205 = vrot.slane %v4203, 4
      %v4206 = vor.u32 %v4202, %v4205
      %v4207 = vsel %vm796, %v4197, %v4206
      %v4212 = vunpack.c.l.b16 %v4137
      %v4213 = vunpack.c.l.b16 %v4138
      %v4214 = vunpack.c.l.b16 %v4139
      %v4215 = vunpack.c.l.b16 %v4140
      %v4216 = vpack.c.b16 %v4213, %v4212
      %v4217 = vpack.c.b16 %v4215, %v4214
      %v4221 = vsel %vm695, %v4180, 0
      %v4224 = vsel %vm695, %v4189, 0
      %v4227 = vsel %vm695, %v4198, 0
      %v4230 = vsel %vm695, %v4207, 0
      %4232 = vmatprep.subr.bf16.mxu0 0
      %4233 = vmatpush1.bf16.msra.mxu0 0
      %4234 = vmatprep.subr.bf16.mxu0 0
      %4235 = vmatpush1.bf16.msra.mxu0 0
      %4236 = vmatprep.subr.bf16.mxu0 0
      %4237 = vmatpush1.bf16.msra.mxu0 0
      %4238 = vmatprep.subr.bf16.mxu0 0
      %4239 = vmatpush1.bf16.msra.mxu0 0
      %4240 = vmatprep.subr.bf16.mxu0 0
      %4241 = vmatpush1.bf16.msra.mxu0 0
      %4242 = vmatprep.subr.bf16.mxu0 0
      %4243 = vmatpush1.bf16.msra.mxu0 0
      %4244 = vmatprep.subr.bf16.mxu0 0
      %4245 = vmatpush1.bf16.msra.mxu0 %v4217
      %4246 = vmatprep.subr.bf16.mxu0 0
      %4247 = vmatpush1.bf16.msra.mxu0 %v4216
      %4248 = vmatprep.subr.bf16.mxu0 0
      %4249 = vmatpush2.bf16.msra.mxu0 0
      %4250 = vmatprep.subr.bf16.mxu0 0
      %4251 = vmatpush2.bf16.msra.mxu0 0
      %4252 = vmatprep.subr.bf16.mxu0 0
      %4253 = vmatpush2.bf16.msra.mxu0 0
      %4254 = vmatprep.subr.bf16.mxu0 0
      %4255 = vmatpush2.bf16.msra.mxu0 0
      %4256 = vmatprep.subr.bf16.mxu0 0
      %4257 = vmatpush2.bf16.msra.mxu0 0
      %4258 = vmatprep.subr.bf16.mxu0 0
      %4259 = vmatpush2.bf16.msra.mxu0 0
      %4260 = vmatprep.subr.bf16.mxu0 0
      %4261 = vmatpush2.bf16.msra.mxu0 0
      %4262 = vmatprep.subr.bf16.mxu0 0
      %4263 = vmatpush2.bf16.msra.mxu0 0
      %4264 = vmatprep.mubr.bf16.mxu0 0
      %4265 = vmatmul.mubr.bf16.gmra.mxu0 %v4221
      %v4266 = vpop.f32.mrf.mxu0
      %v4267 = vadd.f32 0.0, %v4266
      %v4268 = vpop.f32.mrf.mxu0
      %v4269 = vpop.f32.mrf.mxu0
      %v4270 = vadd.f32 0.0, %v4269
      %v4271 = vpop.f32.mrf.mxu0
      %4272 = vmatprep.mubr.bf16.mxu0 0
      %4273 = vmatmul.mubr.bf16.gmra.mxu0 %v4224
      %v4274 = vpop.f32.mrf.mxu0
      %v4275 = vadd.f32 0.0, %v4274
      %v4276 = vpop.f32.mrf.mxu0
      %v4277 = vpop.f32.mrf.mxu0
      %v4278 = vadd.f32 0.0, %v4277
      %v4279 = vpop.f32.mrf.mxu0
      %4280 = vmatprep.mubr.bf16.mxu0 0
      %4281 = vmatmul.mubr.bf16.gmra.mxu0 %v4227
      %v4282 = vpop.f32.mrf.mxu0
      %v4283 = vadd.f32 0.0, %v4282
      %v4284 = vpop.f32.mrf.mxu0
      %v4285 = vpop.f32.mrf.mxu0
      %v4286 = vadd.f32 0.0, %v4285
      %v4287 = vpop.f32.mrf.mxu0
      %4288 = vmatprep.mubr.bf16.mxu0 0
      %4289 = vmatmul.mubr.bf16.gmra.mxu0 %v4230
      %v4290 = vpop.f32.mrf.mxu0
      %v4291 = vadd.f32 0.0, %v4290
      %v4292 = vpop.f32.mrf.mxu0
      %v4293 = vpop.f32.mrf.mxu0
      %v4294 = vadd.f32 0.0, %v4293
      %v4295 = vpop.f32.mrf.mxu0
      %4296 = vdwg.mxu0
      %v4297 = vadd.f32 %v4117, %v4267
      %v4298 = vadd.f32 %v4118, %v4270
      %v4299 = vadd.f32 %v4119, %v4275
      %v4300 = vadd.f32 %v4120, %v4278
      %v4301 = vadd.f32 %v4121, %v4283
      %v4302 = vadd.f32 %v4122, %v4286
      %v4303 = vadd.f32 %v4123, %v4291
      %v4304 = vadd.f32 %v4124, %v4294
      %s4305 = scalar_lea.vmem %s4, 352
      %v4306 = vld [vmem:[%s4305] sm:$0xf]
      %v4307 = vld [vmem:[%s4305 + $0x4] sm:$0xf]
      %v4308 = vld [vmem:[%s4305 + $0x8] sm:$0xf]
      %v4309 = vld [vmem:[%s4305 + $0xc] sm:$0xf]
      %v4318 = vunpack.c.l.b16 %v3947
      %v4319 = vunpack.c.l.b16 %v3948
      %v4320 = vunpack.c.l.b16 %v3949
      %v4321 = vunpack.c.l.b16 %v3950
      %v4322 = vunpack.c.l.b16 %v3951
      %v4323 = vunpack.c.l.b16 %v3952
      %v4324 = vunpack.c.l.b16 %v3953
      %v4325 = vunpack.c.l.b16 %v4126
      %v4326 = vpack.c.b16 %v4319, %v4318
      %v4327 = vpack.c.b16 %v4321, %v4320
      %v4328 = vpack.c.b16 %v4323, %v4322
      %v4329 = vpack.c.b16 %v4325, %v4324
      %v4334 = vunpack.c.l.b16 %v4306
      %v4335 = vunpack.c.l.b16 %v4307
      %v4336 = vunpack.c.l.b16 %v4308
      %v4337 = vunpack.c.l.b16 %v4309
      %v4338 = vpack.c.b16 %v4335, %v4334
      %v4339 = vpack.c.b16 %v4337, %v4336
      %v4343 = vsel %vm695, %v4326, 0
      %v4346 = vsel %vm695, %v4327, 0
      %v4349 = vsel %vm695, %v4328, 0
      %v4352 = vsel %vm695, %v4329, 0
      %4354 = vmatprep.subr.bf16.mxu0 0
      %4355 = vmatpush1.bf16.msra.mxu0 0
      %4356 = vmatprep.subr.bf16.mxu0 0
      %4357 = vmatpush1.bf16.msra.mxu0 0
      %4358 = vmatprep.subr.bf16.mxu0 0
      %4359 = vmatpush1.bf16.msra.mxu0 0
      %4360 = vmatprep.subr.bf16.mxu0 0
      %4361 = vmatpush1.bf16.msra.mxu0 0
      %4362 = vmatprep.subr.bf16.mxu0 0
      %4363 = vmatpush1.bf16.msra.mxu0 0
      %4364 = vmatprep.subr.bf16.mxu0 0
      %4365 = vmatpush1.bf16.msra.mxu0 0
      %4366 = vmatprep.subr.bf16.mxu0 0
      %4367 = vmatpush1.bf16.msra.mxu0 %v4339
      %4368 = vmatprep.subr.bf16.mxu0 0
      %4369 = vmatpush1.bf16.msra.mxu0 %v4338
      %4370 = vmatprep.subr.bf16.mxu0 0
      %4371 = vmatpush2.bf16.msra.mxu0 0
      %4372 = vmatprep.subr.bf16.mxu0 0
      %4373 = vmatpush2.bf16.msra.mxu0 0
      %4374 = vmatprep.subr.bf16.mxu0 0
      %4375 = vmatpush2.bf16.msra.mxu0 0
      %4376 = vmatprep.subr.bf16.mxu0 0
      %4377 = vmatpush2.bf16.msra.mxu0 0
      %4378 = vmatprep.subr.bf16.mxu0 0
      %4379 = vmatpush2.bf16.msra.mxu0 0
      %4380 = vmatprep.subr.bf16.mxu0 0
      %4381 = vmatpush2.bf16.msra.mxu0 0
      %4382 = vmatprep.subr.bf16.mxu0 0
      %4383 = vmatpush2.bf16.msra.mxu0 0
      %4384 = vmatprep.subr.bf16.mxu0 0
      %4385 = vmatpush2.bf16.msra.mxu0 0
      %4386 = vmatprep.mubr.bf16.mxu0 0
      %4387 = vmatmul.mubr.bf16.gmra.mxu0 %v4343
      %v4388 = vpop.f32.mrf.mxu0
      %v4389 = vadd.f32 0.0, %v4388
      %v4390 = vpop.f32.mrf.mxu0
      %v4391 = vpop.f32.mrf.mxu0
      %v4392 = vadd.f32 0.0, %v4391
      %v4393 = vpop.f32.mrf.mxu0
      %4394 = vmatprep.mubr.bf16.mxu0 0
      %4395 = vmatmul.mubr.bf16.gmra.mxu0 %v4346
      %v4396 = vpop.f32.mrf.mxu0
      %v4397 = vadd.f32 0.0, %v4396
      %v4398 = vpop.f32.mrf.mxu0
      %v4399 = vpop.f32.mrf.mxu0
      %v4400 = vadd.f32 0.0, %v4399
      %v4401 = vpop.f32.mrf.mxu0
      %4402 = vmatprep.mubr.bf16.mxu0 0
      %4403 = vmatmul.mubr.bf16.gmra.mxu0 %v4349
      %v4404 = vpop.f32.mrf.mxu0
      %v4405 = vadd.f32 0.0, %v4404
      %v4406 = vpop.f32.mrf.mxu0
      %v4407 = vpop.f32.mrf.mxu0
      %v4408 = vadd.f32 0.0, %v4407
      %v4409 = vpop.f32.mrf.mxu0
      %4410 = vmatprep.mubr.bf16.mxu0 0
      %4411 = vmatmul.mubr.bf16.gmra.mxu0 %v4352
      %v4412 = vpop.f32.mrf.mxu0
      %v4413 = vadd.f32 0.0, %v4412
      %v4414 = vpop.f32.mrf.mxu0
      %v4415 = vpop.f32.mrf.mxu0
      %v4416 = vadd.f32 0.0, %v4415
      %v4417 = vpop.f32.mrf.mxu0
      %4418 = vdwg.mxu0
      %v4419 = vadd.f32 %v4297, %v4389
      %v4420 = vadd.f32 %v4298, %v4392
      %v4421 = vadd.f32 %v4299, %v4397
      %v4422 = vadd.f32 %v4300, %v4400
      %v4423 = vadd.f32 %v4301, %v4405
      %v4424 = vadd.f32 %v4302, %v4408
      %v4425 = vadd.f32 %v4303, %v4413
      %v4426 = vadd.f32 %v4304, %v4416
      %v4427 = vld [vmem:[%s373 + $0x8] sm:$0xf]
      %v4428 = vld [vmem:[%s373 + $0xc] sm:$0xf]
      %v4429 = vld [vmem:[%s373 + $0x10] sm:$0xf]
      %v4430 = vld [vmem:[%s373 + $0x14] sm:$0xf]
      %v4431 = vld [vmem:[%s373 + $0x18] sm:$0xf]
      %v4432 = vld [vmem:[%s373 + $0x1c] sm:$0xf]
      %v4433 = vld [vmem:[%s373 + $0x20] sm:$0xf]
      %v4434 = vld [vmem:[%s373 + $0x24] sm:$0xf]
      %v4435 = vld [vmem:[%s373 + $0x28] sm:$0x1]
      %v4436 = vsel %vm1045, %v4427, 0
      %v4437 = vsel %vm1046, %v4428, 0
      %v4438 = vsel %vm1047, %v4429, 0
      %v4439 = vsel %vm1048, %v4430, 0
      %v4440 = vsel %vm1049, %v4431, 0
      %v4441 = vsel %vm1050, %v4432, 0
      %v4442 = vsel %vm1051, %v4433, 0
      %v4443 = vsel %vm1052, %v4434, 0
      %v4444 = vsel %vm1053, %v4435, 0
      %s4445 = scalar_lea.vmem %s4, 368
      %v4446 = vld [vmem:[%s4445] sm:$0xf]
      %v4447 = vld [vmem:[%s4445 + $0x4] sm:$0xf]
      %v4448 = vld [vmem:[%s4445 + $0x8] sm:$0xf]
      %v4449 = vld [vmem:[%s4445 + $0xc] sm:$0xf]
      %v4459 = vunpack.c.l.b16 %v4436
      %v4460 = vunpack.c.l.b16 %v4437
      %v4461 = vunpack.c.l.b16 %v4438
      %v4462 = vunpack.c.l.b16 %v4439
      %v4463 = vunpack.c.l.b16 %v4440
      %v4464 = vunpack.c.l.b16 %v4441
      %v4465 = vunpack.c.l.b16 %v4442
      %v4466 = vunpack.c.l.b16 %v4443
      %v4467 = vunpack.c.l.b16 %v4444
      %v4468 = vpack.c.b16 %v4460, %v4459
      %v4469 = vpack.c.b16 %v4462, %v4461
      %v4470 = vpack.c.b16 %v4464, %v4463
      %v4471 = vpack.c.b16 %v4466, %v4465
      %v4472 = vpack.c.b16 %v4467, %v4467
      %v4474 = vshrl.u32 %v4468, 16
      %v4476 = vshll.u32 %v4468, 16
      %v4478 = vrot.slane %v4476, 1
      %v4479 = vor.u32 %v4474, %v4478
      %v4481 = vshll.u32 %v4469, 16
      %v4483 = vrot.slane %v4481, 1
      %v4484 = vsel %vm1091, %v4479, %v4483
      %v4485 = vshrl.u32 %v4469, 16
      %v4487 = vor.u32 %v4485, %v4483
      %v4489 = vshll.u32 %v4470, 16
      %v4491 = vrot.slane %v4489, 1
      %v4492 = vsel %vm1091, %v4487, %v4491
      %v4493 = vshrl.u32 %v4470, 16
      %v4495 = vor.u32 %v4493, %v4491
      %v4497 = vshll.u32 %v4471, 16
      %v4499 = vrot.slane %v4497, 1
      %v4500 = vsel %vm1091, %v4495, %v4499
      %v4501 = vshrl.u32 %v4471, 16
      %v4503 = vor.u32 %v4501, %v4499
      %v4505 = vshll.u32 %v4472, 16
      %v4507 = vrot.slane %v4505, 1
      %v4508 = vsel %vm1091, %v4503, %v4507
      %v4513 = vunpack.c.l.b16 %v4446
      %v4514 = vunpack.c.l.b16 %v4447
      %v4515 = vunpack.c.l.b16 %v4448
      %v4516 = vunpack.c.l.b16 %v4449
      %v4517 = vpack.c.b16 %v4514, %v4513
      %v4518 = vpack.c.b16 %v4516, %v4515
      %v4522 = vsel %vm695, %v4484, 0
      %v4525 = vsel %vm695, %v4492, 0
      %v4528 = vsel %vm695, %v4500, 0
      %v4531 = vsel %vm695, %v4508, 0
      %4533 = vmatprep.subr.bf16.mxu0 0
      %4534 = vmatpush1.bf16.msra.mxu0 0
      %4535 = vmatprep.subr.bf16.mxu0 0
      %4536 = vmatpush1.bf16.msra.mxu0 0
      %4537 = vmatprep.subr.bf16.mxu0 0
      %4538 = vmatpush1.bf16.msra.mxu0 0
      %4539 = vmatprep.subr.bf16.mxu0 0
      %4540 = vmatpush1.bf16.msra.mxu0 0
      %4541 = vmatprep.subr.bf16.mxu0 0
      %4542 = vmatpush1.bf16.msra.mxu0 0
      %4543 = vmatprep.subr.bf16.mxu0 0
      %4544 = vmatpush1.bf16.msra.mxu0 0
      %4545 = vmatprep.subr.bf16.mxu0 0
      %4546 = vmatpush1.bf16.msra.mxu0 %v4518
      %4547 = vmatprep.subr.bf16.mxu0 0
      %4548 = vmatpush1.bf16.msra.mxu0 %v4517
      %4549 = vmatprep.subr.bf16.mxu0 0
      %4550 = vmatpush2.bf16.msra.mxu0 0
      %4551 = vmatprep.subr.bf16.mxu0 0
      %4552 = vmatpush2.bf16.msra.mxu0 0
      %4553 = vmatprep.subr.bf16.mxu0 0
      %4554 = vmatpush2.bf16.msra.mxu0 0
      %4555 = vmatprep.subr.bf16.mxu0 0
      %4556 = vmatpush2.bf16.msra.mxu0 0
      %4557 = vmatprep.subr.bf16.mxu0 0
      %4558 = vmatpush2.bf16.msra.mxu0 0
      %4559 = vmatprep.subr.bf16.mxu0 0
      %4560 = vmatpush2.bf16.msra.mxu0 0
      %4561 = vmatprep.subr.bf16.mxu0 0
      %4562 = vmatpush2.bf16.msra.mxu0 0
      %4563 = vmatprep.subr.bf16.mxu0 0
      %4564 = vmatpush2.bf16.msra.mxu0 0
      %4565 = vmatprep.mubr.bf16.mxu0 0
      %4566 = vmatmul.mubr.bf16.gmra.mxu0 %v4522
      %v4567 = vpop.f32.mrf.mxu0
      %v4568 = vadd.f32 0.0, %v4567
      %v4569 = vpop.f32.mrf.mxu0
      %v4570 = vpop.f32.mrf.mxu0
      %v4571 = vadd.f32 0.0, %v4570
      %v4572 = vpop.f32.mrf.mxu0
      %4573 = vmatprep.mubr.bf16.mxu0 0
      %4574 = vmatmul.mubr.bf16.gmra.mxu0 %v4525
      %v4575 = vpop.f32.mrf.mxu0
      %v4576 = vadd.f32 0.0, %v4575
      %v4577 = vpop.f32.mrf.mxu0
      %v4578 = vpop.f32.mrf.mxu0
      %v4579 = vadd.f32 0.0, %v4578
      %v4580 = vpop.f32.mrf.mxu0
      %4581 = vmatprep.mubr.bf16.mxu0 0
      %4582 = vmatmul.mubr.bf16.gmra.mxu0 %v4528
      %v4583 = vpop.f32.mrf.mxu0
      %v4584 = vadd.f32 0.0, %v4583
      %v4585 = vpop.f32.mrf.mxu0
      %v4586 = vpop.f32.mrf.mxu0
      %v4587 = vadd.f32 0.0, %v4586
      %v4588 = vpop.f32.mrf.mxu0
      %4589 = vmatprep.mubr.bf16.mxu0 0
      %4590 = vmatmul.mubr.bf16.gmra.mxu0 %v4531
      %v4591 = vpop.f32.mrf.mxu0
      %v4592 = vadd.f32 0.0, %v4591
      %v4593 = vpop.f32.mrf.mxu0
      %v4594 = vpop.f32.mrf.mxu0
      %v4595 = vadd.f32 0.0, %v4594
      %v4596 = vpop.f32.mrf.mxu0
      %4597 = vdwg.mxu0
      %v4598 = vadd.f32 %v4419, %v4568
      %v4599 = vadd.f32 %v4420, %v4571
      %v4600 = vadd.f32 %v4421, %v4576
      %v4601 = vadd.f32 %v4422, %v4579
      %v4602 = vadd.f32 %v4423, %v4584
      %v4603 = vadd.f32 %v4424, %v4587
      %v4604 = vadd.f32 %v4425, %v4592
      %v4605 = vadd.f32 %v4426, %v4595
      %v4606 = vld [vmem:[%s373 + $0x8] sm:$0x8]
      %v4607 = vld [vmem:[%s373 + $0x28] sm:$0xf]
      %v4608 = vsel %vm636, %v4606, 0
      %v4609 = vsel %vm637, %v4428, 0
      %v4610 = vsel %vm638, %v4429, 0
      %v4611 = vsel %vm639, %v4430, 0
      %v4612 = vsel %vm640, %v4431, 0
      %v4613 = vsel %vm641, %v4432, 0
      %v4614 = vsel %vm642, %v4433, 0
      %v4615 = vsel %vm643, %v4434, 0
      %v4616 = vsel %vm644, %v4607, 0
      %s4617 = scalar_lea.vmem %s4, 384
      %v4618 = vld [vmem:[%s4617] sm:$0xf]
      %v4619 = vld [vmem:[%s4617 + $0x4] sm:$0xf]
      %v4620 = vld [vmem:[%s4617 + $0x8] sm:$0xf]
      %v4621 = vld [vmem:[%s4617 + $0xc] sm:$0xf]
      %v4631 = vunpack.c.l.b16 %v4608
      %v4632 = vunpack.c.l.b16 %v4609
      %v4633 = vunpack.c.l.b16 %v4610
      %v4634 = vunpack.c.l.b16 %v4611
      %v4635 = vunpack.c.l.b16 %v4612
      %v4636 = vunpack.c.l.b16 %v4613
      %v4637 = vunpack.c.l.b16 %v4614
      %v4638 = vunpack.c.l.b16 %v4615
      %v4639 = vunpack.c.l.b16 %v4616
      %v4640 = vpack.c.b16 %v4632, %v4631
      %v4641 = vpack.c.b16 %v4634, %v4633
      %v4642 = vpack.c.b16 %v4636, %v4635
      %v4643 = vpack.c.b16 %v4638, %v4637
      %v4644 = vpack.c.b16 %v4639, %v4639
      %v4646 = vshrl.u32 %v4640, 16
      %v4648 = vrot.slane %v4646, 3
      %v4649 = vshll.u32 %v4640, 16
      %v4651 = vrot.slane %v4649, 4
      %v4652 = vor.u32 %v4648, %v4651
      %v4654 = vshrl.u32 %v4641, 16
      %v4656 = vrot.slane %v4654, 3
      %v4657 = vshll.u32 %v4641, 16
      %v4659 = vrot.slane %v4657, 4
      %v4660 = vor.u32 %v4656, %v4659
      %v4661 = vsel %vm796, %v4652, %v4660
      %v4663 = vshrl.u32 %v4642, 16
      %v4665 = vrot.slane %v4663, 3
      %v4666 = vshll.u32 %v4642, 16
      %v4668 = vrot.slane %v4666, 4
      %v4669 = vor.u32 %v4665, %v4668
      %v4670 = vsel %vm796, %v4660, %v4669
      %v4672 = vshrl.u32 %v4643, 16
      %v4674 = vrot.slane %v4672, 3
      %v4675 = vshll.u32 %v4643, 16
      %v4677 = vrot.slane %v4675, 4
      %v4678 = vor.u32 %v4674, %v4677
      %v4679 = vsel %vm796, %v4669, %v4678
      %v4681 = vshrl.u32 %v4644, 16
      %v4683 = vrot.slane %v4681, 3
      %v4684 = vshll.u32 %v4644, 16
      %v4686 = vrot.slane %v4684, 4
      %v4687 = vor.u32 %v4683, %v4686
      %v4688 = vsel %vm796, %v4678, %v4687
      %v4693 = vunpack.c.l.b16 %v4618
      %v4694 = vunpack.c.l.b16 %v4619
      %v4695 = vunpack.c.l.b16 %v4620
      %v4696 = vunpack.c.l.b16 %v4621
      %v4697 = vpack.c.b16 %v4694, %v4693
      %v4698 = vpack.c.b16 %v4696, %v4695
      %v4702 = vsel %vm695, %v4661, 0
      %v4705 = vsel %vm695, %v4670, 0
      %v4708 = vsel %vm695, %v4679, 0
      %v4711 = vsel %vm695, %v4688, 0
      %4713 = vmatprep.subr.bf16.mxu0 0
      %4714 = vmatpush1.bf16.msra.mxu0 0
      %4715 = vmatprep.subr.bf16.mxu0 0
      %4716 = vmatpush1.bf16.msra.mxu0 0
      %4717 = vmatprep.subr.bf16.mxu0 0
      %4718 = vmatpush1.bf16.msra.mxu0 0
      %4719 = vmatprep.subr.bf16.mxu0 0
      %4720 = vmatpush1.bf16.msra.mxu0 0
      %4721 = vmatprep.subr.bf16.mxu0 0
      %4722 = vmatpush1.bf16.msra.mxu0 0
      %4723 = vmatprep.subr.bf16.mxu0 0
      %4724 = vmatpush1.bf16.msra.mxu0 0
      %4725 = vmatprep.subr.bf16.mxu0 0
      %4726 = vmatpush1.bf16.msra.mxu0 %v4698
      %4727 = vmatprep.subr.bf16.mxu0 0
      %4728 = vmatpush1.bf16.msra.mxu0 %v4697
      %4729 = vmatprep.subr.bf16.mxu0 0
      %4730 = vmatpush2.bf16.msra.mxu0 0
      %4731 = vmatprep.subr.bf16.mxu0 0
      %4732 = vmatpush2.bf16.msra.mxu0 0
      %4733 = vmatprep.subr.bf16.mxu0 0
      %4734 = vmatpush2.bf16.msra.mxu0 0
      %4735 = vmatprep.subr.bf16.mxu0 0
      %4736 = vmatpush2.bf16.msra.mxu0 0
      %4737 = vmatprep.subr.bf16.mxu0 0
      %4738 = vmatpush2.bf16.msra.mxu0 0
      %4739 = vmatprep.subr.bf16.mxu0 0
      %4740 = vmatpush2.bf16.msra.mxu0 0
      %4741 = vmatprep.subr.bf16.mxu0 0
      %4742 = vmatpush2.bf16.msra.mxu0 0
      %4743 = vmatprep.subr.bf16.mxu0 0
      %4744 = vmatpush2.bf16.msra.mxu0 0
      %4745 = vmatprep.mubr.bf16.mxu0 0
      %4746 = vmatmul.mubr.bf16.gmra.mxu0 %v4702
      %v4747 = vpop.f32.mrf.mxu0
      %v4748 = vadd.f32 0.0, %v4747
      %v4749 = vpop.f32.mrf.mxu0
      %v4750 = vpop.f32.mrf.mxu0
      %v4751 = vadd.f32 0.0, %v4750
      %v4752 = vpop.f32.mrf.mxu0
      %4753 = vmatprep.mubr.bf16.mxu0 0
      %4754 = vmatmul.mubr.bf16.gmra.mxu0 %v4705
      %v4755 = vpop.f32.mrf.mxu0
      %v4756 = vadd.f32 0.0, %v4755
      %v4757 = vpop.f32.mrf.mxu0
      %v4758 = vpop.f32.mrf.mxu0
      %v4759 = vadd.f32 0.0, %v4758
      %v4760 = vpop.f32.mrf.mxu0
      %4761 = vmatprep.mubr.bf16.mxu0 0
      %4762 = vmatmul.mubr.bf16.gmra.mxu0 %v4708
      %v4763 = vpop.f32.mrf.mxu0
      %v4764 = vadd.f32 0.0, %v4763
      %v4765 = vpop.f32.mrf.mxu0
      %v4766 = vpop.f32.mrf.mxu0
      %v4767 = vadd.f32 0.0, %v4766
      %v4768 = vpop.f32.mrf.mxu0
      %4769 = vmatprep.mubr.bf16.mxu0 0
      %4770 = vmatmul.mubr.bf16.gmra.mxu0 %v4711
      %v4771 = vpop.f32.mrf.mxu0
      %v4772 = vadd.f32 0.0, %v4771
      %v4773 = vpop.f32.mrf.mxu0
      %v4774 = vpop.f32.mrf.mxu0
      %v4775 = vadd.f32 0.0, %v4774
      %v4776 = vpop.f32.mrf.mxu0
      %4777 = vdwg.mxu0
      %v4778 = vadd.f32 %v4598, %v4748
      %v4779 = vadd.f32 %v4599, %v4751
      %v4780 = vadd.f32 %v4600, %v4756
      %v4781 = vadd.f32 %v4601, %v4759
      %v4782 = vadd.f32 %v4602, %v4764
      %v4783 = vadd.f32 %v4603, %v4767
      %v4784 = vadd.f32 %v4604, %v4772
      %v4785 = vadd.f32 %v4605, %v4775
      %s4786 = scalar_lea.vmem %s4, 400
      %v4787 = vld [vmem:[%s4786] sm:$0xf]
      %v4788 = vld [vmem:[%s4786 + $0x4] sm:$0xf]
      %v4789 = vld [vmem:[%s4786 + $0x8] sm:$0xf]
      %v4790 = vld [vmem:[%s4786 + $0xc] sm:$0xf]
      %v4799 = vunpack.c.l.b16 %v4428
      %v4800 = vunpack.c.l.b16 %v4429
      %v4801 = vunpack.c.l.b16 %v4430
      %v4802 = vunpack.c.l.b16 %v4431
      %v4803 = vunpack.c.l.b16 %v4432
      %v4804 = vunpack.c.l.b16 %v4433
      %v4805 = vunpack.c.l.b16 %v4434
      %v4806 = vunpack.c.l.b16 %v4607
      %v4807 = vpack.c.b16 %v4800, %v4799
      %v4808 = vpack.c.b16 %v4802, %v4801
      %v4809 = vpack.c.b16 %v4804, %v4803
      %v4810 = vpack.c.b16 %v4806, %v4805
      %v4815 = vunpack.c.l.b16 %v4787
      %v4816 = vunpack.c.l.b16 %v4788
      %v4817 = vunpack.c.l.b16 %v4789
      %v4818 = vunpack.c.l.b16 %v4790
      %v4819 = vpack.c.b16 %v4816, %v4815
      %v4820 = vpack.c.b16 %v4818, %v4817
      %v4824 = vsel %vm695, %v4807, 0
      %v4827 = vsel %vm695, %v4808, 0
      %v4830 = vsel %vm695, %v4809, 0
      %v4833 = vsel %vm695, %v4810, 0
      %4835 = vmatprep.subr.bf16.mxu0 0
      %4836 = vmatpush1.bf16.msra.mxu0 0
      %4837 = vmatprep.subr.bf16.mxu0 0
      %4838 = vmatpush1.bf16.msra.mxu0 0
      %4839 = vmatprep.subr.bf16.mxu0 0
      %4840 = vmatpush1.bf16.msra.mxu0 0
      %4841 = vmatprep.subr.bf16.mxu0 0
      %4842 = vmatpush1.bf16.msra.mxu0 0
      %4843 = vmatprep.subr.bf16.mxu0 0
      %4844 = vmatpush1.bf16.msra.mxu0 0
      %4845 = vmatprep.subr.bf16.mxu0 0
      %4846 = vmatpush1.bf16.msra.mxu0 0
      %4847 = vmatprep.subr.bf16.mxu0 0
      %4848 = vmatpush1.bf16.msra.mxu0 %v4820
      %4849 = vmatprep.subr.bf16.mxu0 0
      %4850 = vmatpush1.bf16.msra.mxu0 %v4819
      %4851 = vmatprep.subr.bf16.mxu0 0
      %4852 = vmatpush2.bf16.msra.mxu0 0
      %4853 = vmatprep.subr.bf16.mxu0 0
      %4854 = vmatpush2.bf16.msra.mxu0 0
      %4855 = vmatprep.subr.bf16.mxu0 0
      %4856 = vmatpush2.bf16.msra.mxu0 0
      %4857 = vmatprep.subr.bf16.mxu0 0
      %4858 = vmatpush2.bf16.msra.mxu0 0
      %4859 = vmatprep.subr.bf16.mxu0 0
      %4860 = vmatpush2.bf16.msra.mxu0 0
      %4861 = vmatprep.subr.bf16.mxu0 0
      %4862 = vmatpush2.bf16.msra.mxu0 0
      %4863 = vmatprep.subr.bf16.mxu0 0
      %4864 = vmatpush2.bf16.msra.mxu0 0
      %4865 = vmatprep.subr.bf16.mxu0 0
      %4866 = vmatpush2.bf16.msra.mxu0 0
      %4867 = vmatprep.mubr.bf16.mxu0 0
      %4868 = vmatmul.mubr.bf16.gmra.mxu0 %v4824
      %v4869 = vpop.f32.mrf.mxu0
      %v4870 = vadd.f32 0.0, %v4869
      %v4871 = vpop.f32.mrf.mxu0
      %v4872 = vpop.f32.mrf.mxu0
      %v4873 = vadd.f32 0.0, %v4872
      %v4874 = vpop.f32.mrf.mxu0
      %4875 = vmatprep.mubr.bf16.mxu0 0
      %4876 = vmatmul.mubr.bf16.gmra.mxu0 %v4827
      %v4877 = vpop.f32.mrf.mxu0
      %v4878 = vadd.f32 0.0, %v4877
      %v4879 = vpop.f32.mrf.mxu0
      %v4880 = vpop.f32.mrf.mxu0
      %v4881 = vadd.f32 0.0, %v4880
      %v4882 = vpop.f32.mrf.mxu0
      %4883 = vmatprep.mubr.bf16.mxu0 0
      %4884 = vmatmul.mubr.bf16.gmra.mxu0 %v4830
      %v4885 = vpop.f32.mrf.mxu0
      %v4886 = vadd.f32 0.0, %v4885
      %v4887 = vpop.f32.mrf.mxu0
      %v4888 = vpop.f32.mrf.mxu0
      %v4889 = vadd.f32 0.0, %v4888
      %v4890 = vpop.f32.mrf.mxu0
      %4891 = vmatprep.mubr.bf16.mxu0 0
      %4892 = vmatmul.mubr.bf16.gmra.mxu0 %v4833
      %v4893 = vpop.f32.mrf.mxu0
      %v4894 = vadd.f32 0.0, %v4893
      %v4895 = vpop.f32.mrf.mxu0
      %v4896 = vpop.f32.mrf.mxu0
      %v4897 = vadd.f32 0.0, %v4896
      %v4898 = vpop.f32.mrf.mxu0
      %4899 = vdwg.mxu0
      %v4900 = vadd.f32 %v4778, %v4870
      %v4901 = vadd.f32 %v4779, %v4873
      %v4902 = vadd.f32 %v4780, %v4878
      %v4903 = vadd.f32 %v4781, %v4881
      %v4904 = vadd.f32 %v4782, %v4886
      %v4905 = vadd.f32 %v4783, %v4889
      %v4906 = vadd.f32 %v4784, %v4894
      %v4907 = vadd.f32 %v4785, %v4897
      %v4908 = vld [vmem:[%s373 + $0xc] sm:$0xf]
      %v4909 = vld [vmem:[%s373 + $0x10] sm:$0xf]
      %v4910 = vld [vmem:[%s373 + $0x14] sm:$0xf]
      %v4911 = vld [vmem:[%s373 + $0x18] sm:$0xf]
      %v4912 = vld [vmem:[%s373 + $0x1c] sm:$0xf]
      %v4913 = vld [vmem:[%s373 + $0x20] sm:$0xf]
      %v4914 = vld [vmem:[%s373 + $0x24] sm:$0xf]
      %v4915 = vld [vmem:[%s373 + $0x28] sm:$0xf]
      %v4916 = vld [vmem:[%s373 + $0x2c] sm:$0x1]
      %v4917 = vsel %vm1045, %v4908, 0
      %v4918 = vsel %vm1046, %v4909, 0
      %v4919 = vsel %vm1047, %v4910, 0
      %v4920 = vsel %vm1048, %v4911, 0
      %v4921 = vsel %vm1049, %v4912, 0
      %v4922 = vsel %vm1050, %v4913, 0
      %v4923 = vsel %vm1051, %v4914, 0
      %v4924 = vsel %vm1052, %v4915, 0
      %v4925 = vsel %vm1053, %v4916, 0
      %s4926 = scalar_lea.vmem %s4, 416
      %v4927 = vld [vmem:[%s4926] sm:$0xf]
      %v4928 = vld [vmem:[%s4926 + $0x4] sm:$0xf]
      %v4929 = vld [vmem:[%s4926 + $0x8] sm:$0xf]
      %v4930 = vld [vmem:[%s4926 + $0xc] sm:$0xf]
      %v4940 = vunpack.c.l.b16 %v4917
      %v4941 = vunpack.c.l.b16 %v4918
      %v4942 = vunpack.c.l.b16 %v4919
      %v4943 = vunpack.c.l.b16 %v4920
      %v4944 = vunpack.c.l.b16 %v4921
      %v4945 = vunpack.c.l.b16 %v4922
      %v4946 = vunpack.c.l.b16 %v4923
      %v4947 = vunpack.c.l.b16 %v4924
      %v4948 = vunpack.c.l.b16 %v4925
      %v4949 = vpack.c.b16 %v4941, %v4940
      %v4950 = vpack.c.b16 %v4943, %v4942
      %v4951 = vpack.c.b16 %v4945, %v4944
      %v4952 = vpack.c.b16 %v4947, %v4946
      %v4953 = vpack.c.b16 %v4948, %v4948
      %v4955 = vshrl.u32 %v4949, 16
      %v4957 = vshll.u32 %v4949, 16
      %v4959 = vrot.slane %v4957, 1
      %v4960 = vor.u32 %v4955, %v4959
      %v4962 = vshll.u32 %v4950, 16
      %v4964 = vrot.slane %v4962, 1
      %v4965 = vsel %vm1091, %v4960, %v4964
      %v4966 = vshrl.u32 %v4950, 16
      %v4968 = vor.u32 %v4966, %v4964
      %v4970 = vshll.u32 %v4951, 16
      %v4972 = vrot.slane %v4970, 1
      %v4973 = vsel %vm1091, %v4968, %v4972
      %v4974 = vshrl.u32 %v4951, 16
      %v4976 = vor.u32 %v4974, %v4972
      %v4978 = vshll.u32 %v4952, 16
      %v4980 = vrot.slane %v4978, 1
      %v4981 = vsel %vm1091, %v4976, %v4980
      %v4982 = vshrl.u32 %v4952, 16
      %v4984 = vor.u32 %v4982, %v4980
      %v4986 = vshll.u32 %v4953, 16
      %v4988 = vrot.slane %v4986, 1
      %v4989 = vsel %vm1091, %v4984, %v4988
      %v4994 = vunpack.c.l.b16 %v4927
      %v4995 = vunpack.c.l.b16 %v4928
      %v4996 = vunpack.c.l.b16 %v4929
      %v4997 = vunpack.c.l.b16 %v4930
      %v4998 = vpack.c.b16 %v4995, %v4994
      %v4999 = vpack.c.b16 %v4997, %v4996
      %v5003 = vsel %vm695, %v4965, 0
      %v5006 = vsel %vm695, %v4973, 0
      %v5009 = vsel %vm695, %v4981, 0
      %v5012 = vsel %vm695, %v4989, 0
      %5014 = vmatprep.subr.bf16.mxu0 0
      %5015 = vmatpush1.bf16.msra.mxu0 0
      %5016 = vmatprep.subr.bf16.mxu0 0
      %5017 = vmatpush1.bf16.msra.mxu0 0
      %5018 = vmatprep.subr.bf16.mxu0 0
      %5019 = vmatpush1.bf16.msra.mxu0 0
      %5020 = vmatprep.subr.bf16.mxu0 0
      %5021 = vmatpush1.bf16.msra.mxu0 0
      %5022 = vmatprep.subr.bf16.mxu0 0
      %5023 = vmatpush1.bf16.msra.mxu0 0
      %5024 = vmatprep.subr.bf16.mxu0 0
      %5025 = vmatpush1.bf16.msra.mxu0 0
      %5026 = vmatprep.subr.bf16.mxu0 0
      %5027 = vmatpush1.bf16.msra.mxu0 %v4999
      %5028 = vmatprep.subr.bf16.mxu0 0
      %5029 = vmatpush1.bf16.msra.mxu0 %v4998
      %5030 = vmatprep.subr.bf16.mxu0 0
      %5031 = vmatpush2.bf16.msra.mxu0 0
      %5032 = vmatprep.subr.bf16.mxu0 0
      %5033 = vmatpush2.bf16.msra.mxu0 0
      %5034 = vmatprep.subr.bf16.mxu0 0
      %5035 = vmatpush2.bf16.msra.mxu0 0
      %5036 = vmatprep.subr.bf16.mxu0 0
      %5037 = vmatpush2.bf16.msra.mxu0 0
      %5038 = vmatprep.subr.bf16.mxu0 0
      %5039 = vmatpush2.bf16.msra.mxu0 0
      %5040 = vmatprep.subr.bf16.mxu0 0
      %5041 = vmatpush2.bf16.msra.mxu0 0
      %5042 = vmatprep.subr.bf16.mxu0 0
      %5043 = vmatpush2.bf16.msra.mxu0 0
      %5044 = vmatprep.subr.bf16.mxu0 0
      %5045 = vmatpush2.bf16.msra.mxu0 0
      %5046 = vmatprep.mubr.bf16.mxu0 0
      %5047 = vmatmul.mubr.bf16.gmra.mxu0 %v5003
      %v5048 = vpop.f32.mrf.mxu0
      %v5049 = vadd.f32 0.0, %v5048
      %v5050 = vpop.f32.mrf.mxu0
      %v5051 = vpop.f32.mrf.mxu0
      %v5052 = vadd.f32 0.0, %v5051
      %v5053 = vpop.f32.mrf.mxu0
      %5054 = vmatprep.mubr.bf16.mxu0 0
      %5055 = vmatmul.mubr.bf16.gmra.mxu0 %v5006
      %v5056 = vpop.f32.mrf.mxu0
      %v5057 = vadd.f32 0.0, %v5056
      %v5058 = vpop.f32.mrf.mxu0
      %v5059 = vpop.f32.mrf.mxu0
      %v5060 = vadd.f32 0.0, %v5059
      %v5061 = vpop.f32.mrf.mxu0
      %5062 = vmatprep.mubr.bf16.mxu0 0
      %5063 = vmatmul.mubr.bf16.gmra.mxu0 %v5009
      %v5064 = vpop.f32.mrf.mxu0
      %v5065 = vadd.f32 0.0, %v5064
      %v5066 = vpop.f32.mrf.mxu0
      %v5067 = vpop.f32.mrf.mxu0
      %v5068 = vadd.f32 0.0, %v5067
      %v5069 = vpop.f32.mrf.mxu0
      %5070 = vmatprep.mubr.bf16.mxu0 0
      %5071 = vmatmul.mubr.bf16.gmra.mxu0 %v5012
      %v5072 = vpop.f32.mrf.mxu0
      %v5073 = vadd.f32 0.0, %v5072
      %v5074 = vpop.f32.mrf.mxu0
      %v5075 = vpop.f32.mrf.mxu0
      %v5076 = vadd.f32 0.0, %v5075
      %v5077 = vpop.f32.mrf.mxu0
      %5078 = vdwg.mxu0
      %v5079 = vadd.f32 %v4900, %v5049
      %v5080 = vadd.f32 %v4901, %v5052
      %v5081 = vadd.f32 %v4902, %v5057
      %v5082 = vadd.f32 %v4903, %v5060
      %v5083 = vadd.f32 %v4904, %v5065
      %v5084 = vadd.f32 %v4905, %v5068
      %v5085 = vadd.f32 %v4906, %v5073
      %v5086 = vadd.f32 %v4907, %v5076
      %v5087 = vld [vmem:[%s5] sm:$0x1]
      %v5089 = vlaneseq
      %v5090 = vshrl.u32 %v5089, 7
      %v5091 = vsub.s32 0, %v5090
      %v5092 = vrot.slane %v5087, %v5091
      %v5094 = vadd.f32 %v5079, %v5092
      %v5095 = vadd.f32 %v5080, %v5092
      %v5096 = vadd.f32 %v5081, %v5092
      %v5097 = vadd.f32 %v5082, %v5092
      %v5098 = vadd.f32 %v5083, %v5092
      %v5099 = vadd.f32 %v5084, %v5092
      %v5100 = vadd.f32 %v5085, %v5092
      %v5101 = vadd.f32 %v5086, %v5092
      %s5102 = sld [smem:[#allocation2]]
      %vm5103 = vcmp.ge.f32.partialorder %v5094, 0.0
      %vm5104 = vcmp.ge.f32.partialorder %v5095, 0.0
      %vm5105 = vcmp.ge.f32.partialorder %v5096, 0.0
      %vm5106 = vcmp.ge.f32.partialorder %v5097, 0.0
      %vm5107 = vcmp.ge.f32.partialorder %v5098, 0.0
      %vm5108 = vcmp.ge.f32.partialorder %v5099, 0.0
      %vm5109 = vcmp.ge.f32.partialorder %v5100, 0.0
      %vm5110 = vcmp.ge.f32.partialorder %v5101, 0.0
      %v5111 = vstv %s5102
      %v5112 = vmul.f32 %v5111, %v5094
      %v5113 = vmul.f32 %v5111, %v5095
      %v5114 = vmul.f32 %v5111, %v5096
      %v5115 = vmul.f32 %v5111, %v5097
      %v5116 = vmul.f32 %v5111, %v5098
      %v5117 = vmul.f32 %v5111, %v5099
      %v5118 = vmul.f32 %v5111, %v5100
      %v5119 = vmul.f32 %v5111, %v5101
      %v5120 = vsel %vm5103, %v5094, %v5112
      %v5121 = vsel %vm5104, %v5095, %v5113
      %v5122 = vsel %vm5105, %v5096, %v5114
      %v5123 = vsel %vm5106, %v5097, %v5115
      %v5124 = vsel %vm5107, %v5098, %v5116
      %v5125 = vsel %vm5108, %v5099, %v5117
      %v5126 = vsel %vm5109, %v5100, %v5118
      %v5127 = vsel %vm5110, %v5101, %v5119
      %v5128 = vpack.c.bf16 %v5121, %v5120
      %v5129 = vpack.c.bf16 %v5123, %v5122
      %v5130 = vpack.c.bf16 %v5125, %v5124
      %v5131 = vpack.c.bf16 %v5127, %v5126
      %v5136 = vunpack.c.l.b16 %v5128
      %v5137 = vunpack.c.h.b16 %v5128
      %v5138 = vunpack.c.l.b16 %v5129
      %v5139 = vunpack.c.h.b16 %v5129
      %v5140 = vunpack.c.l.b16 %v5130
      %v5141 = vunpack.c.h.b16 %v5130
      %v5142 = vunpack.c.l.b16 %v5131
      %v5143 = vunpack.c.h.b16 %v5131
      %v5144 = vpack.c.b16 %v5136, %v5136
      %v5145 = vpack.c.b16 %v5137, %v5137
      %v5146 = vpack.c.b16 %v5138, %v5138
      %v5147 = vpack.c.b16 %v5139, %v5139
      %v5148 = vpack.c.b16 %v5140, %v5140
      %v5149 = vpack.c.b16 %v5141, %v5141
      %v5150 = vpack.c.b16 %v5142, %v5142
      %v5151 = vpack.c.b16 %v5143, %v5143
      %vm5160 = vcmask 257024
      %5161 = vst.msk [vmem:[%s387] sm:$0xf] %vm5160, %v5144
      %5162 = vst.msk [vmem:[%s387 + $0x4] sm:$0xf] %vm5160, %v5145
      %5163 = vst.msk [vmem:[%s387 + $0x8] sm:$0xf] %vm5160, %v5146
      %5164 = vst.msk [vmem:[%s387 + $0xc] sm:$0xf] %vm5160, %v5147
      %5165 = vst.msk [vmem:[%s387 + $0x10] sm:$0xf] %vm5160, %v5148
      %5166 = vst.msk [vmem:[%s387 + $0x14] sm:$0xf] %vm5160, %v5149
      %5167 = vst.msk [vmem:[%s387 + $0x18] sm:$0xf] %vm5160, %v5150
      %5168 = vst.msk [vmem:[%s387 + $0x1c] sm:$0xf] %vm5160, %v5151
      %s5169 = smul.u32 8, %s25
      %p5170 = scmp.lt.s32.totalorder %s23, 1
      %s5171 = scalar_select %p5170, %s23, 1
      %p5172 = scmp.lt.s32.totalorder %s24, 7
      %s5173 = scalar_select %p5172, %s24, 7
      %p5174 = scmp.lt.s32.totalorder %s5169, 7
      %s5175 = scalar_select %p5174, %s5169, 7
      %s5176 = smul.addr %s5173, 8
      %s5177 = sadd.s32 %s5175, %s5176
      %s5178 = smul.addr %s5171, 64
      %s5179 = sadd.s32 %s5177, %s5178
      %s5180 = smul.addr %s5179, 4
      %s5181 = scalar_lea.vmem %s6, %s5180
      // Predicated region
      $region45: #{senet_bottleneck_pallas.5} parent=43 // pred_check
        %p5182 = pneg %p210
      $region46: #{senet_bottleneck_pallas.5} parent=43 // pred_check_branch
        %5184 = sbr.rel (%p5182) target = $region48
      $region47: #{senet_bottleneck_pallas.5} parent=43 // pred_region
        %s5185 = smul.u32 8, %s25
      $region48: #{senet_bottleneck_pallas.5} parent=43 // pred_fallthru
        _
    $region44: #{senet_bottleneck_pallas.5} parent=5 // pred_fallthru
      _
    %p5186 = scmp.le.s32.totalorder 2, %s13
    // Predicated region
    $region49: #{senet_bottleneck_pallas.5} parent=5 // pred_check
      %p5187 = pneg %p5186
    $region50: #{senet_bottleneck_pallas.5} parent=5 // pred_check_branch
      %5189 = sbr.rel (%p5187) target = $region52
    $region51: #{senet_bottleneck_pallas.5} parent=5 // pred_region
      %s5190 = ssub.s32 %s13, 2
      // Predicated region
      $region53: #{senet_bottleneck_pallas.5} parent=51 // pred_check
        %p5191 = pneg %p216
      $region54: #{senet_bottleneck_pallas.5} parent=51 // pred_check_branch
        %5193 = sbr.rel (%p5191) target = $region56
      $region55: #{senet_bottleneck_pallas.5} parent=51 // pred_region
        %s5194 = smul.u32 8, %s28
        %p5195 = scmp.lt.s32.totalorder %s26, 1
        %s5196 = scalar_select %p5195, %s26, 1
        %p5197 = scmp.lt.s32.totalorder %s27, 7
        %s5198 = scalar_select %p5197, %s27, 7
        %p5199 = scmp.lt.s32.totalorder %s5194, 7
        %s5200 = scalar_select %p5199, %s5194, 7
        %s5201 = smul.addr %s5198, 8
        %s5202 = sadd.s32 %s5200, %s5201
        %s5203 = smul.addr %s5196, 64
        %s5204 = sadd.s32 %s5202, %s5203
        %s5205 = smul.addr %s5204, 4
        %s5206 = scalar_lea.vmem %s6, %s5205
      $region56: #{senet_bottleneck_pallas.5} parent=51 // pred_fallthru
        _
    $region52: #{senet_bottleneck_pallas.5} parent=5 // pred_fallthru
      _
  $region6: #{senet_bottleneck_pallas.5} parent=0 // loop_footer
    %s17 = sadd.s32 1, %s13
  $region7: #{senet_bottleneck_pallas.5} parent=0 // loop_footer_branch
    %12 = sbr.rel target = $region3
  $region8: #{senet_bottleneck_pallas.5} parent=0 // loop_exit
    _

</llo_original>
